<compile_context>
chip_gen: v6e
topology: v6e:2x2x1
jax: 0.10.0
libtpu: 0.0.40
codegen_flags: <defaults>
</compile_context>

<pallas_src>
import functools
import math

import jax
import jax.numpy as jnp
import numpy as np
from jax import lax
from jax.experimental import pallas as pl
from jax.experimental.pallas import tpu as pltpu

# ----------------------------- configuration -------------------------------
MEMORY_SLOTS = 8          # S (seq length of the memory)
KEY_SIZE = 2048           # key_size -> all_head_size = 2048 (required by LayerNorm(2048))
VALUE_SIZE = 32           # unused in forward (only feeds the unused qkv_projector)
N_HEADS = 8               # H
HEAD_SIZE = KEY_SIZE // N_HEADS          # dh = 256
ALL_HEAD_SIZE = N_HEADS * HEAD_SIZE      # 2048
PROJ_SIZE = 2048                         # input dim of query/key/value Linears
LN_EPS = 1e-5
BATCH = 2
HEADS_PER_STEP = 2                       # grid = H // 2 = 4 (even -> balanced on v7x)
WEIGHT_DTYPE = jnp.bfloat16              # halves the dominant HBM weight stream


# ------------------------------ Pallas kernel -------------------------------
def attn_kernel(q_ref, k_ref, v_ref, w_ref, b_ref, o_ref, *,
                scale, batch, slots, head_size, heads_per_step):
    # q/k/v refs: [B*S, D] f32
    # w_ref:      [heads_per_step, D, 3*dh] bf16, columns packed as [Wq | Wk | Wv]
    # b_ref:      [heads_per_step, 1, 3*dh] f32
    # o_ref:      [B*S, heads_per_step*dh]  (this step's lane-dense column slice)
    dh = head_size
    bs = batch * slots

    for hh in range(heads_per_step):          # tiny static unroll (2 heads)
        def proj(x_ref, col):
            # static, lane-aligned 256-wide slice of the packed weight slab;
            # weights upcast in-vreg (HBM/VMEM stream stays bf16), f32 accumulate.
            w = w_ref[hh, :, col * dh:(col + 1) * dh].astype(jnp.float32)   # [D, dh]
            b = b_ref[hh, :, col * dh:(col + 1) * dh]                       # [1, dh]
            return jnp.dot(x_ref[...], w, preferred_element_type=jnp.float32) + b

        qh = proj(q_ref, 0).reshape(batch, slots, dh)                       # [B, S, dh]
        kh = proj(k_ref, 1).reshape(batch, slots, dh)
        vh = proj(v_ref, 2).reshape(batch, slots, dh)

        # scaled dot-product attention, batched over B in one shot
        s = jnp.einsum("bqd,bkd->bqk", qh, kh,
                       preferred_element_type=jnp.float32) * scale          # [B, S, S]
        m = jnp.max(s, axis=-1, keepdims=True)
        e = jnp.exp(s - m)
        p = e / jnp.sum(e, axis=-1, keepdims=True)     # exact division (correctness feedback)
        ctx = jnp.einsum("bqk,bkd->bqd", p, vh,
                         preferred_element_type=jnp.float32)                # [B, S, dh]

        o_ref[:, hh * dh:(hh + 1) * dh] = ctx.reshape(bs, dh).astype(o_ref.dtype)


# -------------------------- parameter preparation ---------------------------
def prepare_params(params, weight_dtype=WEIGHT_DTYPE):
    """One-time repack of torch-layout params into kernel-friendly layouts.

    nn.Linear stores weight as [out, in]; per head h we want Wh[i, c] = W[h*dh + c, i]
    so the kernel computes x @ Wh.  Wq/Wk/Wv are concatenated head-major into a single
    [H, D, 3*dh] slab (one contiguous DMA per head pair) and cast to bf16; biases are
    packed f32 [H, 1, 3*dh].  Runs once at setup, NOT per forward call.
    """
    D, H, dh = PROJ_SIZE, N_HEADS, HEAD_SIZE

    def head_major(w):                    # [all_head, D] -> [H, D, dh]
        return jnp.transpose(w.reshape(H, dh, D), (0, 2, 1))

    w_qkv = jnp.concatenate(
        [head_major(params["wq"]), head_major(params["wk"]), head_major(params["wv"])],
        axis=-1).astype(weight_dtype)                                   # [H, D, 3*dh]
    b_qkv = jnp.concatenate(
        [params["bq"].reshape(H, 1, dh),
         params["bk"].reshape(H, 1, dh),
         params["bv"].reshape(H, 1, dh)],
        axis=-1).astype(jnp.float32)                                    # [H, 1, 3*dh]

    return {
        "w_qkv": w_qkv,
        "b_qkv": b_qkv,
        "ln_gamma": params["ln_gamma"].reshape(1, D),
        "ln_beta": params["ln_beta"].reshape(1, D),
    }


# ------------------------------- forward ------------------------------------
@jax.jit
def mhdpa_forward(q, k, v, kp):
    B, S, D = q.shape
    H, dh = N_HEADS, HEAD_SIZE
    BS = B * S
    G = H // HEADS_PER_STEP
    scale = 1.0 / math.sqrt(dh)

    # free (contiguous) flatten so the kernel works on 2-D slabs
    q2 = q.reshape(BS, D)
    k2 = k.reshape(BS, D)
    v2 = v.reshape(BS, D)

    ctx = pl.pallas_call(
        functools.partial(attn_kernel, scale=scale, batch=B, slots=S,
                          head_size=dh, heads_per_step=HEADS_PER_STEP),
        out_shape=jax.ShapeDtypeStruct((BS, D), jnp.float32),
        grid_spec=pltpu.PrefetchScalarGridSpec(
            num_scalar_prefetch=0,
            grid=(G,),
            in_specs=[
                pl.BlockSpec((BS, D), lambda g: (0, 0)),     # q (constant block -> DMA'd once)
                pl.BlockSpec((BS, D), lambda g: (0, 0)),     # k
                pl.BlockSpec((BS, D), lambda g: (0, 0)),     # v
                pl.BlockSpec((HEADS_PER_STEP, D, 3 * dh),    # packed Wq|Wk|Wv, 2 heads/step
                             lambda g: (g, 0, 0)),
                pl.BlockSpec((HEADS_PER_STEP, 1, 3 * dh),    # packed biases
                             lambda g: (g, 0, 0)),
            ],
            out_specs=pl.BlockSpec((BS, HEADS_PER_STEP * dh), lambda g: (0, g)),
        ),
        compiler_params=pltpu.CompilerParams(
            dimension_semantics=("parallel",),   # v7x: 2 TCs stream 2 head-pairs each
            vmem_limit_bytes=32 * 1024 * 1024),  # ~14 MiB actually used; safe on v5e/v6e/v7x
    )(q2, k2, v2, kp["w_qkv"], kp["b_qkv"])

    # LayerNorm over the hidden dim in plain jnp inside the same jit (perf review:
    # a single-step Pallas launch costs more than XLA's fused elementwise LN here).
    mean = jnp.mean(ctx, axis=-1, keepdims=True)
    var = jnp.mean(jnp.square(ctx - mean), axis=-1, keepdims=True)   # biased, like nn.LayerNorm
    out = (ctx - mean) * lax.rsqrt(var + LN_EPS) * kp["ln_gamma"] + kp["ln_beta"]
    return out.reshape(B, S, D)


# -------------------------- plain-JAX reference -----------------------------
def mhdpa_reference(q, k, v, params):
    """f32 reference with HIGHEST matmul precision — mirrors the torch module."""
    B, S, D = q.shape
    H, dh = N_HEADS, HEAD_SIZE
    hp = lax.Precision.HIGHEST

    def lin(x, w, b):
        return jnp.dot(x, w.T, precision=hp) + b

    Q = lin(q, params["wq"], params["bq"])
    K = lin(k, params["wk"], params["bk"])
    V = lin(v, params["wv"], params["bv"])

    def split(x):
        return x.reshape(B, S, H, dh).transpose(0, 2, 1, 3)

    Qh, Kh, Vh = split(Q), split(K), split(V)
    scores = jnp.einsum("bhqd,bhkd->bhqk", Qh, Kh, precision=hp) / math.sqrt(dh)
    probs = jax.nn.softmax(scores, axis=-1)
    ctx = jnp.einsum("bhqk,bhkd->bhqd", probs, Vh, precision=hp)
    ctx = ctx.transpose(0, 2, 1, 3).reshape(B, S, D)

    mean = jnp.mean(ctx, axis=-1, keepdims=True)
    var = jnp.mean(jnp.square(ctx - mean), axis=-1, keepdims=True)
    return (ctx - mean) * lax.rsqrt(var + LN_EPS) * params["ln_gamma"] + params["ln_beta"]


# --------------------------------- main --------------------------------------
if __name__ == "__main__":
    key = jax.random.PRNGKey(0)
    ks = jax.random.split(key, 11)

    D = PROJ_SIZE
    # deterministic synthetic parameters (same shapes as the nn.Module's layers)
    params = {
        "wq": jax.random.normal(ks[0], (ALL_HEAD_SIZE, D), jnp.float32) * 0.02,
        "bq": jax.random.normal(ks[1], (ALL_HEAD_SIZE,), jnp.float32) * 0.02,
        "wk": jax.random.normal(ks[2], (ALL_HEAD_SIZE, D), jnp.float32) * 0.02,
        "bk": jax.random.normal(ks[3], (ALL_HEAD_SIZE,), jnp.float32) * 0.02,
        "wv": jax.random.normal(ks[4], (ALL_HEAD_SIZE, D), jnp.float32) * 0.02,
        "bv": jax.random.normal(ks[5], (ALL_HEAD_SIZE,), jnp.float32) * 0.02,
        "ln_gamma": 1.0 + jax.random.normal(ks[6], (PROJ_SIZE,), jnp.float32) * 0.02,
        "ln_beta": jax.random.normal(ks[7], (PROJ_SIZE,), jnp.float32) * 0.02,
    }

    q = jax.random.normal(ks[8], (BATCH, MEMORY_SLOTS, D), jnp.float32)
    k = jax.random.normal(ks[9], (BATCH, MEMORY_SLOTS, D), jnp.float32)
    v = jax.random.normal(ks[10], (BATCH, MEMORY_SLOTS, D), jnp.float32)

    # one-time weight repack (head-major packed bf16 slabs), outside the jitted forward
    kernel_params = jax.tree_util.tree_map(jax.block_until_ready, prepare_params(params))

    out = jax.block_until_ready(mhdpa_forward(q, k, v, kernel_params))
    ref = jax.block_until_ready(mhdpa_reference(q, k, v, params))

    # Tolerance is set by the deliberate bf16 weight quantization propagated through
    # projection + attention + LayerNorm (estimated worst-case ~2e-2 abs at these scales;
    # softmax now uses exact division, so no approx-reciprocal error remains).
    np.testing.assert_allclose(np.asarray(out), np.asarray(ref), rtol=5e-2, atol=5e-2)

    print("KERNEL_OK")
</pallas_src>

<mosaic_0001>
module attributes {stable_mosaic.version = 11 : i64} {
  func.func @attn_kernel(%arg0: i32, %arg1: memref<16x2048xf32, #tpu.memory_space<vmem>>, %arg2: memref<16x2048xf32, #tpu.memory_space<vmem>>, %arg3: memref<16x2048xf32, #tpu.memory_space<vmem>>, %arg4: memref<2x2048x768xbf16, #tpu.memory_space<vmem>>, %arg5: memref<2x1x768xf32, #tpu.memory_space<vmem>>, %arg6: memref<16x512xf32, #tpu.memory_space<vmem>>) attributes {dimension_semantics = [#tpu.dimension_semantics<parallel>], iteration_bounds = array<i64: 4>, scalar_prefetch = 0 : i64, scratch_operands = 0 : i64, tpu.core_type = #tpu.core_type<tc>, window_params = [{pipeline_mode = #tpu.pipeline_mode<synchronous>, transform_indices = @transform_0, window_bounds = array<i64: 16, 2048>}, {pipeline_mode = #tpu.pipeline_mode<synchronous>, transform_indices = @transform_1, window_bounds = array<i64: 16, 2048>}, {pipeline_mode = #tpu.pipeline_mode<synchronous>, transform_indices = @transform_2, window_bounds = array<i64: 16, 2048>}, {transform_indices = @transform_3, window_bounds = array<i64: 2, 2048, 768>}, {transform_indices = @transform_4, window_bounds = array<i64: 2, 1, 768>}, {transform_indices = @transform_5, window_bounds = array<i64: 16, 512>}]} {
    %c0 = arith.constant 0 : index
    %c0_0 = arith.constant 0 : index
    %c0_1 = arith.constant 0 : index
    %0 = vector.load %arg4[%c0, %c0_0, %c0_1] : memref<2x2048x768xbf16, #tpu.memory_space<vmem>>, vector<1x2048x256xbf16>
    %1 = vector.shape_cast %0 : vector<1x2048x256xbf16> to vector<2048x256xbf16>
    %2 = arith.extf %1 : vector<2048x256xbf16> to vector<2048x256xf32>
    %c0_2 = arith.constant 0 : index
    %c0_3 = arith.constant 0 : index
    %c0_4 = arith.constant 0 : index
    %3 = vector.load %arg5[%c0_2, %c0_3, %c0_4] : memref<2x1x768xf32, #tpu.memory_space<vmem>>, vector<1x1x256xf32>
    %4 = vector.shape_cast %3 : vector<1x1x256xf32> to vector<1x256xf32>
    %c0_5 = arith.constant 0 : index
    %c0_6 = arith.constant 0 : index
    %5 = vector.load %arg1[%c0_5, %c0_6] : memref<16x2048xf32, #tpu.memory_space<vmem>>, vector<16x2048xf32>
    %cst = arith.constant dense<0.000000e+00> : vector<16x256xf32>
    %6 = tpu.matmul %5, %2, %cst {dimension_numbers = #tpu.dot_dimension_numbers<[1], [0], [0], [1], [0, 0, 1, 1], [], []>} : vector<16x2048xf32>, vector<2048x256xf32>, vector<16x256xf32> -> vector<16x256xf32>
    %7 = vector.broadcast %4 : vector<1x256xf32> to vector<16x256xf32>
    %8 = arith.addf %6, %7 : vector<16x256xf32>
    %9 = vector.shape_cast %8 : vector<16x256xf32> to vector<2x8x256xf32>
    %c0_7 = arith.constant 0 : index
    %c0_8 = arith.constant 0 : index
    %c256 = arith.constant 256 : index
    %10 = vector.load %arg4[%c0_7, %c0_8, %c256] : memref<2x2048x768xbf16, #tpu.memory_space<vmem>>, vector<1x2048x256xbf16>
    %11 = vector.shape_cast %10 : vector<1x2048x256xbf16> to vector<2048x256xbf16>
    %12 = arith.extf %11 : vector<2048x256xbf16> to vector<2048x256xf32>
    %c0_9 = arith.constant 0 : index
    %c0_10 = arith.constant 0 : index
    %c256_11 = arith.constant 256 : index
    %13 = vector.load %arg5[%c0_9, %c0_10, %c256_11] : memref<2x1x768xf32, #tpu.memory_space<vmem>>, vector<1x1x256xf32>
    %14 = vector.shape_cast %13 : vector<1x1x256xf32> to vector<1x256xf32>
    %c0_12 = arith.constant 0 : index
    %c0_13 = arith.constant 0 : index
    %15 = vector.load %arg2[%c0_12, %c0_13] : memref<16x2048xf32, #tpu.memory_space<vmem>>, vector<16x2048xf32>
    %cst_14 = arith.constant dense<0.000000e+00> : vector<16x256xf32>
    %16 = tpu.matmul %15, %12, %cst_14 {dimension_numbers = #tpu.dot_dimension_numbers<[1], [0], [0], [1], [0, 0, 1, 1], [], []>} : vector<16x2048xf32>, vector<2048x256xf32>, vector<16x256xf32> -> vector<16x256xf32>
    %17 = vector.broadcast %14 : vector<1x256xf32> to vector<16x256xf32>
    %18 = arith.addf %16, %17 : vector<16x256xf32>
    %19 = vector.shape_cast %18 : vector<16x256xf32> to vector<2x8x256xf32>
    %c0_15 = arith.constant 0 : index
    %c0_16 = arith.constant 0 : index
    %c512 = arith.constant 512 : index
    %20 = vector.load %arg4[%c0_15, %c0_16, %c512] : memref<2x2048x768xbf16, #tpu.memory_space<vmem>>, vector<1x2048x256xbf16>
    %21 = vector.shape_cast %20 : vector<1x2048x256xbf16> to vector<2048x256xbf16>
    %22 = arith.extf %21 : vector<2048x256xbf16> to vector<2048x256xf32>
    %c0_17 = arith.constant 0 : index
    %c0_18 = arith.constant 0 : index
    %c512_19 = arith.constant 512 : index
    %23 = vector.load %arg5[%c0_17, %c0_18, %c512_19] : memref<2x1x768xf32, #tpu.memory_space<vmem>>, vector<1x1x256xf32>
    %24 = vector.shape_cast %23 : vector<1x1x256xf32> to vector<1x256xf32>
    %c0_20 = arith.constant 0 : index
    %c0_21 = arith.constant 0 : index
    %25 = vector.load %arg3[%c0_20, %c0_21] : memref<16x2048xf32, #tpu.memory_space<vmem>>, vector<16x2048xf32>
    %cst_22 = arith.constant dense<0.000000e+00> : vector<16x256xf32>
    %26 = tpu.matmul %25, %22, %cst_22 {dimension_numbers = #tpu.dot_dimension_numbers<[1], [0], [0], [1], [0, 0, 1, 1], [], []>} : vector<16x2048xf32>, vector<2048x256xf32>, vector<16x256xf32> -> vector<16x256xf32>
    %27 = vector.broadcast %24 : vector<1x256xf32> to vector<16x256xf32>
    %28 = arith.addf %26, %27 : vector<16x256xf32>
    %29 = vector.shape_cast %28 : vector<16x256xf32> to vector<2x8x256xf32>
    "tpu.trace_start"() <{level = 10 : i32, message = "bqd,bkd->bqk"}> : () -> ()
    %cst_23 = arith.constant dense<0.000000e+00> : vector<2x8x8xf32>
    %30 = tpu.matmul %9, %19, %cst_23 {dimension_numbers = #tpu.dot_dimension_numbers<[2], [2], [1], [1], [0, 0, 0, 1, 1, 1], [0], [0]>} : vector<2x8x256xf32>, vector<2x8x256xf32>, vector<2x8x8xf32> -> vector<2x8x8xf32>
    "tpu.trace_stop"() : () -> ()
    %cst_24 = arith.constant 6.250000e-02 : f32
    %31 = vector.broadcast %cst_24 : f32 to vector<2x8x8xf32>
    %32 = arith.mulf %30, %31 : vector<2x8x8xf32>
    %cst_25 = arith.constant dense<0xFF800000> : vector<2x8xf32>
    %33 = vector.multi_reduction <maximumf>, %32, %cst_25 [2] : vector<2x8x8xf32> to vector<2x8xf32>
    %34 = vector.shape_cast %33 : vector<2x8xf32> to vector<2x8x1xf32>
    %35 = vector.broadcast %34 : vector<2x8x1xf32> to vector<2x8x8xf32>
    %36 = arith.subf %32, %35 : vector<2x8x8xf32>
    %37 = math.exp %36 : vector<2x8x8xf32>
    %cst_26 = arith.constant dense<0.000000e+00> : vector<2x8xf32>
    %38 = vector.multi_reduction <add>, %37, %cst_26 [2] : vector<2x8x8xf32> to vector<2x8xf32>
    %39 = vector.shape_cast %38 : vector<2x8xf32> to vector<2x8x1xf32>
    %40 = vector.broadcast %39 : vector<2x8x1xf32> to vector<2x8x8xf32>
    %41 = arith.divf %37, %40 : vector<2x8x8xf32>
    "tpu.trace_start"() <{level = 10 : i32, message = "bqk,bkd->bqd"}> : () -> ()
    %cst_27 = arith.constant dense<0.000000e+00> : vector<2x8x256xf32>
    %42 = tpu.matmul %41, %29, %cst_27 {dimension_numbers = #tpu.dot_dimension_numbers<[2], [1], [1], [2], [0, 0, 0, 1, 1, 2], [0], [0]>} : vector<2x8x8xf32>, vector<2x8x256xf32>, vector<2x8x256xf32> -> vector<2x8x256xf32>
    "tpu.trace_stop"() : () -> ()
    %43 = vector.shape_cast %42 : vector<2x8x256xf32> to vector<16x256xf32>
    %c0_28 = arith.constant 0 : index
    %c0_29 = arith.constant 0 : index
    %44 = vector.load %arg6[%c0_28, %c0_29] : memref<16x512xf32, #tpu.memory_space<vmem>>, vector<16x256xf32>
    tpu.vector_store %arg6[%c0_28, %c0_29], %43 {strides = array<i32>} : memref<16x512xf32, #tpu.memory_space<vmem>>, vector<16x256xf32>,
    %c1 = arith.constant 1 : index
    %c0_30 = arith.constant 0 : index
    %c0_31 = arith.constant 0 : index
    %45 = vector.load %arg4[%c1, %c0_30, %c0_31] : memref<2x2048x768xbf16, #tpu.memory_space<vmem>>, vector<1x2048x256xbf16>
    %46 = vector.shape_cast %45 : vector<1x2048x256xbf16> to vector<2048x256xbf16>
    %47 = arith.extf %46 : vector<2048x256xbf16> to vector<2048x256xf32>
    %c1_32 = arith.constant 1 : index
    %c0_33 = arith.constant 0 : index
    %c0_34 = arith.constant 0 : index
    %48 = vector.load %arg5[%c1_32, %c0_33, %c0_34] : memref<2x1x768xf32, #tpu.memory_space<vmem>>, vector<1x1x256xf32>
    %49 = vector.shape_cast %48 : vector<1x1x256xf32> to vector<1x256xf32>
    %c0_35 = arith.constant 0 : index
    %c0_36 = arith.constant 0 : index
    %50 = vector.load %arg1[%c0_35, %c0_36] : memref<16x2048xf32, #tpu.memory_space<vmem>>, vector<16x2048xf32>
    %cst_37 = arith.constant dense<0.000000e+00> : vector<16x256xf32>
    %51 = tpu.matmul %50, %47, %cst_37 {dimension_numbers = #tpu.dot_dimension_numbers<[1], [0], [0], [1], [0, 0, 1, 1], [], []>} : vector<16x2048xf32>, vector<2048x256xf32>, vector<16x256xf32> -> vector<16x256xf32>
    %52 = vector.broadcast %49 : vector<1x256xf32> to vector<16x256xf32>
    %53 = arith.addf %51, %52 : vector<16x256xf32>
    %54 = vector.shape_cast %53 : vector<16x256xf32> to vector<2x8x256xf32>
    %c1_38 = arith.constant 1 : index
    %c0_39 = arith.constant 0 : index
    %c256_40 = arith.constant 256 : index
    %55 = vector.load %arg4[%c1_38, %c0_39, %c256_40] : memref<2x2048x768xbf16, #tpu.memory_space<vmem>>, vector<1x2048x256xbf16>
    %56 = vector.shape_cast %55 : vector<1x2048x256xbf16> to vector<2048x256xbf16>
    %57 = arith.extf %56 : vector<2048x256xbf16> to vector<2048x256xf32>
    %c1_41 = arith.constant 1 : index
    %c0_42 = arith.constant 0 : index
    %c256_43 = arith.constant 256 : index
    %58 = vector.load %arg5[%c1_41, %c0_42, %c256_43] : memref<2x1x768xf32, #tpu.memory_space<vmem>>, vector<1x1x256xf32>
    %59 = vector.shape_cast %58 : vector<1x1x256xf32> to vector<1x256xf32>
    %c0_44 = arith.constant 0 : index
    %c0_45 = arith.constant 0 : index
    %60 = vector.load %arg2[%c0_44, %c0_45] : memref<16x2048xf32, #tpu.memory_space<vmem>>, vector<16x2048xf32>
    %cst_46 = arith.constant dense<0.000000e+00> : vector<16x256xf32>
    %61 = tpu.matmul %60, %57, %cst_46 {dimension_numbers = #tpu.dot_dimension_numbers<[1], [0], [0], [1], [0, 0, 1, 1], [], []>} : vector<16x2048xf32>, vector<2048x256xf32>, vector<16x256xf32> -> vector<16x256xf32>
    %62 = vector.broadcast %59 : vector<1x256xf32> to vector<16x256xf32>
    %63 = arith.addf %61, %62 : vector<16x256xf32>
    %64 = vector.shape_cast %63 : vector<16x256xf32> to vector<2x8x256xf32>
    %c1_47 = arith.constant 1 : index
    %c0_48 = arith.constant 0 : index
    %c512_49 = arith.constant 512 : index
    %65 = vector.load %arg4[%c1_47, %c0_48, %c512_49] : memref<2x2048x768xbf16, #tpu.memory_space<vmem>>, vector<1x2048x256xbf16>
    %66 = vector.shape_cast %65 : vector<1x2048x256xbf16> to vector<2048x256xbf16>
    %67 = arith.extf %66 : vector<2048x256xbf16> to vector<2048x256xf32>
    %c1_50 = arith.constant 1 : index
    %c0_51 = arith.constant 0 : index
    %c512_52 = arith.constant 512 : index
    %68 = vector.load %arg5[%c1_50, %c0_51, %c512_52] : memref<2x1x768xf32, #tpu.memory_space<vmem>>, vector<1x1x256xf32>
    %69 = vector.shape_cast %68 : vector<1x1x256xf32> to vector<1x256xf32>
    %c0_53 = arith.constant 0 : index
    %c0_54 = arith.constant 0 : index
    %70 = vector.load %arg3[%c0_53, %c0_54] : memref<16x2048xf32, #tpu.memory_space<vmem>>, vector<16x2048xf32>
    %cst_55 = arith.constant dense<0.000000e+00> : vector<16x256xf32>
    %71 = tpu.matmul %70, %67, %cst_55 {dimension_numbers = #tpu.dot_dimension_numbers<[1], [0], [0], [1], [0, 0, 1, 1], [], []>} : vector<16x2048xf32>, vector<2048x256xf32>, vector<16x256xf32> -> vector<16x256xf32>
    %72 = vector.broadcast %69 : vector<1x256xf32> to vector<16x256xf32>
    %73 = arith.addf %71, %72 : vector<16x256xf32>
    %74 = vector.shape_cast %73 : vector<16x256xf32> to vector<2x8x256xf32>
    "tpu.trace_start"() <{level = 10 : i32, message = "bqd,bkd->bqk"}> : () -> ()
    %cst_56 = arith.constant dense<0.000000e+00> : vector<2x8x8xf32>
    %75 = tpu.matmul %54, %64, %cst_56 {dimension_numbers = #tpu.dot_dimension_numbers<[2], [2], [1], [1], [0, 0, 0, 1, 1, 1], [0], [0]>} : vector<2x8x256xf32>, vector<2x8x256xf32>, vector<2x8x8xf32> -> vector<2x8x8xf32>
    "tpu.trace_stop"() : () -> ()
    %cst_57 = arith.constant 6.250000e-02 : f32
    %76 = vector.broadcast %cst_57 : f32 to vector<2x8x8xf32>
    %77 = arith.mulf %75, %76 : vector<2x8x8xf32>
    %cst_58 = arith.constant dense<0xFF800000> : vector<2x8xf32>
    %78 = vector.multi_reduction <maximumf>, %77, %cst_58 [2] : vector<2x8x8xf32> to vector<2x8xf32>
    %79 = vector.shape_cast %78 : vector<2x8xf32> to vector<2x8x1xf32>
    %80 = vector.broadcast %79 : vector<2x8x1xf32> to vector<2x8x8xf32>
    %81 = arith.subf %77, %80 : vector<2x8x8xf32>
    %82 = math.exp %81 : vector<2x8x8xf32>
    %cst_59 = arith.constant dense<0.000000e+00> : vector<2x8xf32>
    %83 = vector.multi_reduction <add>, %82, %cst_59 [2] : vector<2x8x8xf32> to vector<2x8xf32>
    %84 = vector.shape_cast %83 : vector<2x8xf32> to vector<2x8x1xf32>
    %85 = vector.broadcast %84 : vector<2x8x1xf32> to vector<2x8x8xf32>
    %86 = arith.divf %82, %85 : vector<2x8x8xf32>
    "tpu.trace_start"() <{level = 10 : i32, message = "bqk,bkd->bqd"}> : () -> ()
    %cst_60 = arith.constant dense<0.000000e+00> : vector<2x8x256xf32>
    %87 = tpu.matmul %86, %74, %cst_60 {dimension_numbers = #tpu.dot_dimension_numbers<[2], [1], [1], [2], [0, 0, 0, 1, 1, 2], [0], [0]>} : vector<2x8x8xf32>, vector<2x8x256xf32>, vector<2x8x256xf32> -> vector<2x8x256xf32>
    "tpu.trace_stop"() : () -> ()
    %88 = vector.shape_cast %87 : vector<2x8x256xf32> to vector<16x256xf32>
    %c0_61 = arith.constant 0 : index
    %c256_62 = arith.constant 256 : index
    %89 = vector.load %arg6[%c0_61, %c256_62] : memref<16x512xf32, #tpu.memory_space<vmem>>, vector<16x256xf32>
    tpu.vector_store %arg6[%c0_61, %c256_62], %88 {strides = array<i32>} : memref<16x512xf32, #tpu.memory_space<vmem>>, vector<16x256xf32>,
    return
  }
  func.func @transform_0(%arg0: i32) -> (i32, i32) {
    %c0_i32 = arith.constant 0 : i32
    %c0_i32_0 = arith.constant 0 : i32
    %c0_i32_1 = arith.constant 0 : i32
    return %c0_i32, %c0_i32_0 : i32, i32
  }
  func.func @transform_1(%arg0: i32) -> (i32, i32) {
    %c0_i32 = arith.constant 0 : i32
    %c0_i32_0 = arith.constant 0 : i32
    %c0_i32_1 = arith.constant 0 : i32
    return %c0_i32, %c0_i32_0 : i32, i32
  }
  func.func @transform_2(%arg0: i32) -> (i32, i32) {
    %c0_i32 = arith.constant 0 : i32
    %c0_i32_0 = arith.constant 0 : i32
    %c0_i32_1 = arith.constant 0 : i32
    return %c0_i32, %c0_i32_0 : i32, i32
  }
  func.func @transform_3(%arg0: i32) -> (i32, i32, i32) {
    %c0_i32 = arith.constant 0 : i32
    %c0_i32_0 = arith.constant 0 : i32
    %c0_i32_1 = arith.constant 0 : i32
    return %arg0, %c0_i32, %c0_i32_0 : i32, i32, i32
  }
  func.func @transform_4(%arg0: i32) -> (i32, i32, i32) {
    %c0_i32 = arith.constant 0 : i32
    %c0_i32_0 = arith.constant 0 : i32
    %c0_i32_1 = arith.constant 0 : i32
    return %arg0, %c0_i32, %c0_i32_0 : i32, i32, i32
  }
  func.func @transform_5(%arg0: i32) -> (i32, i32) {
    %c0_i32 = arith.constant 0 : i32
    %c0_i32_0 = arith.constant 0 : i32
    return %c0_i32, %arg0 : i32, i32
  }
}

</mosaic_0001>

<llo_original>
// kernel: mhdpa_forward.1
$region0: #{mhdpa_forward.1}
  #allocation0 [shape = 'u32[]', space=smem, size = 0x4, offset = 0x4, fixed_abs, tag = 'smem constant byte address 0x4 - core index']
  #allocation1 [shape = 'u32[144,128]{1,0:T(1,128)}', space=vmem, size = 0x12000, scoped, tag = 'internal scratch']
  %s0 = inlined_call_operand.hbm [shape: f32[16,2048], index: 0, kind: input, shape index: {}]
  %s1 = inlined_call_operand.hbm [shape: f32[16,2048], index: 1, kind: input, shape index: {}]
  %s2 = inlined_call_operand.hbm [shape: f32[16,2048], index: 2, kind: input, shape index: {}]
  %s3 = inlined_call_operand.hbm [shape: bf16[8,2048,768], index: 3, kind: input, shape index: {}]
  %s4 = inlined_call_operand.hbm [shape: f32[8,1,768], index: 4, kind: input, shape index: {}]
  %s5 = inlined_call_operand.vmem [shape: f32[16,2048], index: 5, kind: output, shape index: {}]
  %s6 = sld [smem:[#allocation0]]
  $region92: #{mhdpa_forward.1} parent=0
    _
  %s8 = ssub.s32 1, %s6
  %s9 = scalar_select 0, %s8, %s6
  $region1: #{mhdpa_forward.1} parent=0
    #allocation2 [shape = 'u8[131072]{0}', space=vmem, size = 0x20000, scoped, tag = 'input window, operand 0, single buffered']
    #allocation3 [shape = 's32[2]{0}', space=sflag, size = 0x8, scoped, tag = 'scoped memory for mhdpa_forward.1']
    #allocation4 [shape = 'u8[131072]{0}', space=vmem, size = 0x20000, scoped, tag = 'input window, operand 1, single buffered']
    #allocation5 [shape = 's32[1]{0}', space=sflag, size = 0x4, scoped, tag = 'scoped memory for mhdpa_forward.1']
    #allocation6 [shape = 'u8[131072]{0}', space=vmem, size = 0x20000, scoped, tag = 'input window, operand 2, single buffered']
    #allocation7 [shape = 'u8[12582912]{0}', space=vmem, size = 0xc00000, scoped, tag = 'input window, operand 3']
    #allocation8 [shape = 's32[2]{0}', space=sflag, size = 0x8, scoped, tag = 'scoped memory for mhdpa_forward.1']
    #allocation9 [shape = 'u8[12288]{0}', space=vmem, size = 0x3000, scoped, tag = 'input window, operand 4']
    #allocation10 [shape = 'u8[65536]{0}', space=vmem, size = 0x10000, scoped, tag = 'output window, operand 0']
    %10 = vsyncpa [#allocation3], 0
    %11 = vsyncpa [#allocation5], 0
    %12 = vsyncpa [#allocation8], 0
    %s13 = scalar_lea.sflag [#allocation8], 1
    %14 = vsyncpa %s13, 0
    loop: start=0, step=1, limit=6
    $region2: #{mhdpa_forward.1} parent=1 // loop_pre_header
      _
    $region3: #{mhdpa_forward.1} parent=1 // loop_header
      %s16 = sphi 0, %s20
      %p17 = scmp.ge.s32.totalorder %s16, 6
      %s24 = sphi 0, %s24
      %s26 = sphi 0, %s24
      %s27 = sphi 0, %s26
      %s41 = sphi 0, %s27
      %s45 = sphi 0, %s45
      %s47 = sphi 0, %s45
      %s48 = sphi 0, %s47
      %s62 = sphi 0, %s48
      %s66 = sphi 0, %s66
      %s68 = sphi 0, %s66
      %s69 = sphi 0, %s68
      %s83 = sphi 0, %s69
      %s89 = sphi 0, %s91
      %s92 = sphi 0, %s89
      %s93 = sphi 0, %s92
      %s109 = sphi 0, %s93
      %s115 = sphi 0, %s117
      %s118 = sphi 0, %s115
      %s119 = sphi 0, %s118
      %s135 = sphi 0, %s119
      %s141 = sphi 0, %s143
      %s144 = sphi 0, %s141
      %s145 = sphi 0, %s144
      %s161 = sphi 0, %s145
    $region4: #{mhdpa_forward.1} parent=1 // loop_header_branch
      %19 = sbr.rel (%p17) target = $region8
    $region5: #{mhdpa_forward.1} parent=1 // loop_body
      %s21 = ssub.s32 %s16, 1
      %s22 = ssub.s32 %s16, 2
      %s23 = sadd.s32 %s16, 1
      %s25 = sadd.s32 %s24, 1
      %p28 = scmp.eq.s32.totalorder %s16, 3
      %p29 = scmp.ne.s32.totalorder %s24, %s26
      %p30 = scmp.eq.s32.totalorder %s16, 0
      %p31 = por %p29, %p30
      %p32 = scmp.ne.s32.totalorder %s24, %s26
      %p33 = scmp.eq.s32.totalorder %s21, 3
      %p34 = por %p32, %p33
      %p35 = scmp.ne.s32.totalorder %s26, %s27
      %p36 = scmp.eq.s32.totalorder %s21, 0
      %p37 = por %p35, %p36
      %p38 = scmp.ne.s32.totalorder %s26, %s27
      %p39 = scmp.eq.s32.totalorder %s22, 3
      %p40 = por %p38, %p39
      %p42 = scmp.ne.s32.totalorder %s27, %s41
      %p43 = scmp.eq.s32.totalorder %s22, 0
      %p44 = por %p42, %p43
      %s46 = sadd.s32 %s45, 1
      %p49 = scmp.eq.s32.totalorder %s16, 3
      %p50 = scmp.ne.s32.totalorder %s45, %s47
      %p51 = scmp.eq.s32.totalorder %s16, 0
      %p52 = por %p50, %p51
      %p53 = scmp.ne.s32.totalorder %s45, %s47
      %p54 = scmp.eq.s32.totalorder %s21, 3
      %p55 = por %p53, %p54
      %p56 = scmp.ne.s32.totalorder %s47, %s48
      %p57 = scmp.eq.s32.totalorder %s21, 0
      %p58 = por %p56, %p57
      %p59 = scmp.ne.s32.totalorder %s47, %s48
      %p60 = scmp.eq.s32.totalorder %s22, 3
      %p61 = por %p59, %p60
      %p63 = scmp.ne.s32.totalorder %s48, %s62
      %p64 = scmp.eq.s32.totalorder %s22, 0
      %p65 = por %p63, %p64
      %s67 = sadd.s32 %s66, 1
      %p70 = scmp.eq.s32.totalorder %s16, 3
      %p71 = scmp.ne.s32.totalorder %s66, %s68
      %p72 = scmp.eq.s32.totalorder %s16, 0
      %p73 = por %p71, %p72
      %p74 = scmp.ne.s32.totalorder %s66, %s68
      %p75 = scmp.eq.s32.totalorder %s21, 3
      %p76 = por %p74, %p75
      %p77 = scmp.ne.s32.totalorder %s68, %s69
      %p78 = scmp.eq.s32.totalorder %s21, 0
      %p79 = por %p77, %p78
      %p80 = scmp.ne.s32.totalorder %s68, %s69
      %p81 = scmp.eq.s32.totalorder %s22, 3
      %p82 = por %p80, %p81
      %p84 = scmp.ne.s32.totalorder %s69, %s83
      %p85 = scmp.eq.s32.totalorder %s22, 0
      %p86 = por %p84, %p85
      %s87 = ssub.s32 %s16, %s23
      %p88 = scmp.eq.s32.totalorder %s87, 0
      %s90 = sadd.s32 %s89, 1
      %s91 = scalar_select %p88, %s89, %s90
      %p94 = pneg %p88
      %p95 = scmp.eq.s32.totalorder %s16, 3
      %p96 = por %p94, %p95
      %p97 = scmp.ne.s32.totalorder %s89, %s92
      %p98 = scmp.eq.s32.totalorder %s16, 0
      %p99 = por %p97, %p98
      %p100 = scmp.ne.s32.totalorder %s89, %s92
      %p101 = scmp.eq.s32.totalorder %s21, 3
      %p102 = por %p100, %p101
      %p103 = scmp.ne.s32.totalorder %s92, %s93
      %p104 = scmp.eq.s32.totalorder %s21, 0
      %p105 = por %p103, %p104
      %p106 = scmp.ne.s32.totalorder %s92, %s93
      %p107 = scmp.eq.s32.totalorder %s22, 3
      %p108 = por %p106, %p107
      %p110 = scmp.ne.s32.totalorder %s93, %s109
      %p111 = scmp.eq.s32.totalorder %s22, 0
      %p112 = por %p110, %p111
      %s113 = ssub.s32 %s16, %s23
      %p114 = scmp.eq.s32.totalorder %s113, 0
      %s116 = sadd.s32 %s115, 1
      %s117 = scalar_select %p114, %s115, %s116
      %p120 = pneg %p114
      %p121 = scmp.eq.s32.totalorder %s16, 3
      %p122 = por %p120, %p121
      %p123 = scmp.ne.s32.totalorder %s115, %s118
      %p124 = scmp.eq.s32.totalorder %s16, 0
      %p125 = por %p123, %p124
      %p126 = scmp.ne.s32.totalorder %s115, %s118
      %p127 = scmp.eq.s32.totalorder %s21, 3
      %p128 = por %p126, %p127
      %p129 = scmp.ne.s32.totalorder %s118, %s119
      %p130 = scmp.eq.s32.totalorder %s21, 0
      %p131 = por %p129, %p130
      %p132 = scmp.ne.s32.totalorder %s118, %s119
      %p133 = scmp.eq.s32.totalorder %s22, 3
      %p134 = por %p132, %p133
      %p136 = scmp.ne.s32.totalorder %s119, %s135
      %p137 = scmp.eq.s32.totalorder %s22, 0
      %p138 = por %p136, %p137
      %s139 = ssub.s32 %s16, %s23
      %p140 = scmp.eq.s32.totalorder %s139, 0
      %s142 = sadd.s32 %s141, 1
      %s143 = scalar_select %p140, %s141, %s142
      %p146 = pneg %p140
      %p147 = scmp.eq.s32.totalorder %s16, 3
      %p148 = por %p146, %p147
      %p149 = scmp.ne.s32.totalorder %s141, %s144
      %p150 = scmp.eq.s32.totalorder %s16, 0
      %p151 = por %p149, %p150
      %p152 = scmp.ne.s32.totalorder %s141, %s144
      %p153 = scmp.eq.s32.totalorder %s21, 3
      %p154 = por %p152, %p153
      %p155 = scmp.ne.s32.totalorder %s144, %s145
      %p156 = scmp.eq.s32.totalorder %s21, 0
      %p157 = por %p155, %p156
      %p158 = scmp.ne.s32.totalorder %s144, %s145
      %p159 = scmp.eq.s32.totalorder %s22, 3
      %p160 = por %p158, %p159
      %p162 = scmp.ne.s32.totalorder %s145, %s161
      %p163 = scmp.eq.s32.totalorder %s22, 0
      %p164 = por %p162, %p163
      %p165 = scmp.le.s32.totalorder 1, %s16
      %p166 = scmp.lt.s32.totalorder %s16, 5
      %p167 = pnand %p165, %p166
      %p168 = pneg %p167
      // Predicated region
      $region9: #{mhdpa_forward.1} parent=5 // pred_check
        _
      $region10: #{mhdpa_forward.1} parent=5 // pred_check_branch
        %170 = sbr.rel (%p167) target = $region12
      $region11: #{mhdpa_forward.1} parent=5 // pred_region
        %s171 = ssub.s32 %s16, 1
        // Predicated region
        $region13: #{mhdpa_forward.1} parent=11 // pred_check
          %p172 = pneg %p37
        $region14: #{mhdpa_forward.1} parent=11 // pred_check_branch
          %174 = sbr.rel (%p172) target = $region16
        $region15: #{mhdpa_forward.1} parent=11 // pred_region
          %s176 = ssub.s32 4096, 4096
          %177 = vsyncadd [#allocation3], %s176
          %s178 = sshll.u32 [#allocation2], 4
          %s179 = int_to_ptr.vmem [resolvable:$true] %s178
          %184 = dma.hbm_to_vmem [thread:$0]  %s0, 4096, %s179, [#allocation3], 2048, 2048, 128
        $region16: #{mhdpa_forward.1} parent=11 // pred_fallthru
          _
        // Predicated region
        $region17: #{mhdpa_forward.1} parent=11 // pred_check
          %p185 = pneg %p58
        $region18: #{mhdpa_forward.1} parent=11 // pred_check_branch
          %187 = sbr.rel (%p185) target = $region20
        $region19: #{mhdpa_forward.1} parent=11 // pred_region
          %s189 = ssub.s32 4096, 4096
          %190 = vsyncadd [#allocation5], %s189
          %s191 = sshll.u32 [#allocation4], 4
          %s192 = int_to_ptr.vmem [resolvable:$true] %s191
          %197 = dma.hbm_to_vmem [thread:$0]  %s1, 4096, %s192, [#allocation5], 2048, 2048, 128
        $region20: #{mhdpa_forward.1} parent=11 // pred_fallthru
          _
        // Predicated region
        $region21: #{mhdpa_forward.1} parent=11 // pred_check
          %p198 = pneg %p79
        $region22: #{mhdpa_forward.1} parent=11 // pred_check_branch
          %200 = sbr.rel (%p198) target = $region24
        $region23: #{mhdpa_forward.1} parent=11 // pred_region
          %s202 = ssub.s32 4096, 4096
          %203 = vsyncadd [#allocation5], %s202
          %s204 = sshll.u32 [#allocation6], 4
          %s205 = int_to_ptr.vmem [resolvable:$true] %s204
          %210 = dma.hbm_to_vmem [thread:$0]  %s2, 4096, %s205, [#allocation5], 2048, 2048, 128
        $region24: #{mhdpa_forward.1} parent=11 // pred_fallthru
          _
      $region12: #{mhdpa_forward.1} parent=5 // pred_fallthru
        _
      %p211 = scmp.lt.s32.totalorder %s16, 4
      // Predicated region
      $region25: #{mhdpa_forward.1} parent=5 // pred_check
        %p212 = pneg %p211
      $region26: #{mhdpa_forward.1} parent=5 // pred_check_branch
        %214 = sbr.rel (%p212) target = $region28
      $region27: #{mhdpa_forward.1} parent=5 // pred_region
        // Predicated region
        $region29: #{mhdpa_forward.1} parent=27 // pred_check
          %p215 = pneg %p99
        $region30: #{mhdpa_forward.1} parent=27 // pred_check_branch
          %217 = sbr.rel (%p215) target = $region32
        $region31: #{mhdpa_forward.1} parent=27 // pred_region
          %s218 = sand.u32 %s16, 1
          %s219 = scalar_lea.sflag [#allocation8], %s218
          %s220 = sand.u32 %s89, 1
          %s221 = smul.addr %s220, 12288
          %s222 = scalar_lea.vmem [#allocation7], %s221
          %s223 = smul.u32 2, %s16
          %s225 = ssub.s32 196608, 196608
          %226 = vsyncadd %s219, %s225
          %s227 = smul.addr %s223, 1536
          %s228 = smul.addr %s227, 64
          %s229 = scalar_lea.hbm %s3, %s228
          %s230 = sshll.u32 %s222, 4
          %s231 = int_to_ptr.vmem [resolvable:$true] %s230
          %236 = dma.hbm_to_vmem [thread:$0]  %s229, 196608, %s231, %s219, 384, 384, 24
        $region32: #{mhdpa_forward.1} parent=27 // pred_fallthru
          _
        // Predicated region
        $region33: #{mhdpa_forward.1} parent=27 // pred_check
          %p237 = pneg %p125
        $region34: #{mhdpa_forward.1} parent=27 // pred_check_branch
          %239 = sbr.rel (%p237) target = $region36
        $region35: #{mhdpa_forward.1} parent=27 // pred_region
          %s240 = sand.u32 %s16, 1
          %s241 = scalar_lea.sflag [#allocation8], %s240
          %s242 = sand.u32 %s115, 1
          %s243 = smul.addr %s242, 12
          %s244 = scalar_lea.vmem [#allocation9], %s243
          %s245 = smul.u32 2, %s16
          %s247 = ssub.s32 192, 192
          %248 = vsyncadd %s241, %s247
          %s249 = smul.addr %s245, 6
          %s250 = smul.addr %s249, 16
          %s251 = scalar_lea.hbm %s4, %s250
          %s252 = sshll.u32 %s244, 4
          %s253 = int_to_ptr.vmem [resolvable:$true] %s252
          %258 = dma.hbm_to_vmem [thread:$0]  %s251, 192, %s253, %s241, 96, 96, 6
        $region36: #{mhdpa_forward.1} parent=27 // pred_fallthru
          _
      $region28: #{mhdpa_forward.1} parent=5 // pred_fallthru
        _
      %p259 = scmp.le.s32.totalorder 1, %s16
      %p260 = scmp.lt.s32.totalorder %s16, 5
      %p261 = pnand %p259, %p260
      %p262 = pneg %p261
      // Predicated region
      $region37: #{mhdpa_forward.1} parent=5 // pred_check
        _
      $region38: #{mhdpa_forward.1} parent=5 // pred_check_branch
        %264 = sbr.rel (%p261) target = $region40
      $region39: #{mhdpa_forward.1} parent=5 // pred_region
        %s265 = ssub.s32 %s16, 1
        // Predicated region
        $region41: #{mhdpa_forward.1} parent=39 // pred_check
          %p266 = pneg %p37
        $region42: #{mhdpa_forward.1} parent=39 // pred_check_branch
          %268 = sbr.rel (%p266) target = $region44
        $region43: #{mhdpa_forward.1} parent=39 // pred_region
          %269 = dma.done [#allocation3], 4096
        $region44: #{mhdpa_forward.1} parent=39 // pred_fallthru
          _
        // Predicated region
        $region45: #{mhdpa_forward.1} parent=39 // pred_check
          %p270 = pneg %p58
        $region46: #{mhdpa_forward.1} parent=39 // pred_check_branch
          %272 = sbr.rel (%p270) target = $region48
        $region47: #{mhdpa_forward.1} parent=39 // pred_region
          %273 = dma.done [#allocation5], 4096
        $region48: #{mhdpa_forward.1} parent=39 // pred_fallthru
          _
        // Predicated region
        $region49: #{mhdpa_forward.1} parent=39 // pred_check
          %p274 = pneg %p79
        $region50: #{mhdpa_forward.1} parent=39 // pred_check_branch
          %276 = sbr.rel (%p274) target = $region52
        $region51: #{mhdpa_forward.1} parent=39 // pred_region
          %277 = dma.done [#allocation5], 4096
        $region52: #{mhdpa_forward.1} parent=39 // pred_fallthru
          _
        %s278 = sand.u32 %s21, 1
        %s279 = scalar_lea.sflag [#allocation8], %s278
        %s280 = sand.u32 %s92, 1
        %s281 = smul.addr %s280, 12288
        %s282 = scalar_lea.vmem [#allocation7], %s281
        // Predicated region
        $region53: #{mhdpa_forward.1} parent=39 // pred_check
          %p283 = pneg %p105
        $region54: #{mhdpa_forward.1} parent=39 // pred_check_branch
          %285 = sbr.rel (%p283) target = $region56
        $region55: #{mhdpa_forward.1} parent=39 // pred_region
          %286 = dma.done %s279, 196608
        $region56: #{mhdpa_forward.1} parent=39 // pred_fallthru
          _
        %s287 = sand.u32 %s21, 1
        %s288 = scalar_lea.sflag [#allocation8], %s287
        %s289 = sand.u32 %s118, 1
        %s290 = smul.addr %s289, 12
        %s291 = scalar_lea.vmem [#allocation9], %s290
        // Predicated region
        $region57: #{mhdpa_forward.1} parent=39 // pred_check
          %p292 = pneg %p131
        $region58: #{mhdpa_forward.1} parent=39 // pred_check_branch
          %294 = sbr.rel (%p292) target = $region60
        $region59: #{mhdpa_forward.1} parent=39 // pred_region
          %295 = dma.done %s288, 192
        $region60: #{mhdpa_forward.1} parent=39 // pred_fallthru
          _
        %p296 = pneg %p37
        %p297 = pneg %p34
        %p298 = pneg %p58
        %p299 = pneg %p55
        %p300 = pneg %p79
        %p301 = pneg %p76
        %s302 = sand.u32 %s21, 1
        %s303 = scalar_lea.sflag [#allocation8], %s302
        %s304 = sand.u32 %s92, 1
        %s305 = smul.addr %s304, 12288
        %s306 = scalar_lea.vmem [#allocation7], %s305
        %p307 = pneg %p105
        %p308 = pneg %p102
        %s309 = sand.u32 %s21, 1
        %s310 = scalar_lea.sflag [#allocation8], %s309
        %s311 = sand.u32 %s118, 1
        %s312 = smul.addr %s311, 12
        %s313 = scalar_lea.vmem [#allocation9], %s312
        %p314 = pneg %p131
        %p315 = pneg %p128
        %p316 = pneg %p157
        %p317 = pneg %p154
        %s318 = sand.u32 %s144, 1
        %s319 = sand.u32 %s144, 1
        %s320 = smul.addr %s319, 64
        %s321 = scalar_lea.vmem [#allocation10], %s320
        %s322 = smul.u32 2, %s21
        %s323 = smul.u32 2, %s21
        %s324 = smul.u32 4, %s21
        %v325 = vld [vmem:[%s282] sm:$0xff]
        %v326 = vld [vmem:[%s282 + $0x18] sm:$0xff]
        %v327 = vld [vmem:[%s282 + $0x30] sm:$0xff]
        %v328 = vld [vmem:[%s282 + $0x48] sm:$0xff]
        %v329 = vld [vmem:[%s282 + $0x60] sm:$0xff]
        %v330 = vld [vmem:[%s282 + $0x78] sm:$0xff]
        %v331 = vld [vmem:[%s282 + $0x90] sm:$0xff]
        %v332 = vld [vmem:[%s282 + $0xa8] sm:$0xff]
        %v333 = vld [vmem:[%s282 + $0xc0] sm:$0xff]
        %v334 = vld [vmem:[%s282 + $0xd8] sm:$0xff]
        %v335 = vld [vmem:[%s282 + $0xf0] sm:$0xff]
        %v336 = vld [vmem:[%s282 + $0x108] sm:$0xff]
        %v337 = vld [vmem:[%s282 + $0x120] sm:$0xff]
        %v338 = vld [vmem:[%s282 + $0x138] sm:$0xff]
        %v339 = vld [vmem:[%s282 + $0x150] sm:$0xff]
        %v340 = vld [vmem:[%s282 + $0x168] sm:$0xff]
        %v341 = vld [vmem:[%s282 + $0x180] sm:$0xff]
        %v342 = vld [vmem:[%s282 + $0x198] sm:$0xff]
        %v343 = vld [vmem:[%s282 + $0x1b0] sm:$0xff]
        %v344 = vld [vmem:[%s282 + $0x1c8] sm:$0xff]
        %v345 = vld [vmem:[%s282 + $0x1e0] sm:$0xff]
        %v346 = vld [vmem:[%s282 + $0x1f8] sm:$0xff]
        %v347 = vld [vmem:[%s282 + $0x210] sm:$0xff]
        %v348 = vld [vmem:[%s282 + $0x228] sm:$0xff]
        %v349 = vld [vmem:[%s282 + $0x240] sm:$0xff]
        %v350 = vld [vmem:[%s282 + $0x258] sm:$0xff]
        %v351 = vld [vmem:[%s282 + $0x270] sm:$0xff]
        %v352 = vld [vmem:[%s282 + $0x288] sm:$0xff]
        %v353 = vld [vmem:[%s282 + $0x2a0] sm:$0xff]
        %v354 = vld [vmem:[%s282 + $0x2b8] sm:$0xff]
        %v355 = vld [vmem:[%s282 + $0x2d0] sm:$0xff]
        %v356 = vld [vmem:[%s282 + $0x2e8] sm:$0xff]
        %v357 = vld [vmem:[%s282 + $0x300] sm:$0xff]
        %v358 = vld [vmem:[%s282 + $0x318] sm:$0xff]
        %v359 = vld [vmem:[%s282 + $0x330] sm:$0xff]
        %v360 = vld [vmem:[%s282 + $0x348] sm:$0xff]
        %v361 = vld [vmem:[%s282 + $0x360] sm:$0xff]
        %v362 = vld [vmem:[%s282 + $0x378] sm:$0xff]
        %v363 = vld [vmem:[%s282 + $0x390] sm:$0xff]
        %v364 = vld [vmem:[%s282 + $0x3a8] sm:$0xff]
        %v365 = vld [vmem:[%s282 + $0x3c0] sm:$0xff]
        %v366 = vld [vmem:[%s282 + $0x3d8] sm:$0xff]
        %v367 = vld [vmem:[%s282 + $0x3f0] sm:$0xff]
        %v368 = vld [vmem:[%s282 + $0x408] sm:$0xff]
        %v369 = vld [vmem:[%s282 + $0x420] sm:$0xff]
        %v370 = vld [vmem:[%s282 + $0x438] sm:$0xff]
        %v371 = vld [vmem:[%s282 + $0x450] sm:$0xff]
        %v372 = vld [vmem:[%s282 + $0x468] sm:$0xff]
        %v373 = vld [vmem:[%s282 + $0x480] sm:$0xff]
        %v374 = vld [vmem:[%s282 + $0x498] sm:$0xff]
        %v375 = vld [vmem:[%s282 + $0x4b0] sm:$0xff]
        %v376 = vld [vmem:[%s282 + $0x4c8] sm:$0xff]
        %v377 = vld [vmem:[%s282 + $0x4e0] sm:$0xff]
        %v378 = vld [vmem:[%s282 + $0x4f8] sm:$0xff]
        %v379 = vld [vmem:[%s282 + $0x510] sm:$0xff]
        %v380 = vld [vmem:[%s282 + $0x528] sm:$0xff]
        %v381 = vld [vmem:[%s282 + $0x540] sm:$0xff]
        %v382 = vld [vmem:[%s282 + $0x558] sm:$0xff]
        %v383 = vld [vmem:[%s282 + $0x570] sm:$0xff]
        %v384 = vld [vmem:[%s282 + $0x588] sm:$0xff]
        %v385 = vld [vmem:[%s282 + $0x5a0] sm:$0xff]
        %v386 = vld [vmem:[%s282 + $0x5b8] sm:$0xff]
        %v387 = vld [vmem:[%s282 + $0x5d0] sm:$0xff]
        %v388 = vld [vmem:[%s282 + $0x5e8] sm:$0xff]
        %v389 = vld [vmem:[%s282 + $0x600] sm:$0xff]
        %v390 = vld [vmem:[%s282 + $0x618] sm:$0xff]
        %v391 = vld [vmem:[%s282 + $0x630] sm:$0xff]
        %v392 = vld [vmem:[%s282 + $0x648] sm:$0xff]
        %v393 = vld [vmem:[%s282 + $0x660] sm:$0xff]
        %v394 = vld [vmem:[%s282 + $0x678] sm:$0xff]
        %v395 = vld [vmem:[%s282 + $0x690] sm:$0xff]
        %v396 = vld [vmem:[%s282 + $0x6a8] sm:$0xff]
        %v397 = vld [vmem:[%s282 + $0x6c0] sm:$0xff]
        %v398 = vld [vmem:[%s282 + $0x6d8] sm:$0xff]
        %v399 = vld [vmem:[%s282 + $0x6f0] sm:$0xff]
        %v400 = vld [vmem:[%s282 + $0x708] sm:$0xff]
        %v401 = vld [vmem:[%s282 + $0x720] sm:$0xff]
        %v402 = vld [vmem:[%s282 + $0x738] sm:$0xff]
        %v403 = vld [vmem:[%s282 + $0x750] sm:$0xff]
        %v404 = vld [vmem:[%s282 + $0x768] sm:$0xff]
        %v405 = vld [vmem:[%s282 + $0x780] sm:$0xff]
        %v406 = vld [vmem:[%s282 + $0x798] sm:$0xff]
        %v407 = vld [vmem:[%s282 + $0x7b0] sm:$0xff]
        %v408 = vld [vmem:[%s282 + $0x7c8] sm:$0xff]
        %v409 = vld [vmem:[%s282 + $0x7e0] sm:$0xff]
        %v410 = vld [vmem:[%s282 + $0x7f8] sm:$0xff]
        %v411 = vld [vmem:[%s282 + $0x810] sm:$0xff]
        %v412 = vld [vmem:[%s282 + $0x828] sm:$0xff]
        %v413 = vld [vmem:[%s282 + $0x840] sm:$0xff]
        %v414 = vld [vmem:[%s282 + $0x858] sm:$0xff]
        %v415 = vld [vmem:[%s282 + $0x870] sm:$0xff]
        %v416 = vld [vmem:[%s282 + $0x888] sm:$0xff]
        %v417 = vld [vmem:[%s282 + $0x8a0] sm:$0xff]
        %v418 = vld [vmem:[%s282 + $0x8b8] sm:$0xff]
        %v419 = vld [vmem:[%s282 + $0x8d0] sm:$0xff]
        %v420 = vld [vmem:[%s282 + $0x8e8] sm:$0xff]
        %v421 = vld [vmem:[%s282 + $0x900] sm:$0xff]
        %v422 = vld [vmem:[%s282 + $0x918] sm:$0xff]
        %v423 = vld [vmem:[%s282 + $0x930] sm:$0xff]
        %v424 = vld [vmem:[%s282 + $0x948] sm:$0xff]
        %v425 = vld [vmem:[%s282 + $0x960] sm:$0xff]
        %v426 = vld [vmem:[%s282 + $0x978] sm:$0xff]
        %v427 = vld [vmem:[%s282 + $0x990] sm:$0xff]
        %v428 = vld [vmem:[%s282 + $0x9a8] sm:$0xff]
        %v429 = vld [vmem:[%s282 + $0x9c0] sm:$0xff]
        %v430 = vld [vmem:[%s282 + $0x9d8] sm:$0xff]
        %v431 = vld [vmem:[%s282 + $0x9f0] sm:$0xff]
        %v432 = vld [vmem:[%s282 + $0xa08] sm:$0xff]
        %v433 = vld [vmem:[%s282 + $0xa20] sm:$0xff]
        %v434 = vld [vmem:[%s282 + $0xa38] sm:$0xff]
        %v435 = vld [vmem:[%s282 + $0xa50] sm:$0xff]
        %v436 = vld [vmem:[%s282 + $0xa68] sm:$0xff]
        %v437 = vld [vmem:[%s282 + $0xa80] sm:$0xff]
        %v438 = vld [vmem:[%s282 + $0xa98] sm:$0xff]
        %v439 = vld [vmem:[%s282 + $0xab0] sm:$0xff]
        %v440 = vld [vmem:[%s282 + $0xac8] sm:$0xff]
        %v441 = vld [vmem:[%s282 + $0xae0] sm:$0xff]
        %v442 = vld [vmem:[%s282 + $0xaf8] sm:$0xff]
        %v443 = vld [vmem:[%s282 + $0xb10] sm:$0xff]
        %v444 = vld [vmem:[%s282 + $0xb28] sm:$0xff]
        %v445 = vld [vmem:[%s282 + $0xb40] sm:$0xff]
        %v446 = vld [vmem:[%s282 + $0xb58] sm:$0xff]
        %v447 = vld [vmem:[%s282 + $0xb70] sm:$0xff]
        %v448 = vld [vmem:[%s282 + $0xb88] sm:$0xff]
        %v449 = vld [vmem:[%s282 + $0xba0] sm:$0xff]
        %v450 = vld [vmem:[%s282 + $0xbb8] sm:$0xff]
        %v451 = vld [vmem:[%s282 + $0xbd0] sm:$0xff]
        %v452 = vld [vmem:[%s282 + $0xbe8] sm:$0xff]
        %v453 = vld [vmem:[%s282 + $0xc00] sm:$0xff]
        %v454 = vld [vmem:[%s282 + $0xc18] sm:$0xff]
        %v455 = vld [vmem:[%s282 + $0xc30] sm:$0xff]
        %v456 = vld [vmem:[%s282 + $0xc48] sm:$0xff]
        %v457 = vld [vmem:[%s282 + $0xc60] sm:$0xff]
        %v458 = vld [vmem:[%s282 + $0xc78] sm:$0xff]
        %v459 = vld [vmem:[%s282 + $0xc90] sm:$0xff]
        %v460 = vld [vmem:[%s282 + $0xca8] sm:$0xff]
        %v461 = vld [vmem:[%s282 + $0xcc0] sm:$0xff]
        %v462 = vld [vmem:[%s282 + $0xcd8] sm:$0xff]
        %v463 = vld [vmem:[%s282 + $0xcf0] sm:$0xff]
        %v464 = vld [vmem:[%s282 + $0xd08] sm:$0xff]
        %v465 = vld [vmem:[%s282 + $0xd20] sm:$0xff]
        %v466 = vld [vmem:[%s282 + $0xd38] sm:$0xff]
        %v467 = vld [vmem:[%s282 + $0xd50] sm:$0xff]
        %v468 = vld [vmem:[%s282 + $0xd68] sm:$0xff]
        %v469 = vld [vmem:[%s282 + $0xd80] sm:$0xff]
        %v470 = vld [vmem:[%s282 + $0xd98] sm:$0xff]
        %v471 = vld [vmem:[%s282 + $0xdb0] sm:$0xff]
        %v472 = vld [vmem:[%s282 + $0xdc8] sm:$0xff]
        %v473 = vld [vmem:[%s282 + $0xde0] sm:$0xff]
        %v474 = vld [vmem:[%s282 + $0xdf8] sm:$0xff]
        %v475 = vld [vmem:[%s282 + $0xe10] sm:$0xff]
        %v476 = vld [vmem:[%s282 + $0xe28] sm:$0xff]
        %v477 = vld [vmem:[%s282 + $0xe40] sm:$0xff]
        %v478 = vld [vmem:[%s282 + $0xe58] sm:$0xff]
        %v479 = vld [vmem:[%s282 + $0xe70] sm:$0xff]
        %v480 = vld [vmem:[%s282 + $0xe88] sm:$0xff]
        %v481 = vld [vmem:[%s282 + $0xea0] sm:$0xff]
        %v482 = vld [vmem:[%s282 + $0xeb8] sm:$0xff]
        %v483 = vld [vmem:[%s282 + $0xed0] sm:$0xff]
        %v484 = vld [vmem:[%s282 + $0xee8] sm:$0xff]
        %v485 = vld [vmem:[%s282 + $0xf00] sm:$0xff]
        %v486 = vld [vmem:[%s282 + $0xf18] sm:$0xff]
        %v487 = vld [vmem:[%s282 + $0xf30] sm:$0xff]
        %v488 = vld [vmem:[%s282 + $0xf48] sm:$0xff]
        %v489 = vld [vmem:[%s282 + $0xf60] sm:$0xff]
        %v490 = vld [vmem:[%s282 + $0xf78] sm:$0xff]
        %v491 = vld [vmem:[%s282 + $0xf90] sm:$0xff]
        %v492 = vld [vmem:[%s282 + $0xfa8] sm:$0xff]
        %v493 = vld [vmem:[%s282 + $0xfc0] sm:$0xff]
        %v494 = vld [vmem:[%s282 + $0xfd8] sm:$0xff]
        %v495 = vld [vmem:[%s282 + $0xff0] sm:$0xff]
        %v496 = vld [vmem:[%s282 + $0x1008] sm:$0xff]
        %v497 = vld [vmem:[%s282 + $0x1020] sm:$0xff]
        %v498 = vld [vmem:[%s282 + $0x1038] sm:$0xff]
        %v499 = vld [vmem:[%s282 + $0x1050] sm:$0xff]
        %v500 = vld [vmem:[%s282 + $0x1068] sm:$0xff]
        %v501 = vld [vmem:[%s282 + $0x1080] sm:$0xff]
        %v502 = vld [vmem:[%s282 + $0x1098] sm:$0xff]
        %v503 = vld [vmem:[%s282 + $0x10b0] sm:$0xff]
        %v504 = vld [vmem:[%s282 + $0x10c8] sm:$0xff]
        %v505 = vld [vmem:[%s282 + $0x10e0] sm:$0xff]
        %v506 = vld [vmem:[%s282 + $0x10f8] sm:$0xff]
        %v507 = vld [vmem:[%s282 + $0x1110] sm:$0xff]
        %v508 = vld [vmem:[%s282 + $0x1128] sm:$0xff]
        %v509 = vld [vmem:[%s282 + $0x1140] sm:$0xff]
        %v510 = vld [vmem:[%s282 + $0x1158] sm:$0xff]
        %v511 = vld [vmem:[%s282 + $0x1170] sm:$0xff]
        %v512 = vld [vmem:[%s282 + $0x1188] sm:$0xff]
        %v513 = vld [vmem:[%s282 + $0x11a0] sm:$0xff]
        %v514 = vld [vmem:[%s282 + $0x11b8] sm:$0xff]
        %v515 = vld [vmem:[%s282 + $0x11d0] sm:$0xff]
        %v516 = vld [vmem:[%s282 + $0x11e8] sm:$0xff]
        %v517 = vld [vmem:[%s282 + $0x1200] sm:$0xff]
        %v518 = vld [vmem:[%s282 + $0x1218] sm:$0xff]
        %v519 = vld [vmem:[%s282 + $0x1230] sm:$0xff]
        %v520 = vld [vmem:[%s282 + $0x1248] sm:$0xff]
        %v521 = vld [vmem:[%s282 + $0x1260] sm:$0xff]
        %v522 = vld [vmem:[%s282 + $0x1278] sm:$0xff]
        %v523 = vld [vmem:[%s282 + $0x1290] sm:$0xff]
        %v524 = vld [vmem:[%s282 + $0x12a8] sm:$0xff]
        %v525 = vld [vmem:[%s282 + $0x12c0] sm:$0xff]
        %v526 = vld [vmem:[%s282 + $0x12d8] sm:$0xff]
        %v527 = vld [vmem:[%s282 + $0x12f0] sm:$0xff]
        %v528 = vld [vmem:[%s282 + $0x1308] sm:$0xff]
        %v529 = vld [vmem:[%s282 + $0x1320] sm:$0xff]
        %v530 = vld [vmem:[%s282 + $0x1338] sm:$0xff]
        %v531 = vld [vmem:[%s282 + $0x1350] sm:$0xff]
        %v532 = vld [vmem:[%s282 + $0x1368] sm:$0xff]
        %v533 = vld [vmem:[%s282 + $0x1380] sm:$0xff]
        %v534 = vld [vmem:[%s282 + $0x1398] sm:$0xff]
        %v535 = vld [vmem:[%s282 + $0x13b0] sm:$0xff]
        %v536 = vld [vmem:[%s282 + $0x13c8] sm:$0xff]
        %v537 = vld [vmem:[%s282 + $0x13e0] sm:$0xff]
        %v538 = vld [vmem:[%s282 + $0x13f8] sm:$0xff]
        %v539 = vld [vmem:[%s282 + $0x1410] sm:$0xff]
        %v540 = vld [vmem:[%s282 + $0x1428] sm:$0xff]
        %v541 = vld [vmem:[%s282 + $0x1440] sm:$0xff]
        %v542 = vld [vmem:[%s282 + $0x1458] sm:$0xff]
        %v543 = vld [vmem:[%s282 + $0x1470] sm:$0xff]
        %v544 = vld [vmem:[%s282 + $0x1488] sm:$0xff]
        %v545 = vld [vmem:[%s282 + $0x14a0] sm:$0xff]
        %v546 = vld [vmem:[%s282 + $0x14b8] sm:$0xff]
        %v547 = vld [vmem:[%s282 + $0x14d0] sm:$0xff]
        %v548 = vld [vmem:[%s282 + $0x14e8] sm:$0xff]
        %v549 = vld [vmem:[%s282 + $0x1500] sm:$0xff]
        %v550 = vld [vmem:[%s282 + $0x1518] sm:$0xff]
        %v551 = vld [vmem:[%s282 + $0x1530] sm:$0xff]
        %v552 = vld [vmem:[%s282 + $0x1548] sm:$0xff]
        %v553 = vld [vmem:[%s282 + $0x1560] sm:$0xff]
        %v554 = vld [vmem:[%s282 + $0x1578] sm:$0xff]
        %v555 = vld [vmem:[%s282 + $0x1590] sm:$0xff]
        %v556 = vld [vmem:[%s282 + $0x15a8] sm:$0xff]
        %v557 = vld [vmem:[%s282 + $0x15c0] sm:$0xff]
        %v558 = vld [vmem:[%s282 + $0x15d8] sm:$0xff]
        %v559 = vld [vmem:[%s282 + $0x15f0] sm:$0xff]
        %v560 = vld [vmem:[%s282 + $0x1608] sm:$0xff]
        %v561 = vld [vmem:[%s282 + $0x1620] sm:$0xff]
        %v562 = vld [vmem:[%s282 + $0x1638] sm:$0xff]
        %v563 = vld [vmem:[%s282 + $0x1650] sm:$0xff]
        %v564 = vld [vmem:[%s282 + $0x1668] sm:$0xff]
        %v565 = vld [vmem:[%s282 + $0x1680] sm:$0xff]
        %v566 = vld [vmem:[%s282 + $0x1698] sm:$0xff]
        %v567 = vld [vmem:[%s282 + $0x16b0] sm:$0xff]
        %v568 = vld [vmem:[%s282 + $0x16c8] sm:$0xff]
        %v569 = vld [vmem:[%s282 + $0x16e0] sm:$0xff]
        %v570 = vld [vmem:[%s282 + $0x16f8] sm:$0xff]
        %v571 = vld [vmem:[%s282 + $0x1710] sm:$0xff]
        %v572 = vld [vmem:[%s282 + $0x1728] sm:$0xff]
        %v573 = vld [vmem:[%s282 + $0x1740] sm:$0xff]
        %v574 = vld [vmem:[%s282 + $0x1758] sm:$0xff]
        %v575 = vld [vmem:[%s282 + $0x1770] sm:$0xff]
        %v576 = vld [vmem:[%s282 + $0x1788] sm:$0xff]
        %v577 = vld [vmem:[%s282 + $0x17a0] sm:$0xff]
        %v578 = vld [vmem:[%s282 + $0x17b8] sm:$0xff]
        %v579 = vld [vmem:[%s282 + $0x17d0] sm:$0xff]
        %v580 = vld [vmem:[%s282 + $0x17e8] sm:$0xff]
        %v581 = vunpack.c.l.bf16 %v325
        %v582 = vunpack.c.h.bf16 %v325
        %v583 = vunpack.c.l.bf16 %v326
        %v584 = vunpack.c.h.bf16 %v326
        %v585 = vunpack.c.l.bf16 %v327
        %v586 = vunpack.c.h.bf16 %v327
        %v587 = vunpack.c.l.bf16 %v328
        %v588 = vunpack.c.h.bf16 %v328
        %v589 = vunpack.c.l.bf16 %v329
        %v590 = vunpack.c.h.bf16 %v329
        %v591 = vunpack.c.l.bf16 %v330
        %v592 = vunpack.c.h.bf16 %v330
        %v593 = vunpack.c.l.bf16 %v331
        %v594 = vunpack.c.h.bf16 %v331
        %v595 = vunpack.c.l.bf16 %v332
        %v596 = vunpack.c.h.bf16 %v332
        %v597 = vunpack.c.l.bf16 %v333
        %v598 = vunpack.c.h.bf16 %v333
        %v599 = vunpack.c.l.bf16 %v334
        %v600 = vunpack.c.h.bf16 %v334
        %v601 = vunpack.c.l.bf16 %v335
        %v602 = vunpack.c.h.bf16 %v335
        %v603 = vunpack.c.l.bf16 %v336
        %v604 = vunpack.c.h.bf16 %v336
        %v605 = vunpack.c.l.bf16 %v337
        %v606 = vunpack.c.h.bf16 %v337
        %v607 = vunpack.c.l.bf16 %v338
        %v608 = vunpack.c.h.bf16 %v338
        %v609 = vunpack.c.l.bf16 %v339
        %v610 = vunpack.c.h.bf16 %v339
        %v611 = vunpack.c.l.bf16 %v340
        %v612 = vunpack.c.h.bf16 %v340
        %v613 = vunpack.c.l.bf16 %v341
        %v614 = vunpack.c.h.bf16 %v341
        %v615 = vunpack.c.l.bf16 %v342
        %v616 = vunpack.c.h.bf16 %v342
        %v617 = vunpack.c.l.bf16 %v343
        %v618 = vunpack.c.h.bf16 %v343
        %v619 = vunpack.c.l.bf16 %v344
        %v620 = vunpack.c.h.bf16 %v344
        %v621 = vunpack.c.l.bf16 %v345
        %v622 = vunpack.c.h.bf16 %v345
        %v623 = vunpack.c.l.bf16 %v346
        %v624 = vunpack.c.h.bf16 %v346
        %v625 = vunpack.c.l.bf16 %v347
        %v626 = vunpack.c.h.bf16 %v347
        %v627 = vunpack.c.l.bf16 %v348
        %v628 = vunpack.c.h.bf16 %v348
        %v629 = vunpack.c.l.bf16 %v349
        %v630 = vunpack.c.h.bf16 %v349
        %v631 = vunpack.c.l.bf16 %v350
        %v632 = vunpack.c.h.bf16 %v350
        %v633 = vunpack.c.l.bf16 %v351
        %v634 = vunpack.c.h.bf16 %v351
        %v635 = vunpack.c.l.bf16 %v352
        %v636 = vunpack.c.h.bf16 %v352
        %v637 = vunpack.c.l.bf16 %v353
        %v638 = vunpack.c.h.bf16 %v353
        %v639 = vunpack.c.l.bf16 %v354
        %v640 = vunpack.c.h.bf16 %v354
        %v641 = vunpack.c.l.bf16 %v355
        %v642 = vunpack.c.h.bf16 %v355
        %v643 = vunpack.c.l.bf16 %v356
        %v644 = vunpack.c.h.bf16 %v356
        %v645 = vunpack.c.l.bf16 %v357
        %v646 = vunpack.c.h.bf16 %v357
        %v647 = vunpack.c.l.bf16 %v358
        %v648 = vunpack.c.h.bf16 %v358
        %v649 = vunpack.c.l.bf16 %v359
        %v650 = vunpack.c.h.bf16 %v359
        %v651 = vunpack.c.l.bf16 %v360
        %v652 = vunpack.c.h.bf16 %v360
        %v653 = vunpack.c.l.bf16 %v361
        %v654 = vunpack.c.h.bf16 %v361
        %v655 = vunpack.c.l.bf16 %v362
        %v656 = vunpack.c.h.bf16 %v362
        %v657 = vunpack.c.l.bf16 %v363
        %v658 = vunpack.c.h.bf16 %v363
        %v659 = vunpack.c.l.bf16 %v364
        %v660 = vunpack.c.h.bf16 %v364
        %v661 = vunpack.c.l.bf16 %v365
        %v662 = vunpack.c.h.bf16 %v365
        %v663 = vunpack.c.l.bf16 %v366
        %v664 = vunpack.c.h.bf16 %v366
        %v665 = vunpack.c.l.bf16 %v367
        %v666 = vunpack.c.h.bf16 %v367
        %v667 = vunpack.c.l.bf16 %v368
        %v668 = vunpack.c.h.bf16 %v368
        %v669 = vunpack.c.l.bf16 %v369
        %v670 = vunpack.c.h.bf16 %v369
        %v671 = vunpack.c.l.bf16 %v370
        %v672 = vunpack.c.h.bf16 %v370
        %v673 = vunpack.c.l.bf16 %v371
        %v674 = vunpack.c.h.bf16 %v371
        %v675 = vunpack.c.l.bf16 %v372
        %v676 = vunpack.c.h.bf16 %v372
        %v677 = vunpack.c.l.bf16 %v373
        %v678 = vunpack.c.h.bf16 %v373
        %v679 = vunpack.c.l.bf16 %v374
        %v680 = vunpack.c.h.bf16 %v374
        %v681 = vunpack.c.l.bf16 %v375
        %v682 = vunpack.c.h.bf16 %v375
        %v683 = vunpack.c.l.bf16 %v376
        %v684 = vunpack.c.h.bf16 %v376
        %v685 = vunpack.c.l.bf16 %v377
        %v686 = vunpack.c.h.bf16 %v377
        %v687 = vunpack.c.l.bf16 %v378
        %v688 = vunpack.c.h.bf16 %v378
        %v689 = vunpack.c.l.bf16 %v379
        %v690 = vunpack.c.h.bf16 %v379
        %v691 = vunpack.c.l.bf16 %v380
        %v692 = vunpack.c.h.bf16 %v380
        %v693 = vunpack.c.l.bf16 %v381
        %v694 = vunpack.c.h.bf16 %v381
        %v695 = vunpack.c.l.bf16 %v382
        %v696 = vunpack.c.h.bf16 %v382
        %v697 = vunpack.c.l.bf16 %v383
        %v698 = vunpack.c.h.bf16 %v383
        %v699 = vunpack.c.l.bf16 %v384
        %v700 = vunpack.c.h.bf16 %v384
        %v701 = vunpack.c.l.bf16 %v385
        %v702 = vunpack.c.h.bf16 %v385
        %v703 = vunpack.c.l.bf16 %v386
        %v704 = vunpack.c.h.bf16 %v386
        %v705 = vunpack.c.l.bf16 %v387
        %v706 = vunpack.c.h.bf16 %v387
        %v707 = vunpack.c.l.bf16 %v388
        %v708 = vunpack.c.h.bf16 %v388
        %v709 = vunpack.c.l.bf16 %v389
        %v710 = vunpack.c.h.bf16 %v389
        %v711 = vunpack.c.l.bf16 %v390
        %v712 = vunpack.c.h.bf16 %v390
        %v713 = vunpack.c.l.bf16 %v391
        %v714 = vunpack.c.h.bf16 %v391
        %v715 = vunpack.c.l.bf16 %v392
        %v716 = vunpack.c.h.bf16 %v392
        %v717 = vunpack.c.l.bf16 %v393
        %v718 = vunpack.c.h.bf16 %v393
        %v719 = vunpack.c.l.bf16 %v394
        %v720 = vunpack.c.h.bf16 %v394
        %v721 = vunpack.c.l.bf16 %v395
        %v722 = vunpack.c.h.bf16 %v395
        %v723 = vunpack.c.l.bf16 %v396
        %v724 = vunpack.c.h.bf16 %v396
        %v725 = vunpack.c.l.bf16 %v397
        %v726 = vunpack.c.h.bf16 %v397
        %v727 = vunpack.c.l.bf16 %v398
        %v728 = vunpack.c.h.bf16 %v398
        %v729 = vunpack.c.l.bf16 %v399
        %v730 = vunpack.c.h.bf16 %v399
        %v731 = vunpack.c.l.bf16 %v400
        %v732 = vunpack.c.h.bf16 %v400
        %v733 = vunpack.c.l.bf16 %v401
        %v734 = vunpack.c.h.bf16 %v401
        %v735 = vunpack.c.l.bf16 %v402
        %v736 = vunpack.c.h.bf16 %v402
        %v737 = vunpack.c.l.bf16 %v403
        %v738 = vunpack.c.h.bf16 %v403
        %v739 = vunpack.c.l.bf16 %v404
        %v740 = vunpack.c.h.bf16 %v404
        %v741 = vunpack.c.l.bf16 %v405
        %v742 = vunpack.c.h.bf16 %v405
        %v743 = vunpack.c.l.bf16 %v406
        %v744 = vunpack.c.h.bf16 %v406
        %v745 = vunpack.c.l.bf16 %v407
        %v746 = vunpack.c.h.bf16 %v407
        %v747 = vunpack.c.l.bf16 %v408
        %v748 = vunpack.c.h.bf16 %v408
        %v749 = vunpack.c.l.bf16 %v409
        %v750 = vunpack.c.h.bf16 %v409
        %v751 = vunpack.c.l.bf16 %v410
        %v752 = vunpack.c.h.bf16 %v410
        %v753 = vunpack.c.l.bf16 %v411
        %v754 = vunpack.c.h.bf16 %v411
        %v755 = vunpack.c.l.bf16 %v412
        %v756 = vunpack.c.h.bf16 %v412
        %v757 = vunpack.c.l.bf16 %v413
        %v758 = vunpack.c.h.bf16 %v413
        %v759 = vunpack.c.l.bf16 %v414
        %v760 = vunpack.c.h.bf16 %v414
        %v761 = vunpack.c.l.bf16 %v415
        %v762 = vunpack.c.h.bf16 %v415
        %v763 = vunpack.c.l.bf16 %v416
        %v764 = vunpack.c.h.bf16 %v416
        %v765 = vunpack.c.l.bf16 %v417
        %v766 = vunpack.c.h.bf16 %v417
        %v767 = vunpack.c.l.bf16 %v418
        %v768 = vunpack.c.h.bf16 %v418
        %v769 = vunpack.c.l.bf16 %v419
        %v770 = vunpack.c.h.bf16 %v419
        %v771 = vunpack.c.l.bf16 %v420
        %v772 = vunpack.c.h.bf16 %v420
        %v773 = vunpack.c.l.bf16 %v421
        %v774 = vunpack.c.h.bf16 %v421
        %v775 = vunpack.c.l.bf16 %v422
        %v776 = vunpack.c.h.bf16 %v422
        %v777 = vunpack.c.l.bf16 %v423
        %v778 = vunpack.c.h.bf16 %v423
        %v779 = vunpack.c.l.bf16 %v424
        %v780 = vunpack.c.h.bf16 %v424
        %v781 = vunpack.c.l.bf16 %v425
        %v782 = vunpack.c.h.bf16 %v425
        %v783 = vunpack.c.l.bf16 %v426
        %v784 = vunpack.c.h.bf16 %v426
        %v785 = vunpack.c.l.bf16 %v427
        %v786 = vunpack.c.h.bf16 %v427
        %v787 = vunpack.c.l.bf16 %v428
        %v788 = vunpack.c.h.bf16 %v428
        %v789 = vunpack.c.l.bf16 %v429
        %v790 = vunpack.c.h.bf16 %v429
        %v791 = vunpack.c.l.bf16 %v430
        %v792 = vunpack.c.h.bf16 %v430
        %v793 = vunpack.c.l.bf16 %v431
        %v794 = vunpack.c.h.bf16 %v431
        %v795 = vunpack.c.l.bf16 %v432
        %v796 = vunpack.c.h.bf16 %v432
        %v797 = vunpack.c.l.bf16 %v433
        %v798 = vunpack.c.h.bf16 %v433
        %v799 = vunpack.c.l.bf16 %v434
        %v800 = vunpack.c.h.bf16 %v434
        %v801 = vunpack.c.l.bf16 %v435
        %v802 = vunpack.c.h.bf16 %v435
        %v803 = vunpack.c.l.bf16 %v436
        %v804 = vunpack.c.h.bf16 %v436
        %v805 = vunpack.c.l.bf16 %v437
        %v806 = vunpack.c.h.bf16 %v437
        %v807 = vunpack.c.l.bf16 %v438
        %v808 = vunpack.c.h.bf16 %v438
        %v809 = vunpack.c.l.bf16 %v439
        %v810 = vunpack.c.h.bf16 %v439
        %v811 = vunpack.c.l.bf16 %v440
        %v812 = vunpack.c.h.bf16 %v440
        %v813 = vunpack.c.l.bf16 %v441
        %v814 = vunpack.c.h.bf16 %v441
        %v815 = vunpack.c.l.bf16 %v442
        %v816 = vunpack.c.h.bf16 %v442
        %v817 = vunpack.c.l.bf16 %v443
        %v818 = vunpack.c.h.bf16 %v443
        %v819 = vunpack.c.l.bf16 %v444
        %v820 = vunpack.c.h.bf16 %v444
        %v821 = vunpack.c.l.bf16 %v445
        %v822 = vunpack.c.h.bf16 %v445
        %v823 = vunpack.c.l.bf16 %v446
        %v824 = vunpack.c.h.bf16 %v446
        %v825 = vunpack.c.l.bf16 %v447
        %v826 = vunpack.c.h.bf16 %v447
        %v827 = vunpack.c.l.bf16 %v448
        %v828 = vunpack.c.h.bf16 %v448
        %v829 = vunpack.c.l.bf16 %v449
        %v830 = vunpack.c.h.bf16 %v449
        %v831 = vunpack.c.l.bf16 %v450
        %v832 = vunpack.c.h.bf16 %v450
        %v833 = vunpack.c.l.bf16 %v451
        %v834 = vunpack.c.h.bf16 %v451
        %v835 = vunpack.c.l.bf16 %v452
        %v836 = vunpack.c.h.bf16 %v452
        %v837 = vunpack.c.l.bf16 %v453
        %v838 = vunpack.c.h.bf16 %v453
        %v839 = vunpack.c.l.bf16 %v454
        %v840 = vunpack.c.h.bf16 %v454
        %v841 = vunpack.c.l.bf16 %v455
        %v842 = vunpack.c.h.bf16 %v455
        %v843 = vunpack.c.l.bf16 %v456
        %v844 = vunpack.c.h.bf16 %v456
        %v845 = vunpack.c.l.bf16 %v457
        %v846 = vunpack.c.h.bf16 %v457
        %v847 = vunpack.c.l.bf16 %v458
        %v848 = vunpack.c.h.bf16 %v458
        %v849 = vunpack.c.l.bf16 %v459
        %v850 = vunpack.c.h.bf16 %v459
        %v851 = vunpack.c.l.bf16 %v460
        %v852 = vunpack.c.h.bf16 %v460
        %v853 = vunpack.c.l.bf16 %v461
        %v854 = vunpack.c.h.bf16 %v461
        %v855 = vunpack.c.l.bf16 %v462
        %v856 = vunpack.c.h.bf16 %v462
        %v857 = vunpack.c.l.bf16 %v463
        %v858 = vunpack.c.h.bf16 %v463
        %v859 = vunpack.c.l.bf16 %v464
        %v860 = vunpack.c.h.bf16 %v464
        %v861 = vunpack.c.l.bf16 %v465
        %v862 = vunpack.c.h.bf16 %v465
        %v863 = vunpack.c.l.bf16 %v466
        %v864 = vunpack.c.h.bf16 %v466
        %v865 = vunpack.c.l.bf16 %v467
        %v866 = vunpack.c.h.bf16 %v467
        %v867 = vunpack.c.l.bf16 %v468
        %v868 = vunpack.c.h.bf16 %v468
        %v869 = vunpack.c.l.bf16 %v469
        %v870 = vunpack.c.h.bf16 %v469
        %v871 = vunpack.c.l.bf16 %v470
        %v872 = vunpack.c.h.bf16 %v470
        %v873 = vunpack.c.l.bf16 %v471
        %v874 = vunpack.c.h.bf16 %v471
        %v875 = vunpack.c.l.bf16 %v472
        %v876 = vunpack.c.h.bf16 %v472
        %v877 = vunpack.c.l.bf16 %v473
        %v878 = vunpack.c.h.bf16 %v473
        %v879 = vunpack.c.l.bf16 %v474
        %v880 = vunpack.c.h.bf16 %v474
        %v881 = vunpack.c.l.bf16 %v475
        %v882 = vunpack.c.h.bf16 %v475
        %v883 = vunpack.c.l.bf16 %v476
        %v884 = vunpack.c.h.bf16 %v476
        %v885 = vunpack.c.l.bf16 %v477
        %v886 = vunpack.c.h.bf16 %v477
        %v887 = vunpack.c.l.bf16 %v478
        %v888 = vunpack.c.h.bf16 %v478
        %v889 = vunpack.c.l.bf16 %v479
        %v890 = vunpack.c.h.bf16 %v479
        %v891 = vunpack.c.l.bf16 %v480
        %v892 = vunpack.c.h.bf16 %v480
        %v893 = vunpack.c.l.bf16 %v481
        %v894 = vunpack.c.h.bf16 %v481
        %v895 = vunpack.c.l.bf16 %v482
        %v896 = vunpack.c.h.bf16 %v482
        %v897 = vunpack.c.l.bf16 %v483
        %v898 = vunpack.c.h.bf16 %v483
        %v899 = vunpack.c.l.bf16 %v484
        %v900 = vunpack.c.h.bf16 %v484
        %v901 = vunpack.c.l.bf16 %v485
        %v902 = vunpack.c.h.bf16 %v485
        %v903 = vunpack.c.l.bf16 %v486
        %v904 = vunpack.c.h.bf16 %v486
        %v905 = vunpack.c.l.bf16 %v487
        %v906 = vunpack.c.h.bf16 %v487
        %v907 = vunpack.c.l.bf16 %v488
        %v908 = vunpack.c.h.bf16 %v488
        %v909 = vunpack.c.l.bf16 %v489
        %v910 = vunpack.c.h.bf16 %v489
        %v911 = vunpack.c.l.bf16 %v490
        %v912 = vunpack.c.h.bf16 %v490
        %v913 = vunpack.c.l.bf16 %v491
        %v914 = vunpack.c.h.bf16 %v491
        %v915 = vunpack.c.l.bf16 %v492
        %v916 = vunpack.c.h.bf16 %v492
        %v917 = vunpack.c.l.bf16 %v493
        %v918 = vunpack.c.h.bf16 %v493
        %v919 = vunpack.c.l.bf16 %v494
        %v920 = vunpack.c.h.bf16 %v494
        %v921 = vunpack.c.l.bf16 %v495
        %v922 = vunpack.c.h.bf16 %v495
        %v923 = vunpack.c.l.bf16 %v496
        %v924 = vunpack.c.h.bf16 %v496
        %v925 = vunpack.c.l.bf16 %v497
        %v926 = vunpack.c.h.bf16 %v497
        %v927 = vunpack.c.l.bf16 %v498
        %v928 = vunpack.c.h.bf16 %v498
        %v929 = vunpack.c.l.bf16 %v499
        %v930 = vunpack.c.h.bf16 %v499
        %v931 = vunpack.c.l.bf16 %v500
        %v932 = vunpack.c.h.bf16 %v500
        %v933 = vunpack.c.l.bf16 %v501
        %v934 = vunpack.c.h.bf16 %v501
        %v935 = vunpack.c.l.bf16 %v502
        %v936 = vunpack.c.h.bf16 %v502
        %v937 = vunpack.c.l.bf16 %v503
        %v938 = vunpack.c.h.bf16 %v503
        %v939 = vunpack.c.l.bf16 %v504
        %v940 = vunpack.c.h.bf16 %v504
        %v941 = vunpack.c.l.bf16 %v505
        %v942 = vunpack.c.h.bf16 %v505
        %v943 = vunpack.c.l.bf16 %v506
        %v944 = vunpack.c.h.bf16 %v506
        %v945 = vunpack.c.l.bf16 %v507
        %v946 = vunpack.c.h.bf16 %v507
        %v947 = vunpack.c.l.bf16 %v508
        %v948 = vunpack.c.h.bf16 %v508
        %v949 = vunpack.c.l.bf16 %v509
        %v950 = vunpack.c.h.bf16 %v509
        %v951 = vunpack.c.l.bf16 %v510
        %v952 = vunpack.c.h.bf16 %v510
        %v953 = vunpack.c.l.bf16 %v511
        %v954 = vunpack.c.h.bf16 %v511
        %v955 = vunpack.c.l.bf16 %v512
        %v956 = vunpack.c.h.bf16 %v512
        %v957 = vunpack.c.l.bf16 %v513
        %v958 = vunpack.c.h.bf16 %v513
        %v959 = vunpack.c.l.bf16 %v514
        %v960 = vunpack.c.h.bf16 %v514
        %v961 = vunpack.c.l.bf16 %v515
        %v962 = vunpack.c.h.bf16 %v515
        %v963 = vunpack.c.l.bf16 %v516
        %v964 = vunpack.c.h.bf16 %v516
        %v965 = vunpack.c.l.bf16 %v517
        %v966 = vunpack.c.h.bf16 %v517
        %v967 = vunpack.c.l.bf16 %v518
        %v968 = vunpack.c.h.bf16 %v518
        %v969 = vunpack.c.l.bf16 %v519
        %v970 = vunpack.c.h.bf16 %v519
        %v971 = vunpack.c.l.bf16 %v520
        %v972 = vunpack.c.h.bf16 %v520
        %v973 = vunpack.c.l.bf16 %v521
        %v974 = vunpack.c.h.bf16 %v521
        %v975 = vunpack.c.l.bf16 %v522
        %v976 = vunpack.c.h.bf16 %v522
        %v977 = vunpack.c.l.bf16 %v523
        %v978 = vunpack.c.h.bf16 %v523
        %v979 = vunpack.c.l.bf16 %v524
        %v980 = vunpack.c.h.bf16 %v524
        %v981 = vunpack.c.l.bf16 %v525
        %v982 = vunpack.c.h.bf16 %v525
        %v983 = vunpack.c.l.bf16 %v526
        %v984 = vunpack.c.h.bf16 %v526
        %v985 = vunpack.c.l.bf16 %v527
        %v986 = vunpack.c.h.bf16 %v527
        %v987 = vunpack.c.l.bf16 %v528
        %v988 = vunpack.c.h.bf16 %v528
        %v989 = vunpack.c.l.bf16 %v529
        %v990 = vunpack.c.h.bf16 %v529
        %v991 = vunpack.c.l.bf16 %v530
        %v992 = vunpack.c.h.bf16 %v530
        %v993 = vunpack.c.l.bf16 %v531
        %v994 = vunpack.c.h.bf16 %v531
        %v995 = vunpack.c.l.bf16 %v532
        %v996 = vunpack.c.h.bf16 %v532
        %v997 = vunpack.c.l.bf16 %v533
        %v998 = vunpack.c.h.bf16 %v533
        %v999 = vunpack.c.l.bf16 %v534
        %v1000 = vunpack.c.h.bf16 %v534
        %v1001 = vunpack.c.l.bf16 %v535
        %v1002 = vunpack.c.h.bf16 %v535
        %v1003 = vunpack.c.l.bf16 %v536
        %v1004 = vunpack.c.h.bf16 %v536
        %v1005 = vunpack.c.l.bf16 %v537
        %v1006 = vunpack.c.h.bf16 %v537
        %v1007 = vunpack.c.l.bf16 %v538
        %v1008 = vunpack.c.h.bf16 %v538
        %v1009 = vunpack.c.l.bf16 %v539
        %v1010 = vunpack.c.h.bf16 %v539
        %v1011 = vunpack.c.l.bf16 %v540
        %v1012 = vunpack.c.h.bf16 %v540
        %v1013 = vunpack.c.l.bf16 %v541
        %v1014 = vunpack.c.h.bf16 %v541
        %v1015 = vunpack.c.l.bf16 %v542
        %v1016 = vunpack.c.h.bf16 %v542
        %v1017 = vunpack.c.l.bf16 %v543
        %v1018 = vunpack.c.h.bf16 %v543
        %v1019 = vunpack.c.l.bf16 %v544
        %v1020 = vunpack.c.h.bf16 %v544
        %v1021 = vunpack.c.l.bf16 %v545
        %v1022 = vunpack.c.h.bf16 %v545
        %v1023 = vunpack.c.l.bf16 %v546
        %v1024 = vunpack.c.h.bf16 %v546
        %v1025 = vunpack.c.l.bf16 %v547
        %v1026 = vunpack.c.h.bf16 %v547
        %v1027 = vunpack.c.l.bf16 %v548
        %v1028 = vunpack.c.h.bf16 %v548
        %v1029 = vunpack.c.l.bf16 %v549
        %v1030 = vunpack.c.h.bf16 %v549
        %v1031 = vunpack.c.l.bf16 %v550
        %v1032 = vunpack.c.h.bf16 %v550
        %v1033 = vunpack.c.l.bf16 %v551
        %v1034 = vunpack.c.h.bf16 %v551
        %v1035 = vunpack.c.l.bf16 %v552
        %v1036 = vunpack.c.h.bf16 %v552
        %v1037 = vunpack.c.l.bf16 %v553
        %v1038 = vunpack.c.h.bf16 %v553
        %v1039 = vunpack.c.l.bf16 %v554
        %v1040 = vunpack.c.h.bf16 %v554
        %v1041 = vunpack.c.l.bf16 %v555
        %v1042 = vunpack.c.h.bf16 %v555
        %v1043 = vunpack.c.l.bf16 %v556
        %v1044 = vunpack.c.h.bf16 %v556
        %v1045 = vunpack.c.l.bf16 %v557
        %v1046 = vunpack.c.h.bf16 %v557
        %v1047 = vunpack.c.l.bf16 %v558
        %v1048 = vunpack.c.h.bf16 %v558
        %v1049 = vunpack.c.l.bf16 %v559
        %v1050 = vunpack.c.h.bf16 %v559
        %v1051 = vunpack.c.l.bf16 %v560
        %v1052 = vunpack.c.h.bf16 %v560
        %v1053 = vunpack.c.l.bf16 %v561
        %v1054 = vunpack.c.h.bf16 %v561
        %v1055 = vunpack.c.l.bf16 %v562
        %v1056 = vunpack.c.h.bf16 %v562
        %v1057 = vunpack.c.l.bf16 %v563
        %v1058 = vunpack.c.h.bf16 %v563
        %v1059 = vunpack.c.l.bf16 %v564
        %v1060 = vunpack.c.h.bf16 %v564
        %v1061 = vunpack.c.l.bf16 %v565
        %v1062 = vunpack.c.h.bf16 %v565
        %v1063 = vunpack.c.l.bf16 %v566
        %v1064 = vunpack.c.h.bf16 %v566
        %v1065 = vunpack.c.l.bf16 %v567
        %v1066 = vunpack.c.h.bf16 %v567
        %v1067 = vunpack.c.l.bf16 %v568
        %v1068 = vunpack.c.h.bf16 %v568
        %v1069 = vunpack.c.l.bf16 %v569
        %v1070 = vunpack.c.h.bf16 %v569
        %v1071 = vunpack.c.l.bf16 %v570
        %v1072 = vunpack.c.h.bf16 %v570
        %v1073 = vunpack.c.l.bf16 %v571
        %v1074 = vunpack.c.h.bf16 %v571
        %v1075 = vunpack.c.l.bf16 %v572
        %v1076 = vunpack.c.h.bf16 %v572
        %v1077 = vunpack.c.l.bf16 %v573
        %v1078 = vunpack.c.h.bf16 %v573
        %v1079 = vunpack.c.l.bf16 %v574
        %v1080 = vunpack.c.h.bf16 %v574
        %v1081 = vunpack.c.l.bf16 %v575
        %v1082 = vunpack.c.h.bf16 %v575
        %v1083 = vunpack.c.l.bf16 %v576
        %v1084 = vunpack.c.h.bf16 %v576
        %v1085 = vunpack.c.l.bf16 %v577
        %v1086 = vunpack.c.h.bf16 %v577
        %v1087 = vunpack.c.l.bf16 %v578
        %v1088 = vunpack.c.h.bf16 %v578
        %v1089 = vunpack.c.l.bf16 %v579
        %v1090 = vunpack.c.h.bf16 %v579
        %v1091 = vunpack.c.l.bf16 %v580
        %v1092 = vunpack.c.h.bf16 %v580
        %v1093 = vld [vmem:[%s291] sm:$0x3]
        %v1094 = vld [vmem:[#allocation2] sm:$0xff]
        %v1095 = vld [vmem:[#allocation2 + $0x8] sm:$0xff]
        %v1096 = vld [vmem:[#allocation2 + $0x10] sm:$0xff]
        %v1097 = vld [vmem:[#allocation2 + $0x18] sm:$0xff]
        %v1098 = vld [vmem:[#allocation2 + $0x20] sm:$0xff]
        %v1099 = vld [vmem:[#allocation2 + $0x28] sm:$0xff]
        %v1100 = vld [vmem:[#allocation2 + $0x30] sm:$0xff]
        %v1101 = vld [vmem:[#allocation2 + $0x38] sm:$0xff]
        %v1102 = vld [vmem:[#allocation2 + $0x40] sm:$0xff]
        %v1103 = vld [vmem:[#allocation2 + $0x48] sm:$0xff]
        %v1104 = vld [vmem:[#allocation2 + $0x50] sm:$0xff]
        %v1105 = vld [vmem:[#allocation2 + $0x58] sm:$0xff]
        %v1106 = vld [vmem:[#allocation2 + $0x60] sm:$0xff]
        %v1107 = vld [vmem:[#allocation2 + $0x68] sm:$0xff]
        %v1108 = vld [vmem:[#allocation2 + $0x70] sm:$0xff]
        %v1109 = vld [vmem:[#allocation2 + $0x78] sm:$0xff]
        %v1110 = vld [vmem:[#allocation2 + $0x80] sm:$0xff]
        %v1111 = vld [vmem:[#allocation2 + $0x88] sm:$0xff]
        %v1112 = vld [vmem:[#allocation2 + $0x90] sm:$0xff]
        %v1113 = vld [vmem:[#allocation2 + $0x98] sm:$0xff]
        %v1114 = vld [vmem:[#allocation2 + $0xa0] sm:$0xff]
        %v1115 = vld [vmem:[#allocation2 + $0xa8] sm:$0xff]
        %v1116 = vld [vmem:[#allocation2 + $0xb0] sm:$0xff]
        %v1117 = vld [vmem:[#allocation2 + $0xb8] sm:$0xff]
        %v1118 = vld [vmem:[#allocation2 + $0xc0] sm:$0xff]
        %v1119 = vld [vmem:[#allocation2 + $0xc8] sm:$0xff]
        %v1120 = vld [vmem:[#allocation2 + $0xd0] sm:$0xff]
        %v1121 = vld [vmem:[#allocation2 + $0xd8] sm:$0xff]
        %v1122 = vld [vmem:[#allocation2 + $0xe0] sm:$0xff]
        %v1123 = vld [vmem:[#allocation2 + $0xe8] sm:$0xff]
        %v1124 = vld [vmem:[#allocation2 + $0xf0] sm:$0xff]
        %v1125 = vld [vmem:[#allocation2 + $0xf8] sm:$0xff]
        %v1127 = vlaneseq
        %v1128 = vshrl.u32 %v1127, 7
        %v1129 = vsub.s32 0, %v1128
        %v1130 = vrot.slane %v1093, %v1129
        %v1131 = vlaneseq
        %v1132 = vshrl.u32 %v1131, 7
        %v1133 = vsub.s32 1, %v1132
        %v1134 = vrot.slane %v1093, %v1133
        %1137 = vmatprep.subr.mxu0 %v612
        %1138 = vmatpush1.msra.mxu0 %v611
        %1139 = vmatprep.subr.mxu0 %v610
        %1140 = vmatpush1.msra.mxu0 %v609
        %1141 = vmatprep.subr.mxu0 %v608
        %1142 = vmatpush1.msra.mxu0 %v607
        %1143 = vmatprep.subr.mxu0 %v606
        %1144 = vmatpush1.msra.mxu0 %v605
        %1145 = vmatprep.subr.mxu0 %v604
        %1146 = vmatpush1.msra.mxu0 %v603
        %1147 = vmatprep.subr.mxu0 %v602
        %1148 = vmatpush1.msra.mxu0 %v601
        %1149 = vmatprep.subr.mxu0 %v600
        %1150 = vmatpush1.msra.mxu0 %v599
        %1151 = vmatprep.subr.mxu0 %v598
        %1152 = vmatpush1.msra.mxu0 %v597
        %1153 = vmatprep.subr.mxu0 %v596
        %1154 = vmatpush1.msra.mxu0 %v595
        %1155 = vmatprep.subr.mxu0 %v594
        %1156 = vmatpush1.msra.mxu0 %v593
        %1157 = vmatprep.subr.mxu0 %v592
        %1158 = vmatpush1.msra.mxu0 %v591
        %1159 = vmatprep.subr.mxu0 %v590
        %1160 = vmatpush1.msra.mxu0 %v589
        %1161 = vmatprep.subr.mxu0 %v588
        %1162 = vmatpush1.msra.mxu0 %v587
        %1163 = vmatprep.subr.mxu0 %v586
        %1164 = vmatpush1.msra.mxu0 %v585
        %1165 = vmatprep.subr.mxu0 %v584
        %1166 = vmatpush1.msra.mxu0 %v583
        %1167 = vmatprep.subr.mxu0 %v582
        %1168 = vmatpush1.msra.mxu0 %v581
        %1169 = vmatprep.subr.mxu0 %v644
        %1170 = vmatpush2.msra.mxu0 %v643
        %1171 = vmatprep.subr.mxu0 %v642
        %1172 = vmatpush2.msra.mxu0 %v641
        %1173 = vmatprep.subr.mxu0 %v640
        %1174 = vmatpush2.msra.mxu0 %v639
        %1175 = vmatprep.subr.mxu0 %v638
        %1176 = vmatpush2.msra.mxu0 %v637
        %1177 = vmatprep.subr.mxu0 %v636
        %1178 = vmatpush2.msra.mxu0 %v635
        %1179 = vmatprep.subr.mxu0 %v634
        %1180 = vmatpush2.msra.mxu0 %v633
        %1181 = vmatprep.subr.mxu0 %v632
        %1182 = vmatpush2.msra.mxu0 %v631
        %1183 = vmatprep.subr.mxu0 %v630
        %1184 = vmatpush2.msra.mxu0 %v629
        %1185 = vmatprep.subr.mxu0 %v628
        %1186 = vmatpush2.msra.mxu0 %v627
        %1187 = vmatprep.subr.mxu0 %v626
        %1188 = vmatpush2.msra.mxu0 %v625
        %1189 = vmatprep.subr.mxu0 %v624
        %1190 = vmatpush2.msra.mxu0 %v623
        %1191 = vmatprep.subr.mxu0 %v622
        %1192 = vmatpush2.msra.mxu0 %v621
        %1193 = vmatprep.subr.mxu0 %v620
        %1194 = vmatpush2.msra.mxu0 %v619
        %1195 = vmatprep.subr.mxu0 %v618
        %1196 = vmatpush2.msra.mxu0 %v617
        %1197 = vmatprep.subr.mxu0 %v616
        %1198 = vmatpush2.msra.mxu0 %v615
        %1199 = vmatprep.subr.mxu0 %v614
        %1200 = vmatpush2.msra.mxu0 %v613
        %1201 = vmatprep.mubr.f32.mxu0 %v1095
        %1202 = vmatmul.mubr.f32.gmra.mxu0 %v1094
        %v1203 = vpop.f32.mrf.mxu0
        %v1204 = vadd.f32 %v1130, %v1203
        %v1205 = vpop.f32.mrf.mxu0
        %v1206 = vadd.f32 %v1134, %v1205
        %1207 = vmatprep.mubr.f32.mxu0 %v1111
        %1208 = vmatmul.mubr.f32.gmra.mxu0 %v1110
        %v1209 = vpop.f32.mrf.mxu0
        %v1210 = vadd.f32 %v1130, %v1209
        %v1211 = vpop.f32.mrf.mxu0
        %v1212 = vadd.f32 %v1134, %v1211
        %1213 = vdwg.mxu0
        %1214 = vmatprep.subr.mxu0 %v676
        %1215 = vmatpush1.msra.mxu0 %v675
        %1216 = vmatprep.subr.mxu0 %v674
        %1217 = vmatpush1.msra.mxu0 %v673
        %1218 = vmatprep.subr.mxu0 %v672
        %1219 = vmatpush1.msra.mxu0 %v671
        %1220 = vmatprep.subr.mxu0 %v670
        %1221 = vmatpush1.msra.mxu0 %v669
        %1222 = vmatprep.subr.mxu0 %v668
        %1223 = vmatpush1.msra.mxu0 %v667
        %1224 = vmatprep.subr.mxu0 %v666
        %1225 = vmatpush1.msra.mxu0 %v665
        %1226 = vmatprep.subr.mxu0 %v664
        %1227 = vmatpush1.msra.mxu0 %v663
        %1228 = vmatprep.subr.mxu0 %v662
        %1229 = vmatpush1.msra.mxu0 %v661
        %1230 = vmatprep.subr.mxu0 %v660
        %1231 = vmatpush1.msra.mxu0 %v659
        %1232 = vmatprep.subr.mxu0 %v658
        %1233 = vmatpush1.msra.mxu0 %v657
        %1234 = vmatprep.subr.mxu0 %v656
        %1235 = vmatpush1.msra.mxu0 %v655
        %1236 = vmatprep.subr.mxu0 %v654
        %1237 = vmatpush1.msra.mxu0 %v653
        %1238 = vmatprep.subr.mxu0 %v652
        %1239 = vmatpush1.msra.mxu0 %v651
        %1240 = vmatprep.subr.mxu0 %v650
        %1241 = vmatpush1.msra.mxu0 %v649
        %1242 = vmatprep.subr.mxu0 %v648
        %1243 = vmatpush1.msra.mxu0 %v647
        %1244 = vmatprep.subr.mxu0 %v646
        %1245 = vmatpush1.msra.mxu0 %v645
        %1246 = vmatprep.subr.mxu0 %v708
        %1247 = vmatpush2.msra.mxu0 %v707
        %1248 = vmatprep.subr.mxu0 %v706
        %1249 = vmatpush2.msra.mxu0 %v705
        %1250 = vmatprep.subr.mxu0 %v704
        %1251 = vmatpush2.msra.mxu0 %v703
        %1252 = vmatprep.subr.mxu0 %v702
        %1253 = vmatpush2.msra.mxu0 %v701
        %1254 = vmatprep.subr.mxu0 %v700
        %1255 = vmatpush2.msra.mxu0 %v699
        %1256 = vmatprep.subr.mxu0 %v698
        %1257 = vmatpush2.msra.mxu0 %v697
        %1258 = vmatprep.subr.mxu0 %v696
        %1259 = vmatpush2.msra.mxu0 %v695
        %1260 = vmatprep.subr.mxu0 %v694
        %1261 = vmatpush2.msra.mxu0 %v693
        %1262 = vmatprep.subr.mxu0 %v692
        %1263 = vmatpush2.msra.mxu0 %v691
        %1264 = vmatprep.subr.mxu0 %v690
        %1265 = vmatpush2.msra.mxu0 %v689
        %1266 = vmatprep.subr.mxu0 %v688
        %1267 = vmatpush2.msra.mxu0 %v687
        %1268 = vmatprep.subr.mxu0 %v686
        %1269 = vmatpush2.msra.mxu0 %v685
        %1270 = vmatprep.subr.mxu0 %v684
        %1271 = vmatpush2.msra.mxu0 %v683
        %1272 = vmatprep.subr.mxu0 %v682
        %1273 = vmatpush2.msra.mxu0 %v681
        %1274 = vmatprep.subr.mxu0 %v680
        %1275 = vmatpush2.msra.mxu0 %v679
        %1276 = vmatprep.subr.mxu0 %v678
        %1277 = vmatpush2.msra.mxu0 %v677
        %1278 = vmatprep.mubr.f32.mxu0 %v1097
        %1279 = vmatmul.mubr.f32.gmra.mxu0 %v1096
        %v1280 = vpop.f32.mrf.mxu0
        %v1281 = vadd.f32 %v1204, %v1280
        %v1282 = vpop.f32.mrf.mxu0
        %v1283 = vadd.f32 %v1206, %v1282
        %1284 = vmatprep.mubr.f32.mxu0 %v1113
        %1285 = vmatmul.mubr.f32.gmra.mxu0 %v1112
        %v1286 = vpop.f32.mrf.mxu0
        %v1287 = vadd.f32 %v1210, %v1286
        %v1288 = vpop.f32.mrf.mxu0
        %v1289 = vadd.f32 %v1212, %v1288
        %1290 = vdwg.mxu0
        %1291 = vmatprep.subr.mxu0 %v740
        %1292 = vmatpush1.msra.mxu0 %v739
        %1293 = vmatprep.subr.mxu0 %v738
        %1294 = vmatpush1.msra.mxu0 %v737
        %1295 = vmatprep.subr.mxu0 %v736
        %1296 = vmatpush1.msra.mxu0 %v735
        %1297 = vmatprep.subr.mxu0 %v734
        %1298 = vmatpush1.msra.mxu0 %v733
        %1299 = vmatprep.subr.mxu0 %v732
        %1300 = vmatpush1.msra.mxu0 %v731
        %1301 = vmatprep.subr.mxu0 %v730
        %1302 = vmatpush1.msra.mxu0 %v729
        %1303 = vmatprep.subr.mxu0 %v728
        %1304 = vmatpush1.msra.mxu0 %v727
        %1305 = vmatprep.subr.mxu0 %v726
        %1306 = vmatpush1.msra.mxu0 %v725
        %1307 = vmatprep.subr.mxu0 %v724
        %1308 = vmatpush1.msra.mxu0 %v723
        %1309 = vmatprep.subr.mxu0 %v722
        %1310 = vmatpush1.msra.mxu0 %v721
        %1311 = vmatprep.subr.mxu0 %v720
        %1312 = vmatpush1.msra.mxu0 %v719
        %1313 = vmatprep.subr.mxu0 %v718
        %1314 = vmatpush1.msra.mxu0 %v717
        %1315 = vmatprep.subr.mxu0 %v716
        %1316 = vmatpush1.msra.mxu0 %v715
        %1317 = vmatprep.subr.mxu0 %v714
        %1318 = vmatpush1.msra.mxu0 %v713
        %1319 = vmatprep.subr.mxu0 %v712
        %1320 = vmatpush1.msra.mxu0 %v711
        %1321 = vmatprep.subr.mxu0 %v710
        %1322 = vmatpush1.msra.mxu0 %v709
        %1323 = vmatprep.subr.mxu0 %v772
        %1324 = vmatpush2.msra.mxu0 %v771
        %1325 = vmatprep.subr.mxu0 %v770
        %1326 = vmatpush2.msra.mxu0 %v769
        %1327 = vmatprep.subr.mxu0 %v768
        %1328 = vmatpush2.msra.mxu0 %v767
        %1329 = vmatprep.subr.mxu0 %v766
        %1330 = vmatpush2.msra.mxu0 %v765
        %1331 = vmatprep.subr.mxu0 %v764
        %1332 = vmatpush2.msra.mxu0 %v763
        %1333 = vmatprep.subr.mxu0 %v762
        %1334 = vmatpush2.msra.mxu0 %v761
        %1335 = vmatprep.subr.mxu0 %v760
        %1336 = vmatpush2.msra.mxu0 %v759
        %1337 = vmatprep.subr.mxu0 %v758
        %1338 = vmatpush2.msra.mxu0 %v757
        %1339 = vmatprep.subr.mxu0 %v756
        %1340 = vmatpush2.msra.mxu0 %v755
        %1341 = vmatprep.subr.mxu0 %v754
        %1342 = vmatpush2.msra.mxu0 %v753
        %1343 = vmatprep.subr.mxu0 %v752
        %1344 = vmatpush2.msra.mxu0 %v751
        %1345 = vmatprep.subr.mxu0 %v750
        %1346 = vmatpush2.msra.mxu0 %v749
        %1347 = vmatprep.subr.mxu0 %v748
        %1348 = vmatpush2.msra.mxu0 %v747
        %1349 = vmatprep.subr.mxu0 %v746
        %1350 = vmatpush2.msra.mxu0 %v745
        %1351 = vmatprep.subr.mxu0 %v744
        %1352 = vmatpush2.msra.mxu0 %v743
        %1353 = vmatprep.subr.mxu0 %v742
        %1354 = vmatpush2.msra.mxu0 %v741
        %1355 = vmatprep.mubr.f32.mxu0 %v1099
        %1356 = vmatmul.mubr.f32.gmra.mxu0 %v1098
        %v1357 = vpop.f32.mrf.mxu0
        %v1358 = vadd.f32 %v1281, %v1357
        %v1359 = vpop.f32.mrf.mxu0
        %v1360 = vadd.f32 %v1283, %v1359
        %1361 = vmatprep.mubr.f32.mxu0 %v1115
        %1362 = vmatmul.mubr.f32.gmra.mxu0 %v1114
        %v1363 = vpop.f32.mrf.mxu0
        %v1364 = vadd.f32 %v1287, %v1363
        %v1365 = vpop.f32.mrf.mxu0
        %v1366 = vadd.f32 %v1289, %v1365
        %1367 = vdwg.mxu0
        %1368 = vmatprep.subr.mxu0 %v804
        %1369 = vmatpush1.msra.mxu0 %v803
        %1370 = vmatprep.subr.mxu0 %v802
        %1371 = vmatpush1.msra.mxu0 %v801
        %1372 = vmatprep.subr.mxu0 %v800
        %1373 = vmatpush1.msra.mxu0 %v799
        %1374 = vmatprep.subr.mxu0 %v798
        %1375 = vmatpush1.msra.mxu0 %v797
        %1376 = vmatprep.subr.mxu0 %v796
        %1377 = vmatpush1.msra.mxu0 %v795
        %1378 = vmatprep.subr.mxu0 %v794
        %1379 = vmatpush1.msra.mxu0 %v793
        %1380 = vmatprep.subr.mxu0 %v792
        %1381 = vmatpush1.msra.mxu0 %v791
        %1382 = vmatprep.subr.mxu0 %v790
        %1383 = vmatpush1.msra.mxu0 %v789
        %1384 = vmatprep.subr.mxu0 %v788
        %1385 = vmatpush1.msra.mxu0 %v787
        %1386 = vmatprep.subr.mxu0 %v786
        %1387 = vmatpush1.msra.mxu0 %v785
        %1388 = vmatprep.subr.mxu0 %v784
        %1389 = vmatpush1.msra.mxu0 %v783
        %1390 = vmatprep.subr.mxu0 %v782
        %1391 = vmatpush1.msra.mxu0 %v781
        %1392 = vmatprep.subr.mxu0 %v780
        %1393 = vmatpush1.msra.mxu0 %v779
        %1394 = vmatprep.subr.mxu0 %v778
        %1395 = vmatpush1.msra.mxu0 %v777
        %1396 = vmatprep.subr.mxu0 %v776
        %1397 = vmatpush1.msra.mxu0 %v775
        %1398 = vmatprep.subr.mxu0 %v774
        %1399 = vmatpush1.msra.mxu0 %v773
        %1400 = vmatprep.subr.mxu0 %v836
        %1401 = vmatpush2.msra.mxu0 %v835
        %1402 = vmatprep.subr.mxu0 %v834
        %1403 = vmatpush2.msra.mxu0 %v833
        %1404 = vmatprep.subr.mxu0 %v832
        %1405 = vmatpush2.msra.mxu0 %v831
        %1406 = vmatprep.subr.mxu0 %v830
        %1407 = vmatpush2.msra.mxu0 %v829
        %1408 = vmatprep.subr.mxu0 %v828
        %1409 = vmatpush2.msra.mxu0 %v827
        %1410 = vmatprep.subr.mxu0 %v826
        %1411 = vmatpush2.msra.mxu0 %v825
        %1412 = vmatprep.subr.mxu0 %v824
        %1413 = vmatpush2.msra.mxu0 %v823
        %1414 = vmatprep.subr.mxu0 %v822
        %1415 = vmatpush2.msra.mxu0 %v821
        %1416 = vmatprep.subr.mxu0 %v820
        %1417 = vmatpush2.msra.mxu0 %v819
        %1418 = vmatprep.subr.mxu0 %v818
        %1419 = vmatpush2.msra.mxu0 %v817
        %1420 = vmatprep.subr.mxu0 %v816
        %1421 = vmatpush2.msra.mxu0 %v815
        %1422 = vmatprep.subr.mxu0 %v814
        %1423 = vmatpush2.msra.mxu0 %v813
        %1424 = vmatprep.subr.mxu0 %v812
        %1425 = vmatpush2.msra.mxu0 %v811
        %1426 = vmatprep.subr.mxu0 %v810
        %1427 = vmatpush2.msra.mxu0 %v809
        %1428 = vmatprep.subr.mxu0 %v808
        %1429 = vmatpush2.msra.mxu0 %v807
        %1430 = vmatprep.subr.mxu0 %v806
        %1431 = vmatpush2.msra.mxu0 %v805
        %1432 = vmatprep.mubr.f32.mxu0 %v1101
        %1433 = vmatmul.mubr.f32.gmra.mxu0 %v1100
        %v1434 = vpop.f32.mrf.mxu0
        %v1435 = vadd.f32 %v1358, %v1434
        %v1436 = vpop.f32.mrf.mxu0
        %v1437 = vadd.f32 %v1360, %v1436
        %1438 = vmatprep.mubr.f32.mxu0 %v1117
        %1439 = vmatmul.mubr.f32.gmra.mxu0 %v1116
        %v1440 = vpop.f32.mrf.mxu0
        %v1441 = vadd.f32 %v1364, %v1440
        %v1442 = vpop.f32.mrf.mxu0
        %v1443 = vadd.f32 %v1366, %v1442
        %1444 = vdwg.mxu0
        %1445 = vmatprep.subr.mxu0 %v868
        %1446 = vmatpush1.msra.mxu0 %v867
        %1447 = vmatprep.subr.mxu0 %v866
        %1448 = vmatpush1.msra.mxu0 %v865
        %1449 = vmatprep.subr.mxu0 %v864
        %1450 = vmatpush1.msra.mxu0 %v863
        %1451 = vmatprep.subr.mxu0 %v862
        %1452 = vmatpush1.msra.mxu0 %v861
        %1453 = vmatprep.subr.mxu0 %v860
        %1454 = vmatpush1.msra.mxu0 %v859
        %1455 = vmatprep.subr.mxu0 %v858
        %1456 = vmatpush1.msra.mxu0 %v857
        %1457 = vmatprep.subr.mxu0 %v856
        %1458 = vmatpush1.msra.mxu0 %v855
        %1459 = vmatprep.subr.mxu0 %v854
        %1460 = vmatpush1.msra.mxu0 %v853
        %1461 = vmatprep.subr.mxu0 %v852
        %1462 = vmatpush1.msra.mxu0 %v851
        %1463 = vmatprep.subr.mxu0 %v850
        %1464 = vmatpush1.msra.mxu0 %v849
        %1465 = vmatprep.subr.mxu0 %v848
        %1466 = vmatpush1.msra.mxu0 %v847
        %1467 = vmatprep.subr.mxu0 %v846
        %1468 = vmatpush1.msra.mxu0 %v845
        %1469 = vmatprep.subr.mxu0 %v844
        %1470 = vmatpush1.msra.mxu0 %v843
        %1471 = vmatprep.subr.mxu0 %v842
        %1472 = vmatpush1.msra.mxu0 %v841
        %1473 = vmatprep.subr.mxu0 %v840
        %1474 = vmatpush1.msra.mxu0 %v839
        %1475 = vmatprep.subr.mxu0 %v838
        %1476 = vmatpush1.msra.mxu0 %v837
        %1477 = vmatprep.subr.mxu0 %v900
        %1478 = vmatpush2.msra.mxu0 %v899
        %1479 = vmatprep.subr.mxu0 %v898
        %1480 = vmatpush2.msra.mxu0 %v897
        %1481 = vmatprep.subr.mxu0 %v896
        %1482 = vmatpush2.msra.mxu0 %v895
        %1483 = vmatprep.subr.mxu0 %v894
        %1484 = vmatpush2.msra.mxu0 %v893
        %1485 = vmatprep.subr.mxu0 %v892
        %1486 = vmatpush2.msra.mxu0 %v891
        %1487 = vmatprep.subr.mxu0 %v890
        %1488 = vmatpush2.msra.mxu0 %v889
        %1489 = vmatprep.subr.mxu0 %v888
        %1490 = vmatpush2.msra.mxu0 %v887
        %1491 = vmatprep.subr.mxu0 %v886
        %1492 = vmatpush2.msra.mxu0 %v885
        %1493 = vmatprep.subr.mxu0 %v884
        %1494 = vmatpush2.msra.mxu0 %v883
        %1495 = vmatprep.subr.mxu0 %v882
        %1496 = vmatpush2.msra.mxu0 %v881
        %1497 = vmatprep.subr.mxu0 %v880
        %1498 = vmatpush2.msra.mxu0 %v879
        %1499 = vmatprep.subr.mxu0 %v878
        %1500 = vmatpush2.msra.mxu0 %v877
        %1501 = vmatprep.subr.mxu0 %v876
        %1502 = vmatpush2.msra.mxu0 %v875
        %1503 = vmatprep.subr.mxu0 %v874
        %1504 = vmatpush2.msra.mxu0 %v873
        %1505 = vmatprep.subr.mxu0 %v872
        %1506 = vmatpush2.msra.mxu0 %v871
        %1507 = vmatprep.subr.mxu0 %v870
        %1508 = vmatpush2.msra.mxu0 %v869
        %1509 = vmatprep.mubr.f32.mxu0 %v1103
        %1510 = vmatmul.mubr.f32.gmra.mxu0 %v1102
        %v1511 = vpop.f32.mrf.mxu0
        %v1512 = vadd.f32 %v1435, %v1511
        %v1513 = vpop.f32.mrf.mxu0
        %v1514 = vadd.f32 %v1437, %v1513
        %1515 = vmatprep.mubr.f32.mxu0 %v1119
        %1516 = vmatmul.mubr.f32.gmra.mxu0 %v1118
        %v1517 = vpop.f32.mrf.mxu0
        %v1518 = vadd.f32 %v1441, %v1517
        %v1519 = vpop.f32.mrf.mxu0
        %v1520 = vadd.f32 %v1443, %v1519
        %1521 = vdwg.mxu0
        %1522 = vmatprep.subr.mxu0 %v932
        %1523 = vmatpush1.msra.mxu0 %v931
        %1524 = vmatprep.subr.mxu0 %v930
        %1525 = vmatpush1.msra.mxu0 %v929
        %1526 = vmatprep.subr.mxu0 %v928
        %1527 = vmatpush1.msra.mxu0 %v927
        %1528 = vmatprep.subr.mxu0 %v926
        %1529 = vmatpush1.msra.mxu0 %v925
        %1530 = vmatprep.subr.mxu0 %v924
        %1531 = vmatpush1.msra.mxu0 %v923
        %1532 = vmatprep.subr.mxu0 %v922
        %1533 = vmatpush1.msra.mxu0 %v921
        %1534 = vmatprep.subr.mxu0 %v920
        %1535 = vmatpush1.msra.mxu0 %v919
        %1536 = vmatprep.subr.mxu0 %v918
        %1537 = vmatpush1.msra.mxu0 %v917
        %1538 = vmatprep.subr.mxu0 %v916
        %1539 = vmatpush1.msra.mxu0 %v915
        %1540 = vmatprep.subr.mxu0 %v914
        %1541 = vmatpush1.msra.mxu0 %v913
        %1542 = vmatprep.subr.mxu0 %v912
        %1543 = vmatpush1.msra.mxu0 %v911
        %1544 = vmatprep.subr.mxu0 %v910
        %1545 = vmatpush1.msra.mxu0 %v909
        %1546 = vmatprep.subr.mxu0 %v908
        %1547 = vmatpush1.msra.mxu0 %v907
        %1548 = vmatprep.subr.mxu0 %v906
        %1549 = vmatpush1.msra.mxu0 %v905
        %1550 = vmatprep.subr.mxu0 %v904
        %1551 = vmatpush1.msra.mxu0 %v903
        %1552 = vmatprep.subr.mxu0 %v902
        %1553 = vmatpush1.msra.mxu0 %v901
        %1554 = vmatprep.subr.mxu0 %v964
        %1555 = vmatpush2.msra.mxu0 %v963
        %1556 = vmatprep.subr.mxu0 %v962
        %1557 = vmatpush2.msra.mxu0 %v961
        %1558 = vmatprep.subr.mxu0 %v960
        %1559 = vmatpush2.msra.mxu0 %v959
        %1560 = vmatprep.subr.mxu0 %v958
        %1561 = vmatpush2.msra.mxu0 %v957
        %1562 = vmatprep.subr.mxu0 %v956
        %1563 = vmatpush2.msra.mxu0 %v955
        %1564 = vmatprep.subr.mxu0 %v954
        %1565 = vmatpush2.msra.mxu0 %v953
        %1566 = vmatprep.subr.mxu0 %v952
        %1567 = vmatpush2.msra.mxu0 %v951
        %1568 = vmatprep.subr.mxu0 %v950
        %1569 = vmatpush2.msra.mxu0 %v949
        %1570 = vmatprep.subr.mxu0 %v948
        %1571 = vmatpush2.msra.mxu0 %v947
        %1572 = vmatprep.subr.mxu0 %v946
        %1573 = vmatpush2.msra.mxu0 %v945
        %1574 = vmatprep.subr.mxu0 %v944
        %1575 = vmatpush2.msra.mxu0 %v943
        %1576 = vmatprep.subr.mxu0 %v942
        %1577 = vmatpush2.msra.mxu0 %v941
        %1578 = vmatprep.subr.mxu0 %v940
        %1579 = vmatpush2.msra.mxu0 %v939
        %1580 = vmatprep.subr.mxu0 %v938
        %1581 = vmatpush2.msra.mxu0 %v937
        %1582 = vmatprep.subr.mxu0 %v936
        %1583 = vmatpush2.msra.mxu0 %v935
        %1584 = vmatprep.subr.mxu0 %v934
        %1585 = vmatpush2.msra.mxu0 %v933
        %1586 = vmatprep.mubr.f32.mxu0 %v1105
        %1587 = vmatmul.mubr.f32.gmra.mxu0 %v1104
        %v1588 = vpop.f32.mrf.mxu0
        %v1589 = vadd.f32 %v1512, %v1588
        %v1590 = vpop.f32.mrf.mxu0
        %v1591 = vadd.f32 %v1514, %v1590
        %1592 = vmatprep.mubr.f32.mxu0 %v1121
        %1593 = vmatmul.mubr.f32.gmra.mxu0 %v1120
        %v1594 = vpop.f32.mrf.mxu0
        %v1595 = vadd.f32 %v1518, %v1594
        %v1596 = vpop.f32.mrf.mxu0
        %v1597 = vadd.f32 %v1520, %v1596
        %1598 = vdwg.mxu0
        %1599 = vmatprep.subr.mxu0 %v996
        %1600 = vmatpush1.msra.mxu0 %v995
        %1601 = vmatprep.subr.mxu0 %v994
        %1602 = vmatpush1.msra.mxu0 %v993
        %1603 = vmatprep.subr.mxu0 %v992
        %1604 = vmatpush1.msra.mxu0 %v991
        %1605 = vmatprep.subr.mxu0 %v990
        %1606 = vmatpush1.msra.mxu0 %v989
        %1607 = vmatprep.subr.mxu0 %v988
        %1608 = vmatpush1.msra.mxu0 %v987
        %1609 = vmatprep.subr.mxu0 %v986
        %1610 = vmatpush1.msra.mxu0 %v985
        %1611 = vmatprep.subr.mxu0 %v984
        %1612 = vmatpush1.msra.mxu0 %v983
        %1613 = vmatprep.subr.mxu0 %v982
        %1614 = vmatpush1.msra.mxu0 %v981
        %1615 = vmatprep.subr.mxu0 %v980
        %1616 = vmatpush1.msra.mxu0 %v979
        %1617 = vmatprep.subr.mxu0 %v978
        %1618 = vmatpush1.msra.mxu0 %v977
        %1619 = vmatprep.subr.mxu0 %v976
        %1620 = vmatpush1.msra.mxu0 %v975
        %1621 = vmatprep.subr.mxu0 %v974
        %1622 = vmatpush1.msra.mxu0 %v973
        %1623 = vmatprep.subr.mxu0 %v972
        %1624 = vmatpush1.msra.mxu0 %v971
        %1625 = vmatprep.subr.mxu0 %v970
        %1626 = vmatpush1.msra.mxu0 %v969
        %1627 = vmatprep.subr.mxu0 %v968
        %1628 = vmatpush1.msra.mxu0 %v967
        %1629 = vmatprep.subr.mxu0 %v966
        %1630 = vmatpush1.msra.mxu0 %v965
        %1631 = vmatprep.subr.mxu0 %v1028
        %1632 = vmatpush2.msra.mxu0 %v1027
        %1633 = vmatprep.subr.mxu0 %v1026
        %1634 = vmatpush2.msra.mxu0 %v1025
        %1635 = vmatprep.subr.mxu0 %v1024
        %1636 = vmatpush2.msra.mxu0 %v1023
        %1637 = vmatprep.subr.mxu0 %v1022
        %1638 = vmatpush2.msra.mxu0 %v1021
        %1639 = vmatprep.subr.mxu0 %v1020
        %1640 = vmatpush2.msra.mxu0 %v1019
        %1641 = vmatprep.subr.mxu0 %v1018
        %1642 = vmatpush2.msra.mxu0 %v1017
        %1643 = vmatprep.subr.mxu0 %v1016
        %1644 = vmatpush2.msra.mxu0 %v1015
        %1645 = vmatprep.subr.mxu0 %v1014
        %1646 = vmatpush2.msra.mxu0 %v1013
        %1647 = vmatprep.subr.mxu0 %v1012
        %1648 = vmatpush2.msra.mxu0 %v1011
        %1649 = vmatprep.subr.mxu0 %v1010
        %1650 = vmatpush2.msra.mxu0 %v1009
        %1651 = vmatprep.subr.mxu0 %v1008
        %1652 = vmatpush2.msra.mxu0 %v1007
        %1653 = vmatprep.subr.mxu0 %v1006
        %1654 = vmatpush2.msra.mxu0 %v1005
        %1655 = vmatprep.subr.mxu0 %v1004
        %1656 = vmatpush2.msra.mxu0 %v1003
        %1657 = vmatprep.subr.mxu0 %v1002
        %1658 = vmatpush2.msra.mxu0 %v1001
        %1659 = vmatprep.subr.mxu0 %v1000
        %1660 = vmatpush2.msra.mxu0 %v999
        %1661 = vmatprep.subr.mxu0 %v998
        %1662 = vmatpush2.msra.mxu0 %v997
        %1663 = vmatprep.mubr.f32.mxu0 %v1107
        %1664 = vmatmul.mubr.f32.gmra.mxu0 %v1106
        %v1665 = vpop.f32.mrf.mxu0
        %v1666 = vadd.f32 %v1589, %v1665
        %v1667 = vpop.f32.mrf.mxu0
        %v1668 = vadd.f32 %v1591, %v1667
        %1669 = vmatprep.mubr.f32.mxu0 %v1123
        %1670 = vmatmul.mubr.f32.gmra.mxu0 %v1122
        %v1671 = vpop.f32.mrf.mxu0
        %v1672 = vadd.f32 %v1595, %v1671
        %v1673 = vpop.f32.mrf.mxu0
        %v1674 = vadd.f32 %v1597, %v1673
        %1675 = vdwg.mxu0
        %1676 = vmatprep.subr.mxu0 %v1060
        %1677 = vmatpush1.msra.mxu0 %v1059
        %1678 = vmatprep.subr.mxu0 %v1058
        %1679 = vmatpush1.msra.mxu0 %v1057
        %1680 = vmatprep.subr.mxu0 %v1056
        %1681 = vmatpush1.msra.mxu0 %v1055
        %1682 = vmatprep.subr.mxu0 %v1054
        %1683 = vmatpush1.msra.mxu0 %v1053
        %1684 = vmatprep.subr.mxu0 %v1052
        %1685 = vmatpush1.msra.mxu0 %v1051
        %1686 = vmatprep.subr.mxu0 %v1050
        %1687 = vmatpush1.msra.mxu0 %v1049
        %1688 = vmatprep.subr.mxu0 %v1048
        %1689 = vmatpush1.msra.mxu0 %v1047
        %1690 = vmatprep.subr.mxu0 %v1046
        %1691 = vmatpush1.msra.mxu0 %v1045
        %1692 = vmatprep.subr.mxu0 %v1044
        %1693 = vmatpush1.msra.mxu0 %v1043
        %1694 = vmatprep.subr.mxu0 %v1042
        %1695 = vmatpush1.msra.mxu0 %v1041
        %1696 = vmatprep.subr.mxu0 %v1040
        %1697 = vmatpush1.msra.mxu0 %v1039
        %1698 = vmatprep.subr.mxu0 %v1038
        %1699 = vmatpush1.msra.mxu0 %v1037
        %1700 = vmatprep.subr.mxu0 %v1036
        %1701 = vmatpush1.msra.mxu0 %v1035
        %1702 = vmatprep.subr.mxu0 %v1034
        %1703 = vmatpush1.msra.mxu0 %v1033
        %1704 = vmatprep.subr.mxu0 %v1032
        %1705 = vmatpush1.msra.mxu0 %v1031
        %1706 = vmatprep.subr.mxu0 %v1030
        %1707 = vmatpush1.msra.mxu0 %v1029
        %1708 = vmatprep.subr.mxu0 %v1092
        %1709 = vmatpush2.msra.mxu0 %v1091
        %1710 = vmatprep.subr.mxu0 %v1090
        %1711 = vmatpush2.msra.mxu0 %v1089
        %1712 = vmatprep.subr.mxu0 %v1088
        %1713 = vmatpush2.msra.mxu0 %v1087
        %1714 = vmatprep.subr.mxu0 %v1086
        %1715 = vmatpush2.msra.mxu0 %v1085
        %1716 = vmatprep.subr.mxu0 %v1084
        %1717 = vmatpush2.msra.mxu0 %v1083
        %1718 = vmatprep.subr.mxu0 %v1082
        %1719 = vmatpush2.msra.mxu0 %v1081
        %1720 = vmatprep.subr.mxu0 %v1080
        %1721 = vmatpush2.msra.mxu0 %v1079
        %1722 = vmatprep.subr.mxu0 %v1078
        %1723 = vmatpush2.msra.mxu0 %v1077
        %1724 = vmatprep.subr.mxu0 %v1076
        %1725 = vmatpush2.msra.mxu0 %v1075
        %1726 = vmatprep.subr.mxu0 %v1074
        %1727 = vmatpush2.msra.mxu0 %v1073
        %1728 = vmatprep.subr.mxu0 %v1072
        %1729 = vmatpush2.msra.mxu0 %v1071
        %1730 = vmatprep.subr.mxu0 %v1070
        %1731 = vmatpush2.msra.mxu0 %v1069
        %1732 = vmatprep.subr.mxu0 %v1068
        %1733 = vmatpush2.msra.mxu0 %v1067
        %1734 = vmatprep.subr.mxu0 %v1066
        %1735 = vmatpush2.msra.mxu0 %v1065
        %1736 = vmatprep.subr.mxu0 %v1064
        %1737 = vmatpush2.msra.mxu0 %v1063
        %1738 = vmatprep.subr.mxu0 %v1062
        %1739 = vmatpush2.msra.mxu0 %v1061
        %1740 = vmatprep.mubr.f32.mxu0 %v1109
        %1741 = vmatmul.mubr.f32.gmra.mxu0 %v1108
        %v1742 = vpop.f32.mrf.mxu0
        %v1743 = vadd.f32 %v1666, %v1742
        %v1744 = vpop.f32.mrf.mxu0
        %v1745 = vadd.f32 %v1668, %v1744
        %1746 = vmatprep.mubr.f32.mxu0 %v1125
        %1747 = vmatmul.mubr.f32.gmra.mxu0 %v1124
        %v1748 = vpop.f32.mrf.mxu0
        %v1749 = vadd.f32 %v1672, %v1748
        %v1750 = vpop.f32.mrf.mxu0
        %v1751 = vadd.f32 %v1674, %v1750
        %1752 = vdwg.mxu0
        %v1753 = vld [vmem:[%s282 + $0x8] sm:$0xff]
        %v1754 = vld [vmem:[%s282 + $0x20] sm:$0xff]
        %v1755 = vld [vmem:[%s282 + $0x38] sm:$0xff]
        %v1756 = vld [vmem:[%s282 + $0x50] sm:$0xff]
        %v1757 = vld [vmem:[%s282 + $0x68] sm:$0xff]
        %v1758 = vld [vmem:[%s282 + $0x80] sm:$0xff]
        %v1759 = vld [vmem:[%s282 + $0x98] sm:$0xff]
        %v1760 = vld [vmem:[%s282 + $0xb0] sm:$0xff]
        %v1761 = vld [vmem:[%s282 + $0xc8] sm:$0xff]
        %v1762 = vld [vmem:[%s282 + $0xe0] sm:$0xff]
        %v1763 = vld [vmem:[%s282 + $0xf8] sm:$0xff]
        %v1764 = vld [vmem:[%s282 + $0x110] sm:$0xff]
        %v1765 = vld [vmem:[%s282 + $0x128] sm:$0xff]
        %v1766 = vld [vmem:[%s282 + $0x140] sm:$0xff]
        %v1767 = vld [vmem:[%s282 + $0x158] sm:$0xff]
        %v1768 = vld [vmem:[%s282 + $0x170] sm:$0xff]
        %v1769 = vld [vmem:[%s282 + $0x188] sm:$0xff]
        %v1770 = vld [vmem:[%s282 + $0x1a0] sm:$0xff]
        %v1771 = vld [vmem:[%s282 + $0x1b8] sm:$0xff]
        %v1772 = vld [vmem:[%s282 + $0x1d0] sm:$0xff]
        %v1773 = vld [vmem:[%s282 + $0x1e8] sm:$0xff]
        %v1774 = vld [vmem:[%s282 + $0x200] sm:$0xff]
        %v1775 = vld [vmem:[%s282 + $0x218] sm:$0xff]
        %v1776 = vld [vmem:[%s282 + $0x230] sm:$0xff]
        %v1777 = vld [vmem:[%s282 + $0x248] sm:$0xff]
        %v1778 = vld [vmem:[%s282 + $0x260] sm:$0xff]
        %v1779 = vld [vmem:[%s282 + $0x278] sm:$0xff]
        %v1780 = vld [vmem:[%s282 + $0x290] sm:$0xff]
        %v1781 = vld [vmem:[%s282 + $0x2a8] sm:$0xff]
        %v1782 = vld [vmem:[%s282 + $0x2c0] sm:$0xff]
        %v1783 = vld [vmem:[%s282 + $0x2d8] sm:$0xff]
        %v1784 = vld [vmem:[%s282 + $0x2f0] sm:$0xff]
        %v1785 = vld [vmem:[%s282 + $0x308] sm:$0xff]
        %v1786 = vld [vmem:[%s282 + $0x320] sm:$0xff]
        %v1787 = vld [vmem:[%s282 + $0x338] sm:$0xff]
        %v1788 = vld [vmem:[%s282 + $0x350] sm:$0xff]
        %v1789 = vld [vmem:[%s282 + $0x368] sm:$0xff]
        %v1790 = vld [vmem:[%s282 + $0x380] sm:$0xff]
        %v1791 = vld [vmem:[%s282 + $0x398] sm:$0xff]
        %v1792 = vld [vmem:[%s282 + $0x3b0] sm:$0xff]
        %v1793 = vld [vmem:[%s282 + $0x3c8] sm:$0xff]
        %v1794 = vld [vmem:[%s282 + $0x3e0] sm:$0xff]
        %v1795 = vld [vmem:[%s282 + $0x3f8] sm:$0xff]
        %v1796 = vld [vmem:[%s282 + $0x410] sm:$0xff]
        %v1797 = vld [vmem:[%s282 + $0x428] sm:$0xff]
        %v1798 = vld [vmem:[%s282 + $0x440] sm:$0xff]
        %v1799 = vld [vmem:[%s282 + $0x458] sm:$0xff]
        %v1800 = vld [vmem:[%s282 + $0x470] sm:$0xff]
        %v1801 = vld [vmem:[%s282 + $0x488] sm:$0xff]
        %v1802 = vld [vmem:[%s282 + $0x4a0] sm:$0xff]
        %v1803 = vld [vmem:[%s282 + $0x4b8] sm:$0xff]
        %v1804 = vld [vmem:[%s282 + $0x4d0] sm:$0xff]
        %v1805 = vld [vmem:[%s282 + $0x4e8] sm:$0xff]
        %v1806 = vld [vmem:[%s282 + $0x500] sm:$0xff]
        %v1807 = vld [vmem:[%s282 + $0x518] sm:$0xff]
        %v1808 = vld [vmem:[%s282 + $0x530] sm:$0xff]
        %v1809 = vld [vmem:[%s282 + $0x548] sm:$0xff]
        %v1810 = vld [vmem:[%s282 + $0x560] sm:$0xff]
        %v1811 = vld [vmem:[%s282 + $0x578] sm:$0xff]
        %v1812 = vld [vmem:[%s282 + $0x590] sm:$0xff]
        %v1813 = vld [vmem:[%s282 + $0x5a8] sm:$0xff]
        %v1814 = vld [vmem:[%s282 + $0x5c0] sm:$0xff]
        %v1815 = vld [vmem:[%s282 + $0x5d8] sm:$0xff]
        %v1816 = vld [vmem:[%s282 + $0x5f0] sm:$0xff]
        %v1817 = vld [vmem:[%s282 + $0x608] sm:$0xff]
        %v1818 = vld [vmem:[%s282 + $0x620] sm:$0xff]
        %v1819 = vld [vmem:[%s282 + $0x638] sm:$0xff]
        %v1820 = vld [vmem:[%s282 + $0x650] sm:$0xff]
        %v1821 = vld [vmem:[%s282 + $0x668] sm:$0xff]
        %v1822 = vld [vmem:[%s282 + $0x680] sm:$0xff]
        %v1823 = vld [vmem:[%s282 + $0x698] sm:$0xff]
        %v1824 = vld [vmem:[%s282 + $0x6b0] sm:$0xff]
        %v1825 = vld [vmem:[%s282 + $0x6c8] sm:$0xff]
        %v1826 = vld [vmem:[%s282 + $0x6e0] sm:$0xff]
        %v1827 = vld [vmem:[%s282 + $0x6f8] sm:$0xff]
        %v1828 = vld [vmem:[%s282 + $0x710] sm:$0xff]
        %v1829 = vld [vmem:[%s282 + $0x728] sm:$0xff]
        %v1830 = vld [vmem:[%s282 + $0x740] sm:$0xff]
        %v1831 = vld [vmem:[%s282 + $0x758] sm:$0xff]
        %v1832 = vld [vmem:[%s282 + $0x770] sm:$0xff]
        %v1833 = vld [vmem:[%s282 + $0x788] sm:$0xff]
        %v1834 = vld [vmem:[%s282 + $0x7a0] sm:$0xff]
        %v1835 = vld [vmem:[%s282 + $0x7b8] sm:$0xff]
        %v1836 = vld [vmem:[%s282 + $0x7d0] sm:$0xff]
        %v1837 = vld [vmem:[%s282 + $0x7e8] sm:$0xff]
        %v1838 = vld [vmem:[%s282 + $0x800] sm:$0xff]
        %v1839 = vld [vmem:[%s282 + $0x818] sm:$0xff]
        %v1840 = vld [vmem:[%s282 + $0x830] sm:$0xff]
        %v1841 = vld [vmem:[%s282 + $0x848] sm:$0xff]
        %v1842 = vld [vmem:[%s282 + $0x860] sm:$0xff]
        %v1843 = vld [vmem:[%s282 + $0x878] sm:$0xff]
        %v1844 = vld [vmem:[%s282 + $0x890] sm:$0xff]
        %v1845 = vld [vmem:[%s282 + $0x8a8] sm:$0xff]
        %v1846 = vld [vmem:[%s282 + $0x8c0] sm:$0xff]
        %v1847 = vld [vmem:[%s282 + $0x8d8] sm:$0xff]
        %v1848 = vld [vmem:[%s282 + $0x8f0] sm:$0xff]
        %v1849 = vld [vmem:[%s282 + $0x908] sm:$0xff]
        %v1850 = vld [vmem:[%s282 + $0x920] sm:$0xff]
        %v1851 = vld [vmem:[%s282 + $0x938] sm:$0xff]
        %v1852 = vld [vmem:[%s282 + $0x950] sm:$0xff]
        %v1853 = vld [vmem:[%s282 + $0x968] sm:$0xff]
        %v1854 = vld [vmem:[%s282 + $0x980] sm:$0xff]
        %v1855 = vld [vmem:[%s282 + $0x998] sm:$0xff]
        %v1856 = vld [vmem:[%s282 + $0x9b0] sm:$0xff]
        %v1857 = vld [vmem:[%s282 + $0x9c8] sm:$0xff]
        %v1858 = vld [vmem:[%s282 + $0x9e0] sm:$0xff]
        %v1859 = vld [vmem:[%s282 + $0x9f8] sm:$0xff]
        %v1860 = vld [vmem:[%s282 + $0xa10] sm:$0xff]
        %v1861 = vld [vmem:[%s282 + $0xa28] sm:$0xff]
        %v1862 = vld [vmem:[%s282 + $0xa40] sm:$0xff]
        %v1863 = vld [vmem:[%s282 + $0xa58] sm:$0xff]
        %v1864 = vld [vmem:[%s282 + $0xa70] sm:$0xff]
        %v1865 = vld [vmem:[%s282 + $0xa88] sm:$0xff]
        %v1866 = vld [vmem:[%s282 + $0xaa0] sm:$0xff]
        %v1867 = vld [vmem:[%s282 + $0xab8] sm:$0xff]
        %v1868 = vld [vmem:[%s282 + $0xad0] sm:$0xff]
        %v1869 = vld [vmem:[%s282 + $0xae8] sm:$0xff]
        %v1870 = vld [vmem:[%s282 + $0xb00] sm:$0xff]
        %v1871 = vld [vmem:[%s282 + $0xb18] sm:$0xff]
        %v1872 = vld [vmem:[%s282 + $0xb30] sm:$0xff]
        %v1873 = vld [vmem:[%s282 + $0xb48] sm:$0xff]
        %v1874 = vld [vmem:[%s282 + $0xb60] sm:$0xff]
        %v1875 = vld [vmem:[%s282 + $0xb78] sm:$0xff]
        %v1876 = vld [vmem:[%s282 + $0xb90] sm:$0xff]
        %v1877 = vld [vmem:[%s282 + $0xba8] sm:$0xff]
        %v1878 = vld [vmem:[%s282 + $0xbc0] sm:$0xff]
        %v1879 = vld [vmem:[%s282 + $0xbd8] sm:$0xff]
        %v1880 = vld [vmem:[%s282 + $0xbf0] sm:$0xff]
        %v1881 = vld [vmem:[%s282 + $0xc08] sm:$0xff]
        %v1882 = vld [vmem:[%s282 + $0xc20] sm:$0xff]
        %v1883 = vld [vmem:[%s282 + $0xc38] sm:$0xff]
        %v1884 = vld [vmem:[%s282 + $0xc50] sm:$0xff]
        %v1885 = vld [vmem:[%s282 + $0xc68] sm:$0xff]
        %v1886 = vld [vmem:[%s282 + $0xc80] sm:$0xff]
        %v1887 = vld [vmem:[%s282 + $0xc98] sm:$0xff]
        %v1888 = vld [vmem:[%s282 + $0xcb0] sm:$0xff]
        %v1889 = vld [vmem:[%s282 + $0xcc8] sm:$0xff]
        %v1890 = vld [vmem:[%s282 + $0xce0] sm:$0xff]
        %v1891 = vld [vmem:[%s282 + $0xcf8] sm:$0xff]
        %v1892 = vld [vmem:[%s282 + $0xd10] sm:$0xff]
        %v1893 = vld [vmem:[%s282 + $0xd28] sm:$0xff]
        %v1894 = vld [vmem:[%s282 + $0xd40] sm:$0xff]
        %v1895 = vld [vmem:[%s282 + $0xd58] sm:$0xff]
        %v1896 = vld [vmem:[%s282 + $0xd70] sm:$0xff]
        %v1897 = vld [vmem:[%s282 + $0xd88] sm:$0xff]
        %v1898 = vld [vmem:[%s282 + $0xda0] sm:$0xff]
        %v1899 = vld [vmem:[%s282 + $0xdb8] sm:$0xff]
        %v1900 = vld [vmem:[%s282 + $0xdd0] sm:$0xff]
        %v1901 = vld [vmem:[%s282 + $0xde8] sm:$0xff]
        %v1902 = vld [vmem:[%s282 + $0xe00] sm:$0xff]
        %v1903 = vld [vmem:[%s282 + $0xe18] sm:$0xff]
        %v1904 = vld [vmem:[%s282 + $0xe30] sm:$0xff]
        %v1905 = vld [vmem:[%s282 + $0xe48] sm:$0xff]
        %v1906 = vld [vmem:[%s282 + $0xe60] sm:$0xff]
        %v1907 = vld [vmem:[%s282 + $0xe78] sm:$0xff]
        %v1908 = vld [vmem:[%s282 + $0xe90] sm:$0xff]
        %v1909 = vld [vmem:[%s282 + $0xea8] sm:$0xff]
        %v1910 = vld [vmem:[%s282 + $0xec0] sm:$0xff]
        %v1911 = vld [vmem:[%s282 + $0xed8] sm:$0xff]
        %v1912 = vld [vmem:[%s282 + $0xef0] sm:$0xff]
        %v1913 = vld [vmem:[%s282 + $0xf08] sm:$0xff]
        %v1914 = vld [vmem:[%s282 + $0xf20] sm:$0xff]
        %v1915 = vld [vmem:[%s282 + $0xf38] sm:$0xff]
        %v1916 = vld [vmem:[%s282 + $0xf50] sm:$0xff]
        %v1917 = vld [vmem:[%s282 + $0xf68] sm:$0xff]
        %v1918 = vld [vmem:[%s282 + $0xf80] sm:$0xff]
        %v1919 = vld [vmem:[%s282 + $0xf98] sm:$0xff]
        %v1920 = vld [vmem:[%s282 + $0xfb0] sm:$0xff]
        %v1921 = vld [vmem:[%s282 + $0xfc8] sm:$0xff]
        %v1922 = vld [vmem:[%s282 + $0xfe0] sm:$0xff]
        %v1923 = vld [vmem:[%s282 + $0xff8] sm:$0xff]
        %v1924 = vld [vmem:[%s282 + $0x1010] sm:$0xff]
        %v1925 = vld [vmem:[%s282 + $0x1028] sm:$0xff]
        %v1926 = vld [vmem:[%s282 + $0x1040] sm:$0xff]
        %v1927 = vld [vmem:[%s282 + $0x1058] sm:$0xff]
        %v1928 = vld [vmem:[%s282 + $0x1070] sm:$0xff]
        %v1929 = vld [vmem:[%s282 + $0x1088] sm:$0xff]
        %v1930 = vld [vmem:[%s282 + $0x10a0] sm:$0xff]
        %v1931 = vld [vmem:[%s282 + $0x10b8] sm:$0xff]
        %v1932 = vld [vmem:[%s282 + $0x10d0] sm:$0xff]
        %v1933 = vld [vmem:[%s282 + $0x10e8] sm:$0xff]
        %v1934 = vld [vmem:[%s282 + $0x1100] sm:$0xff]
        %v1935 = vld [vmem:[%s282 + $0x1118] sm:$0xff]
        %v1936 = vld [vmem:[%s282 + $0x1130] sm:$0xff]
        %v1937 = vld [vmem:[%s282 + $0x1148] sm:$0xff]
        %v1938 = vld [vmem:[%s282 + $0x1160] sm:$0xff]
        %v1939 = vld [vmem:[%s282 + $0x1178] sm:$0xff]
        %v1940 = vld [vmem:[%s282 + $0x1190] sm:$0xff]
        %v1941 = vld [vmem:[%s282 + $0x11a8] sm:$0xff]
        %v1942 = vld [vmem:[%s282 + $0x11c0] sm:$0xff]
        %v1943 = vld [vmem:[%s282 + $0x11d8] sm:$0xff]
        %v1944 = vld [vmem:[%s282 + $0x11f0] sm:$0xff]
        %v1945 = vld [vmem:[%s282 + $0x1208] sm:$0xff]
        %v1946 = vld [vmem:[%s282 + $0x1220] sm:$0xff]
        %v1947 = vld [vmem:[%s282 + $0x1238] sm:$0xff]
        %v1948 = vld [vmem:[%s282 + $0x1250] sm:$0xff]
        %v1949 = vld [vmem:[%s282 + $0x1268] sm:$0xff]
        %v1950 = vld [vmem:[%s282 + $0x1280] sm:$0xff]
        %v1951 = vld [vmem:[%s282 + $0x1298] sm:$0xff]
        %v1952 = vld [vmem:[%s282 + $0x12b0] sm:$0xff]
        %v1953 = vld [vmem:[%s282 + $0x12c8] sm:$0xff]
        %v1954 = vld [vmem:[%s282 + $0x12e0] sm:$0xff]
        %v1955 = vld [vmem:[%s282 + $0x12f8] sm:$0xff]
        %v1956 = vld [vmem:[%s282 + $0x1310] sm:$0xff]
        %v1957 = vld [vmem:[%s282 + $0x1328] sm:$0xff]
        %v1958 = vld [vmem:[%s282 + $0x1340] sm:$0xff]
        %v1959 = vld [vmem:[%s282 + $0x1358] sm:$0xff]
        %v1960 = vld [vmem:[%s282 + $0x1370] sm:$0xff]
        %v1961 = vld [vmem:[%s282 + $0x1388] sm:$0xff]
        %v1962 = vld [vmem:[%s282 + $0x13a0] sm:$0xff]
        %v1963 = vld [vmem:[%s282 + $0x13b8] sm:$0xff]
        %v1964 = vld [vmem:[%s282 + $0x13d0] sm:$0xff]
        %v1965 = vld [vmem:[%s282 + $0x13e8] sm:$0xff]
        %v1966 = vld [vmem:[%s282 + $0x1400] sm:$0xff]
        %v1967 = vld [vmem:[%s282 + $0x1418] sm:$0xff]
        %v1968 = vld [vmem:[%s282 + $0x1430] sm:$0xff]
        %v1969 = vld [vmem:[%s282 + $0x1448] sm:$0xff]
        %v1970 = vld [vmem:[%s282 + $0x1460] sm:$0xff]
        %v1971 = vld [vmem:[%s282 + $0x1478] sm:$0xff]
        %v1972 = vld [vmem:[%s282 + $0x1490] sm:$0xff]
        %v1973 = vld [vmem:[%s282 + $0x14a8] sm:$0xff]
        %v1974 = vld [vmem:[%s282 + $0x14c0] sm:$0xff]
        %v1975 = vld [vmem:[%s282 + $0x14d8] sm:$0xff]
        %v1976 = vld [vmem:[%s282 + $0x14f0] sm:$0xff]
        %v1977 = vld [vmem:[%s282 + $0x1508] sm:$0xff]
        %v1978 = vld [vmem:[%s282 + $0x1520] sm:$0xff]
        %v1979 = vld [vmem:[%s282 + $0x1538] sm:$0xff]
        %v1980 = vld [vmem:[%s282 + $0x1550] sm:$0xff]
        %v1981 = vld [vmem:[%s282 + $0x1568] sm:$0xff]
        %v1982 = vld [vmem:[%s282 + $0x1580] sm:$0xff]
        %v1983 = vld [vmem:[%s282 + $0x1598] sm:$0xff]
        %v1984 = vld [vmem:[%s282 + $0x15b0] sm:$0xff]
        %v1985 = vld [vmem:[%s282 + $0x15c8] sm:$0xff]
        %v1986 = vld [vmem:[%s282 + $0x15e0] sm:$0xff]
        %v1987 = vld [vmem:[%s282 + $0x15f8] sm:$0xff]
        %v1988 = vld [vmem:[%s282 + $0x1610] sm:$0xff]
        %v1989 = vld [vmem:[%s282 + $0x1628] sm:$0xff]
        %v1990 = vld [vmem:[%s282 + $0x1640] sm:$0xff]
        %v1991 = vld [vmem:[%s282 + $0x1658] sm:$0xff]
        %v1992 = vld [vmem:[%s282 + $0x1670] sm:$0xff]
        %v1993 = vld [vmem:[%s282 + $0x1688] sm:$0xff]
        %v1994 = vld [vmem:[%s282 + $0x16a0] sm:$0xff]
        %v1995 = vld [vmem:[%s282 + $0x16b8] sm:$0xff]
        %v1996 = vld [vmem:[%s282 + $0x16d0] sm:$0xff]
        %v1997 = vld [vmem:[%s282 + $0x16e8] sm:$0xff]
        %v1998 = vld [vmem:[%s282 + $0x1700] sm:$0xff]
        %v1999 = vld [vmem:[%s282 + $0x1718] sm:$0xff]
        %v2000 = vld [vmem:[%s282 + $0x1730] sm:$0xff]
        %v2001 = vld [vmem:[%s282 + $0x1748] sm:$0xff]
        %v2002 = vld [vmem:[%s282 + $0x1760] sm:$0xff]
        %v2003 = vld [vmem:[%s282 + $0x1778] sm:$0xff]
        %v2004 = vld [vmem:[%s282 + $0x1790] sm:$0xff]
        %v2005 = vld [vmem:[%s282 + $0x17a8] sm:$0xff]
        %v2006 = vld [vmem:[%s282 + $0x17c0] sm:$0xff]
        %v2007 = vld [vmem:[%s282 + $0x17d8] sm:$0xff]
        %v2008 = vld [vmem:[%s282 + $0x17f0] sm:$0xff]
        %v2009 = vunpack.c.l.bf16 %v1753
        %v2010 = vunpack.c.h.bf16 %v1753
        %v2011 = vunpack.c.l.bf16 %v1754
        %v2012 = vunpack.c.h.bf16 %v1754
        %v2013 = vunpack.c.l.bf16 %v1755
        %v2014 = vunpack.c.h.bf16 %v1755
        %v2015 = vunpack.c.l.bf16 %v1756
        %v2016 = vunpack.c.h.bf16 %v1756
        %v2017 = vunpack.c.l.bf16 %v1757
        %v2018 = vunpack.c.h.bf16 %v1757
        %v2019 = vunpack.c.l.bf16 %v1758
        %v2020 = vunpack.c.h.bf16 %v1758
        %v2021 = vunpack.c.l.bf16 %v1759
        %v2022 = vunpack.c.h.bf16 %v1759
        %v2023 = vunpack.c.l.bf16 %v1760
        %v2024 = vunpack.c.h.bf16 %v1760
        %v2025 = vunpack.c.l.bf16 %v1761
        %v2026 = vunpack.c.h.bf16 %v1761
        %v2027 = vunpack.c.l.bf16 %v1762
        %v2028 = vunpack.c.h.bf16 %v1762
        %v2029 = vunpack.c.l.bf16 %v1763
        %v2030 = vunpack.c.h.bf16 %v1763
        %v2031 = vunpack.c.l.bf16 %v1764
        %v2032 = vunpack.c.h.bf16 %v1764
        %v2033 = vunpack.c.l.bf16 %v1765
        %v2034 = vunpack.c.h.bf16 %v1765
        %v2035 = vunpack.c.l.bf16 %v1766
        %v2036 = vunpack.c.h.bf16 %v1766
        %v2037 = vunpack.c.l.bf16 %v1767
        %v2038 = vunpack.c.h.bf16 %v1767
        %v2039 = vunpack.c.l.bf16 %v1768
        %v2040 = vunpack.c.h.bf16 %v1768
        %v2041 = vunpack.c.l.bf16 %v1769
        %v2042 = vunpack.c.h.bf16 %v1769
        %v2043 = vunpack.c.l.bf16 %v1770
        %v2044 = vunpack.c.h.bf16 %v1770
        %v2045 = vunpack.c.l.bf16 %v1771
        %v2046 = vunpack.c.h.bf16 %v1771
        %v2047 = vunpack.c.l.bf16 %v1772
        %v2048 = vunpack.c.h.bf16 %v1772
        %v2049 = vunpack.c.l.bf16 %v1773
        %v2050 = vunpack.c.h.bf16 %v1773
        %v2051 = vunpack.c.l.bf16 %v1774
        %v2052 = vunpack.c.h.bf16 %v1774
        %v2053 = vunpack.c.l.bf16 %v1775
        %v2054 = vunpack.c.h.bf16 %v1775
        %v2055 = vunpack.c.l.bf16 %v1776
        %v2056 = vunpack.c.h.bf16 %v1776
        %v2057 = vunpack.c.l.bf16 %v1777
        %v2058 = vunpack.c.h.bf16 %v1777
        %v2059 = vunpack.c.l.bf16 %v1778
        %v2060 = vunpack.c.h.bf16 %v1778
        %v2061 = vunpack.c.l.bf16 %v1779
        %v2062 = vunpack.c.h.bf16 %v1779
        %v2063 = vunpack.c.l.bf16 %v1780
        %v2064 = vunpack.c.h.bf16 %v1780
        %v2065 = vunpack.c.l.bf16 %v1781
        %v2066 = vunpack.c.h.bf16 %v1781
        %v2067 = vunpack.c.l.bf16 %v1782
        %v2068 = vunpack.c.h.bf16 %v1782
        %v2069 = vunpack.c.l.bf16 %v1783
        %v2070 = vunpack.c.h.bf16 %v1783
        %v2071 = vunpack.c.l.bf16 %v1784
        %v2072 = vunpack.c.h.bf16 %v1784
        %v2073 = vunpack.c.l.bf16 %v1785
        %v2074 = vunpack.c.h.bf16 %v1785
        %v2075 = vunpack.c.l.bf16 %v1786
        %v2076 = vunpack.c.h.bf16 %v1786
        %v2077 = vunpack.c.l.bf16 %v1787
        %v2078 = vunpack.c.h.bf16 %v1787
        %v2079 = vunpack.c.l.bf16 %v1788
        %v2080 = vunpack.c.h.bf16 %v1788
        %v2081 = vunpack.c.l.bf16 %v1789
        %v2082 = vunpack.c.h.bf16 %v1789
        %v2083 = vunpack.c.l.bf16 %v1790
        %v2084 = vunpack.c.h.bf16 %v1790
        %v2085 = vunpack.c.l.bf16 %v1791
        %v2086 = vunpack.c.h.bf16 %v1791
        %v2087 = vunpack.c.l.bf16 %v1792
        %v2088 = vunpack.c.h.bf16 %v1792
        %v2089 = vunpack.c.l.bf16 %v1793
        %v2090 = vunpack.c.h.bf16 %v1793
        %v2091 = vunpack.c.l.bf16 %v1794
        %v2092 = vunpack.c.h.bf16 %v1794
        %v2093 = vunpack.c.l.bf16 %v1795
        %v2094 = vunpack.c.h.bf16 %v1795
        %v2095 = vunpack.c.l.bf16 %v1796
        %v2096 = vunpack.c.h.bf16 %v1796
        %v2097 = vunpack.c.l.bf16 %v1797
        %v2098 = vunpack.c.h.bf16 %v1797
        %v2099 = vunpack.c.l.bf16 %v1798
        %v2100 = vunpack.c.h.bf16 %v1798
        %v2101 = vunpack.c.l.bf16 %v1799
        %v2102 = vunpack.c.h.bf16 %v1799
        %v2103 = vunpack.c.l.bf16 %v1800
        %v2104 = vunpack.c.h.bf16 %v1800
        %v2105 = vunpack.c.l.bf16 %v1801
        %v2106 = vunpack.c.h.bf16 %v1801
        %v2107 = vunpack.c.l.bf16 %v1802
        %v2108 = vunpack.c.h.bf16 %v1802
        %v2109 = vunpack.c.l.bf16 %v1803
        %v2110 = vunpack.c.h.bf16 %v1803
        %v2111 = vunpack.c.l.bf16 %v1804
        %v2112 = vunpack.c.h.bf16 %v1804
        %v2113 = vunpack.c.l.bf16 %v1805
        %v2114 = vunpack.c.h.bf16 %v1805
        %v2115 = vunpack.c.l.bf16 %v1806
        %v2116 = vunpack.c.h.bf16 %v1806
        %v2117 = vunpack.c.l.bf16 %v1807
        %v2118 = vunpack.c.h.bf16 %v1807
        %v2119 = vunpack.c.l.bf16 %v1808
        %v2120 = vunpack.c.h.bf16 %v1808
        %v2121 = vunpack.c.l.bf16 %v1809
        %v2122 = vunpack.c.h.bf16 %v1809
        %v2123 = vunpack.c.l.bf16 %v1810
        %v2124 = vunpack.c.h.bf16 %v1810
        %v2125 = vunpack.c.l.bf16 %v1811
        %v2126 = vunpack.c.h.bf16 %v1811
        %v2127 = vunpack.c.l.bf16 %v1812
        %v2128 = vunpack.c.h.bf16 %v1812
        %v2129 = vunpack.c.l.bf16 %v1813
        %v2130 = vunpack.c.h.bf16 %v1813
        %v2131 = vunpack.c.l.bf16 %v1814
        %v2132 = vunpack.c.h.bf16 %v1814
        %v2133 = vunpack.c.l.bf16 %v1815
        %v2134 = vunpack.c.h.bf16 %v1815
        %v2135 = vunpack.c.l.bf16 %v1816
        %v2136 = vunpack.c.h.bf16 %v1816
        %v2137 = vunpack.c.l.bf16 %v1817
        %v2138 = vunpack.c.h.bf16 %v1817
        %v2139 = vunpack.c.l.bf16 %v1818
        %v2140 = vunpack.c.h.bf16 %v1818
        %v2141 = vunpack.c.l.bf16 %v1819
        %v2142 = vunpack.c.h.bf16 %v1819
        %v2143 = vunpack.c.l.bf16 %v1820
        %v2144 = vunpack.c.h.bf16 %v1820
        %v2145 = vunpack.c.l.bf16 %v1821
        %v2146 = vunpack.c.h.bf16 %v1821
        %v2147 = vunpack.c.l.bf16 %v1822
        %v2148 = vunpack.c.h.bf16 %v1822
        %v2149 = vunpack.c.l.bf16 %v1823
        %v2150 = vunpack.c.h.bf16 %v1823
        %v2151 = vunpack.c.l.bf16 %v1824
        %v2152 = vunpack.c.h.bf16 %v1824
        %v2153 = vunpack.c.l.bf16 %v1825
        %v2154 = vunpack.c.h.bf16 %v1825
        %v2155 = vunpack.c.l.bf16 %v1826
        %v2156 = vunpack.c.h.bf16 %v1826
        %v2157 = vunpack.c.l.bf16 %v1827
        %v2158 = vunpack.c.h.bf16 %v1827
        %v2159 = vunpack.c.l.bf16 %v1828
        %v2160 = vunpack.c.h.bf16 %v1828
        %v2161 = vunpack.c.l.bf16 %v1829
        %v2162 = vunpack.c.h.bf16 %v1829
        %v2163 = vunpack.c.l.bf16 %v1830
        %v2164 = vunpack.c.h.bf16 %v1830
        %v2165 = vunpack.c.l.bf16 %v1831
        %v2166 = vunpack.c.h.bf16 %v1831
        %v2167 = vunpack.c.l.bf16 %v1832
        %v2168 = vunpack.c.h.bf16 %v1832
        %v2169 = vunpack.c.l.bf16 %v1833
        %v2170 = vunpack.c.h.bf16 %v1833
        %v2171 = vunpack.c.l.bf16 %v1834
        %v2172 = vunpack.c.h.bf16 %v1834
        %v2173 = vunpack.c.l.bf16 %v1835
        %v2174 = vunpack.c.h.bf16 %v1835
        %v2175 = vunpack.c.l.bf16 %v1836
        %v2176 = vunpack.c.h.bf16 %v1836
        %v2177 = vunpack.c.l.bf16 %v1837
        %v2178 = vunpack.c.h.bf16 %v1837
        %v2179 = vunpack.c.l.bf16 %v1838
        %v2180 = vunpack.c.h.bf16 %v1838
        %v2181 = vunpack.c.l.bf16 %v1839
        %v2182 = vunpack.c.h.bf16 %v1839
        %v2183 = vunpack.c.l.bf16 %v1840
        %v2184 = vunpack.c.h.bf16 %v1840
        %v2185 = vunpack.c.l.bf16 %v1841
        %v2186 = vunpack.c.h.bf16 %v1841
        %v2187 = vunpack.c.l.bf16 %v1842
        %v2188 = vunpack.c.h.bf16 %v1842
        %v2189 = vunpack.c.l.bf16 %v1843
        %v2190 = vunpack.c.h.bf16 %v1843
        %v2191 = vunpack.c.l.bf16 %v1844
        %v2192 = vunpack.c.h.bf16 %v1844
        %v2193 = vunpack.c.l.bf16 %v1845
        %v2194 = vunpack.c.h.bf16 %v1845
        %v2195 = vunpack.c.l.bf16 %v1846
        %v2196 = vunpack.c.h.bf16 %v1846
        %v2197 = vunpack.c.l.bf16 %v1847
        %v2198 = vunpack.c.h.bf16 %v1847
        %v2199 = vunpack.c.l.bf16 %v1848
        %v2200 = vunpack.c.h.bf16 %v1848
        %v2201 = vunpack.c.l.bf16 %v1849
        %v2202 = vunpack.c.h.bf16 %v1849
        %v2203 = vunpack.c.l.bf16 %v1850
        %v2204 = vunpack.c.h.bf16 %v1850
        %v2205 = vunpack.c.l.bf16 %v1851
        %v2206 = vunpack.c.h.bf16 %v1851
        %v2207 = vunpack.c.l.bf16 %v1852
        %v2208 = vunpack.c.h.bf16 %v1852
        %v2209 = vunpack.c.l.bf16 %v1853
        %v2210 = vunpack.c.h.bf16 %v1853
        %v2211 = vunpack.c.l.bf16 %v1854
        %v2212 = vunpack.c.h.bf16 %v1854
        %v2213 = vunpack.c.l.bf16 %v1855
        %v2214 = vunpack.c.h.bf16 %v1855
        %v2215 = vunpack.c.l.bf16 %v1856
        %v2216 = vunpack.c.h.bf16 %v1856
        %v2217 = vunpack.c.l.bf16 %v1857
        %v2218 = vunpack.c.h.bf16 %v1857
        %v2219 = vunpack.c.l.bf16 %v1858
        %v2220 = vunpack.c.h.bf16 %v1858
        %v2221 = vunpack.c.l.bf16 %v1859
        %v2222 = vunpack.c.h.bf16 %v1859
        %v2223 = vunpack.c.l.bf16 %v1860
        %v2224 = vunpack.c.h.bf16 %v1860
        %v2225 = vunpack.c.l.bf16 %v1861
        %v2226 = vunpack.c.h.bf16 %v1861
        %v2227 = vunpack.c.l.bf16 %v1862
        %v2228 = vunpack.c.h.bf16 %v1862
        %v2229 = vunpack.c.l.bf16 %v1863
        %v2230 = vunpack.c.h.bf16 %v1863
        %v2231 = vunpack.c.l.bf16 %v1864
        %v2232 = vunpack.c.h.bf16 %v1864
        %v2233 = vunpack.c.l.bf16 %v1865
        %v2234 = vunpack.c.h.bf16 %v1865
        %v2235 = vunpack.c.l.bf16 %v1866
        %v2236 = vunpack.c.h.bf16 %v1866
        %v2237 = vunpack.c.l.bf16 %v1867
        %v2238 = vunpack.c.h.bf16 %v1867
        %v2239 = vunpack.c.l.bf16 %v1868
        %v2240 = vunpack.c.h.bf16 %v1868
        %v2241 = vunpack.c.l.bf16 %v1869
        %v2242 = vunpack.c.h.bf16 %v1869
        %v2243 = vunpack.c.l.bf16 %v1870
        %v2244 = vunpack.c.h.bf16 %v1870
        %v2245 = vunpack.c.l.bf16 %v1871
        %v2246 = vunpack.c.h.bf16 %v1871
        %v2247 = vunpack.c.l.bf16 %v1872
        %v2248 = vunpack.c.h.bf16 %v1872
        %v2249 = vunpack.c.l.bf16 %v1873
        %v2250 = vunpack.c.h.bf16 %v1873
        %v2251 = vunpack.c.l.bf16 %v1874
        %v2252 = vunpack.c.h.bf16 %v1874
        %v2253 = vunpack.c.l.bf16 %v1875
        %v2254 = vunpack.c.h.bf16 %v1875
        %v2255 = vunpack.c.l.bf16 %v1876
        %v2256 = vunpack.c.h.bf16 %v1876
        %v2257 = vunpack.c.l.bf16 %v1877
        %v2258 = vunpack.c.h.bf16 %v1877
        %v2259 = vunpack.c.l.bf16 %v1878
        %v2260 = vunpack.c.h.bf16 %v1878
        %v2261 = vunpack.c.l.bf16 %v1879
        %v2262 = vunpack.c.h.bf16 %v1879
        %v2263 = vunpack.c.l.bf16 %v1880
        %v2264 = vunpack.c.h.bf16 %v1880
        %v2265 = vunpack.c.l.bf16 %v1881
        %v2266 = vunpack.c.h.bf16 %v1881
        %v2267 = vunpack.c.l.bf16 %v1882
        %v2268 = vunpack.c.h.bf16 %v1882
        %v2269 = vunpack.c.l.bf16 %v1883
        %v2270 = vunpack.c.h.bf16 %v1883
        %v2271 = vunpack.c.l.bf16 %v1884
        %v2272 = vunpack.c.h.bf16 %v1884
        %v2273 = vunpack.c.l.bf16 %v1885
        %v2274 = vunpack.c.h.bf16 %v1885
        %v2275 = vunpack.c.l.bf16 %v1886
        %v2276 = vunpack.c.h.bf16 %v1886
        %v2277 = vunpack.c.l.bf16 %v1887
        %v2278 = vunpack.c.h.bf16 %v1887
        %v2279 = vunpack.c.l.bf16 %v1888
        %v2280 = vunpack.c.h.bf16 %v1888
        %v2281 = vunpack.c.l.bf16 %v1889
        %v2282 = vunpack.c.h.bf16 %v1889
        %v2283 = vunpack.c.l.bf16 %v1890
        %v2284 = vunpack.c.h.bf16 %v1890
        %v2285 = vunpack.c.l.bf16 %v1891
        %v2286 = vunpack.c.h.bf16 %v1891
        %v2287 = vunpack.c.l.bf16 %v1892
        %v2288 = vunpack.c.h.bf16 %v1892
        %v2289 = vunpack.c.l.bf16 %v1893
        %v2290 = vunpack.c.h.bf16 %v1893
        %v2291 = vunpack.c.l.bf16 %v1894
        %v2292 = vunpack.c.h.bf16 %v1894
        %v2293 = vunpack.c.l.bf16 %v1895
        %v2294 = vunpack.c.h.bf16 %v1895
        %v2295 = vunpack.c.l.bf16 %v1896
        %v2296 = vunpack.c.h.bf16 %v1896
        %v2297 = vunpack.c.l.bf16 %v1897
        %v2298 = vunpack.c.h.bf16 %v1897
        %v2299 = vunpack.c.l.bf16 %v1898
        %v2300 = vunpack.c.h.bf16 %v1898
        %v2301 = vunpack.c.l.bf16 %v1899
        %v2302 = vunpack.c.h.bf16 %v1899
        %v2303 = vunpack.c.l.bf16 %v1900
        %v2304 = vunpack.c.h.bf16 %v1900
        %v2305 = vunpack.c.l.bf16 %v1901
        %v2306 = vunpack.c.h.bf16 %v1901
        %v2307 = vunpack.c.l.bf16 %v1902
        %v2308 = vunpack.c.h.bf16 %v1902
        %v2309 = vunpack.c.l.bf16 %v1903
        %v2310 = vunpack.c.h.bf16 %v1903
        %v2311 = vunpack.c.l.bf16 %v1904
        %v2312 = vunpack.c.h.bf16 %v1904
        %v2313 = vunpack.c.l.bf16 %v1905
        %v2314 = vunpack.c.h.bf16 %v1905
        %v2315 = vunpack.c.l.bf16 %v1906
        %v2316 = vunpack.c.h.bf16 %v1906
        %v2317 = vunpack.c.l.bf16 %v1907
        %v2318 = vunpack.c.h.bf16 %v1907
        %v2319 = vunpack.c.l.bf16 %v1908
        %v2320 = vunpack.c.h.bf16 %v1908
        %v2321 = vunpack.c.l.bf16 %v1909
        %v2322 = vunpack.c.h.bf16 %v1909
        %v2323 = vunpack.c.l.bf16 %v1910
        %v2324 = vunpack.c.h.bf16 %v1910
        %v2325 = vunpack.c.l.bf16 %v1911
        %v2326 = vunpack.c.h.bf16 %v1911
        %v2327 = vunpack.c.l.bf16 %v1912
        %v2328 = vunpack.c.h.bf16 %v1912
        %v2329 = vunpack.c.l.bf16 %v1913
        %v2330 = vunpack.c.h.bf16 %v1913
        %v2331 = vunpack.c.l.bf16 %v1914
        %v2332 = vunpack.c.h.bf16 %v1914
        %v2333 = vunpack.c.l.bf16 %v1915
        %v2334 = vunpack.c.h.bf16 %v1915
        %v2335 = vunpack.c.l.bf16 %v1916
        %v2336 = vunpack.c.h.bf16 %v1916
        %v2337 = vunpack.c.l.bf16 %v1917
        %v2338 = vunpack.c.h.bf16 %v1917
        %v2339 = vunpack.c.l.bf16 %v1918
        %v2340 = vunpack.c.h.bf16 %v1918
        %v2341 = vunpack.c.l.bf16 %v1919
        %v2342 = vunpack.c.h.bf16 %v1919
        %v2343 = vunpack.c.l.bf16 %v1920
        %v2344 = vunpack.c.h.bf16 %v1920
        %v2345 = vunpack.c.l.bf16 %v1921
        %v2346 = vunpack.c.h.bf16 %v1921
        %v2347 = vunpack.c.l.bf16 %v1922
        %v2348 = vunpack.c.h.bf16 %v1922
        %v2349 = vunpack.c.l.bf16 %v1923
        %v2350 = vunpack.c.h.bf16 %v1923
        %v2351 = vunpack.c.l.bf16 %v1924
        %v2352 = vunpack.c.h.bf16 %v1924
        %v2353 = vunpack.c.l.bf16 %v1925
        %v2354 = vunpack.c.h.bf16 %v1925
        %v2355 = vunpack.c.l.bf16 %v1926
        %v2356 = vunpack.c.h.bf16 %v1926
        %v2357 = vunpack.c.l.bf16 %v1927
        %v2358 = vunpack.c.h.bf16 %v1927
        %v2359 = vunpack.c.l.bf16 %v1928
        %v2360 = vunpack.c.h.bf16 %v1928
        %v2361 = vunpack.c.l.bf16 %v1929
        %v2362 = vunpack.c.h.bf16 %v1929
        %v2363 = vunpack.c.l.bf16 %v1930
        %v2364 = vunpack.c.h.bf16 %v1930
        %v2365 = vunpack.c.l.bf16 %v1931
        %v2366 = vunpack.c.h.bf16 %v1931
        %v2367 = vunpack.c.l.bf16 %v1932
        %v2368 = vunpack.c.h.bf16 %v1932
        %v2369 = vunpack.c.l.bf16 %v1933
        %v2370 = vunpack.c.h.bf16 %v1933
        %v2371 = vunpack.c.l.bf16 %v1934
        %v2372 = vunpack.c.h.bf16 %v1934
        %v2373 = vunpack.c.l.bf16 %v1935
        %v2374 = vunpack.c.h.bf16 %v1935
        %v2375 = vunpack.c.l.bf16 %v1936
        %v2376 = vunpack.c.h.bf16 %v1936
        %v2377 = vunpack.c.l.bf16 %v1937
        %v2378 = vunpack.c.h.bf16 %v1937
        %v2379 = vunpack.c.l.bf16 %v1938
        %v2380 = vunpack.c.h.bf16 %v1938
        %v2381 = vunpack.c.l.bf16 %v1939
        %v2382 = vunpack.c.h.bf16 %v1939
        %v2383 = vunpack.c.l.bf16 %v1940
        %v2384 = vunpack.c.h.bf16 %v1940
        %v2385 = vunpack.c.l.bf16 %v1941
        %v2386 = vunpack.c.h.bf16 %v1941
        %v2387 = vunpack.c.l.bf16 %v1942
        %v2388 = vunpack.c.h.bf16 %v1942
        %v2389 = vunpack.c.l.bf16 %v1943
        %v2390 = vunpack.c.h.bf16 %v1943
        %v2391 = vunpack.c.l.bf16 %v1944
        %v2392 = vunpack.c.h.bf16 %v1944
        %v2393 = vunpack.c.l.bf16 %v1945
        %v2394 = vunpack.c.h.bf16 %v1945
        %v2395 = vunpack.c.l.bf16 %v1946
        %v2396 = vunpack.c.h.bf16 %v1946
        %v2397 = vunpack.c.l.bf16 %v1947
        %v2398 = vunpack.c.h.bf16 %v1947
        %v2399 = vunpack.c.l.bf16 %v1948
        %v2400 = vunpack.c.h.bf16 %v1948
        %v2401 = vunpack.c.l.bf16 %v1949
        %v2402 = vunpack.c.h.bf16 %v1949
        %v2403 = vunpack.c.l.bf16 %v1950
        %v2404 = vunpack.c.h.bf16 %v1950
        %v2405 = vunpack.c.l.bf16 %v1951
        %v2406 = vunpack.c.h.bf16 %v1951
        %v2407 = vunpack.c.l.bf16 %v1952
        %v2408 = vunpack.c.h.bf16 %v1952
        %v2409 = vunpack.c.l.bf16 %v1953
        %v2410 = vunpack.c.h.bf16 %v1953
        %v2411 = vunpack.c.l.bf16 %v1954
        %v2412 = vunpack.c.h.bf16 %v1954
        %v2413 = vunpack.c.l.bf16 %v1955
        %v2414 = vunpack.c.h.bf16 %v1955
        %v2415 = vunpack.c.l.bf16 %v1956
        %v2416 = vunpack.c.h.bf16 %v1956
        %v2417 = vunpack.c.l.bf16 %v1957
        %v2418 = vunpack.c.h.bf16 %v1957
        %v2419 = vunpack.c.l.bf16 %v1958
        %v2420 = vunpack.c.h.bf16 %v1958
        %v2421 = vunpack.c.l.bf16 %v1959
        %v2422 = vunpack.c.h.bf16 %v1959
        %v2423 = vunpack.c.l.bf16 %v1960
        %v2424 = vunpack.c.h.bf16 %v1960
        %v2425 = vunpack.c.l.bf16 %v1961
        %v2426 = vunpack.c.h.bf16 %v1961
        %v2427 = vunpack.c.l.bf16 %v1962
        %v2428 = vunpack.c.h.bf16 %v1962
        %v2429 = vunpack.c.l.bf16 %v1963
        %v2430 = vunpack.c.h.bf16 %v1963
        %v2431 = vunpack.c.l.bf16 %v1964
        %v2432 = vunpack.c.h.bf16 %v1964
        %v2433 = vunpack.c.l.bf16 %v1965
        %v2434 = vunpack.c.h.bf16 %v1965
        %v2435 = vunpack.c.l.bf16 %v1966
        %v2436 = vunpack.c.h.bf16 %v1966
        %v2437 = vunpack.c.l.bf16 %v1967
        %v2438 = vunpack.c.h.bf16 %v1967
        %v2439 = vunpack.c.l.bf16 %v1968
        %v2440 = vunpack.c.h.bf16 %v1968
        %v2441 = vunpack.c.l.bf16 %v1969
        %v2442 = vunpack.c.h.bf16 %v1969
        %v2443 = vunpack.c.l.bf16 %v1970
        %v2444 = vunpack.c.h.bf16 %v1970
        %v2445 = vunpack.c.l.bf16 %v1971
        %v2446 = vunpack.c.h.bf16 %v1971
        %v2447 = vunpack.c.l.bf16 %v1972
        %v2448 = vunpack.c.h.bf16 %v1972
        %v2449 = vunpack.c.l.bf16 %v1973
        %v2450 = vunpack.c.h.bf16 %v1973
        %v2451 = vunpack.c.l.bf16 %v1974
        %v2452 = vunpack.c.h.bf16 %v1974
        %v2453 = vunpack.c.l.bf16 %v1975
        %v2454 = vunpack.c.h.bf16 %v1975
        %v2455 = vunpack.c.l.bf16 %v1976
        %v2456 = vunpack.c.h.bf16 %v1976
        %v2457 = vunpack.c.l.bf16 %v1977
        %v2458 = vunpack.c.h.bf16 %v1977
        %v2459 = vunpack.c.l.bf16 %v1978
        %v2460 = vunpack.c.h.bf16 %v1978
        %v2461 = vunpack.c.l.bf16 %v1979
        %v2462 = vunpack.c.h.bf16 %v1979
        %v2463 = vunpack.c.l.bf16 %v1980
        %v2464 = vunpack.c.h.bf16 %v1980
        %v2465 = vunpack.c.l.bf16 %v1981
        %v2466 = vunpack.c.h.bf16 %v1981
        %v2467 = vunpack.c.l.bf16 %v1982
        %v2468 = vunpack.c.h.bf16 %v1982
        %v2469 = vunpack.c.l.bf16 %v1983
        %v2470 = vunpack.c.h.bf16 %v1983
        %v2471 = vunpack.c.l.bf16 %v1984
        %v2472 = vunpack.c.h.bf16 %v1984
        %v2473 = vunpack.c.l.bf16 %v1985
        %v2474 = vunpack.c.h.bf16 %v1985
        %v2475 = vunpack.c.l.bf16 %v1986
        %v2476 = vunpack.c.h.bf16 %v1986
        %v2477 = vunpack.c.l.bf16 %v1987
        %v2478 = vunpack.c.h.bf16 %v1987
        %v2479 = vunpack.c.l.bf16 %v1988
        %v2480 = vunpack.c.h.bf16 %v1988
        %v2481 = vunpack.c.l.bf16 %v1989
        %v2482 = vunpack.c.h.bf16 %v1989
        %v2483 = vunpack.c.l.bf16 %v1990
        %v2484 = vunpack.c.h.bf16 %v1990
        %v2485 = vunpack.c.l.bf16 %v1991
        %v2486 = vunpack.c.h.bf16 %v1991
        %v2487 = vunpack.c.l.bf16 %v1992
        %v2488 = vunpack.c.h.bf16 %v1992
        %v2489 = vunpack.c.l.bf16 %v1993
        %v2490 = vunpack.c.h.bf16 %v1993
        %v2491 = vunpack.c.l.bf16 %v1994
        %v2492 = vunpack.c.h.bf16 %v1994
        %v2493 = vunpack.c.l.bf16 %v1995
        %v2494 = vunpack.c.h.bf16 %v1995
        %v2495 = vunpack.c.l.bf16 %v1996
        %v2496 = vunpack.c.h.bf16 %v1996
        %v2497 = vunpack.c.l.bf16 %v1997
        %v2498 = vunpack.c.h.bf16 %v1997
        %v2499 = vunpack.c.l.bf16 %v1998
        %v2500 = vunpack.c.h.bf16 %v1998
        %v2501 = vunpack.c.l.bf16 %v1999
        %v2502 = vunpack.c.h.bf16 %v1999
        %v2503 = vunpack.c.l.bf16 %v2000
        %v2504 = vunpack.c.h.bf16 %v2000
        %v2505 = vunpack.c.l.bf16 %v2001
        %v2506 = vunpack.c.h.bf16 %v2001
        %v2507 = vunpack.c.l.bf16 %v2002
        %v2508 = vunpack.c.h.bf16 %v2002
        %v2509 = vunpack.c.l.bf16 %v2003
        %v2510 = vunpack.c.h.bf16 %v2003
        %v2511 = vunpack.c.l.bf16 %v2004
        %v2512 = vunpack.c.h.bf16 %v2004
        %v2513 = vunpack.c.l.bf16 %v2005
        %v2514 = vunpack.c.h.bf16 %v2005
        %v2515 = vunpack.c.l.bf16 %v2006
        %v2516 = vunpack.c.h.bf16 %v2006
        %v2517 = vunpack.c.l.bf16 %v2007
        %v2518 = vunpack.c.h.bf16 %v2007
        %v2519 = vunpack.c.l.bf16 %v2008
        %v2520 = vunpack.c.h.bf16 %v2008
        %v2521 = vld [vmem:[%s291 + $0x2] sm:$0x3]
        %v2522 = vld [vmem:[#allocation4] sm:$0xff]
        %v2523 = vld [vmem:[#allocation4 + $0x8] sm:$0xff]
        %v2524 = vld [vmem:[#allocation4 + $0x10] sm:$0xff]
        %v2525 = vld [vmem:[#allocation4 + $0x18] sm:$0xff]
        %v2526 = vld [vmem:[#allocation4 + $0x20] sm:$0xff]
        %v2527 = vld [vmem:[#allocation4 + $0x28] sm:$0xff]
        %v2528 = vld [vmem:[#allocation4 + $0x30] sm:$0xff]
        %v2529 = vld [vmem:[#allocation4 + $0x38] sm:$0xff]
        %v2530 = vld [vmem:[#allocation4 + $0x40] sm:$0xff]
        %v2531 = vld [vmem:[#allocation4 + $0x48] sm:$0xff]
        %v2532 = vld [vmem:[#allocation4 + $0x50] sm:$0xff]
        %v2533 = vld [vmem:[#allocation4 + $0x58] sm:$0xff]
        %v2534 = vld [vmem:[#allocation4 + $0x60] sm:$0xff]
        %v2535 = vld [vmem:[#allocation4 + $0x68] sm:$0xff]
        %v2536 = vld [vmem:[#allocation4 + $0x70] sm:$0xff]
        %v2537 = vld [vmem:[#allocation4 + $0x78] sm:$0xff]
        %v2538 = vld [vmem:[#allocation4 + $0x80] sm:$0xff]
        %v2539 = vld [vmem:[#allocation4 + $0x88] sm:$0xff]
        %v2540 = vld [vmem:[#allocation4 + $0x90] sm:$0xff]
        %v2541 = vld [vmem:[#allocation4 + $0x98] sm:$0xff]
        %v2542 = vld [vmem:[#allocation4 + $0xa0] sm:$0xff]
        %v2543 = vld [vmem:[#allocation4 + $0xa8] sm:$0xff]
        %v2544 = vld [vmem:[#allocation4 + $0xb0] sm:$0xff]
        %v2545 = vld [vmem:[#allocation4 + $0xb8] sm:$0xff]
        %v2546 = vld [vmem:[#allocation4 + $0xc0] sm:$0xff]
        %v2547 = vld [vmem:[#allocation4 + $0xc8] sm:$0xff]
        %v2548 = vld [vmem:[#allocation4 + $0xd0] sm:$0xff]
        %v2549 = vld [vmem:[#allocation4 + $0xd8] sm:$0xff]
        %v2550 = vld [vmem:[#allocation4 + $0xe0] sm:$0xff]
        %v2551 = vld [vmem:[#allocation4 + $0xe8] sm:$0xff]
        %v2552 = vld [vmem:[#allocation4 + $0xf0] sm:$0xff]
        %v2553 = vld [vmem:[#allocation4 + $0xf8] sm:$0xff]
        %v2555 = vlaneseq
        %v2556 = vshrl.u32 %v2555, 7
        %v2557 = vsub.s32 0, %v2556
        %v2558 = vrot.slane %v2521, %v2557
        %v2559 = vlaneseq
        %v2560 = vshrl.u32 %v2559, 7
        %v2561 = vsub.s32 1, %v2560
        %v2562 = vrot.slane %v2521, %v2561
        %2565 = vmatprep.subr.mxu0 %v2040
        %2566 = vmatpush1.msra.mxu0 %v2039
        %2567 = vmatprep.subr.mxu0 %v2038
        %2568 = vmatpush1.msra.mxu0 %v2037
        %2569 = vmatprep.subr.mxu0 %v2036
        %2570 = vmatpush1.msra.mxu0 %v2035
        %2571 = vmatprep.subr.mxu0 %v2034
        %2572 = vmatpush1.msra.mxu0 %v2033
        %2573 = vmatprep.subr.mxu0 %v2032
        %2574 = vmatpush1.msra.mxu0 %v2031
        %2575 = vmatprep.subr.mxu0 %v2030
        %2576 = vmatpush1.msra.mxu0 %v2029
        %2577 = vmatprep.subr.mxu0 %v2028
        %2578 = vmatpush1.msra.mxu0 %v2027
        %2579 = vmatprep.subr.mxu0 %v2026
        %2580 = vmatpush1.msra.mxu0 %v2025
        %2581 = vmatprep.subr.mxu0 %v2024
        %2582 = vmatpush1.msra.mxu0 %v2023
        %2583 = vmatprep.subr.mxu0 %v2022
        %2584 = vmatpush1.msra.mxu0 %v2021
        %2585 = vmatprep.subr.mxu0 %v2020
        %2586 = vmatpush1.msra.mxu0 %v2019
        %2587 = vmatprep.subr.mxu0 %v2018
        %2588 = vmatpush1.msra.mxu0 %v2017
        %2589 = vmatprep.subr.mxu0 %v2016
        %2590 = vmatpush1.msra.mxu0 %v2015
        %2591 = vmatprep.subr.mxu0 %v2014
        %2592 = vmatpush1.msra.mxu0 %v2013
        %2593 = vmatprep.subr.mxu0 %v2012
        %2594 = vmatpush1.msra.mxu0 %v2011
        %2595 = vmatprep.subr.mxu0 %v2010
        %2596 = vmatpush1.msra.mxu0 %v2009
        %2597 = vmatprep.subr.mxu0 %v2072
        %2598 = vmatpush2.msra.mxu0 %v2071
        %2599 = vmatprep.subr.mxu0 %v2070
        %2600 = vmatpush2.msra.mxu0 %v2069
        %2601 = vmatprep.subr.mxu0 %v2068
        %2602 = vmatpush2.msra.mxu0 %v2067
        %2603 = vmatprep.subr.mxu0 %v2066
        %2604 = vmatpush2.msra.mxu0 %v2065
        %2605 = vmatprep.subr.mxu0 %v2064
        %2606 = vmatpush2.msra.mxu0 %v2063
        %2607 = vmatprep.subr.mxu0 %v2062
        %2608 = vmatpush2.msra.mxu0 %v2061
        %2609 = vmatprep.subr.mxu0 %v2060
        %2610 = vmatpush2.msra.mxu0 %v2059
        %2611 = vmatprep.subr.mxu0 %v2058
        %2612 = vmatpush2.msra.mxu0 %v2057
        %2613 = vmatprep.subr.mxu0 %v2056
        %2614 = vmatpush2.msra.mxu0 %v2055
        %2615 = vmatprep.subr.mxu0 %v2054
        %2616 = vmatpush2.msra.mxu0 %v2053
        %2617 = vmatprep.subr.mxu0 %v2052
        %2618 = vmatpush2.msra.mxu0 %v2051
        %2619 = vmatprep.subr.mxu0 %v2050
        %2620 = vmatpush2.msra.mxu0 %v2049
        %2621 = vmatprep.subr.mxu0 %v2048
        %2622 = vmatpush2.msra.mxu0 %v2047
        %2623 = vmatprep.subr.mxu0 %v2046
        %2624 = vmatpush2.msra.mxu0 %v2045
        %2625 = vmatprep.subr.mxu0 %v2044
        %2626 = vmatpush2.msra.mxu0 %v2043
        %2627 = vmatprep.subr.mxu0 %v2042
        %2628 = vmatpush2.msra.mxu0 %v2041
        %2629 = vmatprep.mubr.f32.mxu0 %v2523
        %2630 = vmatmul.mubr.f32.gmra.mxu0 %v2522
        %v2631 = vpop.f32.mrf.mxu0
        %v2632 = vadd.f32 %v2558, %v2631
        %v2633 = vpop.f32.mrf.mxu0
        %v2634 = vadd.f32 %v2562, %v2633
        %2635 = vmatprep.mubr.f32.mxu0 %v2539
        %2636 = vmatmul.mubr.f32.gmra.mxu0 %v2538
        %v2637 = vpop.f32.mrf.mxu0
        %v2638 = vadd.f32 %v2558, %v2637
        %v2639 = vpop.f32.mrf.mxu0
        %v2640 = vadd.f32 %v2562, %v2639
        %2641 = vdwg.mxu0
        %2642 = vmatprep.subr.mxu0 %v2104
        %2643 = vmatpush1.msra.mxu0 %v2103
        %2644 = vmatprep.subr.mxu0 %v2102
        %2645 = vmatpush1.msra.mxu0 %v2101
        %2646 = vmatprep.subr.mxu0 %v2100
        %2647 = vmatpush1.msra.mxu0 %v2099
        %2648 = vmatprep.subr.mxu0 %v2098
        %2649 = vmatpush1.msra.mxu0 %v2097
        %2650 = vmatprep.subr.mxu0 %v2096
        %2651 = vmatpush1.msra.mxu0 %v2095
        %2652 = vmatprep.subr.mxu0 %v2094
        %2653 = vmatpush1.msra.mxu0 %v2093
        %2654 = vmatprep.subr.mxu0 %v2092
        %2655 = vmatpush1.msra.mxu0 %v2091
        %2656 = vmatprep.subr.mxu0 %v2090
        %2657 = vmatpush1.msra.mxu0 %v2089
        %2658 = vmatprep.subr.mxu0 %v2088
        %2659 = vmatpush1.msra.mxu0 %v2087
        %2660 = vmatprep.subr.mxu0 %v2086
        %2661 = vmatpush1.msra.mxu0 %v2085
        %2662 = vmatprep.subr.mxu0 %v2084
        %2663 = vmatpush1.msra.mxu0 %v2083
        %2664 = vmatprep.subr.mxu0 %v2082
        %2665 = vmatpush1.msra.mxu0 %v2081
        %2666 = vmatprep.subr.mxu0 %v2080
        %2667 = vmatpush1.msra.mxu0 %v2079
        %2668 = vmatprep.subr.mxu0 %v2078
        %2669 = vmatpush1.msra.mxu0 %v2077
        %2670 = vmatprep.subr.mxu0 %v2076
        %2671 = vmatpush1.msra.mxu0 %v2075
        %2672 = vmatprep.subr.mxu0 %v2074
        %2673 = vmatpush1.msra.mxu0 %v2073
        %2674 = vmatprep.subr.mxu0 %v2136
        %2675 = vmatpush2.msra.mxu0 %v2135
        %2676 = vmatprep.subr.mxu0 %v2134
        %2677 = vmatpush2.msra.mxu0 %v2133
        %2678 = vmatprep.subr.mxu0 %v2132
        %2679 = vmatpush2.msra.mxu0 %v2131
        %2680 = vmatprep.subr.mxu0 %v2130
        %2681 = vmatpush2.msra.mxu0 %v2129
        %2682 = vmatprep.subr.mxu0 %v2128
        %2683 = vmatpush2.msra.mxu0 %v2127
        %2684 = vmatprep.subr.mxu0 %v2126
        %2685 = vmatpush2.msra.mxu0 %v2125
        %2686 = vmatprep.subr.mxu0 %v2124
        %2687 = vmatpush2.msra.mxu0 %v2123
        %2688 = vmatprep.subr.mxu0 %v2122
        %2689 = vmatpush2.msra.mxu0 %v2121
        %2690 = vmatprep.subr.mxu0 %v2120
        %2691 = vmatpush2.msra.mxu0 %v2119
        %2692 = vmatprep.subr.mxu0 %v2118
        %2693 = vmatpush2.msra.mxu0 %v2117
        %2694 = vmatprep.subr.mxu0 %v2116
        %2695 = vmatpush2.msra.mxu0 %v2115
        %2696 = vmatprep.subr.mxu0 %v2114
        %2697 = vmatpush2.msra.mxu0 %v2113
        %2698 = vmatprep.subr.mxu0 %v2112
        %2699 = vmatpush2.msra.mxu0 %v2111
        %2700 = vmatprep.subr.mxu0 %v2110
        %2701 = vmatpush2.msra.mxu0 %v2109
        %2702 = vmatprep.subr.mxu0 %v2108
        %2703 = vmatpush2.msra.mxu0 %v2107
        %2704 = vmatprep.subr.mxu0 %v2106
        %2705 = vmatpush2.msra.mxu0 %v2105
        %2706 = vmatprep.mubr.f32.mxu0 %v2525
        %2707 = vmatmul.mubr.f32.gmra.mxu0 %v2524
        %v2708 = vpop.f32.mrf.mxu0
        %v2709 = vadd.f32 %v2632, %v2708
        %v2710 = vpop.f32.mrf.mxu0
        %v2711 = vadd.f32 %v2634, %v2710
        %2712 = vmatprep.mubr.f32.mxu0 %v2541
        %2713 = vmatmul.mubr.f32.gmra.mxu0 %v2540
        %v2714 = vpop.f32.mrf.mxu0
        %v2715 = vadd.f32 %v2638, %v2714
        %v2716 = vpop.f32.mrf.mxu0
        %v2717 = vadd.f32 %v2640, %v2716
        %2718 = vdwg.mxu0
        %2719 = vmatprep.subr.mxu0 %v2168
        %2720 = vmatpush1.msra.mxu0 %v2167
        %2721 = vmatprep.subr.mxu0 %v2166
        %2722 = vmatpush1.msra.mxu0 %v2165
        %2723 = vmatprep.subr.mxu0 %v2164
        %2724 = vmatpush1.msra.mxu0 %v2163
        %2725 = vmatprep.subr.mxu0 %v2162
        %2726 = vmatpush1.msra.mxu0 %v2161
        %2727 = vmatprep.subr.mxu0 %v2160
        %2728 = vmatpush1.msra.mxu0 %v2159
        %2729 = vmatprep.subr.mxu0 %v2158
        %2730 = vmatpush1.msra.mxu0 %v2157
        %2731 = vmatprep.subr.mxu0 %v2156
        %2732 = vmatpush1.msra.mxu0 %v2155
        %2733 = vmatprep.subr.mxu0 %v2154
        %2734 = vmatpush1.msra.mxu0 %v2153
        %2735 = vmatprep.subr.mxu0 %v2152
        %2736 = vmatpush1.msra.mxu0 %v2151
        %2737 = vmatprep.subr.mxu0 %v2150
        %2738 = vmatpush1.msra.mxu0 %v2149
        %2739 = vmatprep.subr.mxu0 %v2148
        %2740 = vmatpush1.msra.mxu0 %v2147
        %2741 = vmatprep.subr.mxu0 %v2146
        %2742 = vmatpush1.msra.mxu0 %v2145
        %2743 = vmatprep.subr.mxu0 %v2144
        %2744 = vmatpush1.msra.mxu0 %v2143
        %2745 = vmatprep.subr.mxu0 %v2142
        %2746 = vmatpush1.msra.mxu0 %v2141
        %2747 = vmatprep.subr.mxu0 %v2140
        %2748 = vmatpush1.msra.mxu0 %v2139
        %2749 = vmatprep.subr.mxu0 %v2138
        %2750 = vmatpush1.msra.mxu0 %v2137
        %2751 = vmatprep.subr.mxu0 %v2200
        %2752 = vmatpush2.msra.mxu0 %v2199
        %2753 = vmatprep.subr.mxu0 %v2198
        %2754 = vmatpush2.msra.mxu0 %v2197
        %2755 = vmatprep.subr.mxu0 %v2196
        %2756 = vmatpush2.msra.mxu0 %v2195
        %2757 = vmatprep.subr.mxu0 %v2194
        %2758 = vmatpush2.msra.mxu0 %v2193
        %2759 = vmatprep.subr.mxu0 %v2192
        %2760 = vmatpush2.msra.mxu0 %v2191
        %2761 = vmatprep.subr.mxu0 %v2190
        %2762 = vmatpush2.msra.mxu0 %v2189
        %2763 = vmatprep.subr.mxu0 %v2188
        %2764 = vmatpush2.msra.mxu0 %v2187
        %2765 = vmatprep.subr.mxu0 %v2186
        %2766 = vmatpush2.msra.mxu0 %v2185
        %2767 = vmatprep.subr.mxu0 %v2184
        %2768 = vmatpush2.msra.mxu0 %v2183
        %2769 = vmatprep.subr.mxu0 %v2182
        %2770 = vmatpush2.msra.mxu0 %v2181
        %2771 = vmatprep.subr.mxu0 %v2180
        %2772 = vmatpush2.msra.mxu0 %v2179
        %2773 = vmatprep.subr.mxu0 %v2178
        %2774 = vmatpush2.msra.mxu0 %v2177
        %2775 = vmatprep.subr.mxu0 %v2176
        %2776 = vmatpush2.msra.mxu0 %v2175
        %2777 = vmatprep.subr.mxu0 %v2174
        %2778 = vmatpush2.msra.mxu0 %v2173
        %2779 = vmatprep.subr.mxu0 %v2172
        %2780 = vmatpush2.msra.mxu0 %v2171
        %2781 = vmatprep.subr.mxu0 %v2170
        %2782 = vmatpush2.msra.mxu0 %v2169
        %2783 = vmatprep.mubr.f32.mxu0 %v2527
        %2784 = vmatmul.mubr.f32.gmra.mxu0 %v2526
        %v2785 = vpop.f32.mrf.mxu0
        %v2786 = vadd.f32 %v2709, %v2785
        %v2787 = vpop.f32.mrf.mxu0
        %v2788 = vadd.f32 %v2711, %v2787
        %2789 = vmatprep.mubr.f32.mxu0 %v2543
        %2790 = vmatmul.mubr.f32.gmra.mxu0 %v2542
        %v2791 = vpop.f32.mrf.mxu0
        %v2792 = vadd.f32 %v2715, %v2791
        %v2793 = vpop.f32.mrf.mxu0
        %v2794 = vadd.f32 %v2717, %v2793
        %2795 = vdwg.mxu0
        %2796 = vmatprep.subr.mxu0 %v2232
        %2797 = vmatpush1.msra.mxu0 %v2231
        %2798 = vmatprep.subr.mxu0 %v2230
        %2799 = vmatpush1.msra.mxu0 %v2229
        %2800 = vmatprep.subr.mxu0 %v2228
        %2801 = vmatpush1.msra.mxu0 %v2227
        %2802 = vmatprep.subr.mxu0 %v2226
        %2803 = vmatpush1.msra.mxu0 %v2225
        %2804 = vmatprep.subr.mxu0 %v2224
        %2805 = vmatpush1.msra.mxu0 %v2223
        %2806 = vmatprep.subr.mxu0 %v2222
        %2807 = vmatpush1.msra.mxu0 %v2221
        %2808 = vmatprep.subr.mxu0 %v2220
        %2809 = vmatpush1.msra.mxu0 %v2219
        %2810 = vmatprep.subr.mxu0 %v2218
        %2811 = vmatpush1.msra.mxu0 %v2217
        %2812 = vmatprep.subr.mxu0 %v2216
        %2813 = vmatpush1.msra.mxu0 %v2215
        %2814 = vmatprep.subr.mxu0 %v2214
        %2815 = vmatpush1.msra.mxu0 %v2213
        %2816 = vmatprep.subr.mxu0 %v2212
        %2817 = vmatpush1.msra.mxu0 %v2211
        %2818 = vmatprep.subr.mxu0 %v2210
        %2819 = vmatpush1.msra.mxu0 %v2209
        %2820 = vmatprep.subr.mxu0 %v2208
        %2821 = vmatpush1.msra.mxu0 %v2207
        %2822 = vmatprep.subr.mxu0 %v2206
        %2823 = vmatpush1.msra.mxu0 %v2205
        %2824 = vmatprep.subr.mxu0 %v2204
        %2825 = vmatpush1.msra.mxu0 %v2203
        %2826 = vmatprep.subr.mxu0 %v2202
        %2827 = vmatpush1.msra.mxu0 %v2201
        %2828 = vmatprep.subr.mxu0 %v2264
        %2829 = vmatpush2.msra.mxu0 %v2263
        %2830 = vmatprep.subr.mxu0 %v2262
        %2831 = vmatpush2.msra.mxu0 %v2261
        %2832 = vmatprep.subr.mxu0 %v2260
        %2833 = vmatpush2.msra.mxu0 %v2259
        %2834 = vmatprep.subr.mxu0 %v2258
        %2835 = vmatpush2.msra.mxu0 %v2257
        %2836 = vmatprep.subr.mxu0 %v2256
        %2837 = vmatpush2.msra.mxu0 %v2255
        %2838 = vmatprep.subr.mxu0 %v2254
        %2839 = vmatpush2.msra.mxu0 %v2253
        %2840 = vmatprep.subr.mxu0 %v2252
        %2841 = vmatpush2.msra.mxu0 %v2251
        %2842 = vmatprep.subr.mxu0 %v2250
        %2843 = vmatpush2.msra.mxu0 %v2249
        %2844 = vmatprep.subr.mxu0 %v2248
        %2845 = vmatpush2.msra.mxu0 %v2247
        %2846 = vmatprep.subr.mxu0 %v2246
        %2847 = vmatpush2.msra.mxu0 %v2245
        %2848 = vmatprep.subr.mxu0 %v2244
        %2849 = vmatpush2.msra.mxu0 %v2243
        %2850 = vmatprep.subr.mxu0 %v2242
        %2851 = vmatpush2.msra.mxu0 %v2241
        %2852 = vmatprep.subr.mxu0 %v2240
        %2853 = vmatpush2.msra.mxu0 %v2239
        %2854 = vmatprep.subr.mxu0 %v2238
        %2855 = vmatpush2.msra.mxu0 %v2237
        %2856 = vmatprep.subr.mxu0 %v2236
        %2857 = vmatpush2.msra.mxu0 %v2235
        %2858 = vmatprep.subr.mxu0 %v2234
        %2859 = vmatpush2.msra.mxu0 %v2233
        %2860 = vmatprep.mubr.f32.mxu0 %v2529
        %2861 = vmatmul.mubr.f32.gmra.mxu0 %v2528
        %v2862 = vpop.f32.mrf.mxu0
        %v2863 = vadd.f32 %v2786, %v2862
        %v2864 = vpop.f32.mrf.mxu0
        %v2865 = vadd.f32 %v2788, %v2864
        %2866 = vmatprep.mubr.f32.mxu0 %v2545
        %2867 = vmatmul.mubr.f32.gmra.mxu0 %v2544
        %v2868 = vpop.f32.mrf.mxu0
        %v2869 = vadd.f32 %v2792, %v2868
        %v2870 = vpop.f32.mrf.mxu0
        %v2871 = vadd.f32 %v2794, %v2870
        %2872 = vdwg.mxu0
        %2873 = vmatprep.subr.mxu0 %v2296
        %2874 = vmatpush1.msra.mxu0 %v2295
        %2875 = vmatprep.subr.mxu0 %v2294
        %2876 = vmatpush1.msra.mxu0 %v2293
        %2877 = vmatprep.subr.mxu0 %v2292
        %2878 = vmatpush1.msra.mxu0 %v2291
        %2879 = vmatprep.subr.mxu0 %v2290
        %2880 = vmatpush1.msra.mxu0 %v2289
        %2881 = vmatprep.subr.mxu0 %v2288
        %2882 = vmatpush1.msra.mxu0 %v2287
        %2883 = vmatprep.subr.mxu0 %v2286
        %2884 = vmatpush1.msra.mxu0 %v2285
        %2885 = vmatprep.subr.mxu0 %v2284
        %2886 = vmatpush1.msra.mxu0 %v2283
        %2887 = vmatprep.subr.mxu0 %v2282
        %2888 = vmatpush1.msra.mxu0 %v2281
        %2889 = vmatprep.subr.mxu0 %v2280
        %2890 = vmatpush1.msra.mxu0 %v2279
        %2891 = vmatprep.subr.mxu0 %v2278
        %2892 = vmatpush1.msra.mxu0 %v2277
        %2893 = vmatprep.subr.mxu0 %v2276
        %2894 = vmatpush1.msra.mxu0 %v2275
        %2895 = vmatprep.subr.mxu0 %v2274
        %2896 = vmatpush1.msra.mxu0 %v2273
        %2897 = vmatprep.subr.mxu0 %v2272
        %2898 = vmatpush1.msra.mxu0 %v2271
        %2899 = vmatprep.subr.mxu0 %v2270
        %2900 = vmatpush1.msra.mxu0 %v2269
        %2901 = vmatprep.subr.mxu0 %v2268
        %2902 = vmatpush1.msra.mxu0 %v2267
        %2903 = vmatprep.subr.mxu0 %v2266
        %2904 = vmatpush1.msra.mxu0 %v2265
        %2905 = vmatprep.subr.mxu0 %v2328
        %2906 = vmatpush2.msra.mxu0 %v2327
        %2907 = vmatprep.subr.mxu0 %v2326
        %2908 = vmatpush2.msra.mxu0 %v2325
        %2909 = vmatprep.subr.mxu0 %v2324
        %2910 = vmatpush2.msra.mxu0 %v2323
        %2911 = vmatprep.subr.mxu0 %v2322
        %2912 = vmatpush2.msra.mxu0 %v2321
        %2913 = vmatprep.subr.mxu0 %v2320
        %2914 = vmatpush2.msra.mxu0 %v2319
        %2915 = vmatprep.subr.mxu0 %v2318
        %2916 = vmatpush2.msra.mxu0 %v2317
        %2917 = vmatprep.subr.mxu0 %v2316
        %2918 = vmatpush2.msra.mxu0 %v2315
        %2919 = vmatprep.subr.mxu0 %v2314
        %2920 = vmatpush2.msra.mxu0 %v2313
        %2921 = vmatprep.subr.mxu0 %v2312
        %2922 = vmatpush2.msra.mxu0 %v2311
        %2923 = vmatprep.subr.mxu0 %v2310
        %2924 = vmatpush2.msra.mxu0 %v2309
        %2925 = vmatprep.subr.mxu0 %v2308
        %2926 = vmatpush2.msra.mxu0 %v2307
        %2927 = vmatprep.subr.mxu0 %v2306
        %2928 = vmatpush2.msra.mxu0 %v2305
        %2929 = vmatprep.subr.mxu0 %v2304
        %2930 = vmatpush2.msra.mxu0 %v2303
        %2931 = vmatprep.subr.mxu0 %v2302
        %2932 = vmatpush2.msra.mxu0 %v2301
        %2933 = vmatprep.subr.mxu0 %v2300
        %2934 = vmatpush2.msra.mxu0 %v2299
        %2935 = vmatprep.subr.mxu0 %v2298
        %2936 = vmatpush2.msra.mxu0 %v2297
        %2937 = vmatprep.mubr.f32.mxu0 %v2531
        %2938 = vmatmul.mubr.f32.gmra.mxu0 %v2530
        %v2939 = vpop.f32.mrf.mxu0
        %v2940 = vadd.f32 %v2863, %v2939
        %v2941 = vpop.f32.mrf.mxu0
        %v2942 = vadd.f32 %v2865, %v2941
        %2943 = vmatprep.mubr.f32.mxu0 %v2547
        %2944 = vmatmul.mubr.f32.gmra.mxu0 %v2546
        %v2945 = vpop.f32.mrf.mxu0
        %v2946 = vadd.f32 %v2869, %v2945
        %v2947 = vpop.f32.mrf.mxu0
        %v2948 = vadd.f32 %v2871, %v2947
        %2949 = vdwg.mxu0
        %2950 = vmatprep.subr.mxu0 %v2360
        %2951 = vmatpush1.msra.mxu0 %v2359
        %2952 = vmatprep.subr.mxu0 %v2358
        %2953 = vmatpush1.msra.mxu0 %v2357
        %2954 = vmatprep.subr.mxu0 %v2356
        %2955 = vmatpush1.msra.mxu0 %v2355
        %2956 = vmatprep.subr.mxu0 %v2354
        %2957 = vmatpush1.msra.mxu0 %v2353
        %2958 = vmatprep.subr.mxu0 %v2352
        %2959 = vmatpush1.msra.mxu0 %v2351
        %2960 = vmatprep.subr.mxu0 %v2350
        %2961 = vmatpush1.msra.mxu0 %v2349
        %2962 = vmatprep.subr.mxu0 %v2348
        %2963 = vmatpush1.msra.mxu0 %v2347
        %2964 = vmatprep.subr.mxu0 %v2346
        %2965 = vmatpush1.msra.mxu0 %v2345
        %2966 = vmatprep.subr.mxu0 %v2344
        %2967 = vmatpush1.msra.mxu0 %v2343
        %2968 = vmatprep.subr.mxu0 %v2342
        %2969 = vmatpush1.msra.mxu0 %v2341
        %2970 = vmatprep.subr.mxu0 %v2340
        %2971 = vmatpush1.msra.mxu0 %v2339
        %2972 = vmatprep.subr.mxu0 %v2338
        %2973 = vmatpush1.msra.mxu0 %v2337
        %2974 = vmatprep.subr.mxu0 %v2336
        %2975 = vmatpush1.msra.mxu0 %v2335
        %2976 = vmatprep.subr.mxu0 %v2334
        %2977 = vmatpush1.msra.mxu0 %v2333
        %2978 = vmatprep.subr.mxu0 %v2332
        %2979 = vmatpush1.msra.mxu0 %v2331
        %2980 = vmatprep.subr.mxu0 %v2330
        %2981 = vmatpush1.msra.mxu0 %v2329
        %2982 = vmatprep.subr.mxu0 %v2392
        %2983 = vmatpush2.msra.mxu0 %v2391
        %2984 = vmatprep.subr.mxu0 %v2390
        %2985 = vmatpush2.msra.mxu0 %v2389
        %2986 = vmatprep.subr.mxu0 %v2388
        %2987 = vmatpush2.msra.mxu0 %v2387
        %2988 = vmatprep.subr.mxu0 %v2386
        %2989 = vmatpush2.msra.mxu0 %v2385
        %2990 = vmatprep.subr.mxu0 %v2384
        %2991 = vmatpush2.msra.mxu0 %v2383
        %2992 = vmatprep.subr.mxu0 %v2382
        %2993 = vmatpush2.msra.mxu0 %v2381
        %2994 = vmatprep.subr.mxu0 %v2380
        %2995 = vmatpush2.msra.mxu0 %v2379
        %2996 = vmatprep.subr.mxu0 %v2378
        %2997 = vmatpush2.msra.mxu0 %v2377
        %2998 = vmatprep.subr.mxu0 %v2376
        %2999 = vmatpush2.msra.mxu0 %v2375
        %3000 = vmatprep.subr.mxu0 %v2374
        %3001 = vmatpush2.msra.mxu0 %v2373
        %3002 = vmatprep.subr.mxu0 %v2372
        %3003 = vmatpush2.msra.mxu0 %v2371
        %3004 = vmatprep.subr.mxu0 %v2370
        %3005 = vmatpush2.msra.mxu0 %v2369
        %3006 = vmatprep.subr.mxu0 %v2368
        %3007 = vmatpush2.msra.mxu0 %v2367
        %3008 = vmatprep.subr.mxu0 %v2366
        %3009 = vmatpush2.msra.mxu0 %v2365
        %3010 = vmatprep.subr.mxu0 %v2364
        %3011 = vmatpush2.msra.mxu0 %v2363
        %3012 = vmatprep.subr.mxu0 %v2362
        %3013 = vmatpush2.msra.mxu0 %v2361
        %3014 = vmatprep.mubr.f32.mxu0 %v2533
        %3015 = vmatmul.mubr.f32.gmra.mxu0 %v2532
        %v3016 = vpop.f32.mrf.mxu0
        %v3017 = vadd.f32 %v2940, %v3016
        %v3018 = vpop.f32.mrf.mxu0
        %v3019 = vadd.f32 %v2942, %v3018
        %3020 = vmatprep.mubr.f32.mxu0 %v2549
        %3021 = vmatmul.mubr.f32.gmra.mxu0 %v2548
        %v3022 = vpop.f32.mrf.mxu0
        %v3023 = vadd.f32 %v2946, %v3022
        %v3024 = vpop.f32.mrf.mxu0
        %v3025 = vadd.f32 %v2948, %v3024
        %3026 = vdwg.mxu0
        %3027 = vmatprep.subr.mxu0 %v2424
        %3028 = vmatpush1.msra.mxu0 %v2423
        %3029 = vmatprep.subr.mxu0 %v2422
        %3030 = vmatpush1.msra.mxu0 %v2421
        %3031 = vmatprep.subr.mxu0 %v2420
        %3032 = vmatpush1.msra.mxu0 %v2419
        %3033 = vmatprep.subr.mxu0 %v2418
        %3034 = vmatpush1.msra.mxu0 %v2417
        %3035 = vmatprep.subr.mxu0 %v2416
        %3036 = vmatpush1.msra.mxu0 %v2415
        %3037 = vmatprep.subr.mxu0 %v2414
        %3038 = vmatpush1.msra.mxu0 %v2413
        %3039 = vmatprep.subr.mxu0 %v2412
        %3040 = vmatpush1.msra.mxu0 %v2411
        %3041 = vmatprep.subr.mxu0 %v2410
        %3042 = vmatpush1.msra.mxu0 %v2409
        %3043 = vmatprep.subr.mxu0 %v2408
        %3044 = vmatpush1.msra.mxu0 %v2407
        %3045 = vmatprep.subr.mxu0 %v2406
        %3046 = vmatpush1.msra.mxu0 %v2405
        %3047 = vmatprep.subr.mxu0 %v2404
        %3048 = vmatpush1.msra.mxu0 %v2403
        %3049 = vmatprep.subr.mxu0 %v2402
        %3050 = vmatpush1.msra.mxu0 %v2401
        %3051 = vmatprep.subr.mxu0 %v2400
        %3052 = vmatpush1.msra.mxu0 %v2399
        %3053 = vmatprep.subr.mxu0 %v2398
        %3054 = vmatpush1.msra.mxu0 %v2397
        %3055 = vmatprep.subr.mxu0 %v2396
        %3056 = vmatpush1.msra.mxu0 %v2395
        %3057 = vmatprep.subr.mxu0 %v2394
        %3058 = vmatpush1.msra.mxu0 %v2393
        %3059 = vmatprep.subr.mxu0 %v2456
        %3060 = vmatpush2.msra.mxu0 %v2455
        %3061 = vmatprep.subr.mxu0 %v2454
        %3062 = vmatpush2.msra.mxu0 %v2453
        %3063 = vmatprep.subr.mxu0 %v2452
        %3064 = vmatpush2.msra.mxu0 %v2451
        %3065 = vmatprep.subr.mxu0 %v2450
        %3066 = vmatpush2.msra.mxu0 %v2449
        %3067 = vmatprep.subr.mxu0 %v2448
        %3068 = vmatpush2.msra.mxu0 %v2447
        %3069 = vmatprep.subr.mxu0 %v2446
        %3070 = vmatpush2.msra.mxu0 %v2445
        %3071 = vmatprep.subr.mxu0 %v2444
        %3072 = vmatpush2.msra.mxu0 %v2443
        %3073 = vmatprep.subr.mxu0 %v2442
        %3074 = vmatpush2.msra.mxu0 %v2441
        %3075 = vmatprep.subr.mxu0 %v2440
        %3076 = vmatpush2.msra.mxu0 %v2439
        %3077 = vmatprep.subr.mxu0 %v2438
        %3078 = vmatpush2.msra.mxu0 %v2437
        %3079 = vmatprep.subr.mxu0 %v2436
        %3080 = vmatpush2.msra.mxu0 %v2435
        %3081 = vmatprep.subr.mxu0 %v2434
        %3082 = vmatpush2.msra.mxu0 %v2433
        %3083 = vmatprep.subr.mxu0 %v2432
        %3084 = vmatpush2.msra.mxu0 %v2431
        %3085 = vmatprep.subr.mxu0 %v2430
        %3086 = vmatpush2.msra.mxu0 %v2429
        %3087 = vmatprep.subr.mxu0 %v2428
        %3088 = vmatpush2.msra.mxu0 %v2427
        %3089 = vmatprep.subr.mxu0 %v2426
        %3090 = vmatpush2.msra.mxu0 %v2425
        %3091 = vmatprep.mubr.f32.mxu0 %v2535
        %3092 = vmatmul.mubr.f32.gmra.mxu0 %v2534
        %v3093 = vpop.f32.mrf.mxu0
        %v3094 = vadd.f32 %v3017, %v3093
        %v3095 = vpop.f32.mrf.mxu0
        %v3096 = vadd.f32 %v3019, %v3095
        %3097 = vmatprep.mubr.f32.mxu0 %v2551
        %3098 = vmatmul.mubr.f32.gmra.mxu0 %v2550
        %v3099 = vpop.f32.mrf.mxu0
        %v3100 = vadd.f32 %v3023, %v3099
        %v3101 = vpop.f32.mrf.mxu0
        %v3102 = vadd.f32 %v3025, %v3101
        %3103 = vdwg.mxu0
        %3104 = vmatprep.subr.mxu0 %v2488
        %3105 = vmatpush1.msra.mxu0 %v2487
        %3106 = vmatprep.subr.mxu0 %v2486
        %3107 = vmatpush1.msra.mxu0 %v2485
        %3108 = vmatprep.subr.mxu0 %v2484
        %3109 = vmatpush1.msra.mxu0 %v2483
        %3110 = vmatprep.subr.mxu0 %v2482
        %3111 = vmatpush1.msra.mxu0 %v2481
        %3112 = vmatprep.subr.mxu0 %v2480
        %3113 = vmatpush1.msra.mxu0 %v2479
        %3114 = vmatprep.subr.mxu0 %v2478
        %3115 = vmatpush1.msra.mxu0 %v2477
        %3116 = vmatprep.subr.mxu0 %v2476
        %3117 = vmatpush1.msra.mxu0 %v2475
        %3118 = vmatprep.subr.mxu0 %v2474
        %3119 = vmatpush1.msra.mxu0 %v2473
        %3120 = vmatprep.subr.mxu0 %v2472
        %3121 = vmatpush1.msra.mxu0 %v2471
        %3122 = vmatprep.subr.mxu0 %v2470
        %3123 = vmatpush1.msra.mxu0 %v2469
        %3124 = vmatprep.subr.mxu0 %v2468
        %3125 = vmatpush1.msra.mxu0 %v2467
        %3126 = vmatprep.subr.mxu0 %v2466
        %3127 = vmatpush1.msra.mxu0 %v2465
        %3128 = vmatprep.subr.mxu0 %v2464
        %3129 = vmatpush1.msra.mxu0 %v2463
        %3130 = vmatprep.subr.mxu0 %v2462
        %3131 = vmatpush1.msra.mxu0 %v2461
        %3132 = vmatprep.subr.mxu0 %v2460
        %3133 = vmatpush1.msra.mxu0 %v2459
        %3134 = vmatprep.subr.mxu0 %v2458
        %3135 = vmatpush1.msra.mxu0 %v2457
        %3136 = vmatprep.subr.mxu0 %v2520
        %3137 = vmatpush2.msra.mxu0 %v2519
        %3138 = vmatprep.subr.mxu0 %v2518
        %3139 = vmatpush2.msra.mxu0 %v2517
        %3140 = vmatprep.subr.mxu0 %v2516
        %3141 = vmatpush2.msra.mxu0 %v2515
        %3142 = vmatprep.subr.mxu0 %v2514
        %3143 = vmatpush2.msra.mxu0 %v2513
        %3144 = vmatprep.subr.mxu0 %v2512
        %3145 = vmatpush2.msra.mxu0 %v2511
        %3146 = vmatprep.subr.mxu0 %v2510
        %3147 = vmatpush2.msra.mxu0 %v2509
        %3148 = vmatprep.subr.mxu0 %v2508
        %3149 = vmatpush2.msra.mxu0 %v2507
        %3150 = vmatprep.subr.mxu0 %v2506
        %3151 = vmatpush2.msra.mxu0 %v2505
        %3152 = vmatprep.subr.mxu0 %v2504
        %3153 = vmatpush2.msra.mxu0 %v2503
        %3154 = vmatprep.subr.mxu0 %v2502
        %3155 = vmatpush2.msra.mxu0 %v2501
        %3156 = vmatprep.subr.mxu0 %v2500
        %3157 = vmatpush2.msra.mxu0 %v2499
        %3158 = vmatprep.subr.mxu0 %v2498
        %3159 = vmatpush2.msra.mxu0 %v2497
        %3160 = vmatprep.subr.mxu0 %v2496
        %3161 = vmatpush2.msra.mxu0 %v2495
        %3162 = vmatprep.subr.mxu0 %v2494
        %3163 = vmatpush2.msra.mxu0 %v2493
        %3164 = vmatprep.subr.mxu0 %v2492
        %3165 = vmatpush2.msra.mxu0 %v2491
        %3166 = vmatprep.subr.mxu0 %v2490
        %3167 = vmatpush2.msra.mxu0 %v2489
        %3168 = vmatprep.mubr.f32.mxu0 %v2537
        %3169 = vmatmul.mubr.f32.gmra.mxu0 %v2536
        %v3170 = vpop.f32.mrf.mxu0
        %v3171 = vadd.f32 %v3094, %v3170
        %v3172 = vpop.f32.mrf.mxu0
        %v3173 = vadd.f32 %v3096, %v3172
        %3174 = vmatprep.mubr.f32.mxu0 %v2553
        %3175 = vmatmul.mubr.f32.gmra.mxu0 %v2552
        %v3176 = vpop.f32.mrf.mxu0
        %v3177 = vadd.f32 %v3100, %v3176
        %v3178 = vpop.f32.mrf.mxu0
        %v3179 = vadd.f32 %v3102, %v3178
        %3180 = vdwg.mxu0
        %v3181 = vld [vmem:[%s282 + $0x10] sm:$0xff]
        %v3182 = vld [vmem:[%s282 + $0x28] sm:$0xff]
        %v3183 = vld [vmem:[%s282 + $0x40] sm:$0xff]
        %v3184 = vld [vmem:[%s282 + $0x58] sm:$0xff]
        %v3185 = vld [vmem:[%s282 + $0x70] sm:$0xff]
        %v3186 = vld [vmem:[%s282 + $0x88] sm:$0xff]
        %v3187 = vld [vmem:[%s282 + $0xa0] sm:$0xff]
        %v3188 = vld [vmem:[%s282 + $0xb8] sm:$0xff]
        %v3189 = vld [vmem:[%s282 + $0xd0] sm:$0xff]
        %v3190 = vld [vmem:[%s282 + $0xe8] sm:$0xff]
        %v3191 = vld [vmem:[%s282 + $0x100] sm:$0xff]
        %v3192 = vld [vmem:[%s282 + $0x118] sm:$0xff]
        %v3193 = vld [vmem:[%s282 + $0x130] sm:$0xff]
        %v3194 = vld [vmem:[%s282 + $0x148] sm:$0xff]
        %v3195 = vld [vmem:[%s282 + $0x160] sm:$0xff]
        %v3196 = vld [vmem:[%s282 + $0x178] sm:$0xff]
        %v3197 = vld [vmem:[%s282 + $0x190] sm:$0xff]
        %v3198 = vld [vmem:[%s282 + $0x1a8] sm:$0xff]
        %v3199 = vld [vmem:[%s282 + $0x1c0] sm:$0xff]
        %v3200 = vld [vmem:[%s282 + $0x1d8] sm:$0xff]
        %v3201 = vld [vmem:[%s282 + $0x1f0] sm:$0xff]
        %v3202 = vld [vmem:[%s282 + $0x208] sm:$0xff]
        %v3203 = vld [vmem:[%s282 + $0x220] sm:$0xff]
        %v3204 = vld [vmem:[%s282 + $0x238] sm:$0xff]
        %v3205 = vld [vmem:[%s282 + $0x250] sm:$0xff]
        %v3206 = vld [vmem:[%s282 + $0x268] sm:$0xff]
        %v3207 = vld [vmem:[%s282 + $0x280] sm:$0xff]
        %v3208 = vld [vmem:[%s282 + $0x298] sm:$0xff]
        %v3209 = vld [vmem:[%s282 + $0x2b0] sm:$0xff]
        %v3210 = vld [vmem:[%s282 + $0x2c8] sm:$0xff]
        %v3211 = vld [vmem:[%s282 + $0x2e0] sm:$0xff]
        %v3212 = vld [vmem:[%s282 + $0x2f8] sm:$0xff]
        %v3213 = vld [vmem:[%s282 + $0x310] sm:$0xff]
        %v3214 = vld [vmem:[%s282 + $0x328] sm:$0xff]
        %v3215 = vld [vmem:[%s282 + $0x340] sm:$0xff]
        %v3216 = vld [vmem:[%s282 + $0x358] sm:$0xff]
        %v3217 = vld [vmem:[%s282 + $0x370] sm:$0xff]
        %v3218 = vld [vmem:[%s282 + $0x388] sm:$0xff]
        %v3219 = vld [vmem:[%s282 + $0x3a0] sm:$0xff]
        %v3220 = vld [vmem:[%s282 + $0x3b8] sm:$0xff]
        %v3221 = vld [vmem:[%s282 + $0x3d0] sm:$0xff]
        %v3222 = vld [vmem:[%s282 + $0x3e8] sm:$0xff]
        %v3223 = vld [vmem:[%s282 + $0x400] sm:$0xff]
        %v3224 = vld [vmem:[%s282 + $0x418] sm:$0xff]
        %v3225 = vld [vmem:[%s282 + $0x430] sm:$0xff]
        %v3226 = vld [vmem:[%s282 + $0x448] sm:$0xff]
        %v3227 = vld [vmem:[%s282 + $0x460] sm:$0xff]
        %v3228 = vld [vmem:[%s282 + $0x478] sm:$0xff]
        %v3229 = vld [vmem:[%s282 + $0x490] sm:$0xff]
        %v3230 = vld [vmem:[%s282 + $0x4a8] sm:$0xff]
        %v3231 = vld [vmem:[%s282 + $0x4c0] sm:$0xff]
        %v3232 = vld [vmem:[%s282 + $0x4d8] sm:$0xff]
        %v3233 = vld [vmem:[%s282 + $0x4f0] sm:$0xff]
        %v3234 = vld [vmem:[%s282 + $0x508] sm:$0xff]
        %v3235 = vld [vmem:[%s282 + $0x520] sm:$0xff]
        %v3236 = vld [vmem:[%s282 + $0x538] sm:$0xff]
        %v3237 = vld [vmem:[%s282 + $0x550] sm:$0xff]
        %v3238 = vld [vmem:[%s282 + $0x568] sm:$0xff]
        %v3239 = vld [vmem:[%s282 + $0x580] sm:$0xff]
        %v3240 = vld [vmem:[%s282 + $0x598] sm:$0xff]
        %v3241 = vld [vmem:[%s282 + $0x5b0] sm:$0xff]
        %v3242 = vld [vmem:[%s282 + $0x5c8] sm:$0xff]
        %v3243 = vld [vmem:[%s282 + $0x5e0] sm:$0xff]
        %v3244 = vld [vmem:[%s282 + $0x5f8] sm:$0xff]
        %v3245 = vld [vmem:[%s282 + $0x610] sm:$0xff]
        %v3246 = vld [vmem:[%s282 + $0x628] sm:$0xff]
        %v3247 = vld [vmem:[%s282 + $0x640] sm:$0xff]
        %v3248 = vld [vmem:[%s282 + $0x658] sm:$0xff]
        %v3249 = vld [vmem:[%s282 + $0x670] sm:$0xff]
        %v3250 = vld [vmem:[%s282 + $0x688] sm:$0xff]
        %v3251 = vld [vmem:[%s282 + $0x6a0] sm:$0xff]
        %v3252 = vld [vmem:[%s282 + $0x6b8] sm:$0xff]
        %v3253 = vld [vmem:[%s282 + $0x6d0] sm:$0xff]
        %v3254 = vld [vmem:[%s282 + $0x6e8] sm:$0xff]
        %v3255 = vld [vmem:[%s282 + $0x700] sm:$0xff]
        %v3256 = vld [vmem:[%s282 + $0x718] sm:$0xff]
        %v3257 = vld [vmem:[%s282 + $0x730] sm:$0xff]
        %v3258 = vld [vmem:[%s282 + $0x748] sm:$0xff]
        %v3259 = vld [vmem:[%s282 + $0x760] sm:$0xff]
        %v3260 = vld [vmem:[%s282 + $0x778] sm:$0xff]
        %v3261 = vld [vmem:[%s282 + $0x790] sm:$0xff]
        %v3262 = vld [vmem:[%s282 + $0x7a8] sm:$0xff]
        %v3263 = vld [vmem:[%s282 + $0x7c0] sm:$0xff]
        %v3264 = vld [vmem:[%s282 + $0x7d8] sm:$0xff]
        %v3265 = vld [vmem:[%s282 + $0x7f0] sm:$0xff]
        %v3266 = vld [vmem:[%s282 + $0x808] sm:$0xff]
        %v3267 = vld [vmem:[%s282 + $0x820] sm:$0xff]
        %v3268 = vld [vmem:[%s282 + $0x838] sm:$0xff]
        %v3269 = vld [vmem:[%s282 + $0x850] sm:$0xff]
        %v3270 = vld [vmem:[%s282 + $0x868] sm:$0xff]
        %v3271 = vld [vmem:[%s282 + $0x880] sm:$0xff]
        %v3272 = vld [vmem:[%s282 + $0x898] sm:$0xff]
        %v3273 = vld [vmem:[%s282 + $0x8b0] sm:$0xff]
        %v3274 = vld [vmem:[%s282 + $0x8c8] sm:$0xff]
        %v3275 = vld [vmem:[%s282 + $0x8e0] sm:$0xff]
        %v3276 = vld [vmem:[%s282 + $0x8f8] sm:$0xff]
        %v3277 = vld [vmem:[%s282 + $0x910] sm:$0xff]
        %v3278 = vld [vmem:[%s282 + $0x928] sm:$0xff]
        %v3279 = vld [vmem:[%s282 + $0x940] sm:$0xff]
        %v3280 = vld [vmem:[%s282 + $0x958] sm:$0xff]
        %v3281 = vld [vmem:[%s282 + $0x970] sm:$0xff]
        %v3282 = vld [vmem:[%s282 + $0x988] sm:$0xff]
        %v3283 = vld [vmem:[%s282 + $0x9a0] sm:$0xff]
        %v3284 = vld [vmem:[%s282 + $0x9b8] sm:$0xff]
        %v3285 = vld [vmem:[%s282 + $0x9d0] sm:$0xff]
        %v3286 = vld [vmem:[%s282 + $0x9e8] sm:$0xff]
        %v3287 = vld [vmem:[%s282 + $0xa00] sm:$0xff]
        %v3288 = vld [vmem:[%s282 + $0xa18] sm:$0xff]
        %v3289 = vld [vmem:[%s282 + $0xa30] sm:$0xff]
        %v3290 = vld [vmem:[%s282 + $0xa48] sm:$0xff]
        %v3291 = vld [vmem:[%s282 + $0xa60] sm:$0xff]
        %v3292 = vld [vmem:[%s282 + $0xa78] sm:$0xff]
        %v3293 = vld [vmem:[%s282 + $0xa90] sm:$0xff]
        %v3294 = vld [vmem:[%s282 + $0xaa8] sm:$0xff]
        %v3295 = vld [vmem:[%s282 + $0xac0] sm:$0xff]
        %v3296 = vld [vmem:[%s282 + $0xad8] sm:$0xff]
        %v3297 = vld [vmem:[%s282 + $0xaf0] sm:$0xff]
        %v3298 = vld [vmem:[%s282 + $0xb08] sm:$0xff]
        %v3299 = vld [vmem:[%s282 + $0xb20] sm:$0xff]
        %v3300 = vld [vmem:[%s282 + $0xb38] sm:$0xff]
        %v3301 = vld [vmem:[%s282 + $0xb50] sm:$0xff]
        %v3302 = vld [vmem:[%s282 + $0xb68] sm:$0xff]
        %v3303 = vld [vmem:[%s282 + $0xb80] sm:$0xff]
        %v3304 = vld [vmem:[%s282 + $0xb98] sm:$0xff]
        %v3305 = vld [vmem:[%s282 + $0xbb0] sm:$0xff]
        %v3306 = vld [vmem:[%s282 + $0xbc8] sm:$0xff]
        %v3307 = vld [vmem:[%s282 + $0xbe0] sm:$0xff]
        %v3308 = vld [vmem:[%s282 + $0xbf8] sm:$0xff]
        %v3309 = vld [vmem:[%s282 + $0xc10] sm:$0xff]
        %v3310 = vld [vmem:[%s282 + $0xc28] sm:$0xff]
        %v3311 = vld [vmem:[%s282 + $0xc40] sm:$0xff]
        %v3312 = vld [vmem:[%s282 + $0xc58] sm:$0xff]
        %v3313 = vld [vmem:[%s282 + $0xc70] sm:$0xff]
        %v3314 = vld [vmem:[%s282 + $0xc88] sm:$0xff]
        %v3315 = vld [vmem:[%s282 + $0xca0] sm:$0xff]
        %v3316 = vld [vmem:[%s282 + $0xcb8] sm:$0xff]
        %v3317 = vld [vmem:[%s282 + $0xcd0] sm:$0xff]
        %v3318 = vld [vmem:[%s282 + $0xce8] sm:$0xff]
        %v3319 = vld [vmem:[%s282 + $0xd00] sm:$0xff]
        %v3320 = vld [vmem:[%s282 + $0xd18] sm:$0xff]
        %v3321 = vld [vmem:[%s282 + $0xd30] sm:$0xff]
        %v3322 = vld [vmem:[%s282 + $0xd48] sm:$0xff]
        %v3323 = vld [vmem:[%s282 + $0xd60] sm:$0xff]
        %v3324 = vld [vmem:[%s282 + $0xd78] sm:$0xff]
        %v3325 = vld [vmem:[%s282 + $0xd90] sm:$0xff]
        %v3326 = vld [vmem:[%s282 + $0xda8] sm:$0xff]
        %v3327 = vld [vmem:[%s282 + $0xdc0] sm:$0xff]
        %v3328 = vld [vmem:[%s282 + $0xdd8] sm:$0xff]
        %v3329 = vld [vmem:[%s282 + $0xdf0] sm:$0xff]
        %v3330 = vld [vmem:[%s282 + $0xe08] sm:$0xff]
        %v3331 = vld [vmem:[%s282 + $0xe20] sm:$0xff]
        %v3332 = vld [vmem:[%s282 + $0xe38] sm:$0xff]
        %v3333 = vld [vmem:[%s282 + $0xe50] sm:$0xff]
        %v3334 = vld [vmem:[%s282 + $0xe68] sm:$0xff]
        %v3335 = vld [vmem:[%s282 + $0xe80] sm:$0xff]
        %v3336 = vld [vmem:[%s282 + $0xe98] sm:$0xff]
        %v3337 = vld [vmem:[%s282 + $0xeb0] sm:$0xff]
        %v3338 = vld [vmem:[%s282 + $0xec8] sm:$0xff]
        %v3339 = vld [vmem:[%s282 + $0xee0] sm:$0xff]
        %v3340 = vld [vmem:[%s282 + $0xef8] sm:$0xff]
        %v3341 = vld [vmem:[%s282 + $0xf10] sm:$0xff]
        %v3342 = vld [vmem:[%s282 + $0xf28] sm:$0xff]
        %v3343 = vld [vmem:[%s282 + $0xf40] sm:$0xff]
        %v3344 = vld [vmem:[%s282 + $0xf58] sm:$0xff]
        %v3345 = vld [vmem:[%s282 + $0xf70] sm:$0xff]
        %v3346 = vld [vmem:[%s282 + $0xf88] sm:$0xff]
        %v3347 = vld [vmem:[%s282 + $0xfa0] sm:$0xff]
        %v3348 = vld [vmem:[%s282 + $0xfb8] sm:$0xff]
        %v3349 = vld [vmem:[%s282 + $0xfd0] sm:$0xff]
        %v3350 = vld [vmem:[%s282 + $0xfe8] sm:$0xff]
        %v3351 = vld [vmem:[%s282 + $0x1000] sm:$0xff]
        %v3352 = vld [vmem:[%s282 + $0x1018] sm:$0xff]
        %v3353 = vld [vmem:[%s282 + $0x1030] sm:$0xff]
        %v3354 = vld [vmem:[%s282 + $0x1048] sm:$0xff]
        %v3355 = vld [vmem:[%s282 + $0x1060] sm:$0xff]
        %v3356 = vld [vmem:[%s282 + $0x1078] sm:$0xff]
        %v3357 = vld [vmem:[%s282 + $0x1090] sm:$0xff]
        %v3358 = vld [vmem:[%s282 + $0x10a8] sm:$0xff]
        %v3359 = vld [vmem:[%s282 + $0x10c0] sm:$0xff]
        %v3360 = vld [vmem:[%s282 + $0x10d8] sm:$0xff]
        %v3361 = vld [vmem:[%s282 + $0x10f0] sm:$0xff]
        %v3362 = vld [vmem:[%s282 + $0x1108] sm:$0xff]
        %v3363 = vld [vmem:[%s282 + $0x1120] sm:$0xff]
        %v3364 = vld [vmem:[%s282 + $0x1138] sm:$0xff]
        %v3365 = vld [vmem:[%s282 + $0x1150] sm:$0xff]
        %v3366 = vld [vmem:[%s282 + $0x1168] sm:$0xff]
        %v3367 = vld [vmem:[%s282 + $0x1180] sm:$0xff]
        %v3368 = vld [vmem:[%s282 + $0x1198] sm:$0xff]
        %v3369 = vld [vmem:[%s282 + $0x11b0] sm:$0xff]
        %v3370 = vld [vmem:[%s282 + $0x11c8] sm:$0xff]
        %v3371 = vld [vmem:[%s282 + $0x11e0] sm:$0xff]
        %v3372 = vld [vmem:[%s282 + $0x11f8] sm:$0xff]
        %v3373 = vld [vmem:[%s282 + $0x1210] sm:$0xff]
        %v3374 = vld [vmem:[%s282 + $0x1228] sm:$0xff]
        %v3375 = vld [vmem:[%s282 + $0x1240] sm:$0xff]
        %v3376 = vld [vmem:[%s282 + $0x1258] sm:$0xff]
        %v3377 = vld [vmem:[%s282 + $0x1270] sm:$0xff]
        %v3378 = vld [vmem:[%s282 + $0x1288] sm:$0xff]
        %v3379 = vld [vmem:[%s282 + $0x12a0] sm:$0xff]
        %v3380 = vld [vmem:[%s282 + $0x12b8] sm:$0xff]
        %v3381 = vld [vmem:[%s282 + $0x12d0] sm:$0xff]
        %v3382 = vld [vmem:[%s282 + $0x12e8] sm:$0xff]
        %v3383 = vld [vmem:[%s282 + $0x1300] sm:$0xff]
        %v3384 = vld [vmem:[%s282 + $0x1318] sm:$0xff]
        %v3385 = vld [vmem:[%s282 + $0x1330] sm:$0xff]
        %v3386 = vld [vmem:[%s282 + $0x1348] sm:$0xff]
        %v3387 = vld [vmem:[%s282 + $0x1360] sm:$0xff]
        %v3388 = vld [vmem:[%s282 + $0x1378] sm:$0xff]
        %v3389 = vld [vmem:[%s282 + $0x1390] sm:$0xff]
        %v3390 = vld [vmem:[%s282 + $0x13a8] sm:$0xff]
        %v3391 = vld [vmem:[%s282 + $0x13c0] sm:$0xff]
        %v3392 = vld [vmem:[%s282 + $0x13d8] sm:$0xff]
        %v3393 = vld [vmem:[%s282 + $0x13f0] sm:$0xff]
        %v3394 = vld [vmem:[%s282 + $0x1408] sm:$0xff]
        %v3395 = vld [vmem:[%s282 + $0x1420] sm:$0xff]
        %v3396 = vld [vmem:[%s282 + $0x1438] sm:$0xff]
        %v3397 = vld [vmem:[%s282 + $0x1450] sm:$0xff]
        %v3398 = vld [vmem:[%s282 + $0x1468] sm:$0xff]
        %v3399 = vld [vmem:[%s282 + $0x1480] sm:$0xff]
        %v3400 = vld [vmem:[%s282 + $0x1498] sm:$0xff]
        %v3401 = vld [vmem:[%s282 + $0x14b0] sm:$0xff]
        %v3402 = vld [vmem:[%s282 + $0x14c8] sm:$0xff]
        %v3403 = vld [vmem:[%s282 + $0x14e0] sm:$0xff]
        %v3404 = vld [vmem:[%s282 + $0x14f8] sm:$0xff]
        %v3405 = vld [vmem:[%s282 + $0x1510] sm:$0xff]
        %v3406 = vld [vmem:[%s282 + $0x1528] sm:$0xff]
        %v3407 = vld [vmem:[%s282 + $0x1540] sm:$0xff]
        %v3408 = vld [vmem:[%s282 + $0x1558] sm:$0xff]
        %v3409 = vld [vmem:[%s282 + $0x1570] sm:$0xff]
        %v3410 = vld [vmem:[%s282 + $0x1588] sm:$0xff]
        %v3411 = vld [vmem:[%s282 + $0x15a0] sm:$0xff]
        %v3412 = vld [vmem:[%s282 + $0x15b8] sm:$0xff]
        %v3413 = vld [vmem:[%s282 + $0x15d0] sm:$0xff]
        %v3414 = vld [vmem:[%s282 + $0x15e8] sm:$0xff]
        %v3415 = vld [vmem:[%s282 + $0x1600] sm:$0xff]
        %v3416 = vld [vmem:[%s282 + $0x1618] sm:$0xff]
        %v3417 = vld [vmem:[%s282 + $0x1630] sm:$0xff]
        %v3418 = vld [vmem:[%s282 + $0x1648] sm:$0xff]
        %v3419 = vld [vmem:[%s282 + $0x1660] sm:$0xff]
        %v3420 = vld [vmem:[%s282 + $0x1678] sm:$0xff]
        %v3421 = vld [vmem:[%s282 + $0x1690] sm:$0xff]
        %v3422 = vld [vmem:[%s282 + $0x16a8] sm:$0xff]
        %v3423 = vld [vmem:[%s282 + $0x16c0] sm:$0xff]
        %v3424 = vld [vmem:[%s282 + $0x16d8] sm:$0xff]
        %v3425 = vld [vmem:[%s282 + $0x16f0] sm:$0xff]
        %v3426 = vld [vmem:[%s282 + $0x1708] sm:$0xff]
        %v3427 = vld [vmem:[%s282 + $0x1720] sm:$0xff]
        %v3428 = vld [vmem:[%s282 + $0x1738] sm:$0xff]
        %v3429 = vld [vmem:[%s282 + $0x1750] sm:$0xff]
        %v3430 = vld [vmem:[%s282 + $0x1768] sm:$0xff]
        %v3431 = vld [vmem:[%s282 + $0x1780] sm:$0xff]
        %v3432 = vld [vmem:[%s282 + $0x1798] sm:$0xff]
        %v3433 = vld [vmem:[%s282 + $0x17b0] sm:$0xff]
        %v3434 = vld [vmem:[%s282 + $0x17c8] sm:$0xff]
        %v3435 = vld [vmem:[%s282 + $0x17e0] sm:$0xff]
        %v3436 = vld [vmem:[%s282 + $0x17f8] sm:$0xff]
        %v3437 = vunpack.c.l.bf16 %v3181
        %v3438 = vunpack.c.h.bf16 %v3181
        %v3439 = vunpack.c.l.bf16 %v3182
        %v3440 = vunpack.c.h.bf16 %v3182
        %v3441 = vunpack.c.l.bf16 %v3183
        %v3442 = vunpack.c.h.bf16 %v3183
        %v3443 = vunpack.c.l.bf16 %v3184
        %v3444 = vunpack.c.h.bf16 %v3184
        %v3445 = vunpack.c.l.bf16 %v3185
        %v3446 = vunpack.c.h.bf16 %v3185
        %v3447 = vunpack.c.l.bf16 %v3186
        %v3448 = vunpack.c.h.bf16 %v3186
        %v3449 = vunpack.c.l.bf16 %v3187
        %v3450 = vunpack.c.h.bf16 %v3187
        %v3451 = vunpack.c.l.bf16 %v3188
        %v3452 = vunpack.c.h.bf16 %v3188
        %v3453 = vunpack.c.l.bf16 %v3189
        %v3454 = vunpack.c.h.bf16 %v3189
        %v3455 = vunpack.c.l.bf16 %v3190
        %v3456 = vunpack.c.h.bf16 %v3190
        %v3457 = vunpack.c.l.bf16 %v3191
        %v3458 = vunpack.c.h.bf16 %v3191
        %v3459 = vunpack.c.l.bf16 %v3192
        %v3460 = vunpack.c.h.bf16 %v3192
        %v3461 = vunpack.c.l.bf16 %v3193
        %v3462 = vunpack.c.h.bf16 %v3193
        %v3463 = vunpack.c.l.bf16 %v3194
        %v3464 = vunpack.c.h.bf16 %v3194
        %v3465 = vunpack.c.l.bf16 %v3195
        %v3466 = vunpack.c.h.bf16 %v3195
        %v3467 = vunpack.c.l.bf16 %v3196
        %v3468 = vunpack.c.h.bf16 %v3196
        %v3469 = vunpack.c.l.bf16 %v3197
        %v3470 = vunpack.c.h.bf16 %v3197
        %v3471 = vunpack.c.l.bf16 %v3198
        %v3472 = vunpack.c.h.bf16 %v3198
        %v3473 = vunpack.c.l.bf16 %v3199
        %v3474 = vunpack.c.h.bf16 %v3199
        %v3475 = vunpack.c.l.bf16 %v3200
        %v3476 = vunpack.c.h.bf16 %v3200
        %v3477 = vunpack.c.l.bf16 %v3201
        %v3478 = vunpack.c.h.bf16 %v3201
        %v3479 = vunpack.c.l.bf16 %v3202
        %v3480 = vunpack.c.h.bf16 %v3202
        %v3481 = vunpack.c.l.bf16 %v3203
        %v3482 = vunpack.c.h.bf16 %v3203
        %v3483 = vunpack.c.l.bf16 %v3204
        %v3484 = vunpack.c.h.bf16 %v3204
        %v3485 = vunpack.c.l.bf16 %v3205
        %v3486 = vunpack.c.h.bf16 %v3205
        %v3487 = vunpack.c.l.bf16 %v3206
        %v3488 = vunpack.c.h.bf16 %v3206
        %v3489 = vunpack.c.l.bf16 %v3207
        %v3490 = vunpack.c.h.bf16 %v3207
        %v3491 = vunpack.c.l.bf16 %v3208
        %v3492 = vunpack.c.h.bf16 %v3208
        %v3493 = vunpack.c.l.bf16 %v3209
        %v3494 = vunpack.c.h.bf16 %v3209
        %v3495 = vunpack.c.l.bf16 %v3210
        %v3496 = vunpack.c.h.bf16 %v3210
        %v3497 = vunpack.c.l.bf16 %v3211
        %v3498 = vunpack.c.h.bf16 %v3211
        %v3499 = vunpack.c.l.bf16 %v3212
        %v3500 = vunpack.c.h.bf16 %v3212
        %v3501 = vunpack.c.l.bf16 %v3213
        %v3502 = vunpack.c.h.bf16 %v3213
        %v3503 = vunpack.c.l.bf16 %v3214
        %v3504 = vunpack.c.h.bf16 %v3214
        %v3505 = vunpack.c.l.bf16 %v3215
        %v3506 = vunpack.c.h.bf16 %v3215
        %v3507 = vunpack.c.l.bf16 %v3216
        %v3508 = vunpack.c.h.bf16 %v3216
        %v3509 = vunpack.c.l.bf16 %v3217
        %v3510 = vunpack.c.h.bf16 %v3217
        %v3511 = vunpack.c.l.bf16 %v3218
        %v3512 = vunpack.c.h.bf16 %v3218
        %v3513 = vunpack.c.l.bf16 %v3219
        %v3514 = vunpack.c.h.bf16 %v3219
        %v3515 = vunpack.c.l.bf16 %v3220
        %v3516 = vunpack.c.h.bf16 %v3220
        %v3517 = vunpack.c.l.bf16 %v3221
        %v3518 = vunpack.c.h.bf16 %v3221
        %v3519 = vunpack.c.l.bf16 %v3222
        %v3520 = vunpack.c.h.bf16 %v3222
        %v3521 = vunpack.c.l.bf16 %v3223
        %v3522 = vunpack.c.h.bf16 %v3223
        %v3523 = vunpack.c.l.bf16 %v3224
        %v3524 = vunpack.c.h.bf16 %v3224
        %v3525 = vunpack.c.l.bf16 %v3225
        %v3526 = vunpack.c.h.bf16 %v3225
        %v3527 = vunpack.c.l.bf16 %v3226
        %v3528 = vunpack.c.h.bf16 %v3226
        %v3529 = vunpack.c.l.bf16 %v3227
        %v3530 = vunpack.c.h.bf16 %v3227
        %v3531 = vunpack.c.l.bf16 %v3228
        %v3532 = vunpack.c.h.bf16 %v3228
        %v3533 = vunpack.c.l.bf16 %v3229
        %v3534 = vunpack.c.h.bf16 %v3229
        %v3535 = vunpack.c.l.bf16 %v3230
        %v3536 = vunpack.c.h.bf16 %v3230
        %v3537 = vunpack.c.l.bf16 %v3231
        %v3538 = vunpack.c.h.bf16 %v3231
        %v3539 = vunpack.c.l.bf16 %v3232
        %v3540 = vunpack.c.h.bf16 %v3232
        %v3541 = vunpack.c.l.bf16 %v3233
        %v3542 = vunpack.c.h.bf16 %v3233
        %v3543 = vunpack.c.l.bf16 %v3234
        %v3544 = vunpack.c.h.bf16 %v3234
        %v3545 = vunpack.c.l.bf16 %v3235
        %v3546 = vunpack.c.h.bf16 %v3235
        %v3547 = vunpack.c.l.bf16 %v3236
        %v3548 = vunpack.c.h.bf16 %v3236
        %v3549 = vunpack.c.l.bf16 %v3237
        %v3550 = vunpack.c.h.bf16 %v3237
        %v3551 = vunpack.c.l.bf16 %v3238
        %v3552 = vunpack.c.h.bf16 %v3238
        %v3553 = vunpack.c.l.bf16 %v3239
        %v3554 = vunpack.c.h.bf16 %v3239
        %v3555 = vunpack.c.l.bf16 %v3240
        %v3556 = vunpack.c.h.bf16 %v3240
        %v3557 = vunpack.c.l.bf16 %v3241
        %v3558 = vunpack.c.h.bf16 %v3241
        %v3559 = vunpack.c.l.bf16 %v3242
        %v3560 = vunpack.c.h.bf16 %v3242
        %v3561 = vunpack.c.l.bf16 %v3243
        %v3562 = vunpack.c.h.bf16 %v3243
        %v3563 = vunpack.c.l.bf16 %v3244
        %v3564 = vunpack.c.h.bf16 %v3244
        %v3565 = vunpack.c.l.bf16 %v3245
        %v3566 = vunpack.c.h.bf16 %v3245
        %v3567 = vunpack.c.l.bf16 %v3246
        %v3568 = vunpack.c.h.bf16 %v3246
        %v3569 = vunpack.c.l.bf16 %v3247
        %v3570 = vunpack.c.h.bf16 %v3247
        %v3571 = vunpack.c.l.bf16 %v3248
        %v3572 = vunpack.c.h.bf16 %v3248
        %v3573 = vunpack.c.l.bf16 %v3249
        %v3574 = vunpack.c.h.bf16 %v3249
        %v3575 = vunpack.c.l.bf16 %v3250
        %v3576 = vunpack.c.h.bf16 %v3250
        %v3577 = vunpack.c.l.bf16 %v3251
        %v3578 = vunpack.c.h.bf16 %v3251
        %v3579 = vunpack.c.l.bf16 %v3252
        %v3580 = vunpack.c.h.bf16 %v3252
        %v3581 = vunpack.c.l.bf16 %v3253
        %v3582 = vunpack.c.h.bf16 %v3253
        %v3583 = vunpack.c.l.bf16 %v3254
        %v3584 = vunpack.c.h.bf16 %v3254
        %v3585 = vunpack.c.l.bf16 %v3255
        %v3586 = vunpack.c.h.bf16 %v3255
        %v3587 = vunpack.c.l.bf16 %v3256
        %v3588 = vunpack.c.h.bf16 %v3256
        %v3589 = vunpack.c.l.bf16 %v3257
        %v3590 = vunpack.c.h.bf16 %v3257
        %v3591 = vunpack.c.l.bf16 %v3258
        %v3592 = vunpack.c.h.bf16 %v3258
        %v3593 = vunpack.c.l.bf16 %v3259
        %v3594 = vunpack.c.h.bf16 %v3259
        %v3595 = vunpack.c.l.bf16 %v3260
        %v3596 = vunpack.c.h.bf16 %v3260
        %v3597 = vunpack.c.l.bf16 %v3261
        %v3598 = vunpack.c.h.bf16 %v3261
        %v3599 = vunpack.c.l.bf16 %v3262
        %v3600 = vunpack.c.h.bf16 %v3262
        %v3601 = vunpack.c.l.bf16 %v3263
        %v3602 = vunpack.c.h.bf16 %v3263
        %v3603 = vunpack.c.l.bf16 %v3264
        %v3604 = vunpack.c.h.bf16 %v3264
        %v3605 = vunpack.c.l.bf16 %v3265
        %v3606 = vunpack.c.h.bf16 %v3265
        %v3607 = vunpack.c.l.bf16 %v3266
        %v3608 = vunpack.c.h.bf16 %v3266
        %v3609 = vunpack.c.l.bf16 %v3267
        %v3610 = vunpack.c.h.bf16 %v3267
        %v3611 = vunpack.c.l.bf16 %v3268
        %v3612 = vunpack.c.h.bf16 %v3268
        %v3613 = vunpack.c.l.bf16 %v3269
        %v3614 = vunpack.c.h.bf16 %v3269
        %v3615 = vunpack.c.l.bf16 %v3270
        %v3616 = vunpack.c.h.bf16 %v3270
        %v3617 = vunpack.c.l.bf16 %v3271
        %v3618 = vunpack.c.h.bf16 %v3271
        %v3619 = vunpack.c.l.bf16 %v3272
        %v3620 = vunpack.c.h.bf16 %v3272
        %v3621 = vunpack.c.l.bf16 %v3273
        %v3622 = vunpack.c.h.bf16 %v3273
        %v3623 = vunpack.c.l.bf16 %v3274
        %v3624 = vunpack.c.h.bf16 %v3274
        %v3625 = vunpack.c.l.bf16 %v3275
        %v3626 = vunpack.c.h.bf16 %v3275
        %v3627 = vunpack.c.l.bf16 %v3276
        %v3628 = vunpack.c.h.bf16 %v3276
        %v3629 = vunpack.c.l.bf16 %v3277
        %v3630 = vunpack.c.h.bf16 %v3277
        %v3631 = vunpack.c.l.bf16 %v3278
        %v3632 = vunpack.c.h.bf16 %v3278
        %v3633 = vunpack.c.l.bf16 %v3279
        %v3634 = vunpack.c.h.bf16 %v3279
        %v3635 = vunpack.c.l.bf16 %v3280
        %v3636 = vunpack.c.h.bf16 %v3280
        %v3637 = vunpack.c.l.bf16 %v3281
        %v3638 = vunpack.c.h.bf16 %v3281
        %v3639 = vunpack.c.l.bf16 %v3282
        %v3640 = vunpack.c.h.bf16 %v3282
        %v3641 = vunpack.c.l.bf16 %v3283
        %v3642 = vunpack.c.h.bf16 %v3283
        %v3643 = vunpack.c.l.bf16 %v3284
        %v3644 = vunpack.c.h.bf16 %v3284
        %v3645 = vunpack.c.l.bf16 %v3285
        %v3646 = vunpack.c.h.bf16 %v3285
        %v3647 = vunpack.c.l.bf16 %v3286
        %v3648 = vunpack.c.h.bf16 %v3286
        %v3649 = vunpack.c.l.bf16 %v3287
        %v3650 = vunpack.c.h.bf16 %v3287
        %v3651 = vunpack.c.l.bf16 %v3288
        %v3652 = vunpack.c.h.bf16 %v3288
        %v3653 = vunpack.c.l.bf16 %v3289
        %v3654 = vunpack.c.h.bf16 %v3289
        %v3655 = vunpack.c.l.bf16 %v3290
        %v3656 = vunpack.c.h.bf16 %v3290
        %v3657 = vunpack.c.l.bf16 %v3291
        %v3658 = vunpack.c.h.bf16 %v3291
        %v3659 = vunpack.c.l.bf16 %v3292
        %v3660 = vunpack.c.h.bf16 %v3292
        %v3661 = vunpack.c.l.bf16 %v3293
        %v3662 = vunpack.c.h.bf16 %v3293
        %v3663 = vunpack.c.l.bf16 %v3294
        %v3664 = vunpack.c.h.bf16 %v3294
        %v3665 = vunpack.c.l.bf16 %v3295
        %v3666 = vunpack.c.h.bf16 %v3295
        %v3667 = vunpack.c.l.bf16 %v3296
        %v3668 = vunpack.c.h.bf16 %v3296
        %v3669 = vunpack.c.l.bf16 %v3297
        %v3670 = vunpack.c.h.bf16 %v3297
        %v3671 = vunpack.c.l.bf16 %v3298
        %v3672 = vunpack.c.h.bf16 %v3298
        %v3673 = vunpack.c.l.bf16 %v3299
        %v3674 = vunpack.c.h.bf16 %v3299
        %v3675 = vunpack.c.l.bf16 %v3300
        %v3676 = vunpack.c.h.bf16 %v3300
        %v3677 = vunpack.c.l.bf16 %v3301
        %v3678 = vunpack.c.h.bf16 %v3301
        %v3679 = vunpack.c.l.bf16 %v3302
        %v3680 = vunpack.c.h.bf16 %v3302
        %v3681 = vunpack.c.l.bf16 %v3303
        %v3682 = vunpack.c.h.bf16 %v3303
        %v3683 = vunpack.c.l.bf16 %v3304
        %v3684 = vunpack.c.h.bf16 %v3304
        %v3685 = vunpack.c.l.bf16 %v3305
        %v3686 = vunpack.c.h.bf16 %v3305
        %v3687 = vunpack.c.l.bf16 %v3306
        %v3688 = vunpack.c.h.bf16 %v3306
        %v3689 = vunpack.c.l.bf16 %v3307
        %v3690 = vunpack.c.h.bf16 %v3307
        %v3691 = vunpack.c.l.bf16 %v3308
        %v3692 = vunpack.c.h.bf16 %v3308
        %v3693 = vunpack.c.l.bf16 %v3309
        %v3694 = vunpack.c.h.bf16 %v3309
        %v3695 = vunpack.c.l.bf16 %v3310
        %v3696 = vunpack.c.h.bf16 %v3310
        %v3697 = vunpack.c.l.bf16 %v3311
        %v3698 = vunpack.c.h.bf16 %v3311
        %v3699 = vunpack.c.l.bf16 %v3312
        %v3700 = vunpack.c.h.bf16 %v3312
        %v3701 = vunpack.c.l.bf16 %v3313
        %v3702 = vunpack.c.h.bf16 %v3313
        %v3703 = vunpack.c.l.bf16 %v3314
        %v3704 = vunpack.c.h.bf16 %v3314
        %v3705 = vunpack.c.l.bf16 %v3315
        %v3706 = vunpack.c.h.bf16 %v3315
        %v3707 = vunpack.c.l.bf16 %v3316
        %v3708 = vunpack.c.h.bf16 %v3316
        %v3709 = vunpack.c.l.bf16 %v3317
        %v3710 = vunpack.c.h.bf16 %v3317
        %v3711 = vunpack.c.l.bf16 %v3318
        %v3712 = vunpack.c.h.bf16 %v3318
        %v3713 = vunpack.c.l.bf16 %v3319
        %v3714 = vunpack.c.h.bf16 %v3319
        %v3715 = vunpack.c.l.bf16 %v3320
        %v3716 = vunpack.c.h.bf16 %v3320
        %v3717 = vunpack.c.l.bf16 %v3321
        %v3718 = vunpack.c.h.bf16 %v3321
        %v3719 = vunpack.c.l.bf16 %v3322
        %v3720 = vunpack.c.h.bf16 %v3322
        %v3721 = vunpack.c.l.bf16 %v3323
        %v3722 = vunpack.c.h.bf16 %v3323
        %v3723 = vunpack.c.l.bf16 %v3324
        %v3724 = vunpack.c.h.bf16 %v3324
        %v3725 = vunpack.c.l.bf16 %v3325
        %v3726 = vunpack.c.h.bf16 %v3325
        %v3727 = vunpack.c.l.bf16 %v3326
        %v3728 = vunpack.c.h.bf16 %v3326
        %v3729 = vunpack.c.l.bf16 %v3327
        %v3730 = vunpack.c.h.bf16 %v3327
        %v3731 = vunpack.c.l.bf16 %v3328
        %v3732 = vunpack.c.h.bf16 %v3328
        %v3733 = vunpack.c.l.bf16 %v3329
        %v3734 = vunpack.c.h.bf16 %v3329
        %v3735 = vunpack.c.l.bf16 %v3330
        %v3736 = vunpack.c.h.bf16 %v3330
        %v3737 = vunpack.c.l.bf16 %v3331
        %v3738 = vunpack.c.h.bf16 %v3331
        %v3739 = vunpack.c.l.bf16 %v3332
        %v3740 = vunpack.c.h.bf16 %v3332
        %v3741 = vunpack.c.l.bf16 %v3333
        %v3742 = vunpack.c.h.bf16 %v3333
        %v3743 = vunpack.c.l.bf16 %v3334
        %v3744 = vunpack.c.h.bf16 %v3334
        %v3745 = vunpack.c.l.bf16 %v3335
        %v3746 = vunpack.c.h.bf16 %v3335
        %v3747 = vunpack.c.l.bf16 %v3336
        %v3748 = vunpack.c.h.bf16 %v3336
        %v3749 = vunpack.c.l.bf16 %v3337
        %v3750 = vunpack.c.h.bf16 %v3337
        %v3751 = vunpack.c.l.bf16 %v3338
        %v3752 = vunpack.c.h.bf16 %v3338
        %v3753 = vunpack.c.l.bf16 %v3339
        %v3754 = vunpack.c.h.bf16 %v3339
        %v3755 = vunpack.c.l.bf16 %v3340
        %v3756 = vunpack.c.h.bf16 %v3340
        %v3757 = vunpack.c.l.bf16 %v3341
        %v3758 = vunpack.c.h.bf16 %v3341
        %v3759 = vunpack.c.l.bf16 %v3342
        %v3760 = vunpack.c.h.bf16 %v3342
        %v3761 = vunpack.c.l.bf16 %v3343
        %v3762 = vunpack.c.h.bf16 %v3343
        %v3763 = vunpack.c.l.bf16 %v3344
        %v3764 = vunpack.c.h.bf16 %v3344
        %v3765 = vunpack.c.l.bf16 %v3345
        %v3766 = vunpack.c.h.bf16 %v3345
        %v3767 = vunpack.c.l.bf16 %v3346
        %v3768 = vunpack.c.h.bf16 %v3346
        %v3769 = vunpack.c.l.bf16 %v3347
        %v3770 = vunpack.c.h.bf16 %v3347
        %v3771 = vunpack.c.l.bf16 %v3348
        %v3772 = vunpack.c.h.bf16 %v3348
        %v3773 = vunpack.c.l.bf16 %v3349
        %v3774 = vunpack.c.h.bf16 %v3349
        %v3775 = vunpack.c.l.bf16 %v3350
        %v3776 = vunpack.c.h.bf16 %v3350
        %v3777 = vunpack.c.l.bf16 %v3351
        %v3778 = vunpack.c.h.bf16 %v3351
        %v3779 = vunpack.c.l.bf16 %v3352
        %v3780 = vunpack.c.h.bf16 %v3352
        %v3781 = vunpack.c.l.bf16 %v3353
        %v3782 = vunpack.c.h.bf16 %v3353
        %v3783 = vunpack.c.l.bf16 %v3354
        %v3784 = vunpack.c.h.bf16 %v3354
        %v3785 = vunpack.c.l.bf16 %v3355
        %v3786 = vunpack.c.h.bf16 %v3355
        %v3787 = vunpack.c.l.bf16 %v3356
        %v3788 = vunpack.c.h.bf16 %v3356
        %v3789 = vunpack.c.l.bf16 %v3357
        %v3790 = vunpack.c.h.bf16 %v3357
        %v3791 = vunpack.c.l.bf16 %v3358
        %v3792 = vunpack.c.h.bf16 %v3358
        %v3793 = vunpack.c.l.bf16 %v3359
        %v3794 = vunpack.c.h.bf16 %v3359
        %v3795 = vunpack.c.l.bf16 %v3360
        %v3796 = vunpack.c.h.bf16 %v3360
        %v3797 = vunpack.c.l.bf16 %v3361
        %v3798 = vunpack.c.h.bf16 %v3361
        %v3799 = vunpack.c.l.bf16 %v3362
        %v3800 = vunpack.c.h.bf16 %v3362
        %v3801 = vunpack.c.l.bf16 %v3363
        %v3802 = vunpack.c.h.bf16 %v3363
        %v3803 = vunpack.c.l.bf16 %v3364
        %v3804 = vunpack.c.h.bf16 %v3364
        %v3805 = vunpack.c.l.bf16 %v3365
        %v3806 = vunpack.c.h.bf16 %v3365
        %v3807 = vunpack.c.l.bf16 %v3366
        %v3808 = vunpack.c.h.bf16 %v3366
        %v3809 = vunpack.c.l.bf16 %v3367
        %v3810 = vunpack.c.h.bf16 %v3367
        %v3811 = vunpack.c.l.bf16 %v3368
        %v3812 = vunpack.c.h.bf16 %v3368
        %v3813 = vunpack.c.l.bf16 %v3369
        %v3814 = vunpack.c.h.bf16 %v3369
        %v3815 = vunpack.c.l.bf16 %v3370
        %v3816 = vunpack.c.h.bf16 %v3370
        %v3817 = vunpack.c.l.bf16 %v3371
        %v3818 = vunpack.c.h.bf16 %v3371
        %v3819 = vunpack.c.l.bf16 %v3372
        %v3820 = vunpack.c.h.bf16 %v3372
        %v3821 = vunpack.c.l.bf16 %v3373
        %v3822 = vunpack.c.h.bf16 %v3373
        %v3823 = vunpack.c.l.bf16 %v3374
        %v3824 = vunpack.c.h.bf16 %v3374
        %v3825 = vunpack.c.l.bf16 %v3375
        %v3826 = vunpack.c.h.bf16 %v3375
        %v3827 = vunpack.c.l.bf16 %v3376
        %v3828 = vunpack.c.h.bf16 %v3376
        %v3829 = vunpack.c.l.bf16 %v3377
        %v3830 = vunpack.c.h.bf16 %v3377
        %v3831 = vunpack.c.l.bf16 %v3378
        %v3832 = vunpack.c.h.bf16 %v3378
        %v3833 = vunpack.c.l.bf16 %v3379
        %v3834 = vunpack.c.h.bf16 %v3379
        %v3835 = vunpack.c.l.bf16 %v3380
        %v3836 = vunpack.c.h.bf16 %v3380
        %v3837 = vunpack.c.l.bf16 %v3381
        %v3838 = vunpack.c.h.bf16 %v3381
        %v3839 = vunpack.c.l.bf16 %v3382
        %v3840 = vunpack.c.h.bf16 %v3382
        %v3841 = vunpack.c.l.bf16 %v3383
        %v3842 = vunpack.c.h.bf16 %v3383
        %v3843 = vunpack.c.l.bf16 %v3384
        %v3844 = vunpack.c.h.bf16 %v3384
        %v3845 = vunpack.c.l.bf16 %v3385
        %v3846 = vunpack.c.h.bf16 %v3385
        %v3847 = vunpack.c.l.bf16 %v3386
        %v3848 = vunpack.c.h.bf16 %v3386
        %v3849 = vunpack.c.l.bf16 %v3387
        %v3850 = vunpack.c.h.bf16 %v3387
        %v3851 = vunpack.c.l.bf16 %v3388
        %v3852 = vunpack.c.h.bf16 %v3388
        %v3853 = vunpack.c.l.bf16 %v3389
        %v3854 = vunpack.c.h.bf16 %v3389
        %v3855 = vunpack.c.l.bf16 %v3390
        %v3856 = vunpack.c.h.bf16 %v3390
        %v3857 = vunpack.c.l.bf16 %v3391
        %v3858 = vunpack.c.h.bf16 %v3391
        %v3859 = vunpack.c.l.bf16 %v3392
        %v3860 = vunpack.c.h.bf16 %v3392
        %v3861 = vunpack.c.l.bf16 %v3393
        %v3862 = vunpack.c.h.bf16 %v3393
        %v3863 = vunpack.c.l.bf16 %v3394
        %v3864 = vunpack.c.h.bf16 %v3394
        %v3865 = vunpack.c.l.bf16 %v3395
        %v3866 = vunpack.c.h.bf16 %v3395
        %v3867 = vunpack.c.l.bf16 %v3396
        %v3868 = vunpack.c.h.bf16 %v3396
        %v3869 = vunpack.c.l.bf16 %v3397
        %v3870 = vunpack.c.h.bf16 %v3397
        %v3871 = vunpack.c.l.bf16 %v3398
        %v3872 = vunpack.c.h.bf16 %v3398
        %v3873 = vunpack.c.l.bf16 %v3399
        %v3874 = vunpack.c.h.bf16 %v3399
        %v3875 = vunpack.c.l.bf16 %v3400
        %v3876 = vunpack.c.h.bf16 %v3400
        %v3877 = vunpack.c.l.bf16 %v3401
        %v3878 = vunpack.c.h.bf16 %v3401
        %v3879 = vunpack.c.l.bf16 %v3402
        %v3880 = vunpack.c.h.bf16 %v3402
        %v3881 = vunpack.c.l.bf16 %v3403
        %v3882 = vunpack.c.h.bf16 %v3403
        %v3883 = vunpack.c.l.bf16 %v3404
        %v3884 = vunpack.c.h.bf16 %v3404
        %v3885 = vunpack.c.l.bf16 %v3405
        %v3886 = vunpack.c.h.bf16 %v3405
        %v3887 = vunpack.c.l.bf16 %v3406
        %v3888 = vunpack.c.h.bf16 %v3406
        %v3889 = vunpack.c.l.bf16 %v3407
        %v3890 = vunpack.c.h.bf16 %v3407
        %v3891 = vunpack.c.l.bf16 %v3408
        %v3892 = vunpack.c.h.bf16 %v3408
        %v3893 = vunpack.c.l.bf16 %v3409
        %v3894 = vunpack.c.h.bf16 %v3409
        %v3895 = vunpack.c.l.bf16 %v3410
        %v3896 = vunpack.c.h.bf16 %v3410
        %v3897 = vunpack.c.l.bf16 %v3411
        %v3898 = vunpack.c.h.bf16 %v3411
        %v3899 = vunpack.c.l.bf16 %v3412
        %v3900 = vunpack.c.h.bf16 %v3412
        %v3901 = vunpack.c.l.bf16 %v3413
        %v3902 = vunpack.c.h.bf16 %v3413
        %v3903 = vunpack.c.l.bf16 %v3414
        %v3904 = vunpack.c.h.bf16 %v3414
        %v3905 = vunpack.c.l.bf16 %v3415
        %v3906 = vunpack.c.h.bf16 %v3415
        %v3907 = vunpack.c.l.bf16 %v3416
        %v3908 = vunpack.c.h.bf16 %v3416
        %v3909 = vunpack.c.l.bf16 %v3417
        %v3910 = vunpack.c.h.bf16 %v3417
        %v3911 = vunpack.c.l.bf16 %v3418
        %v3912 = vunpack.c.h.bf16 %v3418
        %v3913 = vunpack.c.l.bf16 %v3419
        %v3914 = vunpack.c.h.bf16 %v3419
        %v3915 = vunpack.c.l.bf16 %v3420
        %v3916 = vunpack.c.h.bf16 %v3420
        %v3917 = vunpack.c.l.bf16 %v3421
        %v3918 = vunpack.c.h.bf16 %v3421
        %v3919 = vunpack.c.l.bf16 %v3422
        %v3920 = vunpack.c.h.bf16 %v3422
        %v3921 = vunpack.c.l.bf16 %v3423
        %v3922 = vunpack.c.h.bf16 %v3423
        %v3923 = vunpack.c.l.bf16 %v3424
        %v3924 = vunpack.c.h.bf16 %v3424
        %v3925 = vunpack.c.l.bf16 %v3425
        %v3926 = vunpack.c.h.bf16 %v3425
        %v3927 = vunpack.c.l.bf16 %v3426
        %v3928 = vunpack.c.h.bf16 %v3426
        %v3929 = vunpack.c.l.bf16 %v3427
        %v3930 = vunpack.c.h.bf16 %v3427
        %v3931 = vunpack.c.l.bf16 %v3428
        %v3932 = vunpack.c.h.bf16 %v3428
        %v3933 = vunpack.c.l.bf16 %v3429
        %v3934 = vunpack.c.h.bf16 %v3429
        %v3935 = vunpack.c.l.bf16 %v3430
        %v3936 = vunpack.c.h.bf16 %v3430
        %v3937 = vunpack.c.l.bf16 %v3431
        %v3938 = vunpack.c.h.bf16 %v3431
        %v3939 = vunpack.c.l.bf16 %v3432
        %v3940 = vunpack.c.h.bf16 %v3432
        %v3941 = vunpack.c.l.bf16 %v3433
        %v3942 = vunpack.c.h.bf16 %v3433
        %v3943 = vunpack.c.l.bf16 %v3434
        %v3944 = vunpack.c.h.bf16 %v3434
        %v3945 = vunpack.c.l.bf16 %v3435
        %v3946 = vunpack.c.h.bf16 %v3435
        %v3947 = vunpack.c.l.bf16 %v3436
        %v3948 = vunpack.c.h.bf16 %v3436
        %v3949 = vld [vmem:[%s291 + $0x4] sm:$0x3]
        %v3950 = vld [vmem:[#allocation6] sm:$0xff]
        %v3951 = vld [vmem:[#allocation6 + $0x8] sm:$0xff]
        %v3952 = vld [vmem:[#allocation6 + $0x10] sm:$0xff]
        %v3953 = vld [vmem:[#allocation6 + $0x18] sm:$0xff]
        %v3954 = vld [vmem:[#allocation6 + $0x20] sm:$0xff]
        %v3955 = vld [vmem:[#allocation6 + $0x28] sm:$0xff]
        %v3956 = vld [vmem:[#allocation6 + $0x30] sm:$0xff]
        %v3957 = vld [vmem:[#allocation6 + $0x38] sm:$0xff]
        %v3958 = vld [vmem:[#allocation6 + $0x40] sm:$0xff]
        %v3959 = vld [vmem:[#allocation6 + $0x48] sm:$0xff]
        %v3960 = vld [vmem:[#allocation6 + $0x50] sm:$0xff]
        %v3961 = vld [vmem:[#allocation6 + $0x58] sm:$0xff]
        %v3962 = vld [vmem:[#allocation6 + $0x60] sm:$0xff]
        %v3963 = vld [vmem:[#allocation6 + $0x68] sm:$0xff]
        %v3964 = vld [vmem:[#allocation6 + $0x70] sm:$0xff]
        %v3965 = vld [vmem:[#allocation6 + $0x78] sm:$0xff]
        %v3966 = vld [vmem:[#allocation6 + $0x80] sm:$0xff]
        %v3967 = vld [vmem:[#allocation6 + $0x88] sm:$0xff]
        %v3968 = vld [vmem:[#allocation6 + $0x90] sm:$0xff]
        %v3969 = vld [vmem:[#allocation6 + $0x98] sm:$0xff]
        %v3970 = vld [vmem:[#allocation6 + $0xa0] sm:$0xff]
        %v3971 = vld [vmem:[#allocation6 + $0xa8] sm:$0xff]
        %v3972 = vld [vmem:[#allocation6 + $0xb0] sm:$0xff]
        %v3973 = vld [vmem:[#allocation6 + $0xb8] sm:$0xff]
        %v3974 = vld [vmem:[#allocation6 + $0xc0] sm:$0xff]
        %v3975 = vld [vmem:[#allocation6 + $0xc8] sm:$0xff]
        %v3976 = vld [vmem:[#allocation6 + $0xd0] sm:$0xff]
        %v3977 = vld [vmem:[#allocation6 + $0xd8] sm:$0xff]
        %v3978 = vld [vmem:[#allocation6 + $0xe0] sm:$0xff]
        %v3979 = vld [vmem:[#allocation6 + $0xe8] sm:$0xff]
        %v3980 = vld [vmem:[#allocation6 + $0xf0] sm:$0xff]
        %v3981 = vld [vmem:[#allocation6 + $0xf8] sm:$0xff]
        %v3983 = vlaneseq
        %v3984 = vshrl.u32 %v3983, 7
        %v3985 = vsub.s32 0, %v3984
        %v3986 = vrot.slane %v3949, %v3985
        %v3987 = vlaneseq
        %v3988 = vshrl.u32 %v3987, 7
        %v3989 = vsub.s32 1, %v3988
        %v3990 = vrot.slane %v3949, %v3989
        %3993 = vmatprep.subr.mxu0 %v3468
        %3994 = vmatpush1.msra.mxu0 %v3467
        %3995 = vmatprep.subr.mxu0 %v3466
        %3996 = vmatpush1.msra.mxu0 %v3465
        %3997 = vmatprep.subr.mxu0 %v3464
        %3998 = vmatpush1.msra.mxu0 %v3463
        %3999 = vmatprep.subr.mxu0 %v3462
        %4000 = vmatpush1.msra.mxu0 %v3461
        %4001 = vmatprep.subr.mxu0 %v3460
        %4002 = vmatpush1.msra.mxu0 %v3459
        %4003 = vmatprep.subr.mxu0 %v3458
        %4004 = vmatpush1.msra.mxu0 %v3457
        %4005 = vmatprep.subr.mxu0 %v3456
        %4006 = vmatpush1.msra.mxu0 %v3455
        %4007 = vmatprep.subr.mxu0 %v3454
        %4008 = vmatpush1.msra.mxu0 %v3453
        %4009 = vmatprep.subr.mxu0 %v3452
        %4010 = vmatpush1.msra.mxu0 %v3451
        %4011 = vmatprep.subr.mxu0 %v3450
        %4012 = vmatpush1.msra.mxu0 %v3449
        %4013 = vmatprep.subr.mxu0 %v3448
        %4014 = vmatpush1.msra.mxu0 %v3447
        %4015 = vmatprep.subr.mxu0 %v3446
        %4016 = vmatpush1.msra.mxu0 %v3445
        %4017 = vmatprep.subr.mxu0 %v3444
        %4018 = vmatpush1.msra.mxu0 %v3443
        %4019 = vmatprep.subr.mxu0 %v3442
        %4020 = vmatpush1.msra.mxu0 %v3441
        %4021 = vmatprep.subr.mxu0 %v3440
        %4022 = vmatpush1.msra.mxu0 %v3439
        %4023 = vmatprep.subr.mxu0 %v3438
        %4024 = vmatpush1.msra.mxu0 %v3437
        %4025 = vmatprep.subr.mxu0 %v3500
        %4026 = vmatpush2.msra.mxu0 %v3499
        %4027 = vmatprep.subr.mxu0 %v3498
        %4028 = vmatpush2.msra.mxu0 %v3497
        %4029 = vmatprep.subr.mxu0 %v3496
        %4030 = vmatpush2.msra.mxu0 %v3495
        %4031 = vmatprep.subr.mxu0 %v3494
        %4032 = vmatpush2.msra.mxu0 %v3493
        %4033 = vmatprep.subr.mxu0 %v3492
        %4034 = vmatpush2.msra.mxu0 %v3491
        %4035 = vmatprep.subr.mxu0 %v3490
        %4036 = vmatpush2.msra.mxu0 %v3489
        %4037 = vmatprep.subr.mxu0 %v3488
        %4038 = vmatpush2.msra.mxu0 %v3487
        %4039 = vmatprep.subr.mxu0 %v3486
        %4040 = vmatpush2.msra.mxu0 %v3485
        %4041 = vmatprep.subr.mxu0 %v3484
        %4042 = vmatpush2.msra.mxu0 %v3483
        %4043 = vmatprep.subr.mxu0 %v3482
        %4044 = vmatpush2.msra.mxu0 %v3481
        %4045 = vmatprep.subr.mxu0 %v3480
        %4046 = vmatpush2.msra.mxu0 %v3479
        %4047 = vmatprep.subr.mxu0 %v3478
        %4048 = vmatpush2.msra.mxu0 %v3477
        %4049 = vmatprep.subr.mxu0 %v3476
        %4050 = vmatpush2.msra.mxu0 %v3475
        %4051 = vmatprep.subr.mxu0 %v3474
        %4052 = vmatpush2.msra.mxu0 %v3473
        %4053 = vmatprep.subr.mxu0 %v3472
        %4054 = vmatpush2.msra.mxu0 %v3471
        %4055 = vmatprep.subr.mxu0 %v3470
        %4056 = vmatpush2.msra.mxu0 %v3469
        %4057 = vmatprep.mubr.f32.mxu0 %v3951
        %4058 = vmatmul.mubr.f32.gmra.mxu0 %v3950
        %v4059 = vpop.f32.mrf.mxu0
        %v4060 = vadd.f32 %v3986, %v4059
        %v4061 = vpop.f32.mrf.mxu0
        %v4062 = vadd.f32 %v3990, %v4061
        %4063 = vmatprep.mubr.f32.mxu0 %v3967
        %4064 = vmatmul.mubr.f32.gmra.mxu0 %v3966
        %v4065 = vpop.f32.mrf.mxu0
        %v4066 = vadd.f32 %v3986, %v4065
        %v4067 = vpop.f32.mrf.mxu0
        %v4068 = vadd.f32 %v3990, %v4067
        %4069 = vdwg.mxu0
        %4070 = vmatprep.subr.mxu0 %v3532
        %4071 = vmatpush1.msra.mxu0 %v3531
        %4072 = vmatprep.subr.mxu0 %v3530
        %4073 = vmatpush1.msra.mxu0 %v3529
        %4074 = vmatprep.subr.mxu0 %v3528
        %4075 = vmatpush1.msra.mxu0 %v3527
        %4076 = vmatprep.subr.mxu0 %v3526
        %4077 = vmatpush1.msra.mxu0 %v3525
        %4078 = vmatprep.subr.mxu0 %v3524
        %4079 = vmatpush1.msra.mxu0 %v3523
        %4080 = vmatprep.subr.mxu0 %v3522
        %4081 = vmatpush1.msra.mxu0 %v3521
        %4082 = vmatprep.subr.mxu0 %v3520
        %4083 = vmatpush1.msra.mxu0 %v3519
        %4084 = vmatprep.subr.mxu0 %v3518
        %4085 = vmatpush1.msra.mxu0 %v3517
        %4086 = vmatprep.subr.mxu0 %v3516
        %4087 = vmatpush1.msra.mxu0 %v3515
        %4088 = vmatprep.subr.mxu0 %v3514
        %4089 = vmatpush1.msra.mxu0 %v3513
        %4090 = vmatprep.subr.mxu0 %v3512
        %4091 = vmatpush1.msra.mxu0 %v3511
        %4092 = vmatprep.subr.mxu0 %v3510
        %4093 = vmatpush1.msra.mxu0 %v3509
        %4094 = vmatprep.subr.mxu0 %v3508
        %4095 = vmatpush1.msra.mxu0 %v3507
        %4096 = vmatprep.subr.mxu0 %v3506
        %4097 = vmatpush1.msra.mxu0 %v3505
        %4098 = vmatprep.subr.mxu0 %v3504
        %4099 = vmatpush1.msra.mxu0 %v3503
        %4100 = vmatprep.subr.mxu0 %v3502
        %4101 = vmatpush1.msra.mxu0 %v3501
        %4102 = vmatprep.subr.mxu0 %v3564
        %4103 = vmatpush2.msra.mxu0 %v3563
        %4104 = vmatprep.subr.mxu0 %v3562
        %4105 = vmatpush2.msra.mxu0 %v3561
        %4106 = vmatprep.subr.mxu0 %v3560
        %4107 = vmatpush2.msra.mxu0 %v3559
        %4108 = vmatprep.subr.mxu0 %v3558
        %4109 = vmatpush2.msra.mxu0 %v3557
        %4110 = vmatprep.subr.mxu0 %v3556
        %4111 = vmatpush2.msra.mxu0 %v3555
        %4112 = vmatprep.subr.mxu0 %v3554
        %4113 = vmatpush2.msra.mxu0 %v3553
        %4114 = vmatprep.subr.mxu0 %v3552
        %4115 = vmatpush2.msra.mxu0 %v3551
        %4116 = vmatprep.subr.mxu0 %v3550
        %4117 = vmatpush2.msra.mxu0 %v3549
        %4118 = vmatprep.subr.mxu0 %v3548
        %4119 = vmatpush2.msra.mxu0 %v3547
        %4120 = vmatprep.subr.mxu0 %v3546
        %4121 = vmatpush2.msra.mxu0 %v3545
        %4122 = vmatprep.subr.mxu0 %v3544
        %4123 = vmatpush2.msra.mxu0 %v3543
        %4124 = vmatprep.subr.mxu0 %v3542
        %4125 = vmatpush2.msra.mxu0 %v3541
        %4126 = vmatprep.subr.mxu0 %v3540
        %4127 = vmatpush2.msra.mxu0 %v3539
        %4128 = vmatprep.subr.mxu0 %v3538
        %4129 = vmatpush2.msra.mxu0 %v3537
        %4130 = vmatprep.subr.mxu0 %v3536
        %4131 = vmatpush2.msra.mxu0 %v3535
        %4132 = vmatprep.subr.mxu0 %v3534
        %4133 = vmatpush2.msra.mxu0 %v3533
        %4134 = vmatprep.mubr.f32.mxu0 %v3953
        %4135 = vmatmul.mubr.f32.gmra.mxu0 %v3952
        %v4136 = vpop.f32.mrf.mxu0
        %v4137 = vadd.f32 %v4060, %v4136
        %v4138 = vpop.f32.mrf.mxu0
        %v4139 = vadd.f32 %v4062, %v4138
        %4140 = vmatprep.mubr.f32.mxu0 %v3969
        %4141 = vmatmul.mubr.f32.gmra.mxu0 %v3968
        %v4142 = vpop.f32.mrf.mxu0
        %v4143 = vadd.f32 %v4066, %v4142
        %v4144 = vpop.f32.mrf.mxu0
        %v4145 = vadd.f32 %v4068, %v4144
        %4146 = vdwg.mxu0
        %4147 = vmatprep.subr.mxu0 %v3596
        %4148 = vmatpush1.msra.mxu0 %v3595
        %4149 = vmatprep.subr.mxu0 %v3594
        %4150 = vmatpush1.msra.mxu0 %v3593
        %4151 = vmatprep.subr.mxu0 %v3592
        %4152 = vmatpush1.msra.mxu0 %v3591
        %4153 = vmatprep.subr.mxu0 %v3590
        %4154 = vmatpush1.msra.mxu0 %v3589
        %4155 = vmatprep.subr.mxu0 %v3588
        %4156 = vmatpush1.msra.mxu0 %v3587
        %4157 = vmatprep.subr.mxu0 %v3586
        %4158 = vmatpush1.msra.mxu0 %v3585
        %4159 = vmatprep.subr.mxu0 %v3584
        %4160 = vmatpush1.msra.mxu0 %v3583
        %4161 = vmatprep.subr.mxu0 %v3582
        %4162 = vmatpush1.msra.mxu0 %v3581
        %4163 = vmatprep.subr.mxu0 %v3580
        %4164 = vmatpush1.msra.mxu0 %v3579
        %4165 = vmatprep.subr.mxu0 %v3578
        %4166 = vmatpush1.msra.mxu0 %v3577
        %4167 = vmatprep.subr.mxu0 %v3576
        %4168 = vmatpush1.msra.mxu0 %v3575
        %4169 = vmatprep.subr.mxu0 %v3574
        %4170 = vmatpush1.msra.mxu0 %v3573
        %4171 = vmatprep.subr.mxu0 %v3572
        %4172 = vmatpush1.msra.mxu0 %v3571
        %4173 = vmatprep.subr.mxu0 %v3570
        %4174 = vmatpush1.msra.mxu0 %v3569
        %4175 = vmatprep.subr.mxu0 %v3568
        %4176 = vmatpush1.msra.mxu0 %v3567
        %4177 = vmatprep.subr.mxu0 %v3566
        %4178 = vmatpush1.msra.mxu0 %v3565
        %4179 = vmatprep.subr.mxu0 %v3628
        %4180 = vmatpush2.msra.mxu0 %v3627
        %4181 = vmatprep.subr.mxu0 %v3626
        %4182 = vmatpush2.msra.mxu0 %v3625
        %4183 = vmatprep.subr.mxu0 %v3624
        %4184 = vmatpush2.msra.mxu0 %v3623
        %4185 = vmatprep.subr.mxu0 %v3622
        %4186 = vmatpush2.msra.mxu0 %v3621
        %4187 = vmatprep.subr.mxu0 %v3620
        %4188 = vmatpush2.msra.mxu0 %v3619
        %4189 = vmatprep.subr.mxu0 %v3618
        %4190 = vmatpush2.msra.mxu0 %v3617
        %4191 = vmatprep.subr.mxu0 %v3616
        %4192 = vmatpush2.msra.mxu0 %v3615
        %4193 = vmatprep.subr.mxu0 %v3614
        %4194 = vmatpush2.msra.mxu0 %v3613
        %4195 = vmatprep.subr.mxu0 %v3612
        %4196 = vmatpush2.msra.mxu0 %v3611
        %4197 = vmatprep.subr.mxu0 %v3610
        %4198 = vmatpush2.msra.mxu0 %v3609
        %4199 = vmatprep.subr.mxu0 %v3608
        %4200 = vmatpush2.msra.mxu0 %v3607
        %4201 = vmatprep.subr.mxu0 %v3606
        %4202 = vmatpush2.msra.mxu0 %v3605
        %4203 = vmatprep.subr.mxu0 %v3604
        %4204 = vmatpush2.msra.mxu0 %v3603
        %4205 = vmatprep.subr.mxu0 %v3602
        %4206 = vmatpush2.msra.mxu0 %v3601
        %4207 = vmatprep.subr.mxu0 %v3600
        %4208 = vmatpush2.msra.mxu0 %v3599
        %4209 = vmatprep.subr.mxu0 %v3598
        %4210 = vmatpush2.msra.mxu0 %v3597
        %4211 = vmatprep.mubr.f32.mxu0 %v3955
        %4212 = vmatmul.mubr.f32.gmra.mxu0 %v3954
        %v4213 = vpop.f32.mrf.mxu0
        %v4214 = vadd.f32 %v4137, %v4213
        %v4215 = vpop.f32.mrf.mxu0
        %v4216 = vadd.f32 %v4139, %v4215
        %4217 = vmatprep.mubr.f32.mxu0 %v3971
        %4218 = vmatmul.mubr.f32.gmra.mxu0 %v3970
        %v4219 = vpop.f32.mrf.mxu0
        %v4220 = vadd.f32 %v4143, %v4219
        %v4221 = vpop.f32.mrf.mxu0
        %v4222 = vadd.f32 %v4145, %v4221
        %4223 = vdwg.mxu0
        %4224 = vmatprep.subr.mxu0 %v3660
        %4225 = vmatpush1.msra.mxu0 %v3659
        %4226 = vmatprep.subr.mxu0 %v3658
        %4227 = vmatpush1.msra.mxu0 %v3657
        %4228 = vmatprep.subr.mxu0 %v3656
        %4229 = vmatpush1.msra.mxu0 %v3655
        %4230 = vmatprep.subr.mxu0 %v3654
        %4231 = vmatpush1.msra.mxu0 %v3653
        %4232 = vmatprep.subr.mxu0 %v3652
        %4233 = vmatpush1.msra.mxu0 %v3651
        %4234 = vmatprep.subr.mxu0 %v3650
        %4235 = vmatpush1.msra.mxu0 %v3649
        %4236 = vmatprep.subr.mxu0 %v3648
        %4237 = vmatpush1.msra.mxu0 %v3647
        %4238 = vmatprep.subr.mxu0 %v3646
        %4239 = vmatpush1.msra.mxu0 %v3645
        %4240 = vmatprep.subr.mxu0 %v3644
        %4241 = vmatpush1.msra.mxu0 %v3643
        %4242 = vmatprep.subr.mxu0 %v3642
        %4243 = vmatpush1.msra.mxu0 %v3641
        %4244 = vmatprep.subr.mxu0 %v3640
        %4245 = vmatpush1.msra.mxu0 %v3639
        %4246 = vmatprep.subr.mxu0 %v3638
        %4247 = vmatpush1.msra.mxu0 %v3637
        %4248 = vmatprep.subr.mxu0 %v3636
        %4249 = vmatpush1.msra.mxu0 %v3635
        %4250 = vmatprep.subr.mxu0 %v3634
        %4251 = vmatpush1.msra.mxu0 %v3633
        %4252 = vmatprep.subr.mxu0 %v3632
        %4253 = vmatpush1.msra.mxu0 %v3631
        %4254 = vmatprep.subr.mxu0 %v3630
        %4255 = vmatpush1.msra.mxu0 %v3629
        %4256 = vmatprep.subr.mxu0 %v3692
        %4257 = vmatpush2.msra.mxu0 %v3691
        %4258 = vmatprep.subr.mxu0 %v3690
        %4259 = vmatpush2.msra.mxu0 %v3689
        %4260 = vmatprep.subr.mxu0 %v3688
        %4261 = vmatpush2.msra.mxu0 %v3687
        %4262 = vmatprep.subr.mxu0 %v3686
        %4263 = vmatpush2.msra.mxu0 %v3685
        %4264 = vmatprep.subr.mxu0 %v3684
        %4265 = vmatpush2.msra.mxu0 %v3683
        %4266 = vmatprep.subr.mxu0 %v3682
        %4267 = vmatpush2.msra.mxu0 %v3681
        %4268 = vmatprep.subr.mxu0 %v3680
        %4269 = vmatpush2.msra.mxu0 %v3679
        %4270 = vmatprep.subr.mxu0 %v3678
        %4271 = vmatpush2.msra.mxu0 %v3677
        %4272 = vmatprep.subr.mxu0 %v3676
        %4273 = vmatpush2.msra.mxu0 %v3675
        %4274 = vmatprep.subr.mxu0 %v3674
        %4275 = vmatpush2.msra.mxu0 %v3673
        %4276 = vmatprep.subr.mxu0 %v3672
        %4277 = vmatpush2.msra.mxu0 %v3671
        %4278 = vmatprep.subr.mxu0 %v3670
        %4279 = vmatpush2.msra.mxu0 %v3669
        %4280 = vmatprep.subr.mxu0 %v3668
        %4281 = vmatpush2.msra.mxu0 %v3667
        %4282 = vmatprep.subr.mxu0 %v3666
        %4283 = vmatpush2.msra.mxu0 %v3665
        %4284 = vmatprep.subr.mxu0 %v3664
        %4285 = vmatpush2.msra.mxu0 %v3663
        %4286 = vmatprep.subr.mxu0 %v3662
        %4287 = vmatpush2.msra.mxu0 %v3661
        %4288 = vmatprep.mubr.f32.mxu0 %v3957
        %4289 = vmatmul.mubr.f32.gmra.mxu0 %v3956
        %v4290 = vpop.f32.mrf.mxu0
        %v4291 = vadd.f32 %v4214, %v4290
        %v4292 = vpop.f32.mrf.mxu0
        %v4293 = vadd.f32 %v4216, %v4292
        %4294 = vmatprep.mubr.f32.mxu0 %v3973
        %4295 = vmatmul.mubr.f32.gmra.mxu0 %v3972
        %v4296 = vpop.f32.mrf.mxu0
        %v4297 = vadd.f32 %v4220, %v4296
        %v4298 = vpop.f32.mrf.mxu0
        %v4299 = vadd.f32 %v4222, %v4298
        %4300 = vdwg.mxu0
        %4301 = vmatprep.subr.mxu0 %v3724
        %4302 = vmatpush1.msra.mxu0 %v3723
        %4303 = vmatprep.subr.mxu0 %v3722
        %4304 = vmatpush1.msra.mxu0 %v3721
        %4305 = vmatprep.subr.mxu0 %v3720
        %4306 = vmatpush1.msra.mxu0 %v3719
        %4307 = vmatprep.subr.mxu0 %v3718
        %4308 = vmatpush1.msra.mxu0 %v3717
        %4309 = vmatprep.subr.mxu0 %v3716
        %4310 = vmatpush1.msra.mxu0 %v3715
        %4311 = vmatprep.subr.mxu0 %v3714
        %4312 = vmatpush1.msra.mxu0 %v3713
        %4313 = vmatprep.subr.mxu0 %v3712
        %4314 = vmatpush1.msra.mxu0 %v3711
        %4315 = vmatprep.subr.mxu0 %v3710
        %4316 = vmatpush1.msra.mxu0 %v3709
        %4317 = vmatprep.subr.mxu0 %v3708
        %4318 = vmatpush1.msra.mxu0 %v3707
        %4319 = vmatprep.subr.mxu0 %v3706
        %4320 = vmatpush1.msra.mxu0 %v3705
        %4321 = vmatprep.subr.mxu0 %v3704
        %4322 = vmatpush1.msra.mxu0 %v3703
        %4323 = vmatprep.subr.mxu0 %v3702
        %4324 = vmatpush1.msra.mxu0 %v3701
        %4325 = vmatprep.subr.mxu0 %v3700
        %4326 = vmatpush1.msra.mxu0 %v3699
        %4327 = vmatprep.subr.mxu0 %v3698
        %4328 = vmatpush1.msra.mxu0 %v3697
        %4329 = vmatprep.subr.mxu0 %v3696
        %4330 = vmatpush1.msra.mxu0 %v3695
        %4331 = vmatprep.subr.mxu0 %v3694
        %4332 = vmatpush1.msra.mxu0 %v3693
        %4333 = vmatprep.subr.mxu0 %v3756
        %4334 = vmatpush2.msra.mxu0 %v3755
        %4335 = vmatprep.subr.mxu0 %v3754
        %4336 = vmatpush2.msra.mxu0 %v3753
        %4337 = vmatprep.subr.mxu0 %v3752
        %4338 = vmatpush2.msra.mxu0 %v3751
        %4339 = vmatprep.subr.mxu0 %v3750
        %4340 = vmatpush2.msra.mxu0 %v3749
        %4341 = vmatprep.subr.mxu0 %v3748
        %4342 = vmatpush2.msra.mxu0 %v3747
        %4343 = vmatprep.subr.mxu0 %v3746
        %4344 = vmatpush2.msra.mxu0 %v3745
        %4345 = vmatprep.subr.mxu0 %v3744
        %4346 = vmatpush2.msra.mxu0 %v3743
        %4347 = vmatprep.subr.mxu0 %v3742
        %4348 = vmatpush2.msra.mxu0 %v3741
        %4349 = vmatprep.subr.mxu0 %v3740
        %4350 = vmatpush2.msra.mxu0 %v3739
        %4351 = vmatprep.subr.mxu0 %v3738
        %4352 = vmatpush2.msra.mxu0 %v3737
        %4353 = vmatprep.subr.mxu0 %v3736
        %4354 = vmatpush2.msra.mxu0 %v3735
        %4355 = vmatprep.subr.mxu0 %v3734
        %4356 = vmatpush2.msra.mxu0 %v3733
        %4357 = vmatprep.subr.mxu0 %v3732
        %4358 = vmatpush2.msra.mxu0 %v3731
        %4359 = vmatprep.subr.mxu0 %v3730
        %4360 = vmatpush2.msra.mxu0 %v3729
        %4361 = vmatprep.subr.mxu0 %v3728
        %4362 = vmatpush2.msra.mxu0 %v3727
        %4363 = vmatprep.subr.mxu0 %v3726
        %4364 = vmatpush2.msra.mxu0 %v3725
        %4365 = vmatprep.mubr.f32.mxu0 %v3959
        %4366 = vmatmul.mubr.f32.gmra.mxu0 %v3958
        %v4367 = vpop.f32.mrf.mxu0
        %v4368 = vadd.f32 %v4291, %v4367
        %v4369 = vpop.f32.mrf.mxu0
        %v4370 = vadd.f32 %v4293, %v4369
        %4371 = vmatprep.mubr.f32.mxu0 %v3975
        %4372 = vmatmul.mubr.f32.gmra.mxu0 %v3974
        %v4373 = vpop.f32.mrf.mxu0
        %v4374 = vadd.f32 %v4297, %v4373
        %v4375 = vpop.f32.mrf.mxu0
        %v4376 = vadd.f32 %v4299, %v4375
        %4377 = vdwg.mxu0
        %4378 = vmatprep.subr.mxu0 %v3788
        %4379 = vmatpush1.msra.mxu0 %v3787
        %4380 = vmatprep.subr.mxu0 %v3786
        %4381 = vmatpush1.msra.mxu0 %v3785
        %4382 = vmatprep.subr.mxu0 %v3784
        %4383 = vmatpush1.msra.mxu0 %v3783
        %4384 = vmatprep.subr.mxu0 %v3782
        %4385 = vmatpush1.msra.mxu0 %v3781
        %4386 = vmatprep.subr.mxu0 %v3780
        %4387 = vmatpush1.msra.mxu0 %v3779
        %4388 = vmatprep.subr.mxu0 %v3778
        %4389 = vmatpush1.msra.mxu0 %v3777
        %4390 = vmatprep.subr.mxu0 %v3776
        %4391 = vmatpush1.msra.mxu0 %v3775
        %4392 = vmatprep.subr.mxu0 %v3774
        %4393 = vmatpush1.msra.mxu0 %v3773
        %4394 = vmatprep.subr.mxu0 %v3772
        %4395 = vmatpush1.msra.mxu0 %v3771
        %4396 = vmatprep.subr.mxu0 %v3770
        %4397 = vmatpush1.msra.mxu0 %v3769
        %4398 = vmatprep.subr.mxu0 %v3768
        %4399 = vmatpush1.msra.mxu0 %v3767
        %4400 = vmatprep.subr.mxu0 %v3766
        %4401 = vmatpush1.msra.mxu0 %v3765
        %4402 = vmatprep.subr.mxu0 %v3764
        %4403 = vmatpush1.msra.mxu0 %v3763
        %4404 = vmatprep.subr.mxu0 %v3762
        %4405 = vmatpush1.msra.mxu0 %v3761
        %4406 = vmatprep.subr.mxu0 %v3760
        %4407 = vmatpush1.msra.mxu0 %v3759
        %4408 = vmatprep.subr.mxu0 %v3758
        %4409 = vmatpush1.msra.mxu0 %v3757
        %4410 = vmatprep.subr.mxu0 %v3820
        %4411 = vmatpush2.msra.mxu0 %v3819
        %4412 = vmatprep.subr.mxu0 %v3818
        %4413 = vmatpush2.msra.mxu0 %v3817
        %4414 = vmatprep.subr.mxu0 %v3816
        %4415 = vmatpush2.msra.mxu0 %v3815
        %4416 = vmatprep.subr.mxu0 %v3814
        %4417 = vmatpush2.msra.mxu0 %v3813
        %4418 = vmatprep.subr.mxu0 %v3812
        %4419 = vmatpush2.msra.mxu0 %v3811
        %4420 = vmatprep.subr.mxu0 %v3810
        %4421 = vmatpush2.msra.mxu0 %v3809
        %4422 = vmatprep.subr.mxu0 %v3808
        %4423 = vmatpush2.msra.mxu0 %v3807
        %4424 = vmatprep.subr.mxu0 %v3806
        %4425 = vmatpush2.msra.mxu0 %v3805
        %4426 = vmatprep.subr.mxu0 %v3804
        %4427 = vmatpush2.msra.mxu0 %v3803
        %4428 = vmatprep.subr.mxu0 %v3802
        %4429 = vmatpush2.msra.mxu0 %v3801
        %4430 = vmatprep.subr.mxu0 %v3800
        %4431 = vmatpush2.msra.mxu0 %v3799
        %4432 = vmatprep.subr.mxu0 %v3798
        %4433 = vmatpush2.msra.mxu0 %v3797
        %4434 = vmatprep.subr.mxu0 %v3796
        %4435 = vmatpush2.msra.mxu0 %v3795
        %4436 = vmatprep.subr.mxu0 %v3794
        %4437 = vmatpush2.msra.mxu0 %v3793
        %4438 = vmatprep.subr.mxu0 %v3792
        %4439 = vmatpush2.msra.mxu0 %v3791
        %4440 = vmatprep.subr.mxu0 %v3790
        %4441 = vmatpush2.msra.mxu0 %v3789
        %4442 = vmatprep.mubr.f32.mxu0 %v3961
        %4443 = vmatmul.mubr.f32.gmra.mxu0 %v3960
        %v4444 = vpop.f32.mrf.mxu0
        %v4445 = vadd.f32 %v4368, %v4444
        %v4446 = vpop.f32.mrf.mxu0
        %v4447 = vadd.f32 %v4370, %v4446
        %4448 = vmatprep.mubr.f32.mxu0 %v3977
        %4449 = vmatmul.mubr.f32.gmra.mxu0 %v3976
        %v4450 = vpop.f32.mrf.mxu0
        %v4451 = vadd.f32 %v4374, %v4450
        %v4452 = vpop.f32.mrf.mxu0
        %v4453 = vadd.f32 %v4376, %v4452
        %4454 = vdwg.mxu0
        %4455 = vmatprep.subr.mxu0 %v3852
        %4456 = vmatpush1.msra.mxu0 %v3851
        %4457 = vmatprep.subr.mxu0 %v3850
        %4458 = vmatpush1.msra.mxu0 %v3849
        %4459 = vmatprep.subr.mxu0 %v3848
        %4460 = vmatpush1.msra.mxu0 %v3847
        %4461 = vmatprep.subr.mxu0 %v3846
        %4462 = vmatpush1.msra.mxu0 %v3845
        %4463 = vmatprep.subr.mxu0 %v3844
        %4464 = vmatpush1.msra.mxu0 %v3843
        %4465 = vmatprep.subr.mxu0 %v3842
        %4466 = vmatpush1.msra.mxu0 %v3841
        %4467 = vmatprep.subr.mxu0 %v3840
        %4468 = vmatpush1.msra.mxu0 %v3839
        %4469 = vmatprep.subr.mxu0 %v3838
        %4470 = vmatpush1.msra.mxu0 %v3837
        %4471 = vmatprep.subr.mxu0 %v3836
        %4472 = vmatpush1.msra.mxu0 %v3835
        %4473 = vmatprep.subr.mxu0 %v3834
        %4474 = vmatpush1.msra.mxu0 %v3833
        %4475 = vmatprep.subr.mxu0 %v3832
        %4476 = vmatpush1.msra.mxu0 %v3831
        %4477 = vmatprep.subr.mxu0 %v3830
        %4478 = vmatpush1.msra.mxu0 %v3829
        %4479 = vmatprep.subr.mxu0 %v3828
        %4480 = vmatpush1.msra.mxu0 %v3827
        %4481 = vmatprep.subr.mxu0 %v3826
        %4482 = vmatpush1.msra.mxu0 %v3825
        %4483 = vmatprep.subr.mxu0 %v3824
        %4484 = vmatpush1.msra.mxu0 %v3823
        %4485 = vmatprep.subr.mxu0 %v3822
        %4486 = vmatpush1.msra.mxu0 %v3821
        %4487 = vmatprep.subr.mxu0 %v3884
        %4488 = vmatpush2.msra.mxu0 %v3883
        %4489 = vmatprep.subr.mxu0 %v3882
        %4490 = vmatpush2.msra.mxu0 %v3881
        %4491 = vmatprep.subr.mxu0 %v3880
        %4492 = vmatpush2.msra.mxu0 %v3879
        %4493 = vmatprep.subr.mxu0 %v3878
        %4494 = vmatpush2.msra.mxu0 %v3877
        %4495 = vmatprep.subr.mxu0 %v3876
        %4496 = vmatpush2.msra.mxu0 %v3875
        %4497 = vmatprep.subr.mxu0 %v3874
        %4498 = vmatpush2.msra.mxu0 %v3873
        %4499 = vmatprep.subr.mxu0 %v3872
        %4500 = vmatpush2.msra.mxu0 %v3871
        %4501 = vmatprep.subr.mxu0 %v3870
        %4502 = vmatpush2.msra.mxu0 %v3869
        %4503 = vmatprep.subr.mxu0 %v3868
        %4504 = vmatpush2.msra.mxu0 %v3867
        %4505 = vmatprep.subr.mxu0 %v3866
        %4506 = vmatpush2.msra.mxu0 %v3865
        %4507 = vmatprep.subr.mxu0 %v3864
        %4508 = vmatpush2.msra.mxu0 %v3863
        %4509 = vmatprep.subr.mxu0 %v3862
        %4510 = vmatpush2.msra.mxu0 %v3861
        %4511 = vmatprep.subr.mxu0 %v3860
        %4512 = vmatpush2.msra.mxu0 %v3859
        %4513 = vmatprep.subr.mxu0 %v3858
        %4514 = vmatpush2.msra.mxu0 %v3857
        %4515 = vmatprep.subr.mxu0 %v3856
        %4516 = vmatpush2.msra.mxu0 %v3855
        %4517 = vmatprep.subr.mxu0 %v3854
        %4518 = vmatpush2.msra.mxu0 %v3853
        %4519 = vmatprep.mubr.f32.mxu0 %v3963
        %4520 = vmatmul.mubr.f32.gmra.mxu0 %v3962
        %v4521 = vpop.f32.mrf.mxu0
        %v4522 = vadd.f32 %v4445, %v4521
        %v4523 = vpop.f32.mrf.mxu0
        %v4524 = vadd.f32 %v4447, %v4523
        %4525 = vmatprep.mubr.f32.mxu0 %v3979
        %4526 = vmatmul.mubr.f32.gmra.mxu0 %v3978
        %v4527 = vpop.f32.mrf.mxu0
        %v4528 = vadd.f32 %v4451, %v4527
        %v4529 = vpop.f32.mrf.mxu0
        %v4530 = vadd.f32 %v4453, %v4529
        %4531 = vdwg.mxu0
        %4532 = vmatprep.subr.mxu0 %v3916
        %4533 = vmatpush1.msra.mxu0 %v3915
        %4534 = vmatprep.subr.mxu0 %v3914
        %4535 = vmatpush1.msra.mxu0 %v3913
        %4536 = vmatprep.subr.mxu0 %v3912
        %4537 = vmatpush1.msra.mxu0 %v3911
        %4538 = vmatprep.subr.mxu0 %v3910
        %4539 = vmatpush1.msra.mxu0 %v3909
        %4540 = vmatprep.subr.mxu0 %v3908
        %4541 = vmatpush1.msra.mxu0 %v3907
        %4542 = vmatprep.subr.mxu0 %v3906
        %4543 = vmatpush1.msra.mxu0 %v3905
        %4544 = vmatprep.subr.mxu0 %v3904
        %4545 = vmatpush1.msra.mxu0 %v3903
        %4546 = vmatprep.subr.mxu0 %v3902
        %4547 = vmatpush1.msra.mxu0 %v3901
        %4548 = vmatprep.subr.mxu0 %v3900
        %4549 = vmatpush1.msra.mxu0 %v3899
        %4550 = vmatprep.subr.mxu0 %v3898
        %4551 = vmatpush1.msra.mxu0 %v3897
        %4552 = vmatprep.subr.mxu0 %v3896
        %4553 = vmatpush1.msra.mxu0 %v3895
        %4554 = vmatprep.subr.mxu0 %v3894
        %4555 = vmatpush1.msra.mxu0 %v3893
        %4556 = vmatprep.subr.mxu0 %v3892
        %4557 = vmatpush1.msra.mxu0 %v3891
        %4558 = vmatprep.subr.mxu0 %v3890
        %4559 = vmatpush1.msra.mxu0 %v3889
        %4560 = vmatprep.subr.mxu0 %v3888
        %4561 = vmatpush1.msra.mxu0 %v3887
        %4562 = vmatprep.subr.mxu0 %v3886
        %4563 = vmatpush1.msra.mxu0 %v3885
        %4564 = vmatprep.subr.mxu0 %v3948
        %4565 = vmatpush2.msra.mxu0 %v3947
        %4566 = vmatprep.subr.mxu0 %v3946
        %4567 = vmatpush2.msra.mxu0 %v3945
        %4568 = vmatprep.subr.mxu0 %v3944
        %4569 = vmatpush2.msra.mxu0 %v3943
        %4570 = vmatprep.subr.mxu0 %v3942
        %4571 = vmatpush2.msra.mxu0 %v3941
        %4572 = vmatprep.subr.mxu0 %v3940
        %4573 = vmatpush2.msra.mxu0 %v3939
        %4574 = vmatprep.subr.mxu0 %v3938
        %4575 = vmatpush2.msra.mxu0 %v3937
        %4576 = vmatprep.subr.mxu0 %v3936
        %4577 = vmatpush2.msra.mxu0 %v3935
        %4578 = vmatprep.subr.mxu0 %v3934
        %4579 = vmatpush2.msra.mxu0 %v3933
        %4580 = vmatprep.subr.mxu0 %v3932
        %4581 = vmatpush2.msra.mxu0 %v3931
        %4582 = vmatprep.subr.mxu0 %v3930
        %4583 = vmatpush2.msra.mxu0 %v3929
        %4584 = vmatprep.subr.mxu0 %v3928
        %4585 = vmatpush2.msra.mxu0 %v3927
        %4586 = vmatprep.subr.mxu0 %v3926
        %4587 = vmatpush2.msra.mxu0 %v3925
        %4588 = vmatprep.subr.mxu0 %v3924
        %4589 = vmatpush2.msra.mxu0 %v3923
        %4590 = vmatprep.subr.mxu0 %v3922
        %4591 = vmatpush2.msra.mxu0 %v3921
        %4592 = vmatprep.subr.mxu0 %v3920
        %4593 = vmatpush2.msra.mxu0 %v3919
        %4594 = vmatprep.subr.mxu0 %v3918
        %4595 = vmatpush2.msra.mxu0 %v3917
        %4596 = vmatprep.mubr.f32.mxu0 %v3965
        %4597 = vmatmul.mubr.f32.gmra.mxu0 %v3964
        %v4598 = vpop.f32.mrf.mxu0
        %v4599 = vadd.f32 %v4522, %v4598
        %v4600 = vpop.f32.mrf.mxu0
        %v4601 = vadd.f32 %v4524, %v4600
        %4602 = vmatprep.mubr.f32.mxu0 %v3981
        %4603 = vmatmul.mubr.f32.gmra.mxu0 %v3980
        %v4604 = vpop.f32.mrf.mxu0
        %v4605 = vadd.f32 %v4528, %v4604
        %v4606 = vpop.f32.mrf.mxu0
        %v4607 = vadd.f32 %v4530, %v4606
        %4608 = vdwg.mxu0
        %4609 = vmatprep.subr.mxu0 0.0
        %4610 = vmatpush1.xpose.msra.mxu0 0.0
        %4611 = vmatprep.subr.mxu0 0.0
        %4612 = vmatpush1.xpose.msra.mxu0 0.0
        %4613 = vmatprep.subr.mxu0 0.0
        %4614 = vmatpush1.xpose.msra.mxu0 0.0
        %4615 = vmatprep.subr.mxu0 0.0
        %4616 = vmatpush1.xpose.msra.mxu0 0.0
        %4617 = vmatprep.subr.mxu0 0.0
        %4618 = vmatpush1.xpose.msra.mxu0 0.0
        %4619 = vmatprep.subr.mxu0 0.0
        %4620 = vmatpush1.xpose.msra.mxu0 0.0
        %4621 = vmatprep.subr.mxu0 0.0
        %4622 = vmatpush1.xpose.msra.mxu0 0.0
        %4623 = vmatprep.subr.mxu0 0.0
        %4624 = vmatpush1.xpose.msra.mxu0 0.0
        %4625 = vmatprep.subr.mxu0 0.0
        %4626 = vmatpush1.xpose.msra.mxu0 0.0
        %4627 = vmatprep.subr.mxu0 0.0
        %4628 = vmatpush1.xpose.msra.mxu0 0.0
        %4629 = vmatprep.subr.mxu0 0.0
        %4630 = vmatpush1.xpose.msra.mxu0 0.0
        %4631 = vmatprep.subr.mxu0 0.0
        %4632 = vmatpush1.xpose.msra.mxu0 0.0
        %4633 = vmatprep.subr.mxu0 0.0
        %4634 = vmatpush1.xpose.msra.mxu0 0.0
        %4635 = vmatprep.subr.mxu0 0.0
        %4636 = vmatpush1.xpose.msra.mxu0 0.0
        %4637 = vmatprep.subr.mxu0 0.0
        %4638 = vmatpush1.xpose.msra.mxu0 0.0
        %4639 = vmatprep.subr.mxu0 %v3173
        %4640 = vmatpush1.xpose.msra.mxu0 %v3171
        %4641 = vmatprep.subr.mxu0 0.0
        %4642 = vmatpush2.xpose.msra.mxu0 0.0
        %4643 = vmatprep.subr.mxu0 0.0
        %4644 = vmatpush2.xpose.msra.mxu0 0.0
        %4645 = vmatprep.subr.mxu0 0.0
        %4646 = vmatpush2.xpose.msra.mxu0 0.0
        %4647 = vmatprep.subr.mxu0 0.0
        %4648 = vmatpush2.xpose.msra.mxu0 0.0
        %4649 = vmatprep.subr.mxu0 0.0
        %4650 = vmatpush2.xpose.msra.mxu0 0.0
        %4651 = vmatprep.subr.mxu0 0.0
        %4652 = vmatpush2.xpose.msra.mxu0 0.0
        %4653 = vmatprep.subr.mxu0 0.0
        %4654 = vmatpush2.xpose.msra.mxu0 0.0
        %4655 = vmatprep.subr.mxu0 0.0
        %4656 = vmatpush2.xpose.msra.mxu0 0.0
        %4657 = vmatprep.subr.mxu0 0.0
        %4658 = vmatpush2.xpose.msra.mxu0 0.0
        %4659 = vmatprep.subr.mxu0 0.0
        %4660 = vmatpush2.xpose.msra.mxu0 0.0
        %4661 = vmatprep.subr.mxu0 0.0
        %4662 = vmatpush2.xpose.msra.mxu0 0.0
        %4663 = vmatprep.subr.mxu0 0.0
        %4664 = vmatpush2.xpose.msra.mxu0 0.0
        %4665 = vmatprep.subr.mxu0 0.0
        %4666 = vmatpush2.xpose.msra.mxu0 0.0
        %4667 = vmatprep.subr.mxu0 0.0
        %4668 = vmatpush2.xpose.msra.mxu0 0.0
        %4669 = vmatprep.subr.mxu0 0.0
        %4670 = vmatpush2.xpose.msra.mxu0 0.0
        %4671 = vmatprep.subr.mxu0 0.0
        %4672 = vmatpush2.xpose.msra.mxu0 0.0
        %4673 = vmatprep.mubr.f32.mxu0 %v1745
        %4674 = vmatmul.mubr.f32.gmra.mxu0 %v1743
        %v4675 = vpop.f32.mrf.mxu0
        %v4676 = vadd.f32 0.0, %v4675
        %v4677 = vpop.f32.mrf.mxu0
        %4678 = vdwg.mxu0
        %4679 = vmatprep.subr.mxu0 0.0
        %4680 = vmatpush1.xpose.msra.mxu0 0.0
        %4681 = vmatprep.subr.mxu0 0.0
        %4682 = vmatpush1.xpose.msra.mxu0 0.0
        %4683 = vmatprep.subr.mxu0 0.0
        %4684 = vmatpush1.xpose.msra.mxu0 0.0
        %4685 = vmatprep.subr.mxu0 0.0
        %4686 = vmatpush1.xpose.msra.mxu0 0.0
        %4687 = vmatprep.subr.mxu0 0.0
        %4688 = vmatpush1.xpose.msra.mxu0 0.0
        %4689 = vmatprep.subr.mxu0 0.0
        %4690 = vmatpush1.xpose.msra.mxu0 0.0
        %4691 = vmatprep.subr.mxu0 0.0
        %4692 = vmatpush1.xpose.msra.mxu0 0.0
        %4693 = vmatprep.subr.mxu0 0.0
        %4694 = vmatpush1.xpose.msra.mxu0 0.0
        %4695 = vmatprep.subr.mxu0 0.0
        %4696 = vmatpush1.xpose.msra.mxu0 0.0
        %4697 = vmatprep.subr.mxu0 0.0
        %4698 = vmatpush1.xpose.msra.mxu0 0.0
        %4699 = vmatprep.subr.mxu0 0.0
        %4700 = vmatpush1.xpose.msra.mxu0 0.0
        %4701 = vmatprep.subr.mxu0 0.0
        %4702 = vmatpush1.xpose.msra.mxu0 0.0
        %4703 = vmatprep.subr.mxu0 0.0
        %4704 = vmatpush1.xpose.msra.mxu0 0.0
        %4705 = vmatprep.subr.mxu0 0.0
        %4706 = vmatpush1.xpose.msra.mxu0 0.0
        %4707 = vmatprep.subr.mxu0 0.0
        %4708 = vmatpush1.xpose.msra.mxu0 0.0
        %4709 = vmatprep.subr.mxu0 %v3179
        %4710 = vmatpush1.xpose.msra.mxu0 %v3177
        %4711 = vmatprep.subr.mxu0 0.0
        %4712 = vmatpush2.xpose.msra.mxu0 0.0
        %4713 = vmatprep.subr.mxu0 0.0
        %4714 = vmatpush2.xpose.msra.mxu0 0.0
        %4715 = vmatprep.subr.mxu0 0.0
        %4716 = vmatpush2.xpose.msra.mxu0 0.0
        %4717 = vmatprep.subr.mxu0 0.0
        %4718 = vmatpush2.xpose.msra.mxu0 0.0
        %4719 = vmatprep.subr.mxu0 0.0
        %4720 = vmatpush2.xpose.msra.mxu0 0.0
        %4721 = vmatprep.subr.mxu0 0.0
        %4722 = vmatpush2.xpose.msra.mxu0 0.0
        %4723 = vmatprep.subr.mxu0 0.0
        %4724 = vmatpush2.xpose.msra.mxu0 0.0
        %4725 = vmatprep.subr.mxu0 0.0
        %4726 = vmatpush2.xpose.msra.mxu0 0.0
        %4727 = vmatprep.subr.mxu0 0.0
        %4728 = vmatpush2.xpose.msra.mxu0 0.0
        %4729 = vmatprep.subr.mxu0 0.0
        %4730 = vmatpush2.xpose.msra.mxu0 0.0
        %4731 = vmatprep.subr.mxu0 0.0
        %4732 = vmatpush2.xpose.msra.mxu0 0.0
        %4733 = vmatprep.subr.mxu0 0.0
        %4734 = vmatpush2.xpose.msra.mxu0 0.0
        %4735 = vmatprep.subr.mxu0 0.0
        %4736 = vmatpush2.xpose.msra.mxu0 0.0
        %4737 = vmatprep.subr.mxu0 0.0
        %4738 = vmatpush2.xpose.msra.mxu0 0.0
        %4739 = vmatprep.subr.mxu0 0.0
        %4740 = vmatpush2.xpose.msra.mxu0 0.0
        %4741 = vmatprep.subr.mxu0 0.0
        %4742 = vmatpush2.xpose.msra.mxu0 0.0
        %4743 = vmatprep.mubr.f32.mxu0 %v1751
        %4744 = vmatmul.mubr.f32.gmra.mxu0 %v1749
        %v4745 = vpop.f32.mrf.mxu0
        %v4746 = vadd.f32 0.0, %v4745
        %v4747 = vpop.f32.mrf.mxu0
        %4748 = vdwg.mxu0
        %v4749 = vmul.f32 %v4676, 0.0625
        %v4750 = vmul.f32 %v4746, 0.0625
        %vm4751 = vcmask 64512
        %v4752 = vsel %vm4751, %v4749, -inf
        %4753 = vmax.xlane.f32.xlu0 %v4752
        %v4754 = vpop.xlane.xlu0 %4753
        %v4755 = vsel %vm4751, %v4750, -inf
        %4756 = vmax.xlane.f32.xlu0 %v4755
        %v4757 = vpop.xlane.xlu0 %4756
        %v4758 = vsub.f32 %v4749, %v4754
        %v4759 = vsub.f32 %v4750, %v4757
        %v4760 = vmul.f32 %v4758, 1.442695
        %v4761 = vpow.pop %v4760
        %v4762 = vmul.f32 %v4759, 1.442695
        %v4763 = vpow.pop %v4762
        %v4764 = vsel %vm4751, %v4761, 0.0
        %4765 = vadd.xlane.f32.xlu0 %v4764
        %v4766 = vpop.xlane.xlu0 %4765
        %v4767 = vsel %vm4751, %v4763, 0.0
        %4768 = vadd.xlane.f32.xlu0 %v4767
        %v4769 = vpop.xlane.xlu0 %4768
        %v4770 = vrcp.pop %v4766
        %v4771 = vmul.f32 %v4761, %v4770
        %v4772 = vrcp.pop %v4769
        %v4773 = vmul.f32 %v4763, %v4772
        %v4775 = vsel %vm4751, %v4771, 0
        %4777 = vmatprep.subr.mxu0 0.0
        %4778 = vmatpush1.msra.mxu0 0.0
        %4779 = vmatprep.subr.mxu0 0.0
        %4780 = vmatpush1.msra.mxu0 0.0
        %4781 = vmatprep.subr.mxu0 0.0
        %4782 = vmatpush1.msra.mxu0 0.0
        %4783 = vmatprep.subr.mxu0 0.0
        %4784 = vmatpush1.msra.mxu0 0.0
        %4785 = vmatprep.subr.mxu0 0.0
        %4786 = vmatpush1.msra.mxu0 0.0
        %4787 = vmatprep.subr.mxu0 0.0
        %4788 = vmatpush1.msra.mxu0 0.0
        %4789 = vmatprep.subr.mxu0 0.0
        %4790 = vmatpush1.msra.mxu0 0.0
        %4791 = vmatprep.subr.mxu0 0.0
        %4792 = vmatpush1.msra.mxu0 0.0
        %4793 = vmatprep.subr.mxu0 0.0
        %4794 = vmatpush1.msra.mxu0 0.0
        %4795 = vmatprep.subr.mxu0 0.0
        %4796 = vmatpush1.msra.mxu0 0.0
        %4797 = vmatprep.subr.mxu0 0.0
        %4798 = vmatpush1.msra.mxu0 0.0
        %4799 = vmatprep.subr.mxu0 0.0
        %4800 = vmatpush1.msra.mxu0 0.0
        %4801 = vmatprep.subr.mxu0 0.0
        %4802 = vmatpush1.msra.mxu0 0.0
        %4803 = vmatprep.subr.mxu0 0.0
        %4804 = vmatpush1.msra.mxu0 0.0
        %4805 = vmatprep.subr.mxu0 0.0
        %4806 = vmatpush1.msra.mxu0 0.0
        %4807 = vmatprep.subr.mxu0 %v4601
        %4808 = vmatpush1.msra.mxu0 %v4599
        %4809 = vmatprep.subr.mxu0 0.0
        %4810 = vmatpush2.msra.mxu0 0.0
        %4811 = vmatprep.subr.mxu0 0.0
        %4812 = vmatpush2.msra.mxu0 0.0
        %4813 = vmatprep.subr.mxu0 0.0
        %4814 = vmatpush2.msra.mxu0 0.0
        %4815 = vmatprep.subr.mxu0 0.0
        %4816 = vmatpush2.msra.mxu0 0.0
        %4817 = vmatprep.subr.mxu0 0.0
        %4818 = vmatpush2.msra.mxu0 0.0
        %4819 = vmatprep.subr.mxu0 0.0
        %4820 = vmatpush2.msra.mxu0 0.0
        %4821 = vmatprep.subr.mxu0 0.0
        %4822 = vmatpush2.msra.mxu0 0.0
        %4823 = vmatprep.subr.mxu0 0.0
        %4824 = vmatpush2.msra.mxu0 0.0
        %4825 = vmatprep.subr.mxu0 0.0
        %4826 = vmatpush2.msra.mxu0 0.0
        %4827 = vmatprep.subr.mxu0 0.0
        %4828 = vmatpush2.msra.mxu0 0.0
        %4829 = vmatprep.subr.mxu0 0.0
        %4830 = vmatpush2.msra.mxu0 0.0
        %4831 = vmatprep.subr.mxu0 0.0
        %4832 = vmatpush2.msra.mxu0 0.0
        %4833 = vmatprep.subr.mxu0 0.0
        %4834 = vmatpush2.msra.mxu0 0.0
        %4835 = vmatprep.subr.mxu0 0.0
        %4836 = vmatpush2.msra.mxu0 0.0
        %4837 = vmatprep.subr.mxu0 0.0
        %4838 = vmatpush2.msra.mxu0 0.0
        %4839 = vmatprep.subr.mxu0 0.0
        %4840 = vmatpush2.msra.mxu0 0.0
        %4841 = vmatprep.mubr.f32.mxu0 0.0
        %4842 = vmatmul.mubr.f32.gmra.mxu0 %v4775
        %v4843 = vpop.f32.mrf.mxu0
        %v4844 = vadd.f32 0.0, %v4843
        %v4845 = vpop.f32.mrf.mxu0
        %v4846 = vadd.f32 0.0, %v4845
        %4847 = vdwg.mxu0
        %v4849 = vsel %vm4751, %v4773, 0
        %4851 = vmatprep.subr.mxu0 0.0
        %4852 = vmatpush1.msra.mxu0 0.0
        %4853 = vmatprep.subr.mxu0 0.0
        %4854 = vmatpush1.msra.mxu0 0.0
        %4855 = vmatprep.subr.mxu0 0.0
        %4856 = vmatpush1.msra.mxu0 0.0
        %4857 = vmatprep.subr.mxu0 0.0
        %4858 = vmatpush1.msra.mxu0 0.0
        %4859 = vmatprep.subr.mxu0 0.0
        %4860 = vmatpush1.msra.mxu0 0.0
        %4861 = vmatprep.subr.mxu0 0.0
        %4862 = vmatpush1.msra.mxu0 0.0
        %4863 = vmatprep.subr.mxu0 0.0
        %4864 = vmatpush1.msra.mxu0 0.0
        %4865 = vmatprep.subr.mxu0 0.0
        %4866 = vmatpush1.msra.mxu0 0.0
        %4867 = vmatprep.subr.mxu0 0.0
        %4868 = vmatpush1.msra.mxu0 0.0
        %4869 = vmatprep.subr.mxu0 0.0
        %4870 = vmatpush1.msra.mxu0 0.0
        %4871 = vmatprep.subr.mxu0 0.0
        %4872 = vmatpush1.msra.mxu0 0.0
        %4873 = vmatprep.subr.mxu0 0.0
        %4874 = vmatpush1.msra.mxu0 0.0
        %4875 = vmatprep.subr.mxu0 0.0
        %4876 = vmatpush1.msra.mxu0 0.0
        %4877 = vmatprep.subr.mxu0 0.0
        %4878 = vmatpush1.msra.mxu0 0.0
        %4879 = vmatprep.subr.mxu0 0.0
        %4880 = vmatpush1.msra.mxu0 0.0
        %4881 = vmatprep.subr.mxu0 %v4607
        %4882 = vmatpush1.msra.mxu0 %v4605
        %4883 = vmatprep.subr.mxu0 0.0
        %4884 = vmatpush2.msra.mxu0 0.0
        %4885 = vmatprep.subr.mxu0 0.0
        %4886 = vmatpush2.msra.mxu0 0.0
        %4887 = vmatprep.subr.mxu0 0.0
        %4888 = vmatpush2.msra.mxu0 0.0
        %4889 = vmatprep.subr.mxu0 0.0
        %4890 = vmatpush2.msra.mxu0 0.0
        %4891 = vmatprep.subr.mxu0 0.0
        %4892 = vmatpush2.msra.mxu0 0.0
        %4893 = vmatprep.subr.mxu0 0.0
        %4894 = vmatpush2.msra.mxu0 0.0
        %4895 = vmatprep.subr.mxu0 0.0
        %4896 = vmatpush2.msra.mxu0 0.0
        %4897 = vmatprep.subr.mxu0 0.0
        %4898 = vmatpush2.msra.mxu0 0.0
        %4899 = vmatprep.subr.mxu0 0.0
        %4900 = vmatpush2.msra.mxu0 0.0
        %4901 = vmatprep.subr.mxu0 0.0
        %4902 = vmatpush2.msra.mxu0 0.0
        %4903 = vmatprep.subr.mxu0 0.0
        %4904 = vmatpush2.msra.mxu0 0.0
        %4905 = vmatprep.subr.mxu0 0.0
        %4906 = vmatpush2.msra.mxu0 0.0
        %4907 = vmatprep.subr.mxu0 0.0
        %4908 = vmatpush2.msra.mxu0 0.0
        %4909 = vmatprep.subr.mxu0 0.0
        %4910 = vmatpush2.msra.mxu0 0.0
        %4911 = vmatprep.subr.mxu0 0.0
        %4912 = vmatpush2.msra.mxu0 0.0
        %4913 = vmatprep.subr.mxu0 0.0
        %4914 = vmatpush2.msra.mxu0 0.0
        %4915 = vmatprep.mubr.f32.mxu0 0.0
        %4916 = vmatmul.mubr.f32.gmra.mxu0 %v4849
        %v4917 = vpop.f32.mrf.mxu0
        %v4918 = vadd.f32 0.0, %v4917
        %v4919 = vpop.f32.mrf.mxu0
        %v4920 = vadd.f32 0.0, %v4919
        %4921 = vdwg.mxu0
        %4922 = vst [vmem:[%s321] sm:$0xff] %v4844
        %4923 = vst [vmem:[%s321 + $0x8] sm:$0xff] %v4846
        %4924 = vst [vmem:[%s321 + $0x20] sm:$0xff] %v4918
        %4925 = vst [vmem:[%s321 + $0x28] sm:$0xff] %v4920
        %s4926 = scalar_lea.vmem %s282, 6144 [#allocation7]
        %v4927 = vld [vmem:[%s4926] sm:$0xff]
        %v4928 = vld [vmem:[%s4926 + $0x18] sm:$0xff]
        %v4929 = vld [vmem:[%s4926 + $0x30] sm:$0xff]
        %v4930 = vld [vmem:[%s4926 + $0x48] sm:$0xff]
        %v4931 = vld [vmem:[%s4926 + $0x60] sm:$0xff]
        %v4932 = vld [vmem:[%s4926 + $0x78] sm:$0xff]
        %v4933 = vld [vmem:[%s4926 + $0x90] sm:$0xff]
        %v4934 = vld [vmem:[%s4926 + $0xa8] sm:$0xff]
        %v4935 = vld [vmem:[%s4926 + $0xc0] sm:$0xff]
        %v4936 = vld [vmem:[%s4926 + $0xd8] sm:$0xff]
        %v4937 = vld [vmem:[%s4926 + $0xf0] sm:$0xff]
        %v4938 = vld [vmem:[%s4926 + $0x108] sm:$0xff]
        %v4939 = vld [vmem:[%s4926 + $0x120] sm:$0xff]
        %v4940 = vld [vmem:[%s4926 + $0x138] sm:$0xff]
        %v4941 = vld [vmem:[%s4926 + $0x150] sm:$0xff]
        %v4942 = vld [vmem:[%s4926 + $0x168] sm:$0xff]
        %v4943 = vld [vmem:[%s4926 + $0x180] sm:$0xff]
        %v4944 = vld [vmem:[%s4926 + $0x198] sm:$0xff]
        %v4945 = vld [vmem:[%s4926 + $0x1b0] sm:$0xff]
        %v4946 = vld [vmem:[%s4926 + $0x1c8] sm:$0xff]
        %v4947 = vld [vmem:[%s4926 + $0x1e0] sm:$0xff]
        %v4948 = vld [vmem:[%s4926 + $0x1f8] sm:$0xff]
        %v4949 = vld [vmem:[%s4926 + $0x210] sm:$0xff]
        %v4950 = vld [vmem:[%s4926 + $0x228] sm:$0xff]
        %v4951 = vld [vmem:[%s4926 + $0x240] sm:$0xff]
        %v4952 = vld [vmem:[%s4926 + $0x258] sm:$0xff]
        %v4953 = vld [vmem:[%s4926 + $0x270] sm:$0xff]
        %v4954 = vld [vmem:[%s4926 + $0x288] sm:$0xff]
        %v4955 = vld [vmem:[%s4926 + $0x2a0] sm:$0xff]
        %v4956 = vld [vmem:[%s4926 + $0x2b8] sm:$0xff]
        %v4957 = vld [vmem:[%s4926 + $0x2d0] sm:$0xff]
        %v4958 = vld [vmem:[%s4926 + $0x2e8] sm:$0xff]
        %v4959 = vld [vmem:[%s4926 + $0x300] sm:$0xff]
        %v4960 = vld [vmem:[%s4926 + $0x318] sm:$0xff]
        %v4961 = vld [vmem:[%s4926 + $0x330] sm:$0xff]
        %v4962 = vld [vmem:[%s4926 + $0x348] sm:$0xff]
        %v4963 = vld [vmem:[%s4926 + $0x360] sm:$0xff]
        %v4964 = vld [vmem:[%s4926 + $0x378] sm:$0xff]
        %v4965 = vld [vmem:[%s4926 + $0x390] sm:$0xff]
        %v4966 = vld [vmem:[%s4926 + $0x3a8] sm:$0xff]
        %v4967 = vld [vmem:[%s4926 + $0x3c0] sm:$0xff]
        %v4968 = vld [vmem:[%s4926 + $0x3d8] sm:$0xff]
        %v4969 = vld [vmem:[%s4926 + $0x3f0] sm:$0xff]
        %v4970 = vld [vmem:[%s4926 + $0x408] sm:$0xff]
        %v4971 = vld [vmem:[%s4926 + $0x420] sm:$0xff]
        %v4972 = vld [vmem:[%s4926 + $0x438] sm:$0xff]
        %v4973 = vld [vmem:[%s4926 + $0x450] sm:$0xff]
        %v4974 = vld [vmem:[%s4926 + $0x468] sm:$0xff]
        %v4975 = vld [vmem:[%s4926 + $0x480] sm:$0xff]
        %v4976 = vld [vmem:[%s4926 + $0x498] sm:$0xff]
        %v4977 = vld [vmem:[%s4926 + $0x4b0] sm:$0xff]
        %v4978 = vld [vmem:[%s4926 + $0x4c8] sm:$0xff]
        %v4979 = vld [vmem:[%s4926 + $0x4e0] sm:$0xff]
        %v4980 = vld [vmem:[%s4926 + $0x4f8] sm:$0xff]
        %v4981 = vld [vmem:[%s4926 + $0x510] sm:$0xff]
        %v4982 = vld [vmem:[%s4926 + $0x528] sm:$0xff]
        %v4983 = vld [vmem:[%s4926 + $0x540] sm:$0xff]
        %v4984 = vld [vmem:[%s4926 + $0x558] sm:$0xff]
        %v4985 = vld [vmem:[%s4926 + $0x570] sm:$0xff]
        %v4986 = vld [vmem:[%s4926 + $0x588] sm:$0xff]
        %v4987 = vld [vmem:[%s4926 + $0x5a0] sm:$0xff]
        %v4988 = vld [vmem:[%s4926 + $0x5b8] sm:$0xff]
        %v4989 = vld [vmem:[%s4926 + $0x5d0] sm:$0xff]
        %v4990 = vld [vmem:[%s4926 + $0x5e8] sm:$0xff]
        %v4991 = vld [vmem:[%s4926 + $0x600] sm:$0xff]
        %v4992 = vld [vmem:[%s4926 + $0x618] sm:$0xff]
        %v4993 = vld [vmem:[%s4926 + $0x630] sm:$0xff]
        %v4994 = vld [vmem:[%s4926 + $0x648] sm:$0xff]
        %v4995 = vld [vmem:[%s4926 + $0x660] sm:$0xff]
        %v4996 = vld [vmem:[%s4926 + $0x678] sm:$0xff]
        %v4997 = vld [vmem:[%s4926 + $0x690] sm:$0xff]
        %v4998 = vld [vmem:[%s4926 + $0x6a8] sm:$0xff]
        %v4999 = vld [vmem:[%s4926 + $0x6c0] sm:$0xff]
        %v5000 = vld [vmem:[%s4926 + $0x6d8] sm:$0xff]
        %v5001 = vld [vmem:[%s4926 + $0x6f0] sm:$0xff]
        %v5002 = vld [vmem:[%s4926 + $0x708] sm:$0xff]
        %v5003 = vld [vmem:[%s4926 + $0x720] sm:$0xff]
        %v5004 = vld [vmem:[%s4926 + $0x738] sm:$0xff]
        %v5005 = vld [vmem:[%s4926 + $0x750] sm:$0xff]
        %v5006 = vld [vmem:[%s4926 + $0x768] sm:$0xff]
        %v5007 = vld [vmem:[%s4926 + $0x780] sm:$0xff]
        %v5008 = vld [vmem:[%s4926 + $0x798] sm:$0xff]
        %v5009 = vld [vmem:[%s4926 + $0x7b0] sm:$0xff]
        %v5010 = vld [vmem:[%s4926 + $0x7c8] sm:$0xff]
        %v5011 = vld [vmem:[%s4926 + $0x7e0] sm:$0xff]
        %v5012 = vld [vmem:[%s4926 + $0x7f8] sm:$0xff]
        %v5013 = vld [vmem:[%s4926 + $0x810] sm:$0xff]
        %v5014 = vld [vmem:[%s4926 + $0x828] sm:$0xff]
        %v5015 = vld [vmem:[%s4926 + $0x840] sm:$0xff]
        %v5016 = vld [vmem:[%s4926 + $0x858] sm:$0xff]
        %v5017 = vld [vmem:[%s4926 + $0x870] sm:$0xff]
        %v5018 = vld [vmem:[%s4926 + $0x888] sm:$0xff]
        %v5019 = vld [vmem:[%s4926 + $0x8a0] sm:$0xff]
        %v5020 = vld [vmem:[%s4926 + $0x8b8] sm:$0xff]
        %v5021 = vld [vmem:[%s4926 + $0x8d0] sm:$0xff]
        %v5022 = vld [vmem:[%s4926 + $0x8e8] sm:$0xff]
        %v5023 = vld [vmem:[%s4926 + $0x900] sm:$0xff]
        %v5024 = vld [vmem:[%s4926 + $0x918] sm:$0xff]
        %v5025 = vld [vmem:[%s4926 + $0x930] sm:$0xff]
        %v5026 = vld [vmem:[%s4926 + $0x948] sm:$0xff]
        %v5027 = vld [vmem:[%s4926 + $0x960] sm:$0xff]
        %v5028 = vld [vmem:[%s4926 + $0x978] sm:$0xff]
        %v5029 = vld [vmem:[%s4926 + $0x990] sm:$0xff]
        %v5030 = vld [vmem:[%s4926 + $0x9a8] sm:$0xff]
        %v5031 = vld [vmem:[%s4926 + $0x9c0] sm:$0xff]
        %v5032 = vld [vmem:[%s4926 + $0x9d8] sm:$0xff]
        %v5033 = vld [vmem:[%s4926 + $0x9f0] sm:$0xff]
        %v5034 = vld [vmem:[%s4926 + $0xa08] sm:$0xff]
        %v5035 = vld [vmem:[%s4926 + $0xa20] sm:$0xff]
        %v5036 = vld [vmem:[%s4926 + $0xa38] sm:$0xff]
        %v5037 = vld [vmem:[%s4926 + $0xa50] sm:$0xff]
        %v5038 = vld [vmem:[%s4926 + $0xa68] sm:$0xff]
        %v5039 = vld [vmem:[%s4926 + $0xa80] sm:$0xff]
        %v5040 = vld [vmem:[%s4926 + $0xa98] sm:$0xff]
        %v5041 = vld [vmem:[%s4926 + $0xab0] sm:$0xff]
        %v5042 = vld [vmem:[%s4926 + $0xac8] sm:$0xff]
        %v5043 = vld [vmem:[%s4926 + $0xae0] sm:$0xff]
        %v5044 = vld [vmem:[%s4926 + $0xaf8] sm:$0xff]
        %v5045 = vld [vmem:[%s4926 + $0xb10] sm:$0xff]
        %v5046 = vld [vmem:[%s4926 + $0xb28] sm:$0xff]
        %v5047 = vld [vmem:[%s4926 + $0xb40] sm:$0xff]
        %v5048 = vld [vmem:[%s4926 + $0xb58] sm:$0xff]
        %v5049 = vld [vmem:[%s4926 + $0xb70] sm:$0xff]
        %v5050 = vld [vmem:[%s4926 + $0xb88] sm:$0xff]
        %v5051 = vld [vmem:[%s4926 + $0xba0] sm:$0xff]
        %v5052 = vld [vmem:[%s4926 + $0xbb8] sm:$0xff]
        %v5053 = vld [vmem:[%s4926 + $0xbd0] sm:$0xff]
        %v5054 = vld [vmem:[%s4926 + $0xbe8] sm:$0xff]
        %v5055 = vld [vmem:[%s4926 + $0xc00] sm:$0xff]
        %v5056 = vld [vmem:[%s4926 + $0xc18] sm:$0xff]
        %v5057 = vld [vmem:[%s4926 + $0xc30] sm:$0xff]
        %v5058 = vld [vmem:[%s4926 + $0xc48] sm:$0xff]
        %v5059 = vld [vmem:[%s4926 + $0xc60] sm:$0xff]
        %v5060 = vld [vmem:[%s4926 + $0xc78] sm:$0xff]
        %v5061 = vld [vmem:[%s4926 + $0xc90] sm:$0xff]
        %v5062 = vld [vmem:[%s4926 + $0xca8] sm:$0xff]
        %v5063 = vld [vmem:[%s4926 + $0xcc0] sm:$0xff]
        %v5064 = vld [vmem:[%s4926 + $0xcd8] sm:$0xff]
        %v5065 = vld [vmem:[%s4926 + $0xcf0] sm:$0xff]
        %v5066 = vld [vmem:[%s4926 + $0xd08] sm:$0xff]
        %v5067 = vld [vmem:[%s4926 + $0xd20] sm:$0xff]
        %v5068 = vld [vmem:[%s4926 + $0xd38] sm:$0xff]
        %v5069 = vld [vmem:[%s4926 + $0xd50] sm:$0xff]
        %v5070 = vld [vmem:[%s4926 + $0xd68] sm:$0xff]
        %v5071 = vld [vmem:[%s4926 + $0xd80] sm:$0xff]
        %v5072 = vld [vmem:[%s4926 + $0xd98] sm:$0xff]
        %v5073 = vld [vmem:[%s4926 + $0xdb0] sm:$0xff]
        %v5074 = vld [vmem:[%s4926 + $0xdc8] sm:$0xff]
        %v5075 = vld [vmem:[%s4926 + $0xde0] sm:$0xff]
        %v5076 = vld [vmem:[%s4926 + $0xdf8] sm:$0xff]
        %v5077 = vld [vmem:[%s4926 + $0xe10] sm:$0xff]
        %v5078 = vld [vmem:[%s4926 + $0xe28] sm:$0xff]
        %v5079 = vld [vmem:[%s4926 + $0xe40] sm:$0xff]
        %v5080 = vld [vmem:[%s4926 + $0xe58] sm:$0xff]
        %v5081 = vld [vmem:[%s4926 + $0xe70] sm:$0xff]
        %v5082 = vld [vmem:[%s4926 + $0xe88] sm:$0xff]
        %v5083 = vld [vmem:[%s4926 + $0xea0] sm:$0xff]
        %v5084 = vld [vmem:[%s4926 + $0xeb8] sm:$0xff]
        %v5085 = vld [vmem:[%s4926 + $0xed0] sm:$0xff]
        %v5086 = vld [vmem:[%s4926 + $0xee8] sm:$0xff]
        %v5087 = vld [vmem:[%s4926 + $0xf00] sm:$0xff]
        %v5088 = vld [vmem:[%s4926 + $0xf18] sm:$0xff]
        %v5089 = vld [vmem:[%s4926 + $0xf30] sm:$0xff]
        %v5090 = vld [vmem:[%s4926 + $0xf48] sm:$0xff]
        %v5091 = vld [vmem:[%s4926 + $0xf60] sm:$0xff]
        %v5092 = vld [vmem:[%s4926 + $0xf78] sm:$0xff]
        %v5093 = vld [vmem:[%s4926 + $0xf90] sm:$0xff]
        %v5094 = vld [vmem:[%s4926 + $0xfa8] sm:$0xff]
        %v5095 = vld [vmem:[%s4926 + $0xfc0] sm:$0xff]
        %v5096 = vld [vmem:[%s4926 + $0xfd8] sm:$0xff]
        %v5097 = vld [vmem:[%s4926 + $0xff0] sm:$0xff]
        %v5098 = vld [vmem:[%s4926 + $0x1008] sm:$0xff]
        %v5099 = vld [vmem:[%s4926 + $0x1020] sm:$0xff]
        %v5100 = vld [vmem:[%s4926 + $0x1038] sm:$0xff]
        %v5101 = vld [vmem:[%s4926 + $0x1050] sm:$0xff]
        %v5102 = vld [vmem:[%s4926 + $0x1068] sm:$0xff]
        %v5103 = vld [vmem:[%s4926 + $0x1080] sm:$0xff]
        %v5104 = vld [vmem:[%s4926 + $0x1098] sm:$0xff]
        %v5105 = vld [vmem:[%s4926 + $0x10b0] sm:$0xff]
        %v5106 = vld [vmem:[%s4926 + $0x10c8] sm:$0xff]
        %v5107 = vld [vmem:[%s4926 + $0x10e0] sm:$0xff]
        %v5108 = vld [vmem:[%s4926 + $0x10f8] sm:$0xff]
        %v5109 = vld [vmem:[%s4926 + $0x1110] sm:$0xff]
        %v5110 = vld [vmem:[%s4926 + $0x1128] sm:$0xff]
        %v5111 = vld [vmem:[%s4926 + $0x1140] sm:$0xff]
        %v5112 = vld [vmem:[%s4926 + $0x1158] sm:$0xff]
        %v5113 = vld [vmem:[%s4926 + $0x1170] sm:$0xff]
        %v5114 = vld [vmem:[%s4926 + $0x1188] sm:$0xff]
        %v5115 = vld [vmem:[%s4926 + $0x11a0] sm:$0xff]
        %v5116 = vld [vmem:[%s4926 + $0x11b8] sm:$0xff]
        %v5117 = vld [vmem:[%s4926 + $0x11d0] sm:$0xff]
        %v5118 = vld [vmem:[%s4926 + $0x11e8] sm:$0xff]
        %v5119 = vld [vmem:[%s4926 + $0x1200] sm:$0xff]
        %v5120 = vld [vmem:[%s4926 + $0x1218] sm:$0xff]
        %v5121 = vld [vmem:[%s4926 + $0x1230] sm:$0xff]
        %v5122 = vld [vmem:[%s4926 + $0x1248] sm:$0xff]
        %v5123 = vld [vmem:[%s4926 + $0x1260] sm:$0xff]
        %v5124 = vld [vmem:[%s4926 + $0x1278] sm:$0xff]
        %v5125 = vld [vmem:[%s4926 + $0x1290] sm:$0xff]
        %v5126 = vld [vmem:[%s4926 + $0x12a8] sm:$0xff]
        %v5127 = vld [vmem:[%s4926 + $0x12c0] sm:$0xff]
        %v5128 = vld [vmem:[%s4926 + $0x12d8] sm:$0xff]
        %v5129 = vld [vmem:[%s4926 + $0x12f0] sm:$0xff]
        %v5130 = vld [vmem:[%s4926 + $0x1308] sm:$0xff]
        %v5131 = vld [vmem:[%s4926 + $0x1320] sm:$0xff]
        %v5132 = vld [vmem:[%s4926 + $0x1338] sm:$0xff]
        %v5133 = vld [vmem:[%s4926 + $0x1350] sm:$0xff]
        %v5134 = vld [vmem:[%s4926 + $0x1368] sm:$0xff]
        %v5135 = vld [vmem:[%s4926 + $0x1380] sm:$0xff]
        %v5136 = vld [vmem:[%s4926 + $0x1398] sm:$0xff]
        %v5137 = vld [vmem:[%s4926 + $0x13b0] sm:$0xff]
        %v5138 = vld [vmem:[%s4926 + $0x13c8] sm:$0xff]
        %v5139 = vld [vmem:[%s4926 + $0x13e0] sm:$0xff]
        %v5140 = vld [vmem:[%s4926 + $0x13f8] sm:$0xff]
        %v5141 = vld [vmem:[%s4926 + $0x1410] sm:$0xff]
        %v5142 = vld [vmem:[%s4926 + $0x1428] sm:$0xff]
        %v5143 = vld [vmem:[%s4926 + $0x1440] sm:$0xff]
        %v5144 = vld [vmem:[%s4926 + $0x1458] sm:$0xff]
        %v5145 = vld [vmem:[%s4926 + $0x1470] sm:$0xff]
        %v5146 = vld [vmem:[%s4926 + $0x1488] sm:$0xff]
        %v5147 = vld [vmem:[%s4926 + $0x14a0] sm:$0xff]
        %v5148 = vld [vmem:[%s4926 + $0x14b8] sm:$0xff]
        %v5149 = vld [vmem:[%s4926 + $0x14d0] sm:$0xff]
        %v5150 = vld [vmem:[%s4926 + $0x14e8] sm:$0xff]
        %v5151 = vld [vmem:[%s4926 + $0x1500] sm:$0xff]
        %v5152 = vld [vmem:[%s4926 + $0x1518] sm:$0xff]
        %v5153 = vld [vmem:[%s4926 + $0x1530] sm:$0xff]
        %v5154 = vld [vmem:[%s4926 + $0x1548] sm:$0xff]
        %v5155 = vld [vmem:[%s4926 + $0x1560] sm:$0xff]
        %v5156 = vld [vmem:[%s4926 + $0x1578] sm:$0xff]
        %v5157 = vld [vmem:[%s4926 + $0x1590] sm:$0xff]
        %v5158 = vld [vmem:[%s4926 + $0x15a8] sm:$0xff]
        %v5159 = vld [vmem:[%s4926 + $0x15c0] sm:$0xff]
        %v5160 = vld [vmem:[%s4926 + $0x15d8] sm:$0xff]
        %v5161 = vld [vmem:[%s4926 + $0x15f0] sm:$0xff]
        %v5162 = vld [vmem:[%s4926 + $0x1608] sm:$0xff]
        %v5163 = vld [vmem:[%s4926 + $0x1620] sm:$0xff]
        %v5164 = vld [vmem:[%s4926 + $0x1638] sm:$0xff]
        %v5165 = vld [vmem:[%s4926 + $0x1650] sm:$0xff]
        %v5166 = vld [vmem:[%s4926 + $0x1668] sm:$0xff]
        %v5167 = vld [vmem:[%s4926 + $0x1680] sm:$0xff]
        %v5168 = vld [vmem:[%s4926 + $0x1698] sm:$0xff]
        %v5169 = vld [vmem:[%s4926 + $0x16b0] sm:$0xff]
        %v5170 = vld [vmem:[%s4926 + $0x16c8] sm:$0xff]
        %v5171 = vld [vmem:[%s4926 + $0x16e0] sm:$0xff]
        %v5172 = vld [vmem:[%s4926 + $0x16f8] sm:$0xff]
        %v5173 = vld [vmem:[%s4926 + $0x1710] sm:$0xff]
        %v5174 = vld [vmem:[%s4926 + $0x1728] sm:$0xff]
        %v5175 = vld [vmem:[%s4926 + $0x1740] sm:$0xff]
        %v5176 = vld [vmem:[%s4926 + $0x1758] sm:$0xff]
        %v5177 = vld [vmem:[%s4926 + $0x1770] sm:$0xff]
        %v5178 = vld [vmem:[%s4926 + $0x1788] sm:$0xff]
        %v5179 = vld [vmem:[%s4926 + $0x17a0] sm:$0xff]
        %v5180 = vld [vmem:[%s4926 + $0x17b8] sm:$0xff]
        %v5181 = vld [vmem:[%s4926 + $0x17d0] sm:$0xff]
        %v5182 = vld [vmem:[%s4926 + $0x17e8] sm:$0xff]
        %v5183 = vunpack.c.l.bf16 %v4927
        %v5184 = vunpack.c.h.bf16 %v4927
        %v5185 = vunpack.c.l.bf16 %v4928
        %v5186 = vunpack.c.h.bf16 %v4928
        %v5187 = vunpack.c.l.bf16 %v4929
        %v5188 = vunpack.c.h.bf16 %v4929
        %v5189 = vunpack.c.l.bf16 %v4930
        %v5190 = vunpack.c.h.bf16 %v4930
        %v5191 = vunpack.c.l.bf16 %v4931
        %v5192 = vunpack.c.h.bf16 %v4931
        %v5193 = vunpack.c.l.bf16 %v4932
        %v5194 = vunpack.c.h.bf16 %v4932
        %v5195 = vunpack.c.l.bf16 %v4933
        %v5196 = vunpack.c.h.bf16 %v4933
        %v5197 = vunpack.c.l.bf16 %v4934
        %v5198 = vunpack.c.h.bf16 %v4934
        %v5199 = vunpack.c.l.bf16 %v4935
        %v5200 = vunpack.c.h.bf16 %v4935
        %v5201 = vunpack.c.l.bf16 %v4936
        %v5202 = vunpack.c.h.bf16 %v4936
        %v5203 = vunpack.c.l.bf16 %v4937
        %v5204 = vunpack.c.h.bf16 %v4937
        %v5205 = vunpack.c.l.bf16 %v4938
        %v5206 = vunpack.c.h.bf16 %v4938
        %v5207 = vunpack.c.l.bf16 %v4939
        %v5208 = vunpack.c.h.bf16 %v4939
        %v5209 = vunpack.c.l.bf16 %v4940
        %v5210 = vunpack.c.h.bf16 %v4940
        %v5211 = vunpack.c.l.bf16 %v4941
        %v5212 = vunpack.c.h.bf16 %v4941
        %v5213 = vunpack.c.l.bf16 %v4942
        %v5214 = vunpack.c.h.bf16 %v4942
        %v5215 = vunpack.c.l.bf16 %v4943
        %v5216 = vunpack.c.h.bf16 %v4943
        %v5217 = vunpack.c.l.bf16 %v4944
        %v5218 = vunpack.c.h.bf16 %v4944
        %v5219 = vunpack.c.l.bf16 %v4945
        %v5220 = vunpack.c.h.bf16 %v4945
        %v5221 = vunpack.c.l.bf16 %v4946
        %v5222 = vunpack.c.h.bf16 %v4946
        %v5223 = vunpack.c.l.bf16 %v4947
        %v5224 = vunpack.c.h.bf16 %v4947
        %v5225 = vunpack.c.l.bf16 %v4948
        %v5226 = vunpack.c.h.bf16 %v4948
        %v5227 = vunpack.c.l.bf16 %v4949
        %v5228 = vunpack.c.h.bf16 %v4949
        %v5229 = vunpack.c.l.bf16 %v4950
        %v5230 = vunpack.c.h.bf16 %v4950
        %v5231 = vunpack.c.l.bf16 %v4951
        %v5232 = vunpack.c.h.bf16 %v4951
        %v5233 = vunpack.c.l.bf16 %v4952
        %v5234 = vunpack.c.h.bf16 %v4952
        %v5235 = vunpack.c.l.bf16 %v4953
        %v5236 = vunpack.c.h.bf16 %v4953
        %v5237 = vunpack.c.l.bf16 %v4954
        %v5238 = vunpack.c.h.bf16 %v4954
        %v5239 = vunpack.c.l.bf16 %v4955
        %v5240 = vunpack.c.h.bf16 %v4955
        %v5241 = vunpack.c.l.bf16 %v4956
        %v5242 = vunpack.c.h.bf16 %v4956
        %v5243 = vunpack.c.l.bf16 %v4957
        %v5244 = vunpack.c.h.bf16 %v4957
        %v5245 = vunpack.c.l.bf16 %v4958
        %v5246 = vunpack.c.h.bf16 %v4958
        %v5247 = vunpack.c.l.bf16 %v4959
        %v5248 = vunpack.c.h.bf16 %v4959
        %v5249 = vunpack.c.l.bf16 %v4960
        %v5250 = vunpack.c.h.bf16 %v4960
        %v5251 = vunpack.c.l.bf16 %v4961
        %v5252 = vunpack.c.h.bf16 %v4961
        %v5253 = vunpack.c.l.bf16 %v4962
        %v5254 = vunpack.c.h.bf16 %v4962
        %v5255 = vunpack.c.l.bf16 %v4963
        %v5256 = vunpack.c.h.bf16 %v4963
        %v5257 = vunpack.c.l.bf16 %v4964
        %v5258 = vunpack.c.h.bf16 %v4964
        %v5259 = vunpack.c.l.bf16 %v4965
        %v5260 = vunpack.c.h.bf16 %v4965
        %v5261 = vunpack.c.l.bf16 %v4966
        %v5262 = vunpack.c.h.bf16 %v4966
        %v5263 = vunpack.c.l.bf16 %v4967
        %v5264 = vunpack.c.h.bf16 %v4967
        %v5265 = vunpack.c.l.bf16 %v4968
        %v5266 = vunpack.c.h.bf16 %v4968
        %v5267 = vunpack.c.l.bf16 %v4969
        %v5268 = vunpack.c.h.bf16 %v4969
        %v5269 = vunpack.c.l.bf16 %v4970
        %v5270 = vunpack.c.h.bf16 %v4970
        %v5271 = vunpack.c.l.bf16 %v4971
        %v5272 = vunpack.c.h.bf16 %v4971
        %v5273 = vunpack.c.l.bf16 %v4972
        %v5274 = vunpack.c.h.bf16 %v4972
        %v5275 = vunpack.c.l.bf16 %v4973
        %v5276 = vunpack.c.h.bf16 %v4973
        %v5277 = vunpack.c.l.bf16 %v4974
        %v5278 = vunpack.c.h.bf16 %v4974
        %v5279 = vunpack.c.l.bf16 %v4975
        %v5280 = vunpack.c.h.bf16 %v4975
        %v5281 = vunpack.c.l.bf16 %v4976
        %v5282 = vunpack.c.h.bf16 %v4976
        %v5283 = vunpack.c.l.bf16 %v4977
        %v5284 = vunpack.c.h.bf16 %v4977
        %v5285 = vunpack.c.l.bf16 %v4978
        %v5286 = vunpack.c.h.bf16 %v4978
        %v5287 = vunpack.c.l.bf16 %v4979
        %v5288 = vunpack.c.h.bf16 %v4979
        %v5289 = vunpack.c.l.bf16 %v4980
        %v5290 = vunpack.c.h.bf16 %v4980
        %v5291 = vunpack.c.l.bf16 %v4981
        %v5292 = vunpack.c.h.bf16 %v4981
        %v5293 = vunpack.c.l.bf16 %v4982
        %v5294 = vunpack.c.h.bf16 %v4982
        %v5295 = vunpack.c.l.bf16 %v4983
        %v5296 = vunpack.c.h.bf16 %v4983
        %v5297 = vunpack.c.l.bf16 %v4984
        %v5298 = vunpack.c.h.bf16 %v4984
        %v5299 = vunpack.c.l.bf16 %v4985
        %v5300 = vunpack.c.h.bf16 %v4985
        %v5301 = vunpack.c.l.bf16 %v4986
        %v5302 = vunpack.c.h.bf16 %v4986
        %v5303 = vunpack.c.l.bf16 %v4987
        %v5304 = vunpack.c.h.bf16 %v4987
        %v5305 = vunpack.c.l.bf16 %v4988
        %v5306 = vunpack.c.h.bf16 %v4988
        %v5307 = vunpack.c.l.bf16 %v4989
        %v5308 = vunpack.c.h.bf16 %v4989
        %v5309 = vunpack.c.l.bf16 %v4990
        %v5310 = vunpack.c.h.bf16 %v4990
        %v5311 = vunpack.c.l.bf16 %v4991
        %v5312 = vunpack.c.h.bf16 %v4991
        %v5313 = vunpack.c.l.bf16 %v4992
        %v5314 = vunpack.c.h.bf16 %v4992
        %v5315 = vunpack.c.l.bf16 %v4993
        %v5316 = vunpack.c.h.bf16 %v4993
        %v5317 = vunpack.c.l.bf16 %v4994
        %v5318 = vunpack.c.h.bf16 %v4994
        %v5319 = vunpack.c.l.bf16 %v4995
        %v5320 = vunpack.c.h.bf16 %v4995
        %v5321 = vunpack.c.l.bf16 %v4996
        %v5322 = vunpack.c.h.bf16 %v4996
        %v5323 = vunpack.c.l.bf16 %v4997
        %v5324 = vunpack.c.h.bf16 %v4997
        %v5325 = vunpack.c.l.bf16 %v4998
        %v5326 = vunpack.c.h.bf16 %v4998
        %v5327 = vunpack.c.l.bf16 %v4999
        %v5328 = vunpack.c.h.bf16 %v4999
        %v5329 = vunpack.c.l.bf16 %v5000
        %v5330 = vunpack.c.h.bf16 %v5000
        %v5331 = vunpack.c.l.bf16 %v5001
        %v5332 = vunpack.c.h.bf16 %v5001
        %v5333 = vunpack.c.l.bf16 %v5002
        %v5334 = vunpack.c.h.bf16 %v5002
        %v5335 = vunpack.c.l.bf16 %v5003
        %v5336 = vunpack.c.h.bf16 %v5003
        %v5337 = vunpack.c.l.bf16 %v5004
        %v5338 = vunpack.c.h.bf16 %v5004
        %v5339 = vunpack.c.l.bf16 %v5005
        %v5340 = vunpack.c.h.bf16 %v5005
        %v5341 = vunpack.c.l.bf16 %v5006
        %v5342 = vunpack.c.h.bf16 %v5006
        %v5343 = vunpack.c.l.bf16 %v5007
        %v5344 = vunpack.c.h.bf16 %v5007
        %v5345 = vunpack.c.l.bf16 %v5008
        %v5346 = vunpack.c.h.bf16 %v5008
        %v5347 = vunpack.c.l.bf16 %v5009
        %v5348 = vunpack.c.h.bf16 %v5009
        %v5349 = vunpack.c.l.bf16 %v5010
        %v5350 = vunpack.c.h.bf16 %v5010
        %v5351 = vunpack.c.l.bf16 %v5011
        %v5352 = vunpack.c.h.bf16 %v5011
        %v5353 = vunpack.c.l.bf16 %v5012
        %v5354 = vunpack.c.h.bf16 %v5012
        %v5355 = vunpack.c.l.bf16 %v5013
        %v5356 = vunpack.c.h.bf16 %v5013
        %v5357 = vunpack.c.l.bf16 %v5014
        %v5358 = vunpack.c.h.bf16 %v5014
        %v5359 = vunpack.c.l.bf16 %v5015
        %v5360 = vunpack.c.h.bf16 %v5015
        %v5361 = vunpack.c.l.bf16 %v5016
        %v5362 = vunpack.c.h.bf16 %v5016
        %v5363 = vunpack.c.l.bf16 %v5017
        %v5364 = vunpack.c.h.bf16 %v5017
        %v5365 = vunpack.c.l.bf16 %v5018
        %v5366 = vunpack.c.h.bf16 %v5018
        %v5367 = vunpack.c.l.bf16 %v5019
        %v5368 = vunpack.c.h.bf16 %v5019
        %v5369 = vunpack.c.l.bf16 %v5020
        %v5370 = vunpack.c.h.bf16 %v5020
        %v5371 = vunpack.c.l.bf16 %v5021
        %v5372 = vunpack.c.h.bf16 %v5021
        %v5373 = vunpack.c.l.bf16 %v5022
        %v5374 = vunpack.c.h.bf16 %v5022
        %v5375 = vunpack.c.l.bf16 %v5023
        %v5376 = vunpack.c.h.bf16 %v5023
        %v5377 = vunpack.c.l.bf16 %v5024
        %v5378 = vunpack.c.h.bf16 %v5024
        %v5379 = vunpack.c.l.bf16 %v5025
        %v5380 = vunpack.c.h.bf16 %v5025
        %v5381 = vunpack.c.l.bf16 %v5026
        %v5382 = vunpack.c.h.bf16 %v5026
        %v5383 = vunpack.c.l.bf16 %v5027
        %v5384 = vunpack.c.h.bf16 %v5027
        %v5385 = vunpack.c.l.bf16 %v5028
        %v5386 = vunpack.c.h.bf16 %v5028
        %v5387 = vunpack.c.l.bf16 %v5029
        %v5388 = vunpack.c.h.bf16 %v5029
        %v5389 = vunpack.c.l.bf16 %v5030
        %v5390 = vunpack.c.h.bf16 %v5030
        %v5391 = vunpack.c.l.bf16 %v5031
        %v5392 = vunpack.c.h.bf16 %v5031
        %v5393 = vunpack.c.l.bf16 %v5032
        %v5394 = vunpack.c.h.bf16 %v5032
        %v5395 = vunpack.c.l.bf16 %v5033
        %v5396 = vunpack.c.h.bf16 %v5033
        %v5397 = vunpack.c.l.bf16 %v5034
        %v5398 = vunpack.c.h.bf16 %v5034
        %v5399 = vunpack.c.l.bf16 %v5035
        %v5400 = vunpack.c.h.bf16 %v5035
        %v5401 = vunpack.c.l.bf16 %v5036
        %v5402 = vunpack.c.h.bf16 %v5036
        %v5403 = vunpack.c.l.bf16 %v5037
        %v5404 = vunpack.c.h.bf16 %v5037
        %v5405 = vunpack.c.l.bf16 %v5038
        %v5406 = vunpack.c.h.bf16 %v5038
        %v5407 = vunpack.c.l.bf16 %v5039
        %v5408 = vunpack.c.h.bf16 %v5039
        %v5409 = vunpack.c.l.bf16 %v5040
        %v5410 = vunpack.c.h.bf16 %v5040
        %v5411 = vunpack.c.l.bf16 %v5041
        %v5412 = vunpack.c.h.bf16 %v5041
        %v5413 = vunpack.c.l.bf16 %v5042
        %v5414 = vunpack.c.h.bf16 %v5042
        %v5415 = vunpack.c.l.bf16 %v5043
        %v5416 = vunpack.c.h.bf16 %v5043
        %v5417 = vunpack.c.l.bf16 %v5044
        %v5418 = vunpack.c.h.bf16 %v5044
        %v5419 = vunpack.c.l.bf16 %v5045
        %v5420 = vunpack.c.h.bf16 %v5045
        %v5421 = vunpack.c.l.bf16 %v5046
        %v5422 = vunpack.c.h.bf16 %v5046
        %v5423 = vunpack.c.l.bf16 %v5047
        %v5424 = vunpack.c.h.bf16 %v5047
        %v5425 = vunpack.c.l.bf16 %v5048
        %v5426 = vunpack.c.h.bf16 %v5048
        %v5427 = vunpack.c.l.bf16 %v5049
        %v5428 = vunpack.c.h.bf16 %v5049
        %v5429 = vunpack.c.l.bf16 %v5050
        %v5430 = vunpack.c.h.bf16 %v5050
        %v5431 = vunpack.c.l.bf16 %v5051
        %v5432 = vunpack.c.h.bf16 %v5051
        %v5433 = vunpack.c.l.bf16 %v5052
        %v5434 = vunpack.c.h.bf16 %v5052
        %v5435 = vunpack.c.l.bf16 %v5053
        %v5436 = vunpack.c.h.bf16 %v5053
        %v5437 = vunpack.c.l.bf16 %v5054
        %v5438 = vunpack.c.h.bf16 %v5054
        %v5439 = vunpack.c.l.bf16 %v5055
        %v5440 = vunpack.c.h.bf16 %v5055
        %v5441 = vunpack.c.l.bf16 %v5056
        %v5442 = vunpack.c.h.bf16 %v5056
        %v5443 = vunpack.c.l.bf16 %v5057
        %v5444 = vunpack.c.h.bf16 %v5057
        %v5445 = vunpack.c.l.bf16 %v5058
        %v5446 = vunpack.c.h.bf16 %v5058
        %v5447 = vunpack.c.l.bf16 %v5059
        %v5448 = vunpack.c.h.bf16 %v5059
        %v5449 = vunpack.c.l.bf16 %v5060
        %v5450 = vunpack.c.h.bf16 %v5060
        %v5451 = vunpack.c.l.bf16 %v5061
        %v5452 = vunpack.c.h.bf16 %v5061
        %v5453 = vunpack.c.l.bf16 %v5062
        %v5454 = vunpack.c.h.bf16 %v5062
        %v5455 = vunpack.c.l.bf16 %v5063
        %v5456 = vunpack.c.h.bf16 %v5063
        %v5457 = vunpack.c.l.bf16 %v5064
        %v5458 = vunpack.c.h.bf16 %v5064
        %v5459 = vunpack.c.l.bf16 %v5065
        %v5460 = vunpack.c.h.bf16 %v5065
        %v5461 = vunpack.c.l.bf16 %v5066
        %v5462 = vunpack.c.h.bf16 %v5066
        %v5463 = vunpack.c.l.bf16 %v5067
        %v5464 = vunpack.c.h.bf16 %v5067
        %v5465 = vunpack.c.l.bf16 %v5068
        %v5466 = vunpack.c.h.bf16 %v5068
        %v5467 = vunpack.c.l.bf16 %v5069
        %v5468 = vunpack.c.h.bf16 %v5069
        %v5469 = vunpack.c.l.bf16 %v5070
        %v5470 = vunpack.c.h.bf16 %v5070
        %v5471 = vunpack.c.l.bf16 %v5071
        %v5472 = vunpack.c.h.bf16 %v5071
        %v5473 = vunpack.c.l.bf16 %v5072
        %v5474 = vunpack.c.h.bf16 %v5072
        %v5475 = vunpack.c.l.bf16 %v5073
        %v5476 = vunpack.c.h.bf16 %v5073
        %v5477 = vunpack.c.l.bf16 %v5074
        %v5478 = vunpack.c.h.bf16 %v5074
        %v5479 = vunpack.c.l.bf16 %v5075
        %v5480 = vunpack.c.h.bf16 %v5075
        %v5481 = vunpack.c.l.bf16 %v5076
        %v5482 = vunpack.c.h.bf16 %v5076
        %v5483 = vunpack.c.l.bf16 %v5077
        %v5484 = vunpack.c.h.bf16 %v5077
        %v5485 = vunpack.c.l.bf16 %v5078
        %v5486 = vunpack.c.h.bf16 %v5078
        %v5487 = vunpack.c.l.bf16 %v5079
        %v5488 = vunpack.c.h.bf16 %v5079
        %v5489 = vunpack.c.l.bf16 %v5080
        %v5490 = vunpack.c.h.bf16 %v5080
        %v5491 = vunpack.c.l.bf16 %v5081
        %v5492 = vunpack.c.h.bf16 %v5081
        %v5493 = vunpack.c.l.bf16 %v5082
        %v5494 = vunpack.c.h.bf16 %v5082
        %v5495 = vunpack.c.l.bf16 %v5083
        %v5496 = vunpack.c.h.bf16 %v5083
        %v5497 = vunpack.c.l.bf16 %v5084
        %v5498 = vunpack.c.h.bf16 %v5084
        %v5499 = vunpack.c.l.bf16 %v5085
        %v5500 = vunpack.c.h.bf16 %v5085
        %v5501 = vunpack.c.l.bf16 %v5086
        %v5502 = vunpack.c.h.bf16 %v5086
        %v5503 = vunpack.c.l.bf16 %v5087
        %v5504 = vunpack.c.h.bf16 %v5087
        %v5505 = vunpack.c.l.bf16 %v5088
        %v5506 = vunpack.c.h.bf16 %v5088
        %v5507 = vunpack.c.l.bf16 %v5089
        %v5508 = vunpack.c.h.bf16 %v5089
        %v5509 = vunpack.c.l.bf16 %v5090
        %v5510 = vunpack.c.h.bf16 %v5090
        %v5511 = vunpack.c.l.bf16 %v5091
        %v5512 = vunpack.c.h.bf16 %v5091
        %v5513 = vunpack.c.l.bf16 %v5092
        %v5514 = vunpack.c.h.bf16 %v5092
        %v5515 = vunpack.c.l.bf16 %v5093
        %v5516 = vunpack.c.h.bf16 %v5093
        %v5517 = vunpack.c.l.bf16 %v5094
        %v5518 = vunpack.c.h.bf16 %v5094
        %v5519 = vunpack.c.l.bf16 %v5095
        %v5520 = vunpack.c.h.bf16 %v5095
        %v5521 = vunpack.c.l.bf16 %v5096
        %v5522 = vunpack.c.h.bf16 %v5096
        %v5523 = vunpack.c.l.bf16 %v5097
        %v5524 = vunpack.c.h.bf16 %v5097
        %v5525 = vunpack.c.l.bf16 %v5098
        %v5526 = vunpack.c.h.bf16 %v5098
        %v5527 = vunpack.c.l.bf16 %v5099
        %v5528 = vunpack.c.h.bf16 %v5099
        %v5529 = vunpack.c.l.bf16 %v5100
        %v5530 = vunpack.c.h.bf16 %v5100
        %v5531 = vunpack.c.l.bf16 %v5101
        %v5532 = vunpack.c.h.bf16 %v5101
        %v5533 = vunpack.c.l.bf16 %v5102
        %v5534 = vunpack.c.h.bf16 %v5102
        %v5535 = vunpack.c.l.bf16 %v5103
        %v5536 = vunpack.c.h.bf16 %v5103
        %v5537 = vunpack.c.l.bf16 %v5104
        %v5538 = vunpack.c.h.bf16 %v5104
        %v5539 = vunpack.c.l.bf16 %v5105
        %v5540 = vunpack.c.h.bf16 %v5105
        %v5541 = vunpack.c.l.bf16 %v5106
        %v5542 = vunpack.c.h.bf16 %v5106
        %v5543 = vunpack.c.l.bf16 %v5107
        %v5544 = vunpack.c.h.bf16 %v5107
        %v5545 = vunpack.c.l.bf16 %v5108
        %v5546 = vunpack.c.h.bf16 %v5108
        %v5547 = vunpack.c.l.bf16 %v5109
        %v5548 = vunpack.c.h.bf16 %v5109
        %v5549 = vunpack.c.l.bf16 %v5110
        %v5550 = vunpack.c.h.bf16 %v5110
        %v5551 = vunpack.c.l.bf16 %v5111
        %v5552 = vunpack.c.h.bf16 %v5111
        %v5553 = vunpack.c.l.bf16 %v5112
        %v5554 = vunpack.c.h.bf16 %v5112
        %v5555 = vunpack.c.l.bf16 %v5113
        %v5556 = vunpack.c.h.bf16 %v5113
        %v5557 = vunpack.c.l.bf16 %v5114
        %v5558 = vunpack.c.h.bf16 %v5114
        %v5559 = vunpack.c.l.bf16 %v5115
        %v5560 = vunpack.c.h.bf16 %v5115
        %v5561 = vunpack.c.l.bf16 %v5116
        %v5562 = vunpack.c.h.bf16 %v5116
        %v5563 = vunpack.c.l.bf16 %v5117
        %v5564 = vunpack.c.h.bf16 %v5117
        %v5565 = vunpack.c.l.bf16 %v5118
        %v5566 = vunpack.c.h.bf16 %v5118
        %v5567 = vunpack.c.l.bf16 %v5119
        %v5568 = vunpack.c.h.bf16 %v5119
        %v5569 = vunpack.c.l.bf16 %v5120
        %v5570 = vunpack.c.h.bf16 %v5120
        %v5571 = vunpack.c.l.bf16 %v5121
        %v5572 = vunpack.c.h.bf16 %v5121
        %v5573 = vunpack.c.l.bf16 %v5122
        %v5574 = vunpack.c.h.bf16 %v5122
        %v5575 = vunpack.c.l.bf16 %v5123
        %v5576 = vunpack.c.h.bf16 %v5123
        %v5577 = vunpack.c.l.bf16 %v5124
        %v5578 = vunpack.c.h.bf16 %v5124
        %v5579 = vunpack.c.l.bf16 %v5125
        %v5580 = vunpack.c.h.bf16 %v5125
        %v5581 = vunpack.c.l.bf16 %v5126
        %v5582 = vunpack.c.h.bf16 %v5126
        %v5583 = vunpack.c.l.bf16 %v5127
        %v5584 = vunpack.c.h.bf16 %v5127
        %v5585 = vunpack.c.l.bf16 %v5128
        %v5586 = vunpack.c.h.bf16 %v5128
        %v5587 = vunpack.c.l.bf16 %v5129
        %v5588 = vunpack.c.h.bf16 %v5129
        %v5589 = vunpack.c.l.bf16 %v5130
        %v5590 = vunpack.c.h.bf16 %v5130
        %v5591 = vunpack.c.l.bf16 %v5131
        %v5592 = vunpack.c.h.bf16 %v5131
        %v5593 = vunpack.c.l.bf16 %v5132
        %v5594 = vunpack.c.h.bf16 %v5132
        %v5595 = vunpack.c.l.bf16 %v5133
        %v5596 = vunpack.c.h.bf16 %v5133
        %v5597 = vunpack.c.l.bf16 %v5134
        %v5598 = vunpack.c.h.bf16 %v5134
        %v5599 = vunpack.c.l.bf16 %v5135
        %v5600 = vunpack.c.h.bf16 %v5135
        %v5601 = vunpack.c.l.bf16 %v5136
        %v5602 = vunpack.c.h.bf16 %v5136
        %v5603 = vunpack.c.l.bf16 %v5137
        %v5604 = vunpack.c.h.bf16 %v5137
        %v5605 = vunpack.c.l.bf16 %v5138
        %v5606 = vunpack.c.h.bf16 %v5138
        %v5607 = vunpack.c.l.bf16 %v5139
        %v5608 = vunpack.c.h.bf16 %v5139
        %v5609 = vunpack.c.l.bf16 %v5140
        %v5610 = vunpack.c.h.bf16 %v5140
        %v5611 = vunpack.c.l.bf16 %v5141
        %v5612 = vunpack.c.h.bf16 %v5141
        %v5613 = vunpack.c.l.bf16 %v5142
        %v5614 = vunpack.c.h.bf16 %v5142
        %v5615 = vunpack.c.l.bf16 %v5143
        %v5616 = vunpack.c.h.bf16 %v5143
        %v5617 = vunpack.c.l.bf16 %v5144
        %v5618 = vunpack.c.h.bf16 %v5144
        %v5619 = vunpack.c.l.bf16 %v5145
        %v5620 = vunpack.c.h.bf16 %v5145
        %v5621 = vunpack.c.l.bf16 %v5146
        %v5622 = vunpack.c.h.bf16 %v5146
        %v5623 = vunpack.c.l.bf16 %v5147
        %v5624 = vunpack.c.h.bf16 %v5147
        %v5625 = vunpack.c.l.bf16 %v5148
        %v5626 = vunpack.c.h.bf16 %v5148
        %v5627 = vunpack.c.l.bf16 %v5149
        %v5628 = vunpack.c.h.bf16 %v5149
        %v5629 = vunpack.c.l.bf16 %v5150
        %v5630 = vunpack.c.h.bf16 %v5150
        %v5631 = vunpack.c.l.bf16 %v5151
        %v5632 = vunpack.c.h.bf16 %v5151
        %v5633 = vunpack.c.l.bf16 %v5152
        %v5634 = vunpack.c.h.bf16 %v5152
        %v5635 = vunpack.c.l.bf16 %v5153
        %v5636 = vunpack.c.h.bf16 %v5153
        %v5637 = vunpack.c.l.bf16 %v5154
        %v5638 = vunpack.c.h.bf16 %v5154
        %v5639 = vunpack.c.l.bf16 %v5155
        %v5640 = vunpack.c.h.bf16 %v5155
        %v5641 = vunpack.c.l.bf16 %v5156
        %v5642 = vunpack.c.h.bf16 %v5156
        %v5643 = vunpack.c.l.bf16 %v5157
        %v5644 = vunpack.c.h.bf16 %v5157
        %v5645 = vunpack.c.l.bf16 %v5158
        %v5646 = vunpack.c.h.bf16 %v5158
        %v5647 = vunpack.c.l.bf16 %v5159
        %v5648 = vunpack.c.h.bf16 %v5159
        %v5649 = vunpack.c.l.bf16 %v5160
        %v5650 = vunpack.c.h.bf16 %v5160
        %v5651 = vunpack.c.l.bf16 %v5161
        %v5652 = vunpack.c.h.bf16 %v5161
        %v5653 = vunpack.c.l.bf16 %v5162
        %v5654 = vunpack.c.h.bf16 %v5162
        %v5655 = vunpack.c.l.bf16 %v5163
        %v5656 = vunpack.c.h.bf16 %v5163
        %v5657 = vunpack.c.l.bf16 %v5164
        %v5658 = vunpack.c.h.bf16 %v5164
        %v5659 = vunpack.c.l.bf16 %v5165
        %v5660 = vunpack.c.h.bf16 %v5165
        %v5661 = vunpack.c.l.bf16 %v5166
        %v5662 = vunpack.c.h.bf16 %v5166
        %v5663 = vunpack.c.l.bf16 %v5167
        %v5664 = vunpack.c.h.bf16 %v5167
        %v5665 = vunpack.c.l.bf16 %v5168
        %v5666 = vunpack.c.h.bf16 %v5168
        %v5667 = vunpack.c.l.bf16 %v5169
        %v5668 = vunpack.c.h.bf16 %v5169
        %v5669 = vunpack.c.l.bf16 %v5170
        %v5670 = vunpack.c.h.bf16 %v5170
        %v5671 = vunpack.c.l.bf16 %v5171
        %v5672 = vunpack.c.h.bf16 %v5171
        %v5673 = vunpack.c.l.bf16 %v5172
        %v5674 = vunpack.c.h.bf16 %v5172
        %v5675 = vunpack.c.l.bf16 %v5173
        %v5676 = vunpack.c.h.bf16 %v5173
        %v5677 = vunpack.c.l.bf16 %v5174
        %v5678 = vunpack.c.h.bf16 %v5174
        %v5679 = vunpack.c.l.bf16 %v5175
        %v5680 = vunpack.c.h.bf16 %v5175
        %v5681 = vunpack.c.l.bf16 %v5176
        %v5682 = vunpack.c.h.bf16 %v5176
        %v5683 = vunpack.c.l.bf16 %v5177
        %v5684 = vunpack.c.h.bf16 %v5177
        %v5685 = vunpack.c.l.bf16 %v5178
        %v5686 = vunpack.c.h.bf16 %v5178
        %v5687 = vunpack.c.l.bf16 %v5179
        %v5688 = vunpack.c.h.bf16 %v5179
        %v5689 = vunpack.c.l.bf16 %v5180
        %v5690 = vunpack.c.h.bf16 %v5180
        %v5691 = vunpack.c.l.bf16 %v5181
        %v5692 = vunpack.c.h.bf16 %v5181
        %v5693 = vunpack.c.l.bf16 %v5182
        %v5694 = vunpack.c.h.bf16 %v5182
        %s5695 = scalar_lea.vmem %s291, 6 [#allocation9]
        %v5696 = vld [vmem:[%s5695] sm:$0x3]
        %v5697 = vld [vmem:[#allocation2] sm:$0xff]
        %v5698 = vld [vmem:[#allocation2 + $0x8] sm:$0xff]
        %v5699 = vld [vmem:[#allocation2 + $0x10] sm:$0xff]
        %v5700 = vld [vmem:[#allocation2 + $0x18] sm:$0xff]
        %v5701 = vld [vmem:[#allocation2 + $0x20] sm:$0xff]
        %v5702 = vld [vmem:[#allocation2 + $0x28] sm:$0xff]
        %v5703 = vld [vmem:[#allocation2 + $0x30] sm:$0xff]
        %v5704 = vld [vmem:[#allocation2 + $0x38] sm:$0xff]
        %v5705 = vld [vmem:[#allocation2 + $0x40] sm:$0xff]
        %v5706 = vld [vmem:[#allocation2 + $0x48] sm:$0xff]
        %v5707 = vld [vmem:[#allocation2 + $0x50] sm:$0xff]
        %v5708 = vld [vmem:[#allocation2 + $0x58] sm:$0xff]
        %v5709 = vld [vmem:[#allocation2 + $0x60] sm:$0xff]
        %v5710 = vld [vmem:[#allocation2 + $0x68] sm:$0xff]
        %v5711 = vld [vmem:[#allocation2 + $0x70] sm:$0xff]
        %v5712 = vld [vmem:[#allocation2 + $0x78] sm:$0xff]
        %v5713 = vld [vmem:[#allocation2 + $0x80] sm:$0xff]
        %v5714 = vld [vmem:[#allocation2 + $0x88] sm:$0xff]
        %v5715 = vld [vmem:[#allocation2 + $0x90] sm:$0xff]
        %v5716 = vld [vmem:[#allocation2 + $0x98] sm:$0xff]
        %v5717 = vld [vmem:[#allocation2 + $0xa0] sm:$0xff]
        %v5718 = vld [vmem:[#allocation2 + $0xa8] sm:$0xff]
        %v5719 = vld [vmem:[#allocation2 + $0xb0] sm:$0xff]
        %v5720 = vld [vmem:[#allocation2 + $0xb8] sm:$0xff]
        %v5721 = vld [vmem:[#allocation2 + $0xc0] sm:$0xff]
        %v5722 = vld [vmem:[#allocation2 + $0xc8] sm:$0xff]
        %v5723 = vld [vmem:[#allocation2 + $0xd0] sm:$0xff]
        %v5724 = vld [vmem:[#allocation2 + $0xd8] sm:$0xff]
        %v5725 = vld [vmem:[#allocation2 + $0xe0] sm:$0xff]
        %v5726 = vld [vmem:[#allocation2 + $0xe8] sm:$0xff]
        %v5727 = vld [vmem:[#allocation2 + $0xf0] sm:$0xff]
        %v5728 = vld [vmem:[#allocation2 + $0xf8] sm:$0xff]
        %v5730 = vlaneseq
        %v5731 = vshrl.u32 %v5730, 7
        %v5732 = vsub.s32 0, %v5731
        %v5733 = vrot.slane %v5696, %v5732
        %v5734 = vlaneseq
        %v5735 = vshrl.u32 %v5734, 7
        %v5736 = vsub.s32 1, %v5735
        %v5737 = vrot.slane %v5696, %v5736
        %5740 = vmatprep.subr.mxu0 %v5214
        %5741 = vmatpush1.msra.mxu0 %v5213
        %5742 = vmatprep.subr.mxu0 %v5212
        %5743 = vmatpush1.msra.mxu0 %v5211
        %5744 = vmatprep.subr.mxu0 %v5210
        %5745 = vmatpush1.msra.mxu0 %v5209
        %5746 = vmatprep.subr.mxu0 %v5208
        %5747 = vmatpush1.msra.mxu0 %v5207
        %5748 = vmatprep.subr.mxu0 %v5206
        %5749 = vmatpush1.msra.mxu0 %v5205
        %5750 = vmatprep.subr.mxu0 %v5204
        %5751 = vmatpush1.msra.mxu0 %v5203
        %5752 = vmatprep.subr.mxu0 %v5202
        %5753 = vmatpush1.msra.mxu0 %v5201
        %5754 = vmatprep.subr.mxu0 %v5200
        %5755 = vmatpush1.msra.mxu0 %v5199
        %5756 = vmatprep.subr.mxu0 %v5198
        %5757 = vmatpush1.msra.mxu0 %v5197
        %5758 = vmatprep.subr.mxu0 %v5196
        %5759 = vmatpush1.msra.mxu0 %v5195
        %5760 = vmatprep.subr.mxu0 %v5194
        %5761 = vmatpush1.msra.mxu0 %v5193
        %5762 = vmatprep.subr.mxu0 %v5192
        %5763 = vmatpush1.msra.mxu0 %v5191
        %5764 = vmatprep.subr.mxu0 %v5190
        %5765 = vmatpush1.msra.mxu0 %v5189
        %5766 = vmatprep.subr.mxu0 %v5188
        %5767 = vmatpush1.msra.mxu0 %v5187
        %5768 = vmatprep.subr.mxu0 %v5186
        %5769 = vmatpush1.msra.mxu0 %v5185
        %5770 = vmatprep.subr.mxu0 %v5184
        %5771 = vmatpush1.msra.mxu0 %v5183
        %5772 = vmatprep.subr.mxu0 %v5246
        %5773 = vmatpush2.msra.mxu0 %v5245
        %5774 = vmatprep.subr.mxu0 %v5244
        %5775 = vmatpush2.msra.mxu0 %v5243
        %5776 = vmatprep.subr.mxu0 %v5242
        %5777 = vmatpush2.msra.mxu0 %v5241
        %5778 = vmatprep.subr.mxu0 %v5240
        %5779 = vmatpush2.msra.mxu0 %v5239
        %5780 = vmatprep.subr.mxu0 %v5238
        %5781 = vmatpush2.msra.mxu0 %v5237
        %5782 = vmatprep.subr.mxu0 %v5236
        %5783 = vmatpush2.msra.mxu0 %v5235
        %5784 = vmatprep.subr.mxu0 %v5234
        %5785 = vmatpush2.msra.mxu0 %v5233
        %5786 = vmatprep.subr.mxu0 %v5232
        %5787 = vmatpush2.msra.mxu0 %v5231
        %5788 = vmatprep.subr.mxu0 %v5230
        %5789 = vmatpush2.msra.mxu0 %v5229
        %5790 = vmatprep.subr.mxu0 %v5228
        %5791 = vmatpush2.msra.mxu0 %v5227
        %5792 = vmatprep.subr.mxu0 %v5226
        %5793 = vmatpush2.msra.mxu0 %v5225
        %5794 = vmatprep.subr.mxu0 %v5224
        %5795 = vmatpush2.msra.mxu0 %v5223
        %5796 = vmatprep.subr.mxu0 %v5222
        %5797 = vmatpush2.msra.mxu0 %v5221
        %5798 = vmatprep.subr.mxu0 %v5220
        %5799 = vmatpush2.msra.mxu0 %v5219
        %5800 = vmatprep.subr.mxu0 %v5218
        %5801 = vmatpush2.msra.mxu0 %v5217
        %5802 = vmatprep.subr.mxu0 %v5216
        %5803 = vmatpush2.msra.mxu0 %v5215
        %5804 = vmatprep.mubr.f32.mxu0 %v5698
        %5805 = vmatmul.mubr.f32.gmra.mxu0 %v5697
        %v5806 = vpop.f32.mrf.mxu0
        %v5807 = vadd.f32 %v5733, %v5806
        %v5808 = vpop.f32.mrf.mxu0
        %v5809 = vadd.f32 %v5737, %v5808
        %5810 = vmatprep.mubr.f32.mxu0 %v5714
        %5811 = vmatmul.mubr.f32.gmra.mxu0 %v5713
        %v5812 = vpop.f32.mrf.mxu0
        %v5813 = vadd.f32 %v5733, %v5812
        %v5814 = vpop.f32.mrf.mxu0
        %v5815 = vadd.f32 %v5737, %v5814
        %5816 = vdwg.mxu0
        %5817 = vmatprep.subr.mxu0 %v5278
        %5818 = vmatpush1.msra.mxu0 %v5277
        %5819 = vmatprep.subr.mxu0 %v5276
        %5820 = vmatpush1.msra.mxu0 %v5275
        %5821 = vmatprep.subr.mxu0 %v5274
        %5822 = vmatpush1.msra.mxu0 %v5273
        %5823 = vmatprep.subr.mxu0 %v5272
        %5824 = vmatpush1.msra.mxu0 %v5271
        %5825 = vmatprep.subr.mxu0 %v5270
        %5826 = vmatpush1.msra.mxu0 %v5269
        %5827 = vmatprep.subr.mxu0 %v5268
        %5828 = vmatpush1.msra.mxu0 %v5267
        %5829 = vmatprep.subr.mxu0 %v5266
        %5830 = vmatpush1.msra.mxu0 %v5265
        %5831 = vmatprep.subr.mxu0 %v5264
        %5832 = vmatpush1.msra.mxu0 %v5263
        %5833 = vmatprep.subr.mxu0 %v5262
        %5834 = vmatpush1.msra.mxu0 %v5261
        %5835 = vmatprep.subr.mxu0 %v5260
        %5836 = vmatpush1.msra.mxu0 %v5259
        %5837 = vmatprep.subr.mxu0 %v5258
        %5838 = vmatpush1.msra.mxu0 %v5257
        %5839 = vmatprep.subr.mxu0 %v5256
        %5840 = vmatpush1.msra.mxu0 %v5255
        %5841 = vmatprep.subr.mxu0 %v5254
        %5842 = vmatpush1.msra.mxu0 %v5253
        %5843 = vmatprep.subr.mxu0 %v5252
        %5844 = vmatpush1.msra.mxu0 %v5251
        %5845 = vmatprep.subr.mxu0 %v5250
        %5846 = vmatpush1.msra.mxu0 %v5249
        %5847 = vmatprep.subr.mxu0 %v5248
        %5848 = vmatpush1.msra.mxu0 %v5247
        %5849 = vmatprep.subr.mxu0 %v5310
        %5850 = vmatpush2.msra.mxu0 %v5309
        %5851 = vmatprep.subr.mxu0 %v5308
        %5852 = vmatpush2.msra.mxu0 %v5307
        %5853 = vmatprep.subr.mxu0 %v5306
        %5854 = vmatpush2.msra.mxu0 %v5305
        %5855 = vmatprep.subr.mxu0 %v5304
        %5856 = vmatpush2.msra.mxu0 %v5303
        %5857 = vmatprep.subr.mxu0 %v5302
        %5858 = vmatpush2.msra.mxu0 %v5301
        %5859 = vmatprep.subr.mxu0 %v5300
        %5860 = vmatpush2.msra.mxu0 %v5299
        %5861 = vmatprep.subr.mxu0 %v5298
        %5862 = vmatpush2.msra.mxu0 %v5297
        %5863 = vmatprep.subr.mxu0 %v5296
        %5864 = vmatpush2.msra.mxu0 %v5295
        %5865 = vmatprep.subr.mxu0 %v5294
        %5866 = vmatpush2.msra.mxu0 %v5293
        %5867 = vmatprep.subr.mxu0 %v5292
        %5868 = vmatpush2.msra.mxu0 %v5291
        %5869 = vmatprep.subr.mxu0 %v5290
        %5870 = vmatpush2.msra.mxu0 %v5289
        %5871 = vmatprep.subr.mxu0 %v5288
        %5872 = vmatpush2.msra.mxu0 %v5287
        %5873 = vmatprep.subr.mxu0 %v5286
        %5874 = vmatpush2.msra.mxu0 %v5285
        %5875 = vmatprep.subr.mxu0 %v5284
        %5876 = vmatpush2.msra.mxu0 %v5283
        %5877 = vmatprep.subr.mxu0 %v5282
        %5878 = vmatpush2.msra.mxu0 %v5281
        %5879 = vmatprep.subr.mxu0 %v5280
        %5880 = vmatpush2.msra.mxu0 %v5279
        %5881 = vmatprep.mubr.f32.mxu0 %v5700
        %5882 = vmatmul.mubr.f32.gmra.mxu0 %v5699
        %v5883 = vpop.f32.mrf.mxu0
        %v5884 = vadd.f32 %v5807, %v5883
        %v5885 = vpop.f32.mrf.mxu0
        %v5886 = vadd.f32 %v5809, %v5885
        %5887 = vmatprep.mubr.f32.mxu0 %v5716
        %5888 = vmatmul.mubr.f32.gmra.mxu0 %v5715
        %v5889 = vpop.f32.mrf.mxu0
        %v5890 = vadd.f32 %v5813, %v5889
        %v5891 = vpop.f32.mrf.mxu0
        %v5892 = vadd.f32 %v5815, %v5891
        %5893 = vdwg.mxu0
        %5894 = vmatprep.subr.mxu0 %v5342
        %5895 = vmatpush1.msra.mxu0 %v5341
        %5896 = vmatprep.subr.mxu0 %v5340
        %5897 = vmatpush1.msra.mxu0 %v5339
        %5898 = vmatprep.subr.mxu0 %v5338
        %5899 = vmatpush1.msra.mxu0 %v5337
        %5900 = vmatprep.subr.mxu0 %v5336
        %5901 = vmatpush1.msra.mxu0 %v5335
        %5902 = vmatprep.subr.mxu0 %v5334
        %5903 = vmatpush1.msra.mxu0 %v5333
        %5904 = vmatprep.subr.mxu0 %v5332
        %5905 = vmatpush1.msra.mxu0 %v5331
        %5906 = vmatprep.subr.mxu0 %v5330
        %5907 = vmatpush1.msra.mxu0 %v5329
        %5908 = vmatprep.subr.mxu0 %v5328
        %5909 = vmatpush1.msra.mxu0 %v5327
        %5910 = vmatprep.subr.mxu0 %v5326
        %5911 = vmatpush1.msra.mxu0 %v5325
        %5912 = vmatprep.subr.mxu0 %v5324
        %5913 = vmatpush1.msra.mxu0 %v5323
        %5914 = vmatprep.subr.mxu0 %v5322
        %5915 = vmatpush1.msra.mxu0 %v5321
        %5916 = vmatprep.subr.mxu0 %v5320
        %5917 = vmatpush1.msra.mxu0 %v5319
        %5918 = vmatprep.subr.mxu0 %v5318
        %5919 = vmatpush1.msra.mxu0 %v5317
        %5920 = vmatprep.subr.mxu0 %v5316
        %5921 = vmatpush1.msra.mxu0 %v5315
        %5922 = vmatprep.subr.mxu0 %v5314
        %5923 = vmatpush1.msra.mxu0 %v5313
        %5924 = vmatprep.subr.mxu0 %v5312
        %5925 = vmatpush1.msra.mxu0 %v5311
        %5926 = vmatprep.subr.mxu0 %v5374
        %5927 = vmatpush2.msra.mxu0 %v5373
        %5928 = vmatprep.subr.mxu0 %v5372
        %5929 = vmatpush2.msra.mxu0 %v5371
        %5930 = vmatprep.subr.mxu0 %v5370
        %5931 = vmatpush2.msra.mxu0 %v5369
        %5932 = vmatprep.subr.mxu0 %v5368
        %5933 = vmatpush2.msra.mxu0 %v5367
        %5934 = vmatprep.subr.mxu0 %v5366
        %5935 = vmatpush2.msra.mxu0 %v5365
        %5936 = vmatprep.subr.mxu0 %v5364
        %5937 = vmatpush2.msra.mxu0 %v5363
        %5938 = vmatprep.subr.mxu0 %v5362
        %5939 = vmatpush2.msra.mxu0 %v5361
        %5940 = vmatprep.subr.mxu0 %v5360
        %5941 = vmatpush2.msra.mxu0 %v5359
        %5942 = vmatprep.subr.mxu0 %v5358
        %5943 = vmatpush2.msra.mxu0 %v5357
        %5944 = vmatprep.subr.mxu0 %v5356
        %5945 = vmatpush2.msra.mxu0 %v5355
        %5946 = vmatprep.subr.mxu0 %v5354
        %5947 = vmatpush2.msra.mxu0 %v5353
        %5948 = vmatprep.subr.mxu0 %v5352
        %5949 = vmatpush2.msra.mxu0 %v5351
        %5950 = vmatprep.subr.mxu0 %v5350
        %5951 = vmatpush2.msra.mxu0 %v5349
        %5952 = vmatprep.subr.mxu0 %v5348
        %5953 = vmatpush2.msra.mxu0 %v5347
        %5954 = vmatprep.subr.mxu0 %v5346
        %5955 = vmatpush2.msra.mxu0 %v5345
        %5956 = vmatprep.subr.mxu0 %v5344
        %5957 = vmatpush2.msra.mxu0 %v5343
        %5958 = vmatprep.mubr.f32.mxu0 %v5702
        %5959 = vmatmul.mubr.f32.gmra.mxu0 %v5701
        %v5960 = vpop.f32.mrf.mxu0
        %v5961 = vadd.f32 %v5884, %v5960
        %v5962 = vpop.f32.mrf.mxu0
        %v5963 = vadd.f32 %v5886, %v5962
        %5964 = vmatprep.mubr.f32.mxu0 %v5718
        %5965 = vmatmul.mubr.f32.gmra.mxu0 %v5717
        %v5966 = vpop.f32.mrf.mxu0
        %v5967 = vadd.f32 %v5890, %v5966
        %v5968 = vpop.f32.mrf.mxu0
        %v5969 = vadd.f32 %v5892, %v5968
        %5970 = vdwg.mxu0
        %5971 = vmatprep.subr.mxu0 %v5406
        %5972 = vmatpush1.msra.mxu0 %v5405
        %5973 = vmatprep.subr.mxu0 %v5404
        %5974 = vmatpush1.msra.mxu0 %v5403
        %5975 = vmatprep.subr.mxu0 %v5402
        %5976 = vmatpush1.msra.mxu0 %v5401
        %5977 = vmatprep.subr.mxu0 %v5400
        %5978 = vmatpush1.msra.mxu0 %v5399
        %5979 = vmatprep.subr.mxu0 %v5398
        %5980 = vmatpush1.msra.mxu0 %v5397
        %5981 = vmatprep.subr.mxu0 %v5396
        %5982 = vmatpush1.msra.mxu0 %v5395
        %5983 = vmatprep.subr.mxu0 %v5394
        %5984 = vmatpush1.msra.mxu0 %v5393
        %5985 = vmatprep.subr.mxu0 %v5392
        %5986 = vmatpush1.msra.mxu0 %v5391
        %5987 = vmatprep.subr.mxu0 %v5390
        %5988 = vmatpush1.msra.mxu0 %v5389
        %5989 = vmatprep.subr.mxu0 %v5388
        %5990 = vmatpush1.msra.mxu0 %v5387
        %5991 = vmatprep.subr.mxu0 %v5386
        %5992 = vmatpush1.msra.mxu0 %v5385
        %5993 = vmatprep.subr.mxu0 %v5384
        %5994 = vmatpush1.msra.mxu0 %v5383
        %5995 = vmatprep.subr.mxu0 %v5382
        %5996 = vmatpush1.msra.mxu0 %v5381
        %5997 = vmatprep.subr.mxu0 %v5380
        %5998 = vmatpush1.msra.mxu0 %v5379
        %5999 = vmatprep.subr.mxu0 %v5378
        %6000 = vmatpush1.msra.mxu0 %v5377
        %6001 = vmatprep.subr.mxu0 %v5376
        %6002 = vmatpush1.msra.mxu0 %v5375
        %6003 = vmatprep.subr.mxu0 %v5438
        %6004 = vmatpush2.msra.mxu0 %v5437
        %6005 = vmatprep.subr.mxu0 %v5436
        %6006 = vmatpush2.msra.mxu0 %v5435
        %6007 = vmatprep.subr.mxu0 %v5434
        %6008 = vmatpush2.msra.mxu0 %v5433
        %6009 = vmatprep.subr.mxu0 %v5432
        %6010 = vmatpush2.msra.mxu0 %v5431
        %6011 = vmatprep.subr.mxu0 %v5430
        %6012 = vmatpush2.msra.mxu0 %v5429
        %6013 = vmatprep.subr.mxu0 %v5428
        %6014 = vmatpush2.msra.mxu0 %v5427
        %6015 = vmatprep.subr.mxu0 %v5426
        %6016 = vmatpush2.msra.mxu0 %v5425
        %6017 = vmatprep.subr.mxu0 %v5424
        %6018 = vmatpush2.msra.mxu0 %v5423
        %6019 = vmatprep.subr.mxu0 %v5422
        %6020 = vmatpush2.msra.mxu0 %v5421
        %6021 = vmatprep.subr.mxu0 %v5420
        %6022 = vmatpush2.msra.mxu0 %v5419
        %6023 = vmatprep.subr.mxu0 %v5418
        %6024 = vmatpush2.msra.mxu0 %v5417
        %6025 = vmatprep.subr.mxu0 %v5416
        %6026 = vmatpush2.msra.mxu0 %v5415
        %6027 = vmatprep.subr.mxu0 %v5414
        %6028 = vmatpush2.msra.mxu0 %v5413
        %6029 = vmatprep.subr.mxu0 %v5412
        %6030 = vmatpush2.msra.mxu0 %v5411
        %6031 = vmatprep.subr.mxu0 %v5410
        %6032 = vmatpush2.msra.mxu0 %v5409
        %6033 = vmatprep.subr.mxu0 %v5408
        %6034 = vmatpush2.msra.mxu0 %v5407
        %6035 = vmatprep.mubr.f32.mxu0 %v5704
        %6036 = vmatmul.mubr.f32.gmra.mxu0 %v5703
        %v6037 = vpop.f32.mrf.mxu0
        %v6038 = vadd.f32 %v5961, %v6037
        %v6039 = vpop.f32.mrf.mxu0
        %v6040 = vadd.f32 %v5963, %v6039
        %6041 = vmatprep.mubr.f32.mxu0 %v5720
        %6042 = vmatmul.mubr.f32.gmra.mxu0 %v5719
        %v6043 = vpop.f32.mrf.mxu0
        %v6044 = vadd.f32 %v5967, %v6043
        %v6045 = vpop.f32.mrf.mxu0
        %v6046 = vadd.f32 %v5969, %v6045
        %6047 = vdwg.mxu0
        %6048 = vmatprep.subr.mxu0 %v5470
        %6049 = vmatpush1.msra.mxu0 %v5469
        %6050 = vmatprep.subr.mxu0 %v5468
        %6051 = vmatpush1.msra.mxu0 %v5467
        %6052 = vmatprep.subr.mxu0 %v5466
        %6053 = vmatpush1.msra.mxu0 %v5465
        %6054 = vmatprep.subr.mxu0 %v5464
        %6055 = vmatpush1.msra.mxu0 %v5463
        %6056 = vmatprep.subr.mxu0 %v5462
        %6057 = vmatpush1.msra.mxu0 %v5461
        %6058 = vmatprep.subr.mxu0 %v5460
        %6059 = vmatpush1.msra.mxu0 %v5459
        %6060 = vmatprep.subr.mxu0 %v5458
        %6061 = vmatpush1.msra.mxu0 %v5457
        %6062 = vmatprep.subr.mxu0 %v5456
        %6063 = vmatpush1.msra.mxu0 %v5455
        %6064 = vmatprep.subr.mxu0 %v5454
        %6065 = vmatpush1.msra.mxu0 %v5453
        %6066 = vmatprep.subr.mxu0 %v5452
        %6067 = vmatpush1.msra.mxu0 %v5451
        %6068 = vmatprep.subr.mxu0 %v5450
        %6069 = vmatpush1.msra.mxu0 %v5449
        %6070 = vmatprep.subr.mxu0 %v5448
        %6071 = vmatpush1.msra.mxu0 %v5447
        %6072 = vmatprep.subr.mxu0 %v5446
        %6073 = vmatpush1.msra.mxu0 %v5445
        %6074 = vmatprep.subr.mxu0 %v5444
        %6075 = vmatpush1.msra.mxu0 %v5443
        %6076 = vmatprep.subr.mxu0 %v5442
        %6077 = vmatpush1.msra.mxu0 %v5441
        %6078 = vmatprep.subr.mxu0 %v5440
        %6079 = vmatpush1.msra.mxu0 %v5439
        %6080 = vmatprep.subr.mxu0 %v5502
        %6081 = vmatpush2.msra.mxu0 %v5501
        %6082 = vmatprep.subr.mxu0 %v5500
        %6083 = vmatpush2.msra.mxu0 %v5499
        %6084 = vmatprep.subr.mxu0 %v5498
        %6085 = vmatpush2.msra.mxu0 %v5497
        %6086 = vmatprep.subr.mxu0 %v5496
        %6087 = vmatpush2.msra.mxu0 %v5495
        %6088 = vmatprep.subr.mxu0 %v5494
        %6089 = vmatpush2.msra.mxu0 %v5493
        %6090 = vmatprep.subr.mxu0 %v5492
        %6091 = vmatpush2.msra.mxu0 %v5491
        %6092 = vmatprep.subr.mxu0 %v5490
        %6093 = vmatpush2.msra.mxu0 %v5489
        %6094 = vmatprep.subr.mxu0 %v5488
        %6095 = vmatpush2.msra.mxu0 %v5487
        %6096 = vmatprep.subr.mxu0 %v5486
        %6097 = vmatpush2.msra.mxu0 %v5485
        %6098 = vmatprep.subr.mxu0 %v5484
        %6099 = vmatpush2.msra.mxu0 %v5483
        %6100 = vmatprep.subr.mxu0 %v5482
        %6101 = vmatpush2.msra.mxu0 %v5481
        %6102 = vmatprep.subr.mxu0 %v5480
        %6103 = vmatpush2.msra.mxu0 %v5479
        %6104 = vmatprep.subr.mxu0 %v5478
        %6105 = vmatpush2.msra.mxu0 %v5477
        %6106 = vmatprep.subr.mxu0 %v5476
        %6107 = vmatpush2.msra.mxu0 %v5475
        %6108 = vmatprep.subr.mxu0 %v5474
        %6109 = vmatpush2.msra.mxu0 %v5473
        %6110 = vmatprep.subr.mxu0 %v5472
        %6111 = vmatpush2.msra.mxu0 %v5471
        %6112 = vmatprep.mubr.f32.mxu0 %v5706
        %6113 = vmatmul.mubr.f32.gmra.mxu0 %v5705
        %v6114 = vpop.f32.mrf.mxu0
        %v6115 = vadd.f32 %v6038, %v6114
        %v6116 = vpop.f32.mrf.mxu0
        %v6117 = vadd.f32 %v6040, %v6116
        %6118 = vmatprep.mubr.f32.mxu0 %v5722
        %6119 = vmatmul.mubr.f32.gmra.mxu0 %v5721
        %v6120 = vpop.f32.mrf.mxu0
        %v6121 = vadd.f32 %v6044, %v6120
        %v6122 = vpop.f32.mrf.mxu0
        %v6123 = vadd.f32 %v6046, %v6122
        %6124 = vdwg.mxu0
        %6125 = vmatprep.subr.mxu0 %v5534
        %6126 = vmatpush1.msra.mxu0 %v5533
        %6127 = vmatprep.subr.mxu0 %v5532
        %6128 = vmatpush1.msra.mxu0 %v5531
        %6129 = vmatprep.subr.mxu0 %v5530
        %6130 = vmatpush1.msra.mxu0 %v5529
        %6131 = vmatprep.subr.mxu0 %v5528
        %6132 = vmatpush1.msra.mxu0 %v5527
        %6133 = vmatprep.subr.mxu0 %v5526
        %6134 = vmatpush1.msra.mxu0 %v5525
        %6135 = vmatprep.subr.mxu0 %v5524
        %6136 = vmatpush1.msra.mxu0 %v5523
        %6137 = vmatprep.subr.mxu0 %v5522
        %6138 = vmatpush1.msra.mxu0 %v5521
        %6139 = vmatprep.subr.mxu0 %v5520
        %6140 = vmatpush1.msra.mxu0 %v5519
        %6141 = vmatprep.subr.mxu0 %v5518
        %6142 = vmatpush1.msra.mxu0 %v5517
        %6143 = vmatprep.subr.mxu0 %v5516
        %6144 = vmatpush1.msra.mxu0 %v5515
        %6145 = vmatprep.subr.mxu0 %v5514
        %6146 = vmatpush1.msra.mxu0 %v5513
        %6147 = vmatprep.subr.mxu0 %v5512
        %6148 = vmatpush1.msra.mxu0 %v5511
        %6149 = vmatprep.subr.mxu0 %v5510
        %6150 = vmatpush1.msra.mxu0 %v5509
        %6151 = vmatprep.subr.mxu0 %v5508
        %6152 = vmatpush1.msra.mxu0 %v5507
        %6153 = vmatprep.subr.mxu0 %v5506
        %6154 = vmatpush1.msra.mxu0 %v5505
        %6155 = vmatprep.subr.mxu0 %v5504
        %6156 = vmatpush1.msra.mxu0 %v5503
        %6157 = vmatprep.subr.mxu0 %v5566
        %6158 = vmatpush2.msra.mxu0 %v5565
        %6159 = vmatprep.subr.mxu0 %v5564
        %6160 = vmatpush2.msra.mxu0 %v5563
        %6161 = vmatprep.subr.mxu0 %v5562
        %6162 = vmatpush2.msra.mxu0 %v5561
        %6163 = vmatprep.subr.mxu0 %v5560
        %6164 = vmatpush2.msra.mxu0 %v5559
        %6165 = vmatprep.subr.mxu0 %v5558
        %6166 = vmatpush2.msra.mxu0 %v5557
        %6167 = vmatprep.subr.mxu0 %v5556
        %6168 = vmatpush2.msra.mxu0 %v5555
        %6169 = vmatprep.subr.mxu0 %v5554
        %6170 = vmatpush2.msra.mxu0 %v5553
        %6171 = vmatprep.subr.mxu0 %v5552
        %6172 = vmatpush2.msra.mxu0 %v5551
        %6173 = vmatprep.subr.mxu0 %v5550
        %6174 = vmatpush2.msra.mxu0 %v5549
        %6175 = vmatprep.subr.mxu0 %v5548
        %6176 = vmatpush2.msra.mxu0 %v5547
        %6177 = vmatprep.subr.mxu0 %v5546
        %6178 = vmatpush2.msra.mxu0 %v5545
        %6179 = vmatprep.subr.mxu0 %v5544
        %6180 = vmatpush2.msra.mxu0 %v5543
        %6181 = vmatprep.subr.mxu0 %v5542
        %6182 = vmatpush2.msra.mxu0 %v5541
        %6183 = vmatprep.subr.mxu0 %v5540
        %6184 = vmatpush2.msra.mxu0 %v5539
        %6185 = vmatprep.subr.mxu0 %v5538
        %6186 = vmatpush2.msra.mxu0 %v5537
        %6187 = vmatprep.subr.mxu0 %v5536
        %6188 = vmatpush2.msra.mxu0 %v5535
        %6189 = vmatprep.mubr.f32.mxu0 %v5708
        %6190 = vmatmul.mubr.f32.gmra.mxu0 %v5707
        %v6191 = vpop.f32.mrf.mxu0
        %v6192 = vadd.f32 %v6115, %v6191
        %v6193 = vpop.f32.mrf.mxu0
        %v6194 = vadd.f32 %v6117, %v6193
        %6195 = vmatprep.mubr.f32.mxu0 %v5724
        %6196 = vmatmul.mubr.f32.gmra.mxu0 %v5723
        %v6197 = vpop.f32.mrf.mxu0
        %v6198 = vadd.f32 %v6121, %v6197
        %v6199 = vpop.f32.mrf.mxu0
        %v6200 = vadd.f32 %v6123, %v6199
        %6201 = vdwg.mxu0
        %6202 = vmatprep.subr.mxu0 %v5598
        %6203 = vmatpush1.msra.mxu0 %v5597
        %6204 = vmatprep.subr.mxu0 %v5596
        %6205 = vmatpush1.msra.mxu0 %v5595
        %6206 = vmatprep.subr.mxu0 %v5594
        %6207 = vmatpush1.msra.mxu0 %v5593
        %6208 = vmatprep.subr.mxu0 %v5592
        %6209 = vmatpush1.msra.mxu0 %v5591
        %6210 = vmatprep.subr.mxu0 %v5590
        %6211 = vmatpush1.msra.mxu0 %v5589
        %6212 = vmatprep.subr.mxu0 %v5588
        %6213 = vmatpush1.msra.mxu0 %v5587
        %6214 = vmatprep.subr.mxu0 %v5586
        %6215 = vmatpush1.msra.mxu0 %v5585
        %6216 = vmatprep.subr.mxu0 %v5584
        %6217 = vmatpush1.msra.mxu0 %v5583
        %6218 = vmatprep.subr.mxu0 %v5582
        %6219 = vmatpush1.msra.mxu0 %v5581
        %6220 = vmatprep.subr.mxu0 %v5580
        %6221 = vmatpush1.msra.mxu0 %v5579
        %6222 = vmatprep.subr.mxu0 %v5578
        %6223 = vmatpush1.msra.mxu0 %v5577
        %6224 = vmatprep.subr.mxu0 %v5576
        %6225 = vmatpush1.msra.mxu0 %v5575
        %6226 = vmatprep.subr.mxu0 %v5574
        %6227 = vmatpush1.msra.mxu0 %v5573
        %6228 = vmatprep.subr.mxu0 %v5572
        %6229 = vmatpush1.msra.mxu0 %v5571
        %6230 = vmatprep.subr.mxu0 %v5570
        %6231 = vmatpush1.msra.mxu0 %v5569
        %6232 = vmatprep.subr.mxu0 %v5568
        %6233 = vmatpush1.msra.mxu0 %v5567
        %6234 = vmatprep.subr.mxu0 %v5630
        %6235 = vmatpush2.msra.mxu0 %v5629
        %6236 = vmatprep.subr.mxu0 %v5628
        %6237 = vmatpush2.msra.mxu0 %v5627
        %6238 = vmatprep.subr.mxu0 %v5626
        %6239 = vmatpush2.msra.mxu0 %v5625
        %6240 = vmatprep.subr.mxu0 %v5624
        %6241 = vmatpush2.msra.mxu0 %v5623
        %6242 = vmatprep.subr.mxu0 %v5622
        %6243 = vmatpush2.msra.mxu0 %v5621
        %6244 = vmatprep.subr.mxu0 %v5620
        %6245 = vmatpush2.msra.mxu0 %v5619
        %6246 = vmatprep.subr.mxu0 %v5618
        %6247 = vmatpush2.msra.mxu0 %v5617
        %6248 = vmatprep.subr.mxu0 %v5616
        %6249 = vmatpush2.msra.mxu0 %v5615
        %6250 = vmatprep.subr.mxu0 %v5614
        %6251 = vmatpush2.msra.mxu0 %v5613
        %6252 = vmatprep.subr.mxu0 %v5612
        %6253 = vmatpush2.msra.mxu0 %v5611
        %6254 = vmatprep.subr.mxu0 %v5610
        %6255 = vmatpush2.msra.mxu0 %v5609
        %6256 = vmatprep.subr.mxu0 %v5608
        %6257 = vmatpush2.msra.mxu0 %v5607
        %6258 = vmatprep.subr.mxu0 %v5606
        %6259 = vmatpush2.msra.mxu0 %v5605
        %6260 = vmatprep.subr.mxu0 %v5604
        %6261 = vmatpush2.msra.mxu0 %v5603
        %6262 = vmatprep.subr.mxu0 %v5602
        %6263 = vmatpush2.msra.mxu0 %v5601
        %6264 = vmatprep.subr.mxu0 %v5600
        %6265 = vmatpush2.msra.mxu0 %v5599
        %6266 = vmatprep.mubr.f32.mxu0 %v5710
        %6267 = vmatmul.mubr.f32.gmra.mxu0 %v5709
        %v6268 = vpop.f32.mrf.mxu0
        %v6269 = vadd.f32 %v6192, %v6268
        %v6270 = vpop.f32.mrf.mxu0
        %v6271 = vadd.f32 %v6194, %v6270
        %6272 = vmatprep.mubr.f32.mxu0 %v5726
        %6273 = vmatmul.mubr.f32.gmra.mxu0 %v5725
        %v6274 = vpop.f32.mrf.mxu0
        %v6275 = vadd.f32 %v6198, %v6274
        %v6276 = vpop.f32.mrf.mxu0
        %v6277 = vadd.f32 %v6200, %v6276
        %6278 = vdwg.mxu0
        %6279 = vmatprep.subr.mxu0 %v5662
        %6280 = vmatpush1.msra.mxu0 %v5661
        %6281 = vmatprep.subr.mxu0 %v5660
        %6282 = vmatpush1.msra.mxu0 %v5659
        %6283 = vmatprep.subr.mxu0 %v5658
        %6284 = vmatpush1.msra.mxu0 %v5657
        %6285 = vmatprep.subr.mxu0 %v5656
        %6286 = vmatpush1.msra.mxu0 %v5655
        %6287 = vmatprep.subr.mxu0 %v5654
        %6288 = vmatpush1.msra.mxu0 %v5653
        %6289 = vmatprep.subr.mxu0 %v5652
        %6290 = vmatpush1.msra.mxu0 %v5651
        %6291 = vmatprep.subr.mxu0 %v5650
        %6292 = vmatpush1.msra.mxu0 %v5649
        %6293 = vmatprep.subr.mxu0 %v5648
        %6294 = vmatpush1.msra.mxu0 %v5647
        %6295 = vmatprep.subr.mxu0 %v5646
        %6296 = vmatpush1.msra.mxu0 %v5645
        %6297 = vmatprep.subr.mxu0 %v5644
        %6298 = vmatpush1.msra.mxu0 %v5643
        %6299 = vmatprep.subr.mxu0 %v5642
        %6300 = vmatpush1.msra.mxu0 %v5641
        %6301 = vmatprep.subr.mxu0 %v5640
        %6302 = vmatpush1.msra.mxu0 %v5639
        %6303 = vmatprep.subr.mxu0 %v5638
        %6304 = vmatpush1.msra.mxu0 %v5637
        %6305 = vmatprep.subr.mxu0 %v5636
        %6306 = vmatpush1.msra.mxu0 %v5635
        %6307 = vmatprep.subr.mxu0 %v5634
        %6308 = vmatpush1.msra.mxu0 %v5633
        %6309 = vmatprep.subr.mxu0 %v5632
        %6310 = vmatpush1.msra.mxu0 %v5631
        %6311 = vmatprep.subr.mxu0 %v5694
        %6312 = vmatpush2.msra.mxu0 %v5693
        %6313 = vmatprep.subr.mxu0 %v5692
        %6314 = vmatpush2.msra.mxu0 %v5691
        %6315 = vmatprep.subr.mxu0 %v5690
        %6316 = vmatpush2.msra.mxu0 %v5689
        %6317 = vmatprep.subr.mxu0 %v5688
        %6318 = vmatpush2.msra.mxu0 %v5687
        %6319 = vmatprep.subr.mxu0 %v5686
        %6320 = vmatpush2.msra.mxu0 %v5685
        %6321 = vmatprep.subr.mxu0 %v5684
        %6322 = vmatpush2.msra.mxu0 %v5683
        %6323 = vmatprep.subr.mxu0 %v5682
        %6324 = vmatpush2.msra.mxu0 %v5681
        %6325 = vmatprep.subr.mxu0 %v5680
        %6326 = vmatpush2.msra.mxu0 %v5679
        %6327 = vmatprep.subr.mxu0 %v5678
        %6328 = vmatpush2.msra.mxu0 %v5677
        %6329 = vmatprep.subr.mxu0 %v5676
        %6330 = vmatpush2.msra.mxu0 %v5675
        %6331 = vmatprep.subr.mxu0 %v5674
        %6332 = vmatpush2.msra.mxu0 %v5673
        %6333 = vmatprep.subr.mxu0 %v5672
        %6334 = vmatpush2.msra.mxu0 %v5671
        %6335 = vmatprep.subr.mxu0 %v5670
        %6336 = vmatpush2.msra.mxu0 %v5669
        %6337 = vmatprep.subr.mxu0 %v5668
        %6338 = vmatpush2.msra.mxu0 %v5667
        %6339 = vmatprep.subr.mxu0 %v5666
        %6340 = vmatpush2.msra.mxu0 %v5665
        %6341 = vmatprep.subr.mxu0 %v5664
        %6342 = vmatpush2.msra.mxu0 %v5663
        %6343 = vmatprep.mubr.f32.mxu0 %v5712
        %6344 = vmatmul.mubr.f32.gmra.mxu0 %v5711
        %v6345 = vpop.f32.mrf.mxu0
        %v6346 = vadd.f32 %v6269, %v6345
        %v6347 = vpop.f32.mrf.mxu0
        %v6348 = vadd.f32 %v6271, %v6347
        %6349 = vmatprep.mubr.f32.mxu0 %v5728
        %6350 = vmatmul.mubr.f32.gmra.mxu0 %v5727
        %v6351 = vpop.f32.mrf.mxu0
        %v6352 = vadd.f32 %v6275, %v6351
        %v6353 = vpop.f32.mrf.mxu0
        %v6354 = vadd.f32 %v6277, %v6353
        %6355 = vdwg.mxu0
        %v6356 = vld [vmem:[%s4926 + $0x8] sm:$0xff]
        %v6357 = vld [vmem:[%s4926 + $0x20] sm:$0xff]
        %v6358 = vld [vmem:[%s4926 + $0x38] sm:$0xff]
        %v6359 = vld [vmem:[%s4926 + $0x50] sm:$0xff]
        %v6360 = vld [vmem:[%s4926 + $0x68] sm:$0xff]
        %v6361 = vld [vmem:[%s4926 + $0x80] sm:$0xff]
        %v6362 = vld [vmem:[%s4926 + $0x98] sm:$0xff]
        %v6363 = vld [vmem:[%s4926 + $0xb0] sm:$0xff]
        %v6364 = vld [vmem:[%s4926 + $0xc8] sm:$0xff]
        %v6365 = vld [vmem:[%s4926 + $0xe0] sm:$0xff]
        %v6366 = vld [vmem:[%s4926 + $0xf8] sm:$0xff]
        %v6367 = vld [vmem:[%s4926 + $0x110] sm:$0xff]
        %v6368 = vld [vmem:[%s4926 + $0x128] sm:$0xff]
        %v6369 = vld [vmem:[%s4926 + $0x140] sm:$0xff]
        %v6370 = vld [vmem:[%s4926 + $0x158] sm:$0xff]
        %v6371 = vld [vmem:[%s4926 + $0x170] sm:$0xff]
        %v6372 = vld [vmem:[%s4926 + $0x188] sm:$0xff]
        %v6373 = vld [vmem:[%s4926 + $0x1a0] sm:$0xff]
        %v6374 = vld [vmem:[%s4926 + $0x1b8] sm:$0xff]
        %v6375 = vld [vmem:[%s4926 + $0x1d0] sm:$0xff]
        %v6376 = vld [vmem:[%s4926 + $0x1e8] sm:$0xff]
        %v6377 = vld [vmem:[%s4926 + $0x200] sm:$0xff]
        %v6378 = vld [vmem:[%s4926 + $0x218] sm:$0xff]
        %v6379 = vld [vmem:[%s4926 + $0x230] sm:$0xff]
        %v6380 = vld [vmem:[%s4926 + $0x248] sm:$0xff]
        %v6381 = vld [vmem:[%s4926 + $0x260] sm:$0xff]
        %v6382 = vld [vmem:[%s4926 + $0x278] sm:$0xff]
        %v6383 = vld [vmem:[%s4926 + $0x290] sm:$0xff]
        %v6384 = vld [vmem:[%s4926 + $0x2a8] sm:$0xff]
        %v6385 = vld [vmem:[%s4926 + $0x2c0] sm:$0xff]
        %v6386 = vld [vmem:[%s4926 + $0x2d8] sm:$0xff]
        %v6387 = vld [vmem:[%s4926 + $0x2f0] sm:$0xff]
        %v6388 = vld [vmem:[%s4926 + $0x308] sm:$0xff]
        %v6389 = vld [vmem:[%s4926 + $0x320] sm:$0xff]
        %v6390 = vld [vmem:[%s4926 + $0x338] sm:$0xff]
        %v6391 = vld [vmem:[%s4926 + $0x350] sm:$0xff]
        %v6392 = vld [vmem:[%s4926 + $0x368] sm:$0xff]
        %v6393 = vld [vmem:[%s4926 + $0x380] sm:$0xff]
        %v6394 = vld [vmem:[%s4926 + $0x398] sm:$0xff]
        %v6395 = vld [vmem:[%s4926 + $0x3b0] sm:$0xff]
        %v6396 = vld [vmem:[%s4926 + $0x3c8] sm:$0xff]
        %v6397 = vld [vmem:[%s4926 + $0x3e0] sm:$0xff]
        %v6398 = vld [vmem:[%s4926 + $0x3f8] sm:$0xff]
        %v6399 = vld [vmem:[%s4926 + $0x410] sm:$0xff]
        %v6400 = vld [vmem:[%s4926 + $0x428] sm:$0xff]
        %v6401 = vld [vmem:[%s4926 + $0x440] sm:$0xff]
        %v6402 = vld [vmem:[%s4926 + $0x458] sm:$0xff]
        %v6403 = vld [vmem:[%s4926 + $0x470] sm:$0xff]
        %v6404 = vld [vmem:[%s4926 + $0x488] sm:$0xff]
        %v6405 = vld [vmem:[%s4926 + $0x4a0] sm:$0xff]
        %v6406 = vld [vmem:[%s4926 + $0x4b8] sm:$0xff]
        %v6407 = vld [vmem:[%s4926 + $0x4d0] sm:$0xff]
        %v6408 = vld [vmem:[%s4926 + $0x4e8] sm:$0xff]
        %v6409 = vld [vmem:[%s4926 + $0x500] sm:$0xff]
        %v6410 = vld [vmem:[%s4926 + $0x518] sm:$0xff]
        %v6411 = vld [vmem:[%s4926 + $0x530] sm:$0xff]
        %v6412 = vld [vmem:[%s4926 + $0x548] sm:$0xff]
        %v6413 = vld [vmem:[%s4926 + $0x560] sm:$0xff]
        %v6414 = vld [vmem:[%s4926 + $0x578] sm:$0xff]
        %v6415 = vld [vmem:[%s4926 + $0x590] sm:$0xff]
        %v6416 = vld [vmem:[%s4926 + $0x5a8] sm:$0xff]
        %v6417 = vld [vmem:[%s4926 + $0x5c0] sm:$0xff]
        %v6418 = vld [vmem:[%s4926 + $0x5d8] sm:$0xff]
        %v6419 = vld [vmem:[%s4926 + $0x5f0] sm:$0xff]
        %v6420 = vld [vmem:[%s4926 + $0x608] sm:$0xff]
        %v6421 = vld [vmem:[%s4926 + $0x620] sm:$0xff]
        %v6422 = vld [vmem:[%s4926 + $0x638] sm:$0xff]
        %v6423 = vld [vmem:[%s4926 + $0x650] sm:$0xff]
        %v6424 = vld [vmem:[%s4926 + $0x668] sm:$0xff]
        %v6425 = vld [vmem:[%s4926 + $0x680] sm:$0xff]
        %v6426 = vld [vmem:[%s4926 + $0x698] sm:$0xff]
        %v6427 = vld [vmem:[%s4926 + $0x6b0] sm:$0xff]
        %v6428 = vld [vmem:[%s4926 + $0x6c8] sm:$0xff]
        %v6429 = vld [vmem:[%s4926 + $0x6e0] sm:$0xff]
        %v6430 = vld [vmem:[%s4926 + $0x6f8] sm:$0xff]
        %v6431 = vld [vmem:[%s4926 + $0x710] sm:$0xff]
        %v6432 = vld [vmem:[%s4926 + $0x728] sm:$0xff]
        %v6433 = vld [vmem:[%s4926 + $0x740] sm:$0xff]
        %v6434 = vld [vmem:[%s4926 + $0x758] sm:$0xff]
        %v6435 = vld [vmem:[%s4926 + $0x770] sm:$0xff]
        %v6436 = vld [vmem:[%s4926 + $0x788] sm:$0xff]
        %v6437 = vld [vmem:[%s4926 + $0x7a0] sm:$0xff]
        %v6438 = vld [vmem:[%s4926 + $0x7b8] sm:$0xff]
        %v6439 = vld [vmem:[%s4926 + $0x7d0] sm:$0xff]
        %v6440 = vld [vmem:[%s4926 + $0x7e8] sm:$0xff]
        %v6441 = vld [vmem:[%s4926 + $0x800] sm:$0xff]
        %v6442 = vld [vmem:[%s4926 + $0x818] sm:$0xff]
        %v6443 = vld [vmem:[%s4926 + $0x830] sm:$0xff]
        %v6444 = vld [vmem:[%s4926 + $0x848] sm:$0xff]
        %v6445 = vld [vmem:[%s4926 + $0x860] sm:$0xff]
        %v6446 = vld [vmem:[%s4926 + $0x878] sm:$0xff]
        %v6447 = vld [vmem:[%s4926 + $0x890] sm:$0xff]
        %v6448 = vld [vmem:[%s4926 + $0x8a8] sm:$0xff]
        %v6449 = vld [vmem:[%s4926 + $0x8c0] sm:$0xff]
        %v6450 = vld [vmem:[%s4926 + $0x8d8] sm:$0xff]
        %v6451 = vld [vmem:[%s4926 + $0x8f0] sm:$0xff]
        %v6452 = vld [vmem:[%s4926 + $0x908] sm:$0xff]
        %v6453 = vld [vmem:[%s4926 + $0x920] sm:$0xff]
        %v6454 = vld [vmem:[%s4926 + $0x938] sm:$0xff]
        %v6455 = vld [vmem:[%s4926 + $0x950] sm:$0xff]
        %v6456 = vld [vmem:[%s4926 + $0x968] sm:$0xff]
        %v6457 = vld [vmem:[%s4926 + $0x980] sm:$0xff]
        %v6458 = vld [vmem:[%s4926 + $0x998] sm:$0xff]
        %v6459 = vld [vmem:[%s4926 + $0x9b0] sm:$0xff]
        %v6460 = vld [vmem:[%s4926 + $0x9c8] sm:$0xff]
        %v6461 = vld [vmem:[%s4926 + $0x9e0] sm:$0xff]
        %v6462 = vld [vmem:[%s4926 + $0x9f8] sm:$0xff]
        %v6463 = vld [vmem:[%s4926 + $0xa10] sm:$0xff]
        %v6464 = vld [vmem:[%s4926 + $0xa28] sm:$0xff]
        %v6465 = vld [vmem:[%s4926 + $0xa40] sm:$0xff]
        %v6466 = vld [vmem:[%s4926 + $0xa58] sm:$0xff]
        %v6467 = vld [vmem:[%s4926 + $0xa70] sm:$0xff]
        %v6468 = vld [vmem:[%s4926 + $0xa88] sm:$0xff]
        %v6469 = vld [vmem:[%s4926 + $0xaa0] sm:$0xff]
        %v6470 = vld [vmem:[%s4926 + $0xab8] sm:$0xff]
        %v6471 = vld [vmem:[%s4926 + $0xad0] sm:$0xff]
        %v6472 = vld [vmem:[%s4926 + $0xae8] sm:$0xff]
        %v6473 = vld [vmem:[%s4926 + $0xb00] sm:$0xff]
        %v6474 = vld [vmem:[%s4926 + $0xb18] sm:$0xff]
        %v6475 = vld [vmem:[%s4926 + $0xb30] sm:$0xff]
        %v6476 = vld [vmem:[%s4926 + $0xb48] sm:$0xff]
        %v6477 = vld [vmem:[%s4926 + $0xb60] sm:$0xff]
        %v6478 = vld [vmem:[%s4926 + $0xb78] sm:$0xff]
        %v6479 = vld [vmem:[%s4926 + $0xb90] sm:$0xff]
        %v6480 = vld [vmem:[%s4926 + $0xba8] sm:$0xff]
        %v6481 = vld [vmem:[%s4926 + $0xbc0] sm:$0xff]
        %v6482 = vld [vmem:[%s4926 + $0xbd8] sm:$0xff]
        %v6483 = vld [vmem:[%s4926 + $0xbf0] sm:$0xff]
        %v6484 = vld [vmem:[%s4926 + $0xc08] sm:$0xff]
        %v6485 = vld [vmem:[%s4926 + $0xc20] sm:$0xff]
        %v6486 = vld [vmem:[%s4926 + $0xc38] sm:$0xff]
        %v6487 = vld [vmem:[%s4926 + $0xc50] sm:$0xff]
        %v6488 = vld [vmem:[%s4926 + $0xc68] sm:$0xff]
        %v6489 = vld [vmem:[%s4926 + $0xc80] sm:$0xff]
        %v6490 = vld [vmem:[%s4926 + $0xc98] sm:$0xff]
        %v6491 = vld [vmem:[%s4926 + $0xcb0] sm:$0xff]
        %v6492 = vld [vmem:[%s4926 + $0xcc8] sm:$0xff]
        %v6493 = vld [vmem:[%s4926 + $0xce0] sm:$0xff]
        %v6494 = vld [vmem:[%s4926 + $0xcf8] sm:$0xff]
        %v6495 = vld [vmem:[%s4926 + $0xd10] sm:$0xff]
        %v6496 = vld [vmem:[%s4926 + $0xd28] sm:$0xff]
        %v6497 = vld [vmem:[%s4926 + $0xd40] sm:$0xff]
        %v6498 = vld [vmem:[%s4926 + $0xd58] sm:$0xff]
        %v6499 = vld [vmem:[%s4926 + $0xd70] sm:$0xff]
        %v6500 = vld [vmem:[%s4926 + $0xd88] sm:$0xff]
        %v6501 = vld [vmem:[%s4926 + $0xda0] sm:$0xff]
        %v6502 = vld [vmem:[%s4926 + $0xdb8] sm:$0xff]
        %v6503 = vld [vmem:[%s4926 + $0xdd0] sm:$0xff]
        %v6504 = vld [vmem:[%s4926 + $0xde8] sm:$0xff]
        %v6505 = vld [vmem:[%s4926 + $0xe00] sm:$0xff]
        %v6506 = vld [vmem:[%s4926 + $0xe18] sm:$0xff]
        %v6507 = vld [vmem:[%s4926 + $0xe30] sm:$0xff]
        %v6508 = vld [vmem:[%s4926 + $0xe48] sm:$0xff]
        %v6509 = vld [vmem:[%s4926 + $0xe60] sm:$0xff]
        %v6510 = vld [vmem:[%s4926 + $0xe78] sm:$0xff]
        %v6511 = vld [vmem:[%s4926 + $0xe90] sm:$0xff]
        %v6512 = vld [vmem:[%s4926 + $0xea8] sm:$0xff]
        %v6513 = vld [vmem:[%s4926 + $0xec0] sm:$0xff]
        %v6514 = vld [vmem:[%s4926 + $0xed8] sm:$0xff]
        %v6515 = vld [vmem:[%s4926 + $0xef0] sm:$0xff]
        %v6516 = vld [vmem:[%s4926 + $0xf08] sm:$0xff]
        %v6517 = vld [vmem:[%s4926 + $0xf20] sm:$0xff]
        %v6518 = vld [vmem:[%s4926 + $0xf38] sm:$0xff]
        %v6519 = vld [vmem:[%s4926 + $0xf50] sm:$0xff]
        %v6520 = vld [vmem:[%s4926 + $0xf68] sm:$0xff]
        %v6521 = vld [vmem:[%s4926 + $0xf80] sm:$0xff]
        %v6522 = vld [vmem:[%s4926 + $0xf98] sm:$0xff]
        %v6523 = vld [vmem:[%s4926 + $0xfb0] sm:$0xff]
        %v6524 = vld [vmem:[%s4926 + $0xfc8] sm:$0xff]
        %v6525 = vld [vmem:[%s4926 + $0xfe0] sm:$0xff]
        %v6526 = vld [vmem:[%s4926 + $0xff8] sm:$0xff]
        %v6527 = vld [vmem:[%s4926 + $0x1010] sm:$0xff]
        %v6528 = vld [vmem:[%s4926 + $0x1028] sm:$0xff]
        %v6529 = vld [vmem:[%s4926 + $0x1040] sm:$0xff]
        %v6530 = vld [vmem:[%s4926 + $0x1058] sm:$0xff]
        %v6531 = vld [vmem:[%s4926 + $0x1070] sm:$0xff]
        %v6532 = vld [vmem:[%s4926 + $0x1088] sm:$0xff]
        %v6533 = vld [vmem:[%s4926 + $0x10a0] sm:$0xff]
        %v6534 = vld [vmem:[%s4926 + $0x10b8] sm:$0xff]
        %v6535 = vld [vmem:[%s4926 + $0x10d0] sm:$0xff]
        %v6536 = vld [vmem:[%s4926 + $0x10e8] sm:$0xff]
        %v6537 = vld [vmem:[%s4926 + $0x1100] sm:$0xff]
        %v6538 = vld [vmem:[%s4926 + $0x1118] sm:$0xff]
        %v6539 = vld [vmem:[%s4926 + $0x1130] sm:$0xff]
        %v6540 = vld [vmem:[%s4926 + $0x1148] sm:$0xff]
        %v6541 = vld [vmem:[%s4926 + $0x1160] sm:$0xff]
        %v6542 = vld [vmem:[%s4926 + $0x1178] sm:$0xff]
        %v6543 = vld [vmem:[%s4926 + $0x1190] sm:$0xff]
        %v6544 = vld [vmem:[%s4926 + $0x11a8] sm:$0xff]
        %v6545 = vld [vmem:[%s4926 + $0x11c0] sm:$0xff]
        %v6546 = vld [vmem:[%s4926 + $0x11d8] sm:$0xff]
        %v6547 = vld [vmem:[%s4926 + $0x11f0] sm:$0xff]
        %v6548 = vld [vmem:[%s4926 + $0x1208] sm:$0xff]
        %v6549 = vld [vmem:[%s4926 + $0x1220] sm:$0xff]
        %v6550 = vld [vmem:[%s4926 + $0x1238] sm:$0xff]
        %v6551 = vld [vmem:[%s4926 + $0x1250] sm:$0xff]
        %v6552 = vld [vmem:[%s4926 + $0x1268] sm:$0xff]
        %v6553 = vld [vmem:[%s4926 + $0x1280] sm:$0xff]
        %v6554 = vld [vmem:[%s4926 + $0x1298] sm:$0xff]
        %v6555 = vld [vmem:[%s4926 + $0x12b0] sm:$0xff]
        %v6556 = vld [vmem:[%s4926 + $0x12c8] sm:$0xff]
        %v6557 = vld [vmem:[%s4926 + $0x12e0] sm:$0xff]
        %v6558 = vld [vmem:[%s4926 + $0x12f8] sm:$0xff]
        %v6559 = vld [vmem:[%s4926 + $0x1310] sm:$0xff]
        %v6560 = vld [vmem:[%s4926 + $0x1328] sm:$0xff]
        %v6561 = vld [vmem:[%s4926 + $0x1340] sm:$0xff]
        %v6562 = vld [vmem:[%s4926 + $0x1358] sm:$0xff]
        %v6563 = vld [vmem:[%s4926 + $0x1370] sm:$0xff]
        %v6564 = vld [vmem:[%s4926 + $0x1388] sm:$0xff]
        %v6565 = vld [vmem:[%s4926 + $0x13a0] sm:$0xff]
        %v6566 = vld [vmem:[%s4926 + $0x13b8] sm:$0xff]
        %v6567 = vld [vmem:[%s4926 + $0x13d0] sm:$0xff]
        %v6568 = vld [vmem:[%s4926 + $0x13e8] sm:$0xff]
        %v6569 = vld [vmem:[%s4926 + $0x1400] sm:$0xff]
        %v6570 = vld [vmem:[%s4926 + $0x1418] sm:$0xff]
        %v6571 = vld [vmem:[%s4926 + $0x1430] sm:$0xff]
        %v6572 = vld [vmem:[%s4926 + $0x1448] sm:$0xff]
        %v6573 = vld [vmem:[%s4926 + $0x1460] sm:$0xff]
        %v6574 = vld [vmem:[%s4926 + $0x1478] sm:$0xff]
        %v6575 = vld [vmem:[%s4926 + $0x1490] sm:$0xff]
        %v6576 = vld [vmem:[%s4926 + $0x14a8] sm:$0xff]
        %v6577 = vld [vmem:[%s4926 + $0x14c0] sm:$0xff]
        %v6578 = vld [vmem:[%s4926 + $0x14d8] sm:$0xff]
        %v6579 = vld [vmem:[%s4926 + $0x14f0] sm:$0xff]
        %v6580 = vld [vmem:[%s4926 + $0x1508] sm:$0xff]
        %v6581 = vld [vmem:[%s4926 + $0x1520] sm:$0xff]
        %v6582 = vld [vmem:[%s4926 + $0x1538] sm:$0xff]
        %v6583 = vld [vmem:[%s4926 + $0x1550] sm:$0xff]
        %v6584 = vld [vmem:[%s4926 + $0x1568] sm:$0xff]
        %v6585 = vld [vmem:[%s4926 + $0x1580] sm:$0xff]
        %v6586 = vld [vmem:[%s4926 + $0x1598] sm:$0xff]
        %v6587 = vld [vmem:[%s4926 + $0x15b0] sm:$0xff]
        %v6588 = vld [vmem:[%s4926 + $0x15c8] sm:$0xff]
        %v6589 = vld [vmem:[%s4926 + $0x15e0] sm:$0xff]
        %v6590 = vld [vmem:[%s4926 + $0x15f8] sm:$0xff]
        %v6591 = vld [vmem:[%s4926 + $0x1610] sm:$0xff]
        %v6592 = vld [vmem:[%s4926 + $0x1628] sm:$0xff]
        %v6593 = vld [vmem:[%s4926 + $0x1640] sm:$0xff]
        %v6594 = vld [vmem:[%s4926 + $0x1658] sm:$0xff]
        %v6595 = vld [vmem:[%s4926 + $0x1670] sm:$0xff]
        %v6596 = vld [vmem:[%s4926 + $0x1688] sm:$0xff]
        %v6597 = vld [vmem:[%s4926 + $0x16a0] sm:$0xff]
        %v6598 = vld [vmem:[%s4926 + $0x16b8] sm:$0xff]
        %v6599 = vld [vmem:[%s4926 + $0x16d0] sm:$0xff]
        %v6600 = vld [vmem:[%s4926 + $0x16e8] sm:$0xff]
        %v6601 = vld [vmem:[%s4926 + $0x1700] sm:$0xff]
        %v6602 = vld [vmem:[%s4926 + $0x1718] sm:$0xff]
        %v6603 = vld [vmem:[%s4926 + $0x1730] sm:$0xff]
        %v6604 = vld [vmem:[%s4926 + $0x1748] sm:$0xff]
        %v6605 = vld [vmem:[%s4926 + $0x1760] sm:$0xff]
        %v6606 = vld [vmem:[%s4926 + $0x1778] sm:$0xff]
        %v6607 = vld [vmem:[%s4926 + $0x1790] sm:$0xff]
        %v6608 = vld [vmem:[%s4926 + $0x17a8] sm:$0xff]
        %v6609 = vld [vmem:[%s4926 + $0x17c0] sm:$0xff]
        %v6610 = vld [vmem:[%s4926 + $0x17d8] sm:$0xff]
        %v6611 = vld [vmem:[%s4926 + $0x17f0] sm:$0xff]
        %v6612 = vunpack.c.l.bf16 %v6356
        %v6613 = vunpack.c.h.bf16 %v6356
        %v6614 = vunpack.c.l.bf16 %v6357
        %v6615 = vunpack.c.h.bf16 %v6357
        %v6616 = vunpack.c.l.bf16 %v6358
        %v6617 = vunpack.c.h.bf16 %v6358
        %v6618 = vunpack.c.l.bf16 %v6359
        %v6619 = vunpack.c.h.bf16 %v6359
        %v6620 = vunpack.c.l.bf16 %v6360
        %v6621 = vunpack.c.h.bf16 %v6360
        %v6622 = vunpack.c.l.bf16 %v6361
        %v6623 = vunpack.c.h.bf16 %v6361
        %v6624 = vunpack.c.l.bf16 %v6362
        %v6625 = vunpack.c.h.bf16 %v6362
        %v6626 = vunpack.c.l.bf16 %v6363
        %v6627 = vunpack.c.h.bf16 %v6363
        %v6628 = vunpack.c.l.bf16 %v6364
        %v6629 = vunpack.c.h.bf16 %v6364
        %v6630 = vunpack.c.l.bf16 %v6365
        %v6631 = vunpack.c.h.bf16 %v6365
        %v6632 = vunpack.c.l.bf16 %v6366
        %v6633 = vunpack.c.h.bf16 %v6366
        %v6634 = vunpack.c.l.bf16 %v6367
        %v6635 = vunpack.c.h.bf16 %v6367
        %v6636 = vunpack.c.l.bf16 %v6368
        %v6637 = vunpack.c.h.bf16 %v6368
        %v6638 = vunpack.c.l.bf16 %v6369
        %v6639 = vunpack.c.h.bf16 %v6369
        %v6640 = vunpack.c.l.bf16 %v6370
        %v6641 = vunpack.c.h.bf16 %v6370
        %v6642 = vunpack.c.l.bf16 %v6371
        %v6643 = vunpack.c.h.bf16 %v6371
        %v6644 = vunpack.c.l.bf16 %v6372
        %v6645 = vunpack.c.h.bf16 %v6372
        %v6646 = vunpack.c.l.bf16 %v6373
        %v6647 = vunpack.c.h.bf16 %v6373
        %v6648 = vunpack.c.l.bf16 %v6374
        %v6649 = vunpack.c.h.bf16 %v6374
        %v6650 = vunpack.c.l.bf16 %v6375
        %v6651 = vunpack.c.h.bf16 %v6375
        %v6652 = vunpack.c.l.bf16 %v6376
        %v6653 = vunpack.c.h.bf16 %v6376
        %v6654 = vunpack.c.l.bf16 %v6377
        %v6655 = vunpack.c.h.bf16 %v6377
        %v6656 = vunpack.c.l.bf16 %v6378
        %v6657 = vunpack.c.h.bf16 %v6378
        %v6658 = vunpack.c.l.bf16 %v6379
        %v6659 = vunpack.c.h.bf16 %v6379
        %v6660 = vunpack.c.l.bf16 %v6380
        %v6661 = vunpack.c.h.bf16 %v6380
        %v6662 = vunpack.c.l.bf16 %v6381
        %v6663 = vunpack.c.h.bf16 %v6381
        %v6664 = vunpack.c.l.bf16 %v6382
        %v6665 = vunpack.c.h.bf16 %v6382
        %v6666 = vunpack.c.l.bf16 %v6383
        %v6667 = vunpack.c.h.bf16 %v6383
        %v6668 = vunpack.c.l.bf16 %v6384
        %v6669 = vunpack.c.h.bf16 %v6384
        %v6670 = vunpack.c.l.bf16 %v6385
        %v6671 = vunpack.c.h.bf16 %v6385
        %v6672 = vunpack.c.l.bf16 %v6386
        %v6673 = vunpack.c.h.bf16 %v6386
        %v6674 = vunpack.c.l.bf16 %v6387
        %v6675 = vunpack.c.h.bf16 %v6387
        %v6676 = vunpack.c.l.bf16 %v6388
        %v6677 = vunpack.c.h.bf16 %v6388
        %v6678 = vunpack.c.l.bf16 %v6389
        %v6679 = vunpack.c.h.bf16 %v6389
        %v6680 = vunpack.c.l.bf16 %v6390
        %v6681 = vunpack.c.h.bf16 %v6390
        %v6682 = vunpack.c.l.bf16 %v6391
        %v6683 = vunpack.c.h.bf16 %v6391
        %v6684 = vunpack.c.l.bf16 %v6392
        %v6685 = vunpack.c.h.bf16 %v6392
        %v6686 = vunpack.c.l.bf16 %v6393
        %v6687 = vunpack.c.h.bf16 %v6393
        %v6688 = vunpack.c.l.bf16 %v6394
        %v6689 = vunpack.c.h.bf16 %v6394
        %v6690 = vunpack.c.l.bf16 %v6395
        %v6691 = vunpack.c.h.bf16 %v6395
        %v6692 = vunpack.c.l.bf16 %v6396
        %v6693 = vunpack.c.h.bf16 %v6396
        %v6694 = vunpack.c.l.bf16 %v6397
        %v6695 = vunpack.c.h.bf16 %v6397
        %v6696 = vunpack.c.l.bf16 %v6398
        %v6697 = vunpack.c.h.bf16 %v6398
        %v6698 = vunpack.c.l.bf16 %v6399
        %v6699 = vunpack.c.h.bf16 %v6399
        %v6700 = vunpack.c.l.bf16 %v6400
        %v6701 = vunpack.c.h.bf16 %v6400
        %v6702 = vunpack.c.l.bf16 %v6401
        %v6703 = vunpack.c.h.bf16 %v6401
        %v6704 = vunpack.c.l.bf16 %v6402
        %v6705 = vunpack.c.h.bf16 %v6402
        %v6706 = vunpack.c.l.bf16 %v6403
        %v6707 = vunpack.c.h.bf16 %v6403
        %v6708 = vunpack.c.l.bf16 %v6404
        %v6709 = vunpack.c.h.bf16 %v6404
        %v6710 = vunpack.c.l.bf16 %v6405
        %v6711 = vunpack.c.h.bf16 %v6405
        %v6712 = vunpack.c.l.bf16 %v6406
        %v6713 = vunpack.c.h.bf16 %v6406
        %v6714 = vunpack.c.l.bf16 %v6407
        %v6715 = vunpack.c.h.bf16 %v6407
        %v6716 = vunpack.c.l.bf16 %v6408
        %v6717 = vunpack.c.h.bf16 %v6408
        %v6718 = vunpack.c.l.bf16 %v6409
        %v6719 = vunpack.c.h.bf16 %v6409
        %v6720 = vunpack.c.l.bf16 %v6410
        %v6721 = vunpack.c.h.bf16 %v6410
        %v6722 = vunpack.c.l.bf16 %v6411
        %v6723 = vunpack.c.h.bf16 %v6411
        %v6724 = vunpack.c.l.bf16 %v6412
        %v6725 = vunpack.c.h.bf16 %v6412
        %v6726 = vunpack.c.l.bf16 %v6413
        %v6727 = vunpack.c.h.bf16 %v6413
        %v6728 = vunpack.c.l.bf16 %v6414
        %v6729 = vunpack.c.h.bf16 %v6414
        %v6730 = vunpack.c.l.bf16 %v6415
        %v6731 = vunpack.c.h.bf16 %v6415
        %v6732 = vunpack.c.l.bf16 %v6416
        %v6733 = vunpack.c.h.bf16 %v6416
        %v6734 = vunpack.c.l.bf16 %v6417
        %v6735 = vunpack.c.h.bf16 %v6417
        %v6736 = vunpack.c.l.bf16 %v6418
        %v6737 = vunpack.c.h.bf16 %v6418
        %v6738 = vunpack.c.l.bf16 %v6419
        %v6739 = vunpack.c.h.bf16 %v6419
        %v6740 = vunpack.c.l.bf16 %v6420
        %v6741 = vunpack.c.h.bf16 %v6420
        %v6742 = vunpack.c.l.bf16 %v6421
        %v6743 = vunpack.c.h.bf16 %v6421
        %v6744 = vunpack.c.l.bf16 %v6422
        %v6745 = vunpack.c.h.bf16 %v6422
        %v6746 = vunpack.c.l.bf16 %v6423
        %v6747 = vunpack.c.h.bf16 %v6423
        %v6748 = vunpack.c.l.bf16 %v6424
        %v6749 = vunpack.c.h.bf16 %v6424
        %v6750 = vunpack.c.l.bf16 %v6425
        %v6751 = vunpack.c.h.bf16 %v6425
        %v6752 = vunpack.c.l.bf16 %v6426
        %v6753 = vunpack.c.h.bf16 %v6426
        %v6754 = vunpack.c.l.bf16 %v6427
        %v6755 = vunpack.c.h.bf16 %v6427
        %v6756 = vunpack.c.l.bf16 %v6428
        %v6757 = vunpack.c.h.bf16 %v6428
        %v6758 = vunpack.c.l.bf16 %v6429
        %v6759 = vunpack.c.h.bf16 %v6429
        %v6760 = vunpack.c.l.bf16 %v6430
        %v6761 = vunpack.c.h.bf16 %v6430
        %v6762 = vunpack.c.l.bf16 %v6431
        %v6763 = vunpack.c.h.bf16 %v6431
        %v6764 = vunpack.c.l.bf16 %v6432
        %v6765 = vunpack.c.h.bf16 %v6432
        %v6766 = vunpack.c.l.bf16 %v6433
        %v6767 = vunpack.c.h.bf16 %v6433
        %v6768 = vunpack.c.l.bf16 %v6434
        %v6769 = vunpack.c.h.bf16 %v6434
        %v6770 = vunpack.c.l.bf16 %v6435
        %v6771 = vunpack.c.h.bf16 %v6435
        %v6772 = vunpack.c.l.bf16 %v6436
        %v6773 = vunpack.c.h.bf16 %v6436
        %v6774 = vunpack.c.l.bf16 %v6437
        %v6775 = vunpack.c.h.bf16 %v6437
        %v6776 = vunpack.c.l.bf16 %v6438
        %v6777 = vunpack.c.h.bf16 %v6438
        %v6778 = vunpack.c.l.bf16 %v6439
        %v6779 = vunpack.c.h.bf16 %v6439
        %v6780 = vunpack.c.l.bf16 %v6440
        %v6781 = vunpack.c.h.bf16 %v6440
        %v6782 = vunpack.c.l.bf16 %v6441
        %v6783 = vunpack.c.h.bf16 %v6441
        %v6784 = vunpack.c.l.bf16 %v6442
        %v6785 = vunpack.c.h.bf16 %v6442
        %v6786 = vunpack.c.l.bf16 %v6443
        %v6787 = vunpack.c.h.bf16 %v6443
        %v6788 = vunpack.c.l.bf16 %v6444
        %v6789 = vunpack.c.h.bf16 %v6444
        %v6790 = vunpack.c.l.bf16 %v6445
        %v6791 = vunpack.c.h.bf16 %v6445
        %v6792 = vunpack.c.l.bf16 %v6446
        %v6793 = vunpack.c.h.bf16 %v6446
        %v6794 = vunpack.c.l.bf16 %v6447
        %v6795 = vunpack.c.h.bf16 %v6447
        %v6796 = vunpack.c.l.bf16 %v6448
        %v6797 = vunpack.c.h.bf16 %v6448
        %v6798 = vunpack.c.l.bf16 %v6449
        %v6799 = vunpack.c.h.bf16 %v6449
        %v6800 = vunpack.c.l.bf16 %v6450
        %v6801 = vunpack.c.h.bf16 %v6450
        %v6802 = vunpack.c.l.bf16 %v6451
        %v6803 = vunpack.c.h.bf16 %v6451
        %v6804 = vunpack.c.l.bf16 %v6452
        %v6805 = vunpack.c.h.bf16 %v6452
        %v6806 = vunpack.c.l.bf16 %v6453
        %v6807 = vunpack.c.h.bf16 %v6453
        %v6808 = vunpack.c.l.bf16 %v6454
        %v6809 = vunpack.c.h.bf16 %v6454
        %v6810 = vunpack.c.l.bf16 %v6455
        %v6811 = vunpack.c.h.bf16 %v6455
        %v6812 = vunpack.c.l.bf16 %v6456
        %v6813 = vunpack.c.h.bf16 %v6456
        %v6814 = vunpack.c.l.bf16 %v6457
        %v6815 = vunpack.c.h.bf16 %v6457
        %v6816 = vunpack.c.l.bf16 %v6458
        %v6817 = vunpack.c.h.bf16 %v6458
        %v6818 = vunpack.c.l.bf16 %v6459
        %v6819 = vunpack.c.h.bf16 %v6459
        %v6820 = vunpack.c.l.bf16 %v6460
        %v6821 = vunpack.c.h.bf16 %v6460
        %v6822 = vunpack.c.l.bf16 %v6461
        %v6823 = vunpack.c.h.bf16 %v6461
        %v6824 = vunpack.c.l.bf16 %v6462
        %v6825 = vunpack.c.h.bf16 %v6462
        %v6826 = vunpack.c.l.bf16 %v6463
        %v6827 = vunpack.c.h.bf16 %v6463
        %v6828 = vunpack.c.l.bf16 %v6464
        %v6829 = vunpack.c.h.bf16 %v6464
        %v6830 = vunpack.c.l.bf16 %v6465
        %v6831 = vunpack.c.h.bf16 %v6465
        %v6832 = vunpack.c.l.bf16 %v6466
        %v6833 = vunpack.c.h.bf16 %v6466
        %v6834 = vunpack.c.l.bf16 %v6467
        %v6835 = vunpack.c.h.bf16 %v6467
        %v6836 = vunpack.c.l.bf16 %v6468
        %v6837 = vunpack.c.h.bf16 %v6468
        %v6838 = vunpack.c.l.bf16 %v6469
        %v6839 = vunpack.c.h.bf16 %v6469
        %v6840 = vunpack.c.l.bf16 %v6470
        %v6841 = vunpack.c.h.bf16 %v6470
        %v6842 = vunpack.c.l.bf16 %v6471
        %v6843 = vunpack.c.h.bf16 %v6471
        %v6844 = vunpack.c.l.bf16 %v6472
        %v6845 = vunpack.c.h.bf16 %v6472
        %v6846 = vunpack.c.l.bf16 %v6473
        %v6847 = vunpack.c.h.bf16 %v6473
        %v6848 = vunpack.c.l.bf16 %v6474
        %v6849 = vunpack.c.h.bf16 %v6474
        %v6850 = vunpack.c.l.bf16 %v6475
        %v6851 = vunpack.c.h.bf16 %v6475
        %v6852 = vunpack.c.l.bf16 %v6476
        %v6853 = vunpack.c.h.bf16 %v6476
        %v6854 = vunpack.c.l.bf16 %v6477
        %v6855 = vunpack.c.h.bf16 %v6477
        %v6856 = vunpack.c.l.bf16 %v6478
        %v6857 = vunpack.c.h.bf16 %v6478
        %v6858 = vunpack.c.l.bf16 %v6479
        %v6859 = vunpack.c.h.bf16 %v6479
        %v6860 = vunpack.c.l.bf16 %v6480
        %v6861 = vunpack.c.h.bf16 %v6480
        %v6862 = vunpack.c.l.bf16 %v6481
        %v6863 = vunpack.c.h.bf16 %v6481
        %v6864 = vunpack.c.l.bf16 %v6482
        %v6865 = vunpack.c.h.bf16 %v6482
        %v6866 = vunpack.c.l.bf16 %v6483
        %v6867 = vunpack.c.h.bf16 %v6483
        %v6868 = vunpack.c.l.bf16 %v6484
        %v6869 = vunpack.c.h.bf16 %v6484
        %v6870 = vunpack.c.l.bf16 %v6485
        %v6871 = vunpack.c.h.bf16 %v6485
        %v6872 = vunpack.c.l.bf16 %v6486
        %v6873 = vunpack.c.h.bf16 %v6486
        %v6874 = vunpack.c.l.bf16 %v6487
        %v6875 = vunpack.c.h.bf16 %v6487
        %v6876 = vunpack.c.l.bf16 %v6488
        %v6877 = vunpack.c.h.bf16 %v6488
        %v6878 = vunpack.c.l.bf16 %v6489
        %v6879 = vunpack.c.h.bf16 %v6489
        %v6880 = vunpack.c.l.bf16 %v6490
        %v6881 = vunpack.c.h.bf16 %v6490
        %v6882 = vunpack.c.l.bf16 %v6491
        %v6883 = vunpack.c.h.bf16 %v6491
        %v6884 = vunpack.c.l.bf16 %v6492
        %v6885 = vunpack.c.h.bf16 %v6492
        %v6886 = vunpack.c.l.bf16 %v6493
        %v6887 = vunpack.c.h.bf16 %v6493
        %v6888 = vunpack.c.l.bf16 %v6494
        %v6889 = vunpack.c.h.bf16 %v6494
        %v6890 = vunpack.c.l.bf16 %v6495
        %v6891 = vunpack.c.h.bf16 %v6495
        %v6892 = vunpack.c.l.bf16 %v6496
        %v6893 = vunpack.c.h.bf16 %v6496
        %v6894 = vunpack.c.l.bf16 %v6497
        %v6895 = vunpack.c.h.bf16 %v6497
        %v6896 = vunpack.c.l.bf16 %v6498
        %v6897 = vunpack.c.h.bf16 %v6498
        %v6898 = vunpack.c.l.bf16 %v6499
        %v6899 = vunpack.c.h.bf16 %v6499
        %v6900 = vunpack.c.l.bf16 %v6500
        %v6901 = vunpack.c.h.bf16 %v6500
        %v6902 = vunpack.c.l.bf16 %v6501
        %v6903 = vunpack.c.h.bf16 %v6501
        %v6904 = vunpack.c.l.bf16 %v6502
        %v6905 = vunpack.c.h.bf16 %v6502
        %v6906 = vunpack.c.l.bf16 %v6503
        %v6907 = vunpack.c.h.bf16 %v6503
        %v6908 = vunpack.c.l.bf16 %v6504
        %v6909 = vunpack.c.h.bf16 %v6504
        %v6910 = vunpack.c.l.bf16 %v6505
        %v6911 = vunpack.c.h.bf16 %v6505
        %v6912 = vunpack.c.l.bf16 %v6506
        %v6913 = vunpack.c.h.bf16 %v6506
        %v6914 = vunpack.c.l.bf16 %v6507
        %v6915 = vunpack.c.h.bf16 %v6507
        %v6916 = vunpack.c.l.bf16 %v6508
        %v6917 = vunpack.c.h.bf16 %v6508
        %v6918 = vunpack.c.l.bf16 %v6509
        %v6919 = vunpack.c.h.bf16 %v6509
        %v6920 = vunpack.c.l.bf16 %v6510
        %v6921 = vunpack.c.h.bf16 %v6510
        %v6922 = vunpack.c.l.bf16 %v6511
        %v6923 = vunpack.c.h.bf16 %v6511
        %v6924 = vunpack.c.l.bf16 %v6512
        %v6925 = vunpack.c.h.bf16 %v6512
        %v6926 = vunpack.c.l.bf16 %v6513
        %v6927 = vunpack.c.h.bf16 %v6513
        %v6928 = vunpack.c.l.bf16 %v6514
        %v6929 = vunpack.c.h.bf16 %v6514
        %v6930 = vunpack.c.l.bf16 %v6515
        %v6931 = vunpack.c.h.bf16 %v6515
        %v6932 = vunpack.c.l.bf16 %v6516
        %v6933 = vunpack.c.h.bf16 %v6516
        %v6934 = vunpack.c.l.bf16 %v6517
        %v6935 = vunpack.c.h.bf16 %v6517
        %v6936 = vunpack.c.l.bf16 %v6518
        %v6937 = vunpack.c.h.bf16 %v6518
        %v6938 = vunpack.c.l.bf16 %v6519
        %v6939 = vunpack.c.h.bf16 %v6519
        %v6940 = vunpack.c.l.bf16 %v6520
        %v6941 = vunpack.c.h.bf16 %v6520
        %v6942 = vunpack.c.l.bf16 %v6521
        %v6943 = vunpack.c.h.bf16 %v6521
        %v6944 = vunpack.c.l.bf16 %v6522
        %v6945 = vunpack.c.h.bf16 %v6522
        %v6946 = vunpack.c.l.bf16 %v6523
        %v6947 = vunpack.c.h.bf16 %v6523
        %v6948 = vunpack.c.l.bf16 %v6524
        %v6949 = vunpack.c.h.bf16 %v6524
        %v6950 = vunpack.c.l.bf16 %v6525
        %v6951 = vunpack.c.h.bf16 %v6525
        %v6952 = vunpack.c.l.bf16 %v6526
        %v6953 = vunpack.c.h.bf16 %v6526
        %v6954 = vunpack.c.l.bf16 %v6527
        %v6955 = vunpack.c.h.bf16 %v6527
        %v6956 = vunpack.c.l.bf16 %v6528
        %v6957 = vunpack.c.h.bf16 %v6528
        %v6958 = vunpack.c.l.bf16 %v6529
        %v6959 = vunpack.c.h.bf16 %v6529
        %v6960 = vunpack.c.l.bf16 %v6530
        %v6961 = vunpack.c.h.bf16 %v6530
        %v6962 = vunpack.c.l.bf16 %v6531
        %v6963 = vunpack.c.h.bf16 %v6531
        %v6964 = vunpack.c.l.bf16 %v6532
        %v6965 = vunpack.c.h.bf16 %v6532
        %v6966 = vunpack.c.l.bf16 %v6533
        %v6967 = vunpack.c.h.bf16 %v6533
        %v6968 = vunpack.c.l.bf16 %v6534
        %v6969 = vunpack.c.h.bf16 %v6534
        %v6970 = vunpack.c.l.bf16 %v6535
        %v6971 = vunpack.c.h.bf16 %v6535
        %v6972 = vunpack.c.l.bf16 %v6536
        %v6973 = vunpack.c.h.bf16 %v6536
        %v6974 = vunpack.c.l.bf16 %v6537
        %v6975 = vunpack.c.h.bf16 %v6537
        %v6976 = vunpack.c.l.bf16 %v6538
        %v6977 = vunpack.c.h.bf16 %v6538
        %v6978 = vunpack.c.l.bf16 %v6539
        %v6979 = vunpack.c.h.bf16 %v6539
        %v6980 = vunpack.c.l.bf16 %v6540
        %v6981 = vunpack.c.h.bf16 %v6540
        %v6982 = vunpack.c.l.bf16 %v6541
        %v6983 = vunpack.c.h.bf16 %v6541
        %v6984 = vunpack.c.l.bf16 %v6542
        %v6985 = vunpack.c.h.bf16 %v6542
        %v6986 = vunpack.c.l.bf16 %v6543
        %v6987 = vunpack.c.h.bf16 %v6543
        %v6988 = vunpack.c.l.bf16 %v6544
        %v6989 = vunpack.c.h.bf16 %v6544
        %v6990 = vunpack.c.l.bf16 %v6545
        %v6991 = vunpack.c.h.bf16 %v6545
        %v6992 = vunpack.c.l.bf16 %v6546
        %v6993 = vunpack.c.h.bf16 %v6546
        %v6994 = vunpack.c.l.bf16 %v6547
        %v6995 = vunpack.c.h.bf16 %v6547
        %v6996 = vunpack.c.l.bf16 %v6548
        %v6997 = vunpack.c.h.bf16 %v6548
        %v6998 = vunpack.c.l.bf16 %v6549
        %v6999 = vunpack.c.h.bf16 %v6549
        %v7000 = vunpack.c.l.bf16 %v6550
        %v7001 = vunpack.c.h.bf16 %v6550
        %v7002 = vunpack.c.l.bf16 %v6551
        %v7003 = vunpack.c.h.bf16 %v6551
        %v7004 = vunpack.c.l.bf16 %v6552
        %v7005 = vunpack.c.h.bf16 %v6552
        %v7006 = vunpack.c.l.bf16 %v6553
        %v7007 = vunpack.c.h.bf16 %v6553
        %v7008 = vunpack.c.l.bf16 %v6554
        %v7009 = vunpack.c.h.bf16 %v6554
        %v7010 = vunpack.c.l.bf16 %v6555
        %v7011 = vunpack.c.h.bf16 %v6555
        %v7012 = vunpack.c.l.bf16 %v6556
        %v7013 = vunpack.c.h.bf16 %v6556
        %v7014 = vunpack.c.l.bf16 %v6557
        %v7015 = vunpack.c.h.bf16 %v6557
        %v7016 = vunpack.c.l.bf16 %v6558
        %v7017 = vunpack.c.h.bf16 %v6558
        %v7018 = vunpack.c.l.bf16 %v6559
        %v7019 = vunpack.c.h.bf16 %v6559
        %v7020 = vunpack.c.l.bf16 %v6560
        %v7021 = vunpack.c.h.bf16 %v6560
        %v7022 = vunpack.c.l.bf16 %v6561
        %v7023 = vunpack.c.h.bf16 %v6561
        %v7024 = vunpack.c.l.bf16 %v6562
        %v7025 = vunpack.c.h.bf16 %v6562
        %v7026 = vunpack.c.l.bf16 %v6563
        %v7027 = vunpack.c.h.bf16 %v6563
        %v7028 = vunpack.c.l.bf16 %v6564
        %v7029 = vunpack.c.h.bf16 %v6564
        %v7030 = vunpack.c.l.bf16 %v6565
        %v7031 = vunpack.c.h.bf16 %v6565
        %v7032 = vunpack.c.l.bf16 %v6566
        %v7033 = vunpack.c.h.bf16 %v6566
        %v7034 = vunpack.c.l.bf16 %v6567
        %v7035 = vunpack.c.h.bf16 %v6567
        %v7036 = vunpack.c.l.bf16 %v6568
        %v7037 = vunpack.c.h.bf16 %v6568
        %v7038 = vunpack.c.l.bf16 %v6569
        %v7039 = vunpack.c.h.bf16 %v6569
        %v7040 = vunpack.c.l.bf16 %v6570
        %v7041 = vunpack.c.h.bf16 %v6570
        %v7042 = vunpack.c.l.bf16 %v6571
        %v7043 = vunpack.c.h.bf16 %v6571
        %v7044 = vunpack.c.l.bf16 %v6572
        %v7045 = vunpack.c.h.bf16 %v6572
        %v7046 = vunpack.c.l.bf16 %v6573
        %v7047 = vunpack.c.h.bf16 %v6573
        %v7048 = vunpack.c.l.bf16 %v6574
        %v7049 = vunpack.c.h.bf16 %v6574
        %v7050 = vunpack.c.l.bf16 %v6575
        %v7051 = vunpack.c.h.bf16 %v6575
        %v7052 = vunpack.c.l.bf16 %v6576
        %v7053 = vunpack.c.h.bf16 %v6576
        %v7054 = vunpack.c.l.bf16 %v6577
        %v7055 = vunpack.c.h.bf16 %v6577
        %v7056 = vunpack.c.l.bf16 %v6578
        %v7057 = vunpack.c.h.bf16 %v6578
        %v7058 = vunpack.c.l.bf16 %v6579
        %v7059 = vunpack.c.h.bf16 %v6579
        %v7060 = vunpack.c.l.bf16 %v6580
        %v7061 = vunpack.c.h.bf16 %v6580
        %v7062 = vunpack.c.l.bf16 %v6581
        %v7063 = vunpack.c.h.bf16 %v6581
        %v7064 = vunpack.c.l.bf16 %v6582
        %v7065 = vunpack.c.h.bf16 %v6582
        %v7066 = vunpack.c.l.bf16 %v6583
        %v7067 = vunpack.c.h.bf16 %v6583
        %v7068 = vunpack.c.l.bf16 %v6584
        %v7069 = vunpack.c.h.bf16 %v6584
        %v7070 = vunpack.c.l.bf16 %v6585
        %v7071 = vunpack.c.h.bf16 %v6585
        %v7072 = vunpack.c.l.bf16 %v6586
        %v7073 = vunpack.c.h.bf16 %v6586
        %v7074 = vunpack.c.l.bf16 %v6587
        %v7075 = vunpack.c.h.bf16 %v6587
        %v7076 = vunpack.c.l.bf16 %v6588
        %v7077 = vunpack.c.h.bf16 %v6588
        %v7078 = vunpack.c.l.bf16 %v6589
        %v7079 = vunpack.c.h.bf16 %v6589
        %v7080 = vunpack.c.l.bf16 %v6590
        %v7081 = vunpack.c.h.bf16 %v6590
        %v7082 = vunpack.c.l.bf16 %v6591
        %v7083 = vunpack.c.h.bf16 %v6591
        %v7084 = vunpack.c.l.bf16 %v6592
        %v7085 = vunpack.c.h.bf16 %v6592
        %v7086 = vunpack.c.l.bf16 %v6593
        %v7087 = vunpack.c.h.bf16 %v6593
        %v7088 = vunpack.c.l.bf16 %v6594
        %v7089 = vunpack.c.h.bf16 %v6594
        %v7090 = vunpack.c.l.bf16 %v6595
        %v7091 = vunpack.c.h.bf16 %v6595
        %v7092 = vunpack.c.l.bf16 %v6596
        %v7093 = vunpack.c.h.bf16 %v6596
        %v7094 = vunpack.c.l.bf16 %v6597
        %v7095 = vunpack.c.h.bf16 %v6597
        %v7096 = vunpack.c.l.bf16 %v6598
        %v7097 = vunpack.c.h.bf16 %v6598
        %v7098 = vunpack.c.l.bf16 %v6599
        %v7099 = vunpack.c.h.bf16 %v6599
        %v7100 = vunpack.c.l.bf16 %v6600
        %v7101 = vunpack.c.h.bf16 %v6600
        %v7102 = vunpack.c.l.bf16 %v6601
        %v7103 = vunpack.c.h.bf16 %v6601
        %v7104 = vunpack.c.l.bf16 %v6602
        %v7105 = vunpack.c.h.bf16 %v6602
        %v7106 = vunpack.c.l.bf16 %v6603
        %v7107 = vunpack.c.h.bf16 %v6603
        %v7108 = vunpack.c.l.bf16 %v6604
        %v7109 = vunpack.c.h.bf16 %v6604
        %v7110 = vunpack.c.l.bf16 %v6605
        %v7111 = vunpack.c.h.bf16 %v6605
        %v7112 = vunpack.c.l.bf16 %v6606
        %v7113 = vunpack.c.h.bf16 %v6606
        %v7114 = vunpack.c.l.bf16 %v6607
        %v7115 = vunpack.c.h.bf16 %v6607
        %v7116 = vunpack.c.l.bf16 %v6608
        %v7117 = vunpack.c.h.bf16 %v6608
        %v7118 = vunpack.c.l.bf16 %v6609
        %v7119 = vunpack.c.h.bf16 %v6609
        %v7120 = vunpack.c.l.bf16 %v6610
        %v7121 = vunpack.c.h.bf16 %v6610
        %v7122 = vunpack.c.l.bf16 %v6611
        %v7123 = vunpack.c.h.bf16 %v6611
        %v7124 = vld [vmem:[%s5695 + $0x2] sm:$0x3]
        %v7125 = vld [vmem:[#allocation4] sm:$0xff]
        %v7126 = vld [vmem:[#allocation4 + $0x8] sm:$0xff]
        %v7127 = vld [vmem:[#allocation4 + $0x10] sm:$0xff]
        %v7128 = vld [vmem:[#allocation4 + $0x18] sm:$0xff]
        %v7129 = vld [vmem:[#allocation4 + $0x20] sm:$0xff]
        %v7130 = vld [vmem:[#allocation4 + $0x28] sm:$0xff]
        %v7131 = vld [vmem:[#allocation4 + $0x30] sm:$0xff]
        %v7132 = vld [vmem:[#allocation4 + $0x38] sm:$0xff]
        %v7133 = vld [vmem:[#allocation4 + $0x40] sm:$0xff]
        %v7134 = vld [vmem:[#allocation4 + $0x48] sm:$0xff]
        %v7135 = vld [vmem:[#allocation4 + $0x50] sm:$0xff]
        %v7136 = vld [vmem:[#allocation4 + $0x58] sm:$0xff]
        %v7137 = vld [vmem:[#allocation4 + $0x60] sm:$0xff]
        %v7138 = vld [vmem:[#allocation4 + $0x68] sm:$0xff]
        %v7139 = vld [vmem:[#allocation4 + $0x70] sm:$0xff]
        %v7140 = vld [vmem:[#allocation4 + $0x78] sm:$0xff]
        %v7141 = vld [vmem:[#allocation4 + $0x80] sm:$0xff]
        %v7142 = vld [vmem:[#allocation4 + $0x88] sm:$0xff]
        %v7143 = vld [vmem:[#allocation4 + $0x90] sm:$0xff]
        %v7144 = vld [vmem:[#allocation4 + $0x98] sm:$0xff]
        %v7145 = vld [vmem:[#allocation4 + $0xa0] sm:$0xff]
        %v7146 = vld [vmem:[#allocation4 + $0xa8] sm:$0xff]
        %v7147 = vld [vmem:[#allocation4 + $0xb0] sm:$0xff]
        %v7148 = vld [vmem:[#allocation4 + $0xb8] sm:$0xff]
        %v7149 = vld [vmem:[#allocation4 + $0xc0] sm:$0xff]
        %v7150 = vld [vmem:[#allocation4 + $0xc8] sm:$0xff]
        %v7151 = vld [vmem:[#allocation4 + $0xd0] sm:$0xff]
        %v7152 = vld [vmem:[#allocation4 + $0xd8] sm:$0xff]
        %v7153 = vld [vmem:[#allocation4 + $0xe0] sm:$0xff]
        %v7154 = vld [vmem:[#allocation4 + $0xe8] sm:$0xff]
        %v7155 = vld [vmem:[#allocation4 + $0xf0] sm:$0xff]
        %v7156 = vld [vmem:[#allocation4 + $0xf8] sm:$0xff]
        %v7158 = vlaneseq
        %v7159 = vshrl.u32 %v7158, 7
        %v7160 = vsub.s32 0, %v7159
        %v7161 = vrot.slane %v7124, %v7160
        %v7162 = vlaneseq
        %v7163 = vshrl.u32 %v7162, 7
        %v7164 = vsub.s32 1, %v7163
        %v7165 = vrot.slane %v7124, %v7164
        %7168 = vmatprep.subr.mxu0 %v6643
        %7169 = vmatpush1.msra.mxu0 %v6642
        %7170 = vmatprep.subr.mxu0 %v6641
        %7171 = vmatpush1.msra.mxu0 %v6640
        %7172 = vmatprep.subr.mxu0 %v6639
        %7173 = vmatpush1.msra.mxu0 %v6638
        %7174 = vmatprep.subr.mxu0 %v6637
        %7175 = vmatpush1.msra.mxu0 %v6636
        %7176 = vmatprep.subr.mxu0 %v6635
        %7177 = vmatpush1.msra.mxu0 %v6634
        %7178 = vmatprep.subr.mxu0 %v6633
        %7179 = vmatpush1.msra.mxu0 %v6632
        %7180 = vmatprep.subr.mxu0 %v6631
        %7181 = vmatpush1.msra.mxu0 %v6630
        %7182 = vmatprep.subr.mxu0 %v6629
        %7183 = vmatpush1.msra.mxu0 %v6628
        %7184 = vmatprep.subr.mxu0 %v6627
        %7185 = vmatpush1.msra.mxu0 %v6626
        %7186 = vmatprep.subr.mxu0 %v6625
        %7187 = vmatpush1.msra.mxu0 %v6624
        %7188 = vmatprep.subr.mxu0 %v6623
        %7189 = vmatpush1.msra.mxu0 %v6622
        %7190 = vmatprep.subr.mxu0 %v6621
        %7191 = vmatpush1.msra.mxu0 %v6620
        %7192 = vmatprep.subr.mxu0 %v6619
        %7193 = vmatpush1.msra.mxu0 %v6618
        %7194 = vmatprep.subr.mxu0 %v6617
        %7195 = vmatpush1.msra.mxu0 %v6616
        %7196 = vmatprep.subr.mxu0 %v6615
        %7197 = vmatpush1.msra.mxu0 %v6614
        %7198 = vmatprep.subr.mxu0 %v6613
        %7199 = vmatpush1.msra.mxu0 %v6612
        %7200 = vmatprep.subr.mxu0 %v6675
        %7201 = vmatpush2.msra.mxu0 %v6674
        %7202 = vmatprep.subr.mxu0 %v6673
        %7203 = vmatpush2.msra.mxu0 %v6672
        %7204 = vmatprep.subr.mxu0 %v6671
        %7205 = vmatpush2.msra.mxu0 %v6670
        %7206 = vmatprep.subr.mxu0 %v6669
        %7207 = vmatpush2.msra.mxu0 %v6668
        %7208 = vmatprep.subr.mxu0 %v6667
        %7209 = vmatpush2.msra.mxu0 %v6666
        %7210 = vmatprep.subr.mxu0 %v6665
        %7211 = vmatpush2.msra.mxu0 %v6664
        %7212 = vmatprep.subr.mxu0 %v6663
        %7213 = vmatpush2.msra.mxu0 %v6662
        %7214 = vmatprep.subr.mxu0 %v6661
        %7215 = vmatpush2.msra.mxu0 %v6660
        %7216 = vmatprep.subr.mxu0 %v6659
        %7217 = vmatpush2.msra.mxu0 %v6658
        %7218 = vmatprep.subr.mxu0 %v6657
        %7219 = vmatpush2.msra.mxu0 %v6656
        %7220 = vmatprep.subr.mxu0 %v6655
        %7221 = vmatpush2.msra.mxu0 %v6654
        %7222 = vmatprep.subr.mxu0 %v6653
        %7223 = vmatpush2.msra.mxu0 %v6652
        %7224 = vmatprep.subr.mxu0 %v6651
        %7225 = vmatpush2.msra.mxu0 %v6650
        %7226 = vmatprep.subr.mxu0 %v6649
        %7227 = vmatpush2.msra.mxu0 %v6648
        %7228 = vmatprep.subr.mxu0 %v6647
        %7229 = vmatpush2.msra.mxu0 %v6646
        %7230 = vmatprep.subr.mxu0 %v6645
        %7231 = vmatpush2.msra.mxu0 %v6644
        %7232 = vmatprep.mubr.f32.mxu0 %v7126
        %7233 = vmatmul.mubr.f32.gmra.mxu0 %v7125
        %v7234 = vpop.f32.mrf.mxu0
        %v7235 = vadd.f32 %v7161, %v7234
        %v7236 = vpop.f32.mrf.mxu0
        %v7237 = vadd.f32 %v7165, %v7236
        %7238 = vmatprep.mubr.f32.mxu0 %v7142
        %7239 = vmatmul.mubr.f32.gmra.mxu0 %v7141
        %v7240 = vpop.f32.mrf.mxu0
        %v7241 = vadd.f32 %v7161, %v7240
        %v7242 = vpop.f32.mrf.mxu0
        %v7243 = vadd.f32 %v7165, %v7242
        %7244 = vdwg.mxu0
        %7245 = vmatprep.subr.mxu0 %v6707
        %7246 = vmatpush1.msra.mxu0 %v6706
        %7247 = vmatprep.subr.mxu0 %v6705
        %7248 = vmatpush1.msra.mxu0 %v6704
        %7249 = vmatprep.subr.mxu0 %v6703
        %7250 = vmatpush1.msra.mxu0 %v6702
        %7251 = vmatprep.subr.mxu0 %v6701
        %7252 = vmatpush1.msra.mxu0 %v6700
        %7253 = vmatprep.subr.mxu0 %v6699
        %7254 = vmatpush1.msra.mxu0 %v6698
        %7255 = vmatprep.subr.mxu0 %v6697
        %7256 = vmatpush1.msra.mxu0 %v6696
        %7257 = vmatprep.subr.mxu0 %v6695
        %7258 = vmatpush1.msra.mxu0 %v6694
        %7259 = vmatprep.subr.mxu0 %v6693
        %7260 = vmatpush1.msra.mxu0 %v6692
        %7261 = vmatprep.subr.mxu0 %v6691
        %7262 = vmatpush1.msra.mxu0 %v6690
        %7263 = vmatprep.subr.mxu0 %v6689
        %7264 = vmatpush1.msra.mxu0 %v6688
        %7265 = vmatprep.subr.mxu0 %v6687
        %7266 = vmatpush1.msra.mxu0 %v6686
        %7267 = vmatprep.subr.mxu0 %v6685
        %7268 = vmatpush1.msra.mxu0 %v6684
        %7269 = vmatprep.subr.mxu0 %v6683
        %7270 = vmatpush1.msra.mxu0 %v6682
        %7271 = vmatprep.subr.mxu0 %v6681
        %7272 = vmatpush1.msra.mxu0 %v6680
        %7273 = vmatprep.subr.mxu0 %v6679
        %7274 = vmatpush1.msra.mxu0 %v6678
        %7275 = vmatprep.subr.mxu0 %v6677
        %7276 = vmatpush1.msra.mxu0 %v6676
        %7277 = vmatprep.subr.mxu0 %v6739
        %7278 = vmatpush2.msra.mxu0 %v6738
        %7279 = vmatprep.subr.mxu0 %v6737
        %7280 = vmatpush2.msra.mxu0 %v6736
        %7281 = vmatprep.subr.mxu0 %v6735
        %7282 = vmatpush2.msra.mxu0 %v6734
        %7283 = vmatprep.subr.mxu0 %v6733
        %7284 = vmatpush2.msra.mxu0 %v6732
        %7285 = vmatprep.subr.mxu0 %v6731
        %7286 = vmatpush2.msra.mxu0 %v6730
        %7287 = vmatprep.subr.mxu0 %v6729
        %7288 = vmatpush2.msra.mxu0 %v6728
        %7289 = vmatprep.subr.mxu0 %v6727
        %7290 = vmatpush2.msra.mxu0 %v6726
        %7291 = vmatprep.subr.mxu0 %v6725
        %7292 = vmatpush2.msra.mxu0 %v6724
        %7293 = vmatprep.subr.mxu0 %v6723
        %7294 = vmatpush2.msra.mxu0 %v6722
        %7295 = vmatprep.subr.mxu0 %v6721
        %7296 = vmatpush2.msra.mxu0 %v6720
        %7297 = vmatprep.subr.mxu0 %v6719
        %7298 = vmatpush2.msra.mxu0 %v6718
        %7299 = vmatprep.subr.mxu0 %v6717
        %7300 = vmatpush2.msra.mxu0 %v6716
        %7301 = vmatprep.subr.mxu0 %v6715
        %7302 = vmatpush2.msra.mxu0 %v6714
        %7303 = vmatprep.subr.mxu0 %v6713
        %7304 = vmatpush2.msra.mxu0 %v6712
        %7305 = vmatprep.subr.mxu0 %v6711
        %7306 = vmatpush2.msra.mxu0 %v6710
        %7307 = vmatprep.subr.mxu0 %v6709
        %7308 = vmatpush2.msra.mxu0 %v6708
        %7309 = vmatprep.mubr.f32.mxu0 %v7128
        %7310 = vmatmul.mubr.f32.gmra.mxu0 %v7127
        %v7311 = vpop.f32.mrf.mxu0
        %v7312 = vadd.f32 %v7235, %v7311
        %v7313 = vpop.f32.mrf.mxu0
        %v7314 = vadd.f32 %v7237, %v7313
        %7315 = vmatprep.mubr.f32.mxu0 %v7144
        %7316 = vmatmul.mubr.f32.gmra.mxu0 %v7143
        %v7317 = vpop.f32.mrf.mxu0
        %v7318 = vadd.f32 %v7241, %v7317
        %v7319 = vpop.f32.mrf.mxu0
        %v7320 = vadd.f32 %v7243, %v7319
        %7321 = vdwg.mxu0
        %7322 = vmatprep.subr.mxu0 %v6771
        %7323 = vmatpush1.msra.mxu0 %v6770
        %7324 = vmatprep.subr.mxu0 %v6769
        %7325 = vmatpush1.msra.mxu0 %v6768
        %7326 = vmatprep.subr.mxu0 %v6767
        %7327 = vmatpush1.msra.mxu0 %v6766
        %7328 = vmatprep.subr.mxu0 %v6765
        %7329 = vmatpush1.msra.mxu0 %v6764
        %7330 = vmatprep.subr.mxu0 %v6763
        %7331 = vmatpush1.msra.mxu0 %v6762
        %7332 = vmatprep.subr.mxu0 %v6761
        %7333 = vmatpush1.msra.mxu0 %v6760
        %7334 = vmatprep.subr.mxu0 %v6759
        %7335 = vmatpush1.msra.mxu0 %v6758
        %7336 = vmatprep.subr.mxu0 %v6757
        %7337 = vmatpush1.msra.mxu0 %v6756
        %7338 = vmatprep.subr.mxu0 %v6755
        %7339 = vmatpush1.msra.mxu0 %v6754
        %7340 = vmatprep.subr.mxu0 %v6753
        %7341 = vmatpush1.msra.mxu0 %v6752
        %7342 = vmatprep.subr.mxu0 %v6751
        %7343 = vmatpush1.msra.mxu0 %v6750
        %7344 = vmatprep.subr.mxu0 %v6749
        %7345 = vmatpush1.msra.mxu0 %v6748
        %7346 = vmatprep.subr.mxu0 %v6747
        %7347 = vmatpush1.msra.mxu0 %v6746
        %7348 = vmatprep.subr.mxu0 %v6745
        %7349 = vmatpush1.msra.mxu0 %v6744
        %7350 = vmatprep.subr.mxu0 %v6743
        %7351 = vmatpush1.msra.mxu0 %v6742
        %7352 = vmatprep.subr.mxu0 %v6741
        %7353 = vmatpush1.msra.mxu0 %v6740
        %7354 = vmatprep.subr.mxu0 %v6803
        %7355 = vmatpush2.msra.mxu0 %v6802
        %7356 = vmatprep.subr.mxu0 %v6801
        %7357 = vmatpush2.msra.mxu0 %v6800
        %7358 = vmatprep.subr.mxu0 %v6799
        %7359 = vmatpush2.msra.mxu0 %v6798
        %7360 = vmatprep.subr.mxu0 %v6797
        %7361 = vmatpush2.msra.mxu0 %v6796
        %7362 = vmatprep.subr.mxu0 %v6795
        %7363 = vmatpush2.msra.mxu0 %v6794
        %7364 = vmatprep.subr.mxu0 %v6793
        %7365 = vmatpush2.msra.mxu0 %v6792
        %7366 = vmatprep.subr.mxu0 %v6791
        %7367 = vmatpush2.msra.mxu0 %v6790
        %7368 = vmatprep.subr.mxu0 %v6789
        %7369 = vmatpush2.msra.mxu0 %v6788
        %7370 = vmatprep.subr.mxu0 %v6787
        %7371 = vmatpush2.msra.mxu0 %v6786
        %7372 = vmatprep.subr.mxu0 %v6785
        %7373 = vmatpush2.msra.mxu0 %v6784
        %7374 = vmatprep.subr.mxu0 %v6783
        %7375 = vmatpush2.msra.mxu0 %v6782
        %7376 = vmatprep.subr.mxu0 %v6781
        %7377 = vmatpush2.msra.mxu0 %v6780
        %7378 = vmatprep.subr.mxu0 %v6779
        %7379 = vmatpush2.msra.mxu0 %v6778
        %7380 = vmatprep.subr.mxu0 %v6777
        %7381 = vmatpush2.msra.mxu0 %v6776
        %7382 = vmatprep.subr.mxu0 %v6775
        %7383 = vmatpush2.msra.mxu0 %v6774
        %7384 = vmatprep.subr.mxu0 %v6773
        %7385 = vmatpush2.msra.mxu0 %v6772
        %7386 = vmatprep.mubr.f32.mxu0 %v7130
        %7387 = vmatmul.mubr.f32.gmra.mxu0 %v7129
        %v7388 = vpop.f32.mrf.mxu0
        %v7389 = vadd.f32 %v7312, %v7388
        %v7390 = vpop.f32.mrf.mxu0
        %v7391 = vadd.f32 %v7314, %v7390
        %7392 = vmatprep.mubr.f32.mxu0 %v7146
        %7393 = vmatmul.mubr.f32.gmra.mxu0 %v7145
        %v7394 = vpop.f32.mrf.mxu0
        %v7395 = vadd.f32 %v7318, %v7394
        %v7396 = vpop.f32.mrf.mxu0
        %v7397 = vadd.f32 %v7320, %v7396
        %7398 = vdwg.mxu0
        %7399 = vmatprep.subr.mxu0 %v6835
        %7400 = vmatpush1.msra.mxu0 %v6834
        %7401 = vmatprep.subr.mxu0 %v6833
        %7402 = vmatpush1.msra.mxu0 %v6832
        %7403 = vmatprep.subr.mxu0 %v6831
        %7404 = vmatpush1.msra.mxu0 %v6830
        %7405 = vmatprep.subr.mxu0 %v6829
        %7406 = vmatpush1.msra.mxu0 %v6828
        %7407 = vmatprep.subr.mxu0 %v6827
        %7408 = vmatpush1.msra.mxu0 %v6826
        %7409 = vmatprep.subr.mxu0 %v6825
        %7410 = vmatpush1.msra.mxu0 %v6824
        %7411 = vmatprep.subr.mxu0 %v6823
        %7412 = vmatpush1.msra.mxu0 %v6822
        %7413 = vmatprep.subr.mxu0 %v6821
        %7414 = vmatpush1.msra.mxu0 %v6820
        %7415 = vmatprep.subr.mxu0 %v6819
        %7416 = vmatpush1.msra.mxu0 %v6818
        %7417 = vmatprep.subr.mxu0 %v6817
        %7418 = vmatpush1.msra.mxu0 %v6816
        %7419 = vmatprep.subr.mxu0 %v6815
        %7420 = vmatpush1.msra.mxu0 %v6814
        %7421 = vmatprep.subr.mxu0 %v6813
        %7422 = vmatpush1.msra.mxu0 %v6812
        %7423 = vmatprep.subr.mxu0 %v6811
        %7424 = vmatpush1.msra.mxu0 %v6810
        %7425 = vmatprep.subr.mxu0 %v6809
        %7426 = vmatpush1.msra.mxu0 %v6808
        %7427 = vmatprep.subr.mxu0 %v6807
        %7428 = vmatpush1.msra.mxu0 %v6806
        %7429 = vmatprep.subr.mxu0 %v6805
        %7430 = vmatpush1.msra.mxu0 %v6804
        %7431 = vmatprep.subr.mxu0 %v6867
        %7432 = vmatpush2.msra.mxu0 %v6866
        %7433 = vmatprep.subr.mxu0 %v6865
        %7434 = vmatpush2.msra.mxu0 %v6864
        %7435 = vmatprep.subr.mxu0 %v6863
        %7436 = vmatpush2.msra.mxu0 %v6862
        %7437 = vmatprep.subr.mxu0 %v6861
        %7438 = vmatpush2.msra.mxu0 %v6860
        %7439 = vmatprep.subr.mxu0 %v6859
        %7440 = vmatpush2.msra.mxu0 %v6858
        %7441 = vmatprep.subr.mxu0 %v6857
        %7442 = vmatpush2.msra.mxu0 %v6856
        %7443 = vmatprep.subr.mxu0 %v6855
        %7444 = vmatpush2.msra.mxu0 %v6854
        %7445 = vmatprep.subr.mxu0 %v6853
        %7446 = vmatpush2.msra.mxu0 %v6852
        %7447 = vmatprep.subr.mxu0 %v6851
        %7448 = vmatpush2.msra.mxu0 %v6850
        %7449 = vmatprep.subr.mxu0 %v6849
        %7450 = vmatpush2.msra.mxu0 %v6848
        %7451 = vmatprep.subr.mxu0 %v6847
        %7452 = vmatpush2.msra.mxu0 %v6846
        %7453 = vmatprep.subr.mxu0 %v6845
        %7454 = vmatpush2.msra.mxu0 %v6844
        %7455 = vmatprep.subr.mxu0 %v6843
        %7456 = vmatpush2.msra.mxu0 %v6842
        %7457 = vmatprep.subr.mxu0 %v6841
        %7458 = vmatpush2.msra.mxu0 %v6840
        %7459 = vmatprep.subr.mxu0 %v6839
        %7460 = vmatpush2.msra.mxu0 %v6838
        %7461 = vmatprep.subr.mxu0 %v6837
        %7462 = vmatpush2.msra.mxu0 %v6836
        %7463 = vmatprep.mubr.f32.mxu0 %v7132
        %7464 = vmatmul.mubr.f32.gmra.mxu0 %v7131
        %v7465 = vpop.f32.mrf.mxu0
        %v7466 = vadd.f32 %v7389, %v7465
        %v7467 = vpop.f32.mrf.mxu0
        %v7468 = vadd.f32 %v7391, %v7467
        %7469 = vmatprep.mubr.f32.mxu0 %v7148
        %7470 = vmatmul.mubr.f32.gmra.mxu0 %v7147
        %v7471 = vpop.f32.mrf.mxu0
        %v7472 = vadd.f32 %v7395, %v7471
        %v7473 = vpop.f32.mrf.mxu0
        %v7474 = vadd.f32 %v7397, %v7473
        %7475 = vdwg.mxu0
        %7476 = vmatprep.subr.mxu0 %v6899
        %7477 = vmatpush1.msra.mxu0 %v6898
        %7478 = vmatprep.subr.mxu0 %v6897
        %7479 = vmatpush1.msra.mxu0 %v6896
        %7480 = vmatprep.subr.mxu0 %v6895
        %7481 = vmatpush1.msra.mxu0 %v6894
        %7482 = vmatprep.subr.mxu0 %v6893
        %7483 = vmatpush1.msra.mxu0 %v6892
        %7484 = vmatprep.subr.mxu0 %v6891
        %7485 = vmatpush1.msra.mxu0 %v6890
        %7486 = vmatprep.subr.mxu0 %v6889
        %7487 = vmatpush1.msra.mxu0 %v6888
        %7488 = vmatprep.subr.mxu0 %v6887
        %7489 = vmatpush1.msra.mxu0 %v6886
        %7490 = vmatprep.subr.mxu0 %v6885
        %7491 = vmatpush1.msra.mxu0 %v6884
        %7492 = vmatprep.subr.mxu0 %v6883
        %7493 = vmatpush1.msra.mxu0 %v6882
        %7494 = vmatprep.subr.mxu0 %v6881
        %7495 = vmatpush1.msra.mxu0 %v6880
        %7496 = vmatprep.subr.mxu0 %v6879
        %7497 = vmatpush1.msra.mxu0 %v6878
        %7498 = vmatprep.subr.mxu0 %v6877
        %7499 = vmatpush1.msra.mxu0 %v6876
        %7500 = vmatprep.subr.mxu0 %v6875
        %7501 = vmatpush1.msra.mxu0 %v6874
        %7502 = vmatprep.subr.mxu0 %v6873
        %7503 = vmatpush1.msra.mxu0 %v6872
        %7504 = vmatprep.subr.mxu0 %v6871
        %7505 = vmatpush1.msra.mxu0 %v6870
        %7506 = vmatprep.subr.mxu0 %v6869
        %7507 = vmatpush1.msra.mxu0 %v6868
        %7508 = vmatprep.subr.mxu0 %v6931
        %7509 = vmatpush2.msra.mxu0 %v6930
        %7510 = vmatprep.subr.mxu0 %v6929
        %7511 = vmatpush2.msra.mxu0 %v6928
        %7512 = vmatprep.subr.mxu0 %v6927
        %7513 = vmatpush2.msra.mxu0 %v6926
        %7514 = vmatprep.subr.mxu0 %v6925
        %7515 = vmatpush2.msra.mxu0 %v6924
        %7516 = vmatprep.subr.mxu0 %v6923
        %7517 = vmatpush2.msra.mxu0 %v6922
        %7518 = vmatprep.subr.mxu0 %v6921
        %7519 = vmatpush2.msra.mxu0 %v6920
        %7520 = vmatprep.subr.mxu0 %v6919
        %7521 = vmatpush2.msra.mxu0 %v6918
        %7522 = vmatprep.subr.mxu0 %v6917
        %7523 = vmatpush2.msra.mxu0 %v6916
        %7524 = vmatprep.subr.mxu0 %v6915
        %7525 = vmatpush2.msra.mxu0 %v6914
        %7526 = vmatprep.subr.mxu0 %v6913
        %7527 = vmatpush2.msra.mxu0 %v6912
        %7528 = vmatprep.subr.mxu0 %v6911
        %7529 = vmatpush2.msra.mxu0 %v6910
        %7530 = vmatprep.subr.mxu0 %v6909
        %7531 = vmatpush2.msra.mxu0 %v6908
        %7532 = vmatprep.subr.mxu0 %v6907
        %7533 = vmatpush2.msra.mxu0 %v6906
        %7534 = vmatprep.subr.mxu0 %v6905
        %7535 = vmatpush2.msra.mxu0 %v6904
        %7536 = vmatprep.subr.mxu0 %v6903
        %7537 = vmatpush2.msra.mxu0 %v6902
        %7538 = vmatprep.subr.mxu0 %v6901
        %7539 = vmatpush2.msra.mxu0 %v6900
        %7540 = vmatprep.mubr.f32.mxu0 %v7134
        %7541 = vmatmul.mubr.f32.gmra.mxu0 %v7133
        %v7542 = vpop.f32.mrf.mxu0
        %v7543 = vadd.f32 %v7466, %v7542
        %v7544 = vpop.f32.mrf.mxu0
        %v7545 = vadd.f32 %v7468, %v7544
        %7546 = vmatprep.mubr.f32.mxu0 %v7150
        %7547 = vmatmul.mubr.f32.gmra.mxu0 %v7149
        %v7548 = vpop.f32.mrf.mxu0
        %v7549 = vadd.f32 %v7472, %v7548
        %v7550 = vpop.f32.mrf.mxu0
        %v7551 = vadd.f32 %v7474, %v7550
        %7552 = vdwg.mxu0
        %7553 = vmatprep.subr.mxu0 %v6963
        %7554 = vmatpush1.msra.mxu0 %v6962
        %7555 = vmatprep.subr.mxu0 %v6961
        %7556 = vmatpush1.msra.mxu0 %v6960
        %7557 = vmatprep.subr.mxu0 %v6959
        %7558 = vmatpush1.msra.mxu0 %v6958
        %7559 = vmatprep.subr.mxu0 %v6957
        %7560 = vmatpush1.msra.mxu0 %v6956
        %7561 = vmatprep.subr.mxu0 %v6955
        %7562 = vmatpush1.msra.mxu0 %v6954
        %7563 = vmatprep.subr.mxu0 %v6953
        %7564 = vmatpush1.msra.mxu0 %v6952
        %7565 = vmatprep.subr.mxu0 %v6951
        %7566 = vmatpush1.msra.mxu0 %v6950
        %7567 = vmatprep.subr.mxu0 %v6949
        %7568 = vmatpush1.msra.mxu0 %v6948
        %7569 = vmatprep.subr.mxu0 %v6947
        %7570 = vmatpush1.msra.mxu0 %v6946
        %7571 = vmatprep.subr.mxu0 %v6945
        %7572 = vmatpush1.msra.mxu0 %v6944
        %7573 = vmatprep.subr.mxu0 %v6943
        %7574 = vmatpush1.msra.mxu0 %v6942
        %7575 = vmatprep.subr.mxu0 %v6941
        %7576 = vmatpush1.msra.mxu0 %v6940
        %7577 = vmatprep.subr.mxu0 %v6939
        %7578 = vmatpush1.msra.mxu0 %v6938
        %7579 = vmatprep.subr.mxu0 %v6937
        %7580 = vmatpush1.msra.mxu0 %v6936
        %7581 = vmatprep.subr.mxu0 %v6935
        %7582 = vmatpush1.msra.mxu0 %v6934
        %7583 = vmatprep.subr.mxu0 %v6933
        %7584 = vmatpush1.msra.mxu0 %v6932
        %7585 = vmatprep.subr.mxu0 %v6995
        %7586 = vmatpush2.msra.mxu0 %v6994
        %7587 = vmatprep.subr.mxu0 %v6993
        %7588 = vmatpush2.msra.mxu0 %v6992
        %7589 = vmatprep.subr.mxu0 %v6991
        %7590 = vmatpush2.msra.mxu0 %v6990
        %7591 = vmatprep.subr.mxu0 %v6989
        %7592 = vmatpush2.msra.mxu0 %v6988
        %7593 = vmatprep.subr.mxu0 %v6987
        %7594 = vmatpush2.msra.mxu0 %v6986
        %7595 = vmatprep.subr.mxu0 %v6985
        %7596 = vmatpush2.msra.mxu0 %v6984
        %7597 = vmatprep.subr.mxu0 %v6983
        %7598 = vmatpush2.msra.mxu0 %v6982
        %7599 = vmatprep.subr.mxu0 %v6981
        %7600 = vmatpush2.msra.mxu0 %v6980
        %7601 = vmatprep.subr.mxu0 %v6979
        %7602 = vmatpush2.msra.mxu0 %v6978
        %7603 = vmatprep.subr.mxu0 %v6977
        %7604 = vmatpush2.msra.mxu0 %v6976
        %7605 = vmatprep.subr.mxu0 %v6975
        %7606 = vmatpush2.msra.mxu0 %v6974
        %7607 = vmatprep.subr.mxu0 %v6973
        %7608 = vmatpush2.msra.mxu0 %v6972
        %7609 = vmatprep.subr.mxu0 %v6971
        %7610 = vmatpush2.msra.mxu0 %v6970
        %7611 = vmatprep.subr.mxu0 %v6969
        %7612 = vmatpush2.msra.mxu0 %v6968
        %7613 = vmatprep.subr.mxu0 %v6967
        %7614 = vmatpush2.msra.mxu0 %v6966
        %7615 = vmatprep.subr.mxu0 %v6965
        %7616 = vmatpush2.msra.mxu0 %v6964
        %7617 = vmatprep.mubr.f32.mxu0 %v7136
        %7618 = vmatmul.mubr.f32.gmra.mxu0 %v7135
        %v7619 = vpop.f32.mrf.mxu0
        %v7620 = vadd.f32 %v7543, %v7619
        %v7621 = vpop.f32.mrf.mxu0
        %v7622 = vadd.f32 %v7545, %v7621
        %7623 = vmatprep.mubr.f32.mxu0 %v7152
        %7624 = vmatmul.mubr.f32.gmra.mxu0 %v7151
        %v7625 = vpop.f32.mrf.mxu0
        %v7626 = vadd.f32 %v7549, %v7625
        %v7627 = vpop.f32.mrf.mxu0
        %v7628 = vadd.f32 %v7551, %v7627
        %7629 = vdwg.mxu0
        %7630 = vmatprep.subr.mxu0 %v7027
        %7631 = vmatpush1.msra.mxu0 %v7026
        %7632 = vmatprep.subr.mxu0 %v7025
        %7633 = vmatpush1.msra.mxu0 %v7024
        %7634 = vmatprep.subr.mxu0 %v7023
        %7635 = vmatpush1.msra.mxu0 %v7022
        %7636 = vmatprep.subr.mxu0 %v7021
        %7637 = vmatpush1.msra.mxu0 %v7020
        %7638 = vmatprep.subr.mxu0 %v7019
        %7639 = vmatpush1.msra.mxu0 %v7018
        %7640 = vmatprep.subr.mxu0 %v7017
        %7641 = vmatpush1.msra.mxu0 %v7016
        %7642 = vmatprep.subr.mxu0 %v7015
        %7643 = vmatpush1.msra.mxu0 %v7014
        %7644 = vmatprep.subr.mxu0 %v7013
        %7645 = vmatpush1.msra.mxu0 %v7012
        %7646 = vmatprep.subr.mxu0 %v7011
        %7647 = vmatpush1.msra.mxu0 %v7010
        %7648 = vmatprep.subr.mxu0 %v7009
        %7649 = vmatpush1.msra.mxu0 %v7008
        %7650 = vmatprep.subr.mxu0 %v7007
        %7651 = vmatpush1.msra.mxu0 %v7006
        %7652 = vmatprep.subr.mxu0 %v7005
        %7653 = vmatpush1.msra.mxu0 %v7004
        %7654 = vmatprep.subr.mxu0 %v7003
        %7655 = vmatpush1.msra.mxu0 %v7002
        %7656 = vmatprep.subr.mxu0 %v7001
        %7657 = vmatpush1.msra.mxu0 %v7000
        %7658 = vmatprep.subr.mxu0 %v6999
        %7659 = vmatpush1.msra.mxu0 %v6998
        %7660 = vmatprep.subr.mxu0 %v6997
        %7661 = vmatpush1.msra.mxu0 %v6996
        %7662 = vmatprep.subr.mxu0 %v7059
        %7663 = vmatpush2.msra.mxu0 %v7058
        %7664 = vmatprep.subr.mxu0 %v7057
        %7665 = vmatpush2.msra.mxu0 %v7056
        %7666 = vmatprep.subr.mxu0 %v7055
        %7667 = vmatpush2.msra.mxu0 %v7054
        %7668 = vmatprep.subr.mxu0 %v7053
        %7669 = vmatpush2.msra.mxu0 %v7052
        %7670 = vmatprep.subr.mxu0 %v7051
        %7671 = vmatpush2.msra.mxu0 %v7050
        %7672 = vmatprep.subr.mxu0 %v7049
        %7673 = vmatpush2.msra.mxu0 %v7048
        %7674 = vmatprep.subr.mxu0 %v7047
        %7675 = vmatpush2.msra.mxu0 %v7046
        %7676 = vmatprep.subr.mxu0 %v7045
        %7677 = vmatpush2.msra.mxu0 %v7044
        %7678 = vmatprep.subr.mxu0 %v7043
        %7679 = vmatpush2.msra.mxu0 %v7042
        %7680 = vmatprep.subr.mxu0 %v7041
        %7681 = vmatpush2.msra.mxu0 %v7040
        %7682 = vmatprep.subr.mxu0 %v7039
        %7683 = vmatpush2.msra.mxu0 %v7038
        %7684 = vmatprep.subr.mxu0 %v7037
        %7685 = vmatpush2.msra.mxu0 %v7036
        %7686 = vmatprep.subr.mxu0 %v7035
        %7687 = vmatpush2.msra.mxu0 %v7034
        %7688 = vmatprep.subr.mxu0 %v7033
        %7689 = vmatpush2.msra.mxu0 %v7032
        %7690 = vmatprep.subr.mxu0 %v7031
        %7691 = vmatpush2.msra.mxu0 %v7030
        %7692 = vmatprep.subr.mxu0 %v7029
        %7693 = vmatpush2.msra.mxu0 %v7028
        %7694 = vmatprep.mubr.f32.mxu0 %v7138
        %7695 = vmatmul.mubr.f32.gmra.mxu0 %v7137
        %v7696 = vpop.f32.mrf.mxu0
        %v7697 = vadd.f32 %v7620, %v7696
        %v7698 = vpop.f32.mrf.mxu0
        %v7699 = vadd.f32 %v7622, %v7698
        %7700 = vmatprep.mubr.f32.mxu0 %v7154
        %7701 = vmatmul.mubr.f32.gmra.mxu0 %v7153
        %v7702 = vpop.f32.mrf.mxu0
        %v7703 = vadd.f32 %v7626, %v7702
        %v7704 = vpop.f32.mrf.mxu0
        %v7705 = vadd.f32 %v7628, %v7704
        %7706 = vdwg.mxu0
        %7707 = vmatprep.subr.mxu0 %v7091
        %7708 = vmatpush1.msra.mxu0 %v7090
        %7709 = vmatprep.subr.mxu0 %v7089
        %7710 = vmatpush1.msra.mxu0 %v7088
        %7711 = vmatprep.subr.mxu0 %v7087
        %7712 = vmatpush1.msra.mxu0 %v7086
        %7713 = vmatprep.subr.mxu0 %v7085
        %7714 = vmatpush1.msra.mxu0 %v7084
        %7715 = vmatprep.subr.mxu0 %v7083
        %7716 = vmatpush1.msra.mxu0 %v7082
        %7717 = vmatprep.subr.mxu0 %v7081
        %7718 = vmatpush1.msra.mxu0 %v7080
        %7719 = vmatprep.subr.mxu0 %v7079
        %7720 = vmatpush1.msra.mxu0 %v7078
        %7721 = vmatprep.subr.mxu0 %v7077
        %7722 = vmatpush1.msra.mxu0 %v7076
        %7723 = vmatprep.subr.mxu0 %v7075
        %7724 = vmatpush1.msra.mxu0 %v7074
        %7725 = vmatprep.subr.mxu0 %v7073
        %7726 = vmatpush1.msra.mxu0 %v7072
        %7727 = vmatprep.subr.mxu0 %v7071
        %7728 = vmatpush1.msra.mxu0 %v7070
        %7729 = vmatprep.subr.mxu0 %v7069
        %7730 = vmatpush1.msra.mxu0 %v7068
        %7731 = vmatprep.subr.mxu0 %v7067
        %7732 = vmatpush1.msra.mxu0 %v7066
        %7733 = vmatprep.subr.mxu0 %v7065
        %7734 = vmatpush1.msra.mxu0 %v7064
        %7735 = vmatprep.subr.mxu0 %v7063
        %7736 = vmatpush1.msra.mxu0 %v7062
        %7737 = vmatprep.subr.mxu0 %v7061
        %7738 = vmatpush1.msra.mxu0 %v7060
        %7739 = vmatprep.subr.mxu0 %v7123
        %7740 = vmatpush2.msra.mxu0 %v7122
        %7741 = vmatprep.subr.mxu0 %v7121
        %7742 = vmatpush2.msra.mxu0 %v7120
        %7743 = vmatprep.subr.mxu0 %v7119
        %7744 = vmatpush2.msra.mxu0 %v7118
        %7745 = vmatprep.subr.mxu0 %v7117
        %7746 = vmatpush2.msra.mxu0 %v7116
        %7747 = vmatprep.subr.mxu0 %v7115
        %7748 = vmatpush2.msra.mxu0 %v7114
        %7749 = vmatprep.subr.mxu0 %v7113
        %7750 = vmatpush2.msra.mxu0 %v7112
        %7751 = vmatprep.subr.mxu0 %v7111
        %7752 = vmatpush2.msra.mxu0 %v7110
        %7753 = vmatprep.subr.mxu0 %v7109
        %7754 = vmatpush2.msra.mxu0 %v7108
        %7755 = vmatprep.subr.mxu0 %v7107
        %7756 = vmatpush2.msra.mxu0 %v7106
        %7757 = vmatprep.subr.mxu0 %v7105
        %7758 = vmatpush2.msra.mxu0 %v7104
        %7759 = vmatprep.subr.mxu0 %v7103
        %7760 = vmatpush2.msra.mxu0 %v7102
        %7761 = vmatprep.subr.mxu0 %v7101
        %7762 = vmatpush2.msra.mxu0 %v7100
        %7763 = vmatprep.subr.mxu0 %v7099
        %7764 = vmatpush2.msra.mxu0 %v7098
        %7765 = vmatprep.subr.mxu0 %v7097
        %7766 = vmatpush2.msra.mxu0 %v7096
        %7767 = vmatprep.subr.mxu0 %v7095
        %7768 = vmatpush2.msra.mxu0 %v7094
        %7769 = vmatprep.subr.mxu0 %v7093
        %7770 = vmatpush2.msra.mxu0 %v7092
        %7771 = vmatprep.mubr.f32.mxu0 %v7140
        %7772 = vmatmul.mubr.f32.gmra.mxu0 %v7139
        %v7773 = vpop.f32.mrf.mxu0
        %v7774 = vadd.f32 %v7697, %v7773
        %v7775 = vpop.f32.mrf.mxu0
        %v7776 = vadd.f32 %v7699, %v7775
        %7777 = vmatprep.mubr.f32.mxu0 %v7156
        %7778 = vmatmul.mubr.f32.gmra.mxu0 %v7155
        %v7779 = vpop.f32.mrf.mxu0
        %v7780 = vadd.f32 %v7703, %v7779
        %v7781 = vpop.f32.mrf.mxu0
        %v7782 = vadd.f32 %v7705, %v7781
        %7783 = vdwg.mxu0
        %v7784 = vld [vmem:[%s4926 + $0x10] sm:$0xff]
        %v7785 = vld [vmem:[%s4926 + $0x28] sm:$0xff]
        %v7786 = vld [vmem:[%s4926 + $0x40] sm:$0xff]
        %v7787 = vld [vmem:[%s4926 + $0x58] sm:$0xff]
        %v7788 = vld [vmem:[%s4926 + $0x70] sm:$0xff]
        %v7789 = vld [vmem:[%s4926 + $0x88] sm:$0xff]
        %v7790 = vld [vmem:[%s4926 + $0xa0] sm:$0xff]
        %v7791 = vld [vmem:[%s4926 + $0xb8] sm:$0xff]
        %v7792 = vld [vmem:[%s4926 + $0xd0] sm:$0xff]
        %v7793 = vld [vmem:[%s4926 + $0xe8] sm:$0xff]
        %v7794 = vld [vmem:[%s4926 + $0x100] sm:$0xff]
        %v7795 = vld [vmem:[%s4926 + $0x118] sm:$0xff]
        %v7796 = vld [vmem:[%s4926 + $0x130] sm:$0xff]
        %v7797 = vld [vmem:[%s4926 + $0x148] sm:$0xff]
        %v7798 = vld [vmem:[%s4926 + $0x160] sm:$0xff]
        %v7799 = vld [vmem:[%s4926 + $0x178] sm:$0xff]
        %v7800 = vld [vmem:[%s4926 + $0x190] sm:$0xff]
        %v7801 = vld [vmem:[%s4926 + $0x1a8] sm:$0xff]
        %v7802 = vld [vmem:[%s4926 + $0x1c0] sm:$0xff]
        %v7803 = vld [vmem:[%s4926 + $0x1d8] sm:$0xff]
        %v7804 = vld [vmem:[%s4926 + $0x1f0] sm:$0xff]
        %v7805 = vld [vmem:[%s4926 + $0x208] sm:$0xff]
        %v7806 = vld [vmem:[%s4926 + $0x220] sm:$0xff]
        %v7807 = vld [vmem:[%s4926 + $0x238] sm:$0xff]
        %v7808 = vld [vmem:[%s4926 + $0x250] sm:$0xff]
        %v7809 = vld [vmem:[%s4926 + $0x268] sm:$0xff]
        %v7810 = vld [vmem:[%s4926 + $0x280] sm:$0xff]
        %v7811 = vld [vmem:[%s4926 + $0x298] sm:$0xff]
        %v7812 = vld [vmem:[%s4926 + $0x2b0] sm:$0xff]
        %v7813 = vld [vmem:[%s4926 + $0x2c8] sm:$0xff]
        %v7814 = vld [vmem:[%s4926 + $0x2e0] sm:$0xff]
        %v7815 = vld [vmem:[%s4926 + $0x2f8] sm:$0xff]
        %v7816 = vld [vmem:[%s4926 + $0x310] sm:$0xff]
        %v7817 = vld [vmem:[%s4926 + $0x328] sm:$0xff]
        %v7818 = vld [vmem:[%s4926 + $0x340] sm:$0xff]
        %v7819 = vld [vmem:[%s4926 + $0x358] sm:$0xff]
        %v7820 = vld [vmem:[%s4926 + $0x370] sm:$0xff]
        %v7821 = vld [vmem:[%s4926 + $0x388] sm:$0xff]
        %v7822 = vld [vmem:[%s4926 + $0x3a0] sm:$0xff]
        %v7823 = vld [vmem:[%s4926 + $0x3b8] sm:$0xff]
        %v7824 = vld [vmem:[%s4926 + $0x3d0] sm:$0xff]
        %v7825 = vld [vmem:[%s4926 + $0x3e8] sm:$0xff]
        %v7826 = vld [vmem:[%s4926 + $0x400] sm:$0xff]
        %v7827 = vld [vmem:[%s4926 + $0x418] sm:$0xff]
        %v7828 = vld [vmem:[%s4926 + $0x430] sm:$0xff]
        %v7829 = vld [vmem:[%s4926 + $0x448] sm:$0xff]
        %v7830 = vld [vmem:[%s4926 + $0x460] sm:$0xff]
        %v7831 = vld [vmem:[%s4926 + $0x478] sm:$0xff]
        %v7832 = vld [vmem:[%s4926 + $0x490] sm:$0xff]
        %v7833 = vld [vmem:[%s4926 + $0x4a8] sm:$0xff]
        %v7834 = vld [vmem:[%s4926 + $0x4c0] sm:$0xff]
        %v7835 = vld [vmem:[%s4926 + $0x4d8] sm:$0xff]
        %v7836 = vld [vmem:[%s4926 + $0x4f0] sm:$0xff]
        %v7837 = vld [vmem:[%s4926 + $0x508] sm:$0xff]
        %v7838 = vld [vmem:[%s4926 + $0x520] sm:$0xff]
        %v7839 = vld [vmem:[%s4926 + $0x538] sm:$0xff]
        %v7840 = vld [vmem:[%s4926 + $0x550] sm:$0xff]
        %v7841 = vld [vmem:[%s4926 + $0x568] sm:$0xff]
        %v7842 = vld [vmem:[%s4926 + $0x580] sm:$0xff]
        %v7843 = vld [vmem:[%s4926 + $0x598] sm:$0xff]
        %v7844 = vld [vmem:[%s4926 + $0x5b0] sm:$0xff]
        %v7845 = vld [vmem:[%s4926 + $0x5c8] sm:$0xff]
        %v7846 = vld [vmem:[%s4926 + $0x5e0] sm:$0xff]
        %v7847 = vld [vmem:[%s4926 + $0x5f8] sm:$0xff]
        %v7848 = vld [vmem:[%s4926 + $0x610] sm:$0xff]
        %v7849 = vld [vmem:[%s4926 + $0x628] sm:$0xff]
        %v7850 = vld [vmem:[%s4926 + $0x640] sm:$0xff]
        %v7851 = vld [vmem:[%s4926 + $0x658] sm:$0xff]
        %v7852 = vld [vmem:[%s4926 + $0x670] sm:$0xff]
        %v7853 = vld [vmem:[%s4926 + $0x688] sm:$0xff]
        %v7854 = vld [vmem:[%s4926 + $0x6a0] sm:$0xff]
        %v7855 = vld [vmem:[%s4926 + $0x6b8] sm:$0xff]
        %v7856 = vld [vmem:[%s4926 + $0x6d0] sm:$0xff]
        %v7857 = vld [vmem:[%s4926 + $0x6e8] sm:$0xff]
        %v7858 = vld [vmem:[%s4926 + $0x700] sm:$0xff]
        %v7859 = vld [vmem:[%s4926 + $0x718] sm:$0xff]
        %v7860 = vld [vmem:[%s4926 + $0x730] sm:$0xff]
        %v7861 = vld [vmem:[%s4926 + $0x748] sm:$0xff]
        %v7862 = vld [vmem:[%s4926 + $0x760] sm:$0xff]
        %v7863 = vld [vmem:[%s4926 + $0x778] sm:$0xff]
        %v7864 = vld [vmem:[%s4926 + $0x790] sm:$0xff]
        %v7865 = vld [vmem:[%s4926 + $0x7a8] sm:$0xff]
        %v7866 = vld [vmem:[%s4926 + $0x7c0] sm:$0xff]
        %v7867 = vld [vmem:[%s4926 + $0x7d8] sm:$0xff]
        %v7868 = vld [vmem:[%s4926 + $0x7f0] sm:$0xff]
        %v7869 = vld [vmem:[%s4926 + $0x808] sm:$0xff]
        %v7870 = vld [vmem:[%s4926 + $0x820] sm:$0xff]
        %v7871 = vld [vmem:[%s4926 + $0x838] sm:$0xff]
        %v7872 = vld [vmem:[%s4926 + $0x850] sm:$0xff]
        %v7873 = vld [vmem:[%s4926 + $0x868] sm:$0xff]
        %v7874 = vld [vmem:[%s4926 + $0x880] sm:$0xff]
        %v7875 = vld [vmem:[%s4926 + $0x898] sm:$0xff]
        %v7876 = vld [vmem:[%s4926 + $0x8b0] sm:$0xff]
        %v7877 = vld [vmem:[%s4926 + $0x8c8] sm:$0xff]
        %v7878 = vld [vmem:[%s4926 + $0x8e0] sm:$0xff]
        %v7879 = vld [vmem:[%s4926 + $0x8f8] sm:$0xff]
        %v7880 = vld [vmem:[%s4926 + $0x910] sm:$0xff]
        %v7881 = vld [vmem:[%s4926 + $0x928] sm:$0xff]
        %v7882 = vld [vmem:[%s4926 + $0x940] sm:$0xff]
        %v7883 = vld [vmem:[%s4926 + $0x958] sm:$0xff]
        %v7884 = vld [vmem:[%s4926 + $0x970] sm:$0xff]
        %v7885 = vld [vmem:[%s4926 + $0x988] sm:$0xff]
        %v7886 = vld [vmem:[%s4926 + $0x9a0] sm:$0xff]
        %v7887 = vld [vmem:[%s4926 + $0x9b8] sm:$0xff]
        %v7888 = vld [vmem:[%s4926 + $0x9d0] sm:$0xff]
        %v7889 = vld [vmem:[%s4926 + $0x9e8] sm:$0xff]
        %v7890 = vld [vmem:[%s4926 + $0xa00] sm:$0xff]
        %v7891 = vld [vmem:[%s4926 + $0xa18] sm:$0xff]
        %v7892 = vld [vmem:[%s4926 + $0xa30] sm:$0xff]
        %v7893 = vld [vmem:[%s4926 + $0xa48] sm:$0xff]
        %v7894 = vld [vmem:[%s4926 + $0xa60] sm:$0xff]
        %v7895 = vld [vmem:[%s4926 + $0xa78] sm:$0xff]
        %v7896 = vld [vmem:[%s4926 + $0xa90] sm:$0xff]
        %v7897 = vld [vmem:[%s4926 + $0xaa8] sm:$0xff]
        %v7898 = vld [vmem:[%s4926 + $0xac0] sm:$0xff]
        %v7899 = vld [vmem:[%s4926 + $0xad8] sm:$0xff]
        %v7900 = vld [vmem:[%s4926 + $0xaf0] sm:$0xff]
        %v7901 = vld [vmem:[%s4926 + $0xb08] sm:$0xff]
        %v7902 = vld [vmem:[%s4926 + $0xb20] sm:$0xff]
        %v7903 = vld [vmem:[%s4926 + $0xb38] sm:$0xff]
        %v7904 = vld [vmem:[%s4926 + $0xb50] sm:$0xff]
        %v7905 = vld [vmem:[%s4926 + $0xb68] sm:$0xff]
        %v7906 = vld [vmem:[%s4926 + $0xb80] sm:$0xff]
        %v7907 = vld [vmem:[%s4926 + $0xb98] sm:$0xff]
        %v7908 = vld [vmem:[%s4926 + $0xbb0] sm:$0xff]
        %v7909 = vld [vmem:[%s4926 + $0xbc8] sm:$0xff]
        %v7910 = vld [vmem:[%s4926 + $0xbe0] sm:$0xff]
        %v7911 = vld [vmem:[%s4926 + $0xbf8] sm:$0xff]
        %v7912 = vld [vmem:[%s4926 + $0xc10] sm:$0xff]
        %v7913 = vld [vmem:[%s4926 + $0xc28] sm:$0xff]
        %v7914 = vld [vmem:[%s4926 + $0xc40] sm:$0xff]
        %v7915 = vld [vmem:[%s4926 + $0xc58] sm:$0xff]
        %v7916 = vld [vmem:[%s4926 + $0xc70] sm:$0xff]
        %v7917 = vld [vmem:[%s4926 + $0xc88] sm:$0xff]
        %v7918 = vld [vmem:[%s4926 + $0xca0] sm:$0xff]
        %v7919 = vld [vmem:[%s4926 + $0xcb8] sm:$0xff]
        %v7920 = vld [vmem:[%s4926 + $0xcd0] sm:$0xff]
        %v7921 = vld [vmem:[%s4926 + $0xce8] sm:$0xff]
        %v7922 = vld [vmem:[%s4926 + $0xd00] sm:$0xff]
        %v7923 = vld [vmem:[%s4926 + $0xd18] sm:$0xff]
        %v7924 = vld [vmem:[%s4926 + $0xd30] sm:$0xff]
        %v7925 = vld [vmem:[%s4926 + $0xd48] sm:$0xff]
        %v7926 = vld [vmem:[%s4926 + $0xd60] sm:$0xff]
        %v7927 = vld [vmem:[%s4926 + $0xd78] sm:$0xff]
        %v7928 = vld [vmem:[%s4926 + $0xd90] sm:$0xff]
        %v7929 = vld [vmem:[%s4926 + $0xda8] sm:$0xff]
        %v7930 = vld [vmem:[%s4926 + $0xdc0] sm:$0xff]
        %v7931 = vld [vmem:[%s4926 + $0xdd8] sm:$0xff]
        %v7932 = vld [vmem:[%s4926 + $0xdf0] sm:$0xff]
        %v7933 = vld [vmem:[%s4926 + $0xe08] sm:$0xff]
        %v7934 = vld [vmem:[%s4926 + $0xe20] sm:$0xff]
        %v7935 = vld [vmem:[%s4926 + $0xe38] sm:$0xff]
        %v7936 = vld [vmem:[%s4926 + $0xe50] sm:$0xff]
        %v7937 = vld [vmem:[%s4926 + $0xe68] sm:$0xff]
        %v7938 = vld [vmem:[%s4926 + $0xe80] sm:$0xff]
        %v7939 = vld [vmem:[%s4926 + $0xe98] sm:$0xff]
        %v7940 = vld [vmem:[%s4926 + $0xeb0] sm:$0xff]
        %v7941 = vld [vmem:[%s4926 + $0xec8] sm:$0xff]
        %v7942 = vld [vmem:[%s4926 + $0xee0] sm:$0xff]
        %v7943 = vld [vmem:[%s4926 + $0xef8] sm:$0xff]
        %v7944 = vld [vmem:[%s4926 + $0xf10] sm:$0xff]
        %v7945 = vld [vmem:[%s4926 + $0xf28] sm:$0xff]
        %v7946 = vld [vmem:[%s4926 + $0xf40] sm:$0xff]
        %v7947 = vld [vmem:[%s4926 + $0xf58] sm:$0xff]
        %v7948 = vld [vmem:[%s4926 + $0xf70] sm:$0xff]
        %v7949 = vld [vmem:[%s4926 + $0xf88] sm:$0xff]
        %v7950 = vld [vmem:[%s4926 + $0xfa0] sm:$0xff]
        %v7951 = vld [vmem:[%s4926 + $0xfb8] sm:$0xff]
        %v7952 = vld [vmem:[%s4926 + $0xfd0] sm:$0xff]
        %v7953 = vld [vmem:[%s4926 + $0xfe8] sm:$0xff]
        %v7954 = vld [vmem:[%s4926 + $0x1000] sm:$0xff]
        %v7955 = vld [vmem:[%s4926 + $0x1018] sm:$0xff]
        %v7956 = vld [vmem:[%s4926 + $0x1030] sm:$0xff]
        %v7957 = vld [vmem:[%s4926 + $0x1048] sm:$0xff]
        %v7958 = vld [vmem:[%s4926 + $0x1060] sm:$0xff]
        %v7959 = vld [vmem:[%s4926 + $0x1078] sm:$0xff]
        %v7960 = vld [vmem:[%s4926 + $0x1090] sm:$0xff]
        %v7961 = vld [vmem:[%s4926 + $0x10a8] sm:$0xff]
        %v7962 = vld [vmem:[%s4926 + $0x10c0] sm:$0xff]
        %v7963 = vld [vmem:[%s4926 + $0x10d8] sm:$0xff]
        %v7964 = vld [vmem:[%s4926 + $0x10f0] sm:$0xff]
        %v7965 = vld [vmem:[%s4926 + $0x1108] sm:$0xff]
        %v7966 = vld [vmem:[%s4926 + $0x1120] sm:$0xff]
        %v7967 = vld [vmem:[%s4926 + $0x1138] sm:$0xff]
        %v7968 = vld [vmem:[%s4926 + $0x1150] sm:$0xff]
        %v7969 = vld [vmem:[%s4926 + $0x1168] sm:$0xff]
        %v7970 = vld [vmem:[%s4926 + $0x1180] sm:$0xff]
        %v7971 = vld [vmem:[%s4926 + $0x1198] sm:$0xff]
        %v7972 = vld [vmem:[%s4926 + $0x11b0] sm:$0xff]
        %v7973 = vld [vmem:[%s4926 + $0x11c8] sm:$0xff]
        %v7974 = vld [vmem:[%s4926 + $0x11e0] sm:$0xff]
        %v7975 = vld [vmem:[%s4926 + $0x11f8] sm:$0xff]
        %v7976 = vld [vmem:[%s4926 + $0x1210] sm:$0xff]
        %v7977 = vld [vmem:[%s4926 + $0x1228] sm:$0xff]
        %v7978 = vld [vmem:[%s4926 + $0x1240] sm:$0xff]
        %v7979 = vld [vmem:[%s4926 + $0x1258] sm:$0xff]
        %v7980 = vld [vmem:[%s4926 + $0x1270] sm:$0xff]
        %v7981 = vld [vmem:[%s4926 + $0x1288] sm:$0xff]
        %v7982 = vld [vmem:[%s4926 + $0x12a0] sm:$0xff]
        %v7983 = vld [vmem:[%s4926 + $0x12b8] sm:$0xff]
        %v7984 = vld [vmem:[%s4926 + $0x12d0] sm:$0xff]
        %v7985 = vld [vmem:[%s4926 + $0x12e8] sm:$0xff]
        %v7986 = vld [vmem:[%s4926 + $0x1300] sm:$0xff]
        %v7987 = vld [vmem:[%s4926 + $0x1318] sm:$0xff]
        %v7988 = vld [vmem:[%s4926 + $0x1330] sm:$0xff]
        %v7989 = vld [vmem:[%s4926 + $0x1348] sm:$0xff]
        %v7990 = vld [vmem:[%s4926 + $0x1360] sm:$0xff]
        %v7991 = vld [vmem:[%s4926 + $0x1378] sm:$0xff]
        %v7992 = vld [vmem:[%s4926 + $0x1390] sm:$0xff]
        %v7993 = vld [vmem:[%s4926 + $0x13a8] sm:$0xff]
        %v7994 = vld [vmem:[%s4926 + $0x13c0] sm:$0xff]
        %v7995 = vld [vmem:[%s4926 + $0x13d8] sm:$0xff]
        %v7996 = vld [vmem:[%s4926 + $0x13f0] sm:$0xff]
        %v7997 = vld [vmem:[%s4926 + $0x1408] sm:$0xff]
        %v7998 = vld [vmem:[%s4926 + $0x1420] sm:$0xff]
        %v7999 = vld [vmem:[%s4926 + $0x1438] sm:$0xff]
        %v8000 = vld [vmem:[%s4926 + $0x1450] sm:$0xff]
        %v8001 = vld [vmem:[%s4926 + $0x1468] sm:$0xff]
        %v8002 = vld [vmem:[%s4926 + $0x1480] sm:$0xff]
        %v8003 = vld [vmem:[%s4926 + $0x1498] sm:$0xff]
        %v8004 = vld [vmem:[%s4926 + $0x14b0] sm:$0xff]
        %v8005 = vld [vmem:[%s4926 + $0x14c8] sm:$0xff]
        %v8006 = vld [vmem:[%s4926 + $0x14e0] sm:$0xff]
        %v8007 = vld [vmem:[%s4926 + $0x14f8] sm:$0xff]
        %v8008 = vld [vmem:[%s4926 + $0x1510] sm:$0xff]
        %v8009 = vld [vmem:[%s4926 + $0x1528] sm:$0xff]
        %v8010 = vld [vmem:[%s4926 + $0x1540] sm:$0xff]
        %v8011 = vld [vmem:[%s4926 + $0x1558] sm:$0xff]
        %v8012 = vld [vmem:[%s4926 + $0x1570] sm:$0xff]
        %v8013 = vld [vmem:[%s4926 + $0x1588] sm:$0xff]
        %v8014 = vld [vmem:[%s4926 + $0x15a0] sm:$0xff]
        %v8015 = vld [vmem:[%s4926 + $0x15b8] sm:$0xff]
        %v8016 = vld [vmem:[%s4926 + $0x15d0] sm:$0xff]
        %v8017 = vld [vmem:[%s4926 + $0x15e8] sm:$0xff]
        %v8018 = vld [vmem:[%s4926 + $0x1600] sm:$0xff]
        %v8019 = vld [vmem:[%s4926 + $0x1618] sm:$0xff]
        %v8020 = vld [vmem:[%s4926 + $0x1630] sm:$0xff]
        %v8021 = vld [vmem:[%s4926 + $0x1648] sm:$0xff]
        %v8022 = vld [vmem:[%s4926 + $0x1660] sm:$0xff]
        %v8023 = vld [vmem:[%s4926 + $0x1678] sm:$0xff]
        %v8024 = vld [vmem:[%s4926 + $0x1690] sm:$0xff]
        %v8025 = vld [vmem:[%s4926 + $0x16a8] sm:$0xff]
        %v8026 = vld [vmem:[%s4926 + $0x16c0] sm:$0xff]
        %v8027 = vld [vmem:[%s4926 + $0x16d8] sm:$0xff]
        %v8028 = vld [vmem:[%s4926 + $0x16f0] sm:$0xff]
        %v8029 = vld [vmem:[%s4926 + $0x1708] sm:$0xff]
        %v8030 = vld [vmem:[%s4926 + $0x1720] sm:$0xff]
        %v8031 = vld [vmem:[%s4926 + $0x1738] sm:$0xff]
        %v8032 = vld [vmem:[%s4926 + $0x1750] sm:$0xff]
        %v8033 = vld [vmem:[%s4926 + $0x1768] sm:$0xff]
        %v8034 = vld [vmem:[%s4926 + $0x1780] sm:$0xff]
        %v8035 = vld [vmem:[%s4926 + $0x1798] sm:$0xff]
        %v8036 = vld [vmem:[%s4926 + $0x17b0] sm:$0xff]
        %v8037 = vld [vmem:[%s4926 + $0x17c8] sm:$0xff]
        %v8038 = vld [vmem:[%s4926 + $0x17e0] sm:$0xff]
        %v8039 = vld [vmem:[%s4926 + $0x17f8] sm:$0xff]
        %v8040 = vunpack.c.l.bf16 %v7784
        %v8041 = vunpack.c.h.bf16 %v7784
        %v8042 = vunpack.c.l.bf16 %v7785
        %v8043 = vunpack.c.h.bf16 %v7785
        %v8044 = vunpack.c.l.bf16 %v7786
        %v8045 = vunpack.c.h.bf16 %v7786
        %v8046 = vunpack.c.l.bf16 %v7787
        %v8047 = vunpack.c.h.bf16 %v7787
        %v8048 = vunpack.c.l.bf16 %v7788
        %v8049 = vunpack.c.h.bf16 %v7788
        %v8050 = vunpack.c.l.bf16 %v7789
        %v8051 = vunpack.c.h.bf16 %v7789
        %v8052 = vunpack.c.l.bf16 %v7790
        %v8053 = vunpack.c.h.bf16 %v7790
        %v8054 = vunpack.c.l.bf16 %v7791
        %v8055 = vunpack.c.h.bf16 %v7791
        %v8056 = vunpack.c.l.bf16 %v7792
        %v8057 = vunpack.c.h.bf16 %v7792
        %v8058 = vunpack.c.l.bf16 %v7793
        %v8059 = vunpack.c.h.bf16 %v7793
        %v8060 = vunpack.c.l.bf16 %v7794
        %v8061 = vunpack.c.h.bf16 %v7794
        %v8062 = vunpack.c.l.bf16 %v7795
        %v8063 = vunpack.c.h.bf16 %v7795
        %v8064 = vunpack.c.l.bf16 %v7796
        %v8065 = vunpack.c.h.bf16 %v7796
        %v8066 = vunpack.c.l.bf16 %v7797
        %v8067 = vunpack.c.h.bf16 %v7797
        %v8068 = vunpack.c.l.bf16 %v7798
        %v8069 = vunpack.c.h.bf16 %v7798
        %v8070 = vunpack.c.l.bf16 %v7799
        %v8071 = vunpack.c.h.bf16 %v7799
        %v8072 = vunpack.c.l.bf16 %v7800
        %v8073 = vunpack.c.h.bf16 %v7800
        %v8074 = vunpack.c.l.bf16 %v7801
        %v8075 = vunpack.c.h.bf16 %v7801
        %v8076 = vunpack.c.l.bf16 %v7802
        %v8077 = vunpack.c.h.bf16 %v7802
        %v8078 = vunpack.c.l.bf16 %v7803
        %v8079 = vunpack.c.h.bf16 %v7803
        %v8080 = vunpack.c.l.bf16 %v7804
        %v8081 = vunpack.c.h.bf16 %v7804
        %v8082 = vunpack.c.l.bf16 %v7805
        %v8083 = vunpack.c.h.bf16 %v7805
        %v8084 = vunpack.c.l.bf16 %v7806
        %v8085 = vunpack.c.h.bf16 %v7806
        %v8086 = vunpack.c.l.bf16 %v7807
        %v8087 = vunpack.c.h.bf16 %v7807
        %v8088 = vunpack.c.l.bf16 %v7808
        %v8089 = vunpack.c.h.bf16 %v7808
        %v8090 = vunpack.c.l.bf16 %v7809
        %v8091 = vunpack.c.h.bf16 %v7809
        %v8092 = vunpack.c.l.bf16 %v7810
        %v8093 = vunpack.c.h.bf16 %v7810
        %v8094 = vunpack.c.l.bf16 %v7811
        %v8095 = vunpack.c.h.bf16 %v7811
        %v8096 = vunpack.c.l.bf16 %v7812
        %v8097 = vunpack.c.h.bf16 %v7812
        %v8098 = vunpack.c.l.bf16 %v7813
        %v8099 = vunpack.c.h.bf16 %v7813
        %v8100 = vunpack.c.l.bf16 %v7814
        %v8101 = vunpack.c.h.bf16 %v7814
        %v8102 = vunpack.c.l.bf16 %v7815
        %v8103 = vunpack.c.h.bf16 %v7815
        %v8104 = vunpack.c.l.bf16 %v7816
        %v8105 = vunpack.c.h.bf16 %v7816
        %v8106 = vunpack.c.l.bf16 %v7817
        %v8107 = vunpack.c.h.bf16 %v7817
        %v8108 = vunpack.c.l.bf16 %v7818
        %v8109 = vunpack.c.h.bf16 %v7818
        %v8110 = vunpack.c.l.bf16 %v7819
        %v8111 = vunpack.c.h.bf16 %v7819
        %v8112 = vunpack.c.l.bf16 %v7820
        %v8113 = vunpack.c.h.bf16 %v7820
        %v8114 = vunpack.c.l.bf16 %v7821
        %v8115 = vunpack.c.h.bf16 %v7821
        %v8116 = vunpack.c.l.bf16 %v7822
        %v8117 = vunpack.c.h.bf16 %v7822
        %v8118 = vunpack.c.l.bf16 %v7823
        %v8119 = vunpack.c.h.bf16 %v7823
        %v8120 = vunpack.c.l.bf16 %v7824
        %v8121 = vunpack.c.h.bf16 %v7824
        %v8122 = vunpack.c.l.bf16 %v7825
        %v8123 = vunpack.c.h.bf16 %v7825
        %v8124 = vunpack.c.l.bf16 %v7826
        %v8125 = vunpack.c.h.bf16 %v7826
        %v8126 = vunpack.c.l.bf16 %v7827
        %v8127 = vunpack.c.h.bf16 %v7827
        %v8128 = vunpack.c.l.bf16 %v7828
        %v8129 = vunpack.c.h.bf16 %v7828
        %v8130 = vunpack.c.l.bf16 %v7829
        %v8131 = vunpack.c.h.bf16 %v7829
        %v8132 = vunpack.c.l.bf16 %v7830
        %v8133 = vunpack.c.h.bf16 %v7830
        %v8134 = vunpack.c.l.bf16 %v7831
        %v8135 = vunpack.c.h.bf16 %v7831
        %v8136 = vunpack.c.l.bf16 %v7832
        %v8137 = vunpack.c.h.bf16 %v7832
        %v8138 = vunpack.c.l.bf16 %v7833
        %v8139 = vunpack.c.h.bf16 %v7833
        %v8140 = vunpack.c.l.bf16 %v7834
        %v8141 = vunpack.c.h.bf16 %v7834
        %v8142 = vunpack.c.l.bf16 %v7835
        %v8143 = vunpack.c.h.bf16 %v7835
        %v8144 = vunpack.c.l.bf16 %v7836
        %v8145 = vunpack.c.h.bf16 %v7836
        %v8146 = vunpack.c.l.bf16 %v7837
        %v8147 = vunpack.c.h.bf16 %v7837
        %v8148 = vunpack.c.l.bf16 %v7838
        %v8149 = vunpack.c.h.bf16 %v7838
        %v8150 = vunpack.c.l.bf16 %v7839
        %v8151 = vunpack.c.h.bf16 %v7839
        %v8152 = vunpack.c.l.bf16 %v7840
        %v8153 = vunpack.c.h.bf16 %v7840
        %v8154 = vunpack.c.l.bf16 %v7841
        %v8155 = vunpack.c.h.bf16 %v7841
        %v8156 = vunpack.c.l.bf16 %v7842
        %v8157 = vunpack.c.h.bf16 %v7842
        %v8158 = vunpack.c.l.bf16 %v7843
        %v8159 = vunpack.c.h.bf16 %v7843
        %v8160 = vunpack.c.l.bf16 %v7844
        %v8161 = vunpack.c.h.bf16 %v7844
        %v8162 = vunpack.c.l.bf16 %v7845
        %v8163 = vunpack.c.h.bf16 %v7845
        %v8164 = vunpack.c.l.bf16 %v7846
        %v8165 = vunpack.c.h.bf16 %v7846
        %v8166 = vunpack.c.l.bf16 %v7847
        %v8167 = vunpack.c.h.bf16 %v7847
        %v8168 = vunpack.c.l.bf16 %v7848
        %v8169 = vunpack.c.h.bf16 %v7848
        %v8170 = vunpack.c.l.bf16 %v7849
        %v8171 = vunpack.c.h.bf16 %v7849
        %v8172 = vunpack.c.l.bf16 %v7850
        %v8173 = vunpack.c.h.bf16 %v7850
        %v8174 = vunpack.c.l.bf16 %v7851
        %v8175 = vunpack.c.h.bf16 %v7851
        %v8176 = vunpack.c.l.bf16 %v7852
        %v8177 = vunpack.c.h.bf16 %v7852
        %v8178 = vunpack.c.l.bf16 %v7853
        %v8179 = vunpack.c.h.bf16 %v7853
        %v8180 = vunpack.c.l.bf16 %v7854
        %v8181 = vunpack.c.h.bf16 %v7854
        %v8182 = vunpack.c.l.bf16 %v7855
        %v8183 = vunpack.c.h.bf16 %v7855
        %v8184 = vunpack.c.l.bf16 %v7856
        %v8185 = vunpack.c.h.bf16 %v7856
        %v8186 = vunpack.c.l.bf16 %v7857
        %v8187 = vunpack.c.h.bf16 %v7857
        %v8188 = vunpack.c.l.bf16 %v7858
        %v8189 = vunpack.c.h.bf16 %v7858
        %v8190 = vunpack.c.l.bf16 %v7859
        %v8191 = vunpack.c.h.bf16 %v7859
        %v8192 = vunpack.c.l.bf16 %v7860
        %v8193 = vunpack.c.h.bf16 %v7860
        %v8194 = vunpack.c.l.bf16 %v7861
        %v8195 = vunpack.c.h.bf16 %v7861
        %v8196 = vunpack.c.l.bf16 %v7862
        %v8197 = vunpack.c.h.bf16 %v7862
        %v8198 = vunpack.c.l.bf16 %v7863
        %v8199 = vunpack.c.h.bf16 %v7863
        %v8200 = vunpack.c.l.bf16 %v7864
        %v8201 = vunpack.c.h.bf16 %v7864
        %v8202 = vunpack.c.l.bf16 %v7865
        %v8203 = vunpack.c.h.bf16 %v7865
        %v8204 = vunpack.c.l.bf16 %v7866
        %v8205 = vunpack.c.h.bf16 %v7866
        %v8206 = vunpack.c.l.bf16 %v7867
        %v8207 = vunpack.c.h.bf16 %v7867
        %v8208 = vunpack.c.l.bf16 %v7868
        %v8209 = vunpack.c.h.bf16 %v7868
        %v8210 = vunpack.c.l.bf16 %v7869
        %v8211 = vunpack.c.h.bf16 %v7869
        %v8212 = vunpack.c.l.bf16 %v7870
        %v8213 = vunpack.c.h.bf16 %v7870
        %v8214 = vunpack.c.l.bf16 %v7871
        %v8215 = vunpack.c.h.bf16 %v7871
        %v8216 = vunpack.c.l.bf16 %v7872
        %v8217 = vunpack.c.h.bf16 %v7872
        %v8218 = vunpack.c.l.bf16 %v7873
        %v8219 = vunpack.c.h.bf16 %v7873
        %v8220 = vunpack.c.l.bf16 %v7874
        %v8221 = vunpack.c.h.bf16 %v7874
        %v8222 = vunpack.c.l.bf16 %v7875
        %v8223 = vunpack.c.h.bf16 %v7875
        %v8224 = vunpack.c.l.bf16 %v7876
        %v8225 = vunpack.c.h.bf16 %v7876
        %v8226 = vunpack.c.l.bf16 %v7877
        %v8227 = vunpack.c.h.bf16 %v7877
        %v8228 = vunpack.c.l.bf16 %v7878
        %v8229 = vunpack.c.h.bf16 %v7878
        %v8230 = vunpack.c.l.bf16 %v7879
        %v8231 = vunpack.c.h.bf16 %v7879
        %v8232 = vunpack.c.l.bf16 %v7880
        %v8233 = vunpack.c.h.bf16 %v7880
        %v8234 = vunpack.c.l.bf16 %v7881
        %v8235 = vunpack.c.h.bf16 %v7881
        %v8236 = vunpack.c.l.bf16 %v7882
        %v8237 = vunpack.c.h.bf16 %v7882
        %v8238 = vunpack.c.l.bf16 %v7883
        %v8239 = vunpack.c.h.bf16 %v7883
        %v8240 = vunpack.c.l.bf16 %v7884
        %v8241 = vunpack.c.h.bf16 %v7884
        %v8242 = vunpack.c.l.bf16 %v7885
        %v8243 = vunpack.c.h.bf16 %v7885
        %v8244 = vunpack.c.l.bf16 %v7886
        %v8245 = vunpack.c.h.bf16 %v7886
        %v8246 = vunpack.c.l.bf16 %v7887
        %v8247 = vunpack.c.h.bf16 %v7887
        %v8248 = vunpack.c.l.bf16 %v7888
        %v8249 = vunpack.c.h.bf16 %v7888
        %v8250 = vunpack.c.l.bf16 %v7889
        %v8251 = vunpack.c.h.bf16 %v7889
        %v8252 = vunpack.c.l.bf16 %v7890
        %v8253 = vunpack.c.h.bf16 %v7890
        %v8254 = vunpack.c.l.bf16 %v7891
        %v8255 = vunpack.c.h.bf16 %v7891
        %v8256 = vunpack.c.l.bf16 %v7892
        %v8257 = vunpack.c.h.bf16 %v7892
        %v8258 = vunpack.c.l.bf16 %v7893
        %v8259 = vunpack.c.h.bf16 %v7893
        %v8260 = vunpack.c.l.bf16 %v7894
        %v8261 = vunpack.c.h.bf16 %v7894
        %v8262 = vunpack.c.l.bf16 %v7895
        %v8263 = vunpack.c.h.bf16 %v7895
        %v8264 = vunpack.c.l.bf16 %v7896
        %v8265 = vunpack.c.h.bf16 %v7896
        %v8266 = vunpack.c.l.bf16 %v7897
        %v8267 = vunpack.c.h.bf16 %v7897
        %v8268 = vunpack.c.l.bf16 %v7898
        %v8269 = vunpack.c.h.bf16 %v7898
        %v8270 = vunpack.c.l.bf16 %v7899
        %v8271 = vunpack.c.h.bf16 %v7899
        %v8272 = vunpack.c.l.bf16 %v7900
        %v8273 = vunpack.c.h.bf16 %v7900
        %v8274 = vunpack.c.l.bf16 %v7901
        %v8275 = vunpack.c.h.bf16 %v7901
        %v8276 = vunpack.c.l.bf16 %v7902
        %v8277 = vunpack.c.h.bf16 %v7902
        %v8278 = vunpack.c.l.bf16 %v7903
        %v8279 = vunpack.c.h.bf16 %v7903
        %v8280 = vunpack.c.l.bf16 %v7904
        %v8281 = vunpack.c.h.bf16 %v7904
        %v8282 = vunpack.c.l.bf16 %v7905
        %v8283 = vunpack.c.h.bf16 %v7905
        %v8284 = vunpack.c.l.bf16 %v7906
        %v8285 = vunpack.c.h.bf16 %v7906
        %v8286 = vunpack.c.l.bf16 %v7907
        %v8287 = vunpack.c.h.bf16 %v7907
        %v8288 = vunpack.c.l.bf16 %v7908
        %v8289 = vunpack.c.h.bf16 %v7908
        %v8290 = vunpack.c.l.bf16 %v7909
        %v8291 = vunpack.c.h.bf16 %v7909
        %v8292 = vunpack.c.l.bf16 %v7910
        %v8293 = vunpack.c.h.bf16 %v7910
        %v8294 = vunpack.c.l.bf16 %v7911
        %v8295 = vunpack.c.h.bf16 %v7911
        %v8296 = vunpack.c.l.bf16 %v7912
        %v8297 = vunpack.c.h.bf16 %v7912
        %v8298 = vunpack.c.l.bf16 %v7913
        %v8299 = vunpack.c.h.bf16 %v7913
        %v8300 = vunpack.c.l.bf16 %v7914
        %v8301 = vunpack.c.h.bf16 %v7914
        %v8302 = vunpack.c.l.bf16 %v7915
        %v8303 = vunpack.c.h.bf16 %v7915
        %v8304 = vunpack.c.l.bf16 %v7916
        %v8305 = vunpack.c.h.bf16 %v7916
        %v8306 = vunpack.c.l.bf16 %v7917
        %v8307 = vunpack.c.h.bf16 %v7917
        %v8308 = vunpack.c.l.bf16 %v7918
        %v8309 = vunpack.c.h.bf16 %v7918
        %v8310 = vunpack.c.l.bf16 %v7919
        %v8311 = vunpack.c.h.bf16 %v7919
        %v8312 = vunpack.c.l.bf16 %v7920
        %v8313 = vunpack.c.h.bf16 %v7920
        %v8314 = vunpack.c.l.bf16 %v7921
        %v8315 = vunpack.c.h.bf16 %v7921
        %v8316 = vunpack.c.l.bf16 %v7922
        %v8317 = vunpack.c.h.bf16 %v7922
        %v8318 = vunpack.c.l.bf16 %v7923
        %v8319 = vunpack.c.h.bf16 %v7923
        %v8320 = vunpack.c.l.bf16 %v7924
        %v8321 = vunpack.c.h.bf16 %v7924
        %v8322 = vunpack.c.l.bf16 %v7925
        %v8323 = vunpack.c.h.bf16 %v7925
        %v8324 = vunpack.c.l.bf16 %v7926
        %v8325 = vunpack.c.h.bf16 %v7926
        %v8326 = vunpack.c.l.bf16 %v7927
        %v8327 = vunpack.c.h.bf16 %v7927
        %v8328 = vunpack.c.l.bf16 %v7928
        %v8329 = vunpack.c.h.bf16 %v7928
        %v8330 = vunpack.c.l.bf16 %v7929
        %v8331 = vunpack.c.h.bf16 %v7929
        %v8332 = vunpack.c.l.bf16 %v7930
        %v8333 = vunpack.c.h.bf16 %v7930
        %v8334 = vunpack.c.l.bf16 %v7931
        %v8335 = vunpack.c.h.bf16 %v7931
        %v8336 = vunpack.c.l.bf16 %v7932
        %v8337 = vunpack.c.h.bf16 %v7932
        %v8338 = vunpack.c.l.bf16 %v7933
        %v8339 = vunpack.c.h.bf16 %v7933
        %v8340 = vunpack.c.l.bf16 %v7934
        %v8341 = vunpack.c.h.bf16 %v7934
        %v8342 = vunpack.c.l.bf16 %v7935
        %v8343 = vunpack.c.h.bf16 %v7935
        %v8344 = vunpack.c.l.bf16 %v7936
        %v8345 = vunpack.c.h.bf16 %v7936
        %v8346 = vunpack.c.l.bf16 %v7937
        %v8347 = vunpack.c.h.bf16 %v7937
        %v8348 = vunpack.c.l.bf16 %v7938
        %v8349 = vunpack.c.h.bf16 %v7938
        %v8350 = vunpack.c.l.bf16 %v7939
        %v8351 = vunpack.c.h.bf16 %v7939
        %v8352 = vunpack.c.l.bf16 %v7940
        %v8353 = vunpack.c.h.bf16 %v7940
        %v8354 = vunpack.c.l.bf16 %v7941
        %v8355 = vunpack.c.h.bf16 %v7941
        %v8356 = vunpack.c.l.bf16 %v7942
        %v8357 = vunpack.c.h.bf16 %v7942
        %v8358 = vunpack.c.l.bf16 %v7943
        %v8359 = vunpack.c.h.bf16 %v7943
        %v8360 = vunpack.c.l.bf16 %v7944
        %v8361 = vunpack.c.h.bf16 %v7944
        %v8362 = vunpack.c.l.bf16 %v7945
        %v8363 = vunpack.c.h.bf16 %v7945
        %v8364 = vunpack.c.l.bf16 %v7946
        %v8365 = vunpack.c.h.bf16 %v7946
        %v8366 = vunpack.c.l.bf16 %v7947
        %v8367 = vunpack.c.h.bf16 %v7947
        %v8368 = vunpack.c.l.bf16 %v7948
        %v8369 = vunpack.c.h.bf16 %v7948
        %v8370 = vunpack.c.l.bf16 %v7949
        %v8371 = vunpack.c.h.bf16 %v7949
        %v8372 = vunpack.c.l.bf16 %v7950
        %v8373 = vunpack.c.h.bf16 %v7950
        %v8374 = vunpack.c.l.bf16 %v7951
        %v8375 = vunpack.c.h.bf16 %v7951
        %v8376 = vunpack.c.l.bf16 %v7952
        %v8377 = vunpack.c.h.bf16 %v7952
        %v8378 = vunpack.c.l.bf16 %v7953
        %v8379 = vunpack.c.h.bf16 %v7953
        %v8380 = vunpack.c.l.bf16 %v7954
        %v8381 = vunpack.c.h.bf16 %v7954
        %v8382 = vunpack.c.l.bf16 %v7955
        %v8383 = vunpack.c.h.bf16 %v7955
        %v8384 = vunpack.c.l.bf16 %v7956
        %v8385 = vunpack.c.h.bf16 %v7956
        %v8386 = vunpack.c.l.bf16 %v7957
        %v8387 = vunpack.c.h.bf16 %v7957
        %v8388 = vunpack.c.l.bf16 %v7958
        %v8389 = vunpack.c.h.bf16 %v7958
        %v8390 = vunpack.c.l.bf16 %v7959
        %v8391 = vunpack.c.h.bf16 %v7959
        %v8392 = vunpack.c.l.bf16 %v7960
        %v8393 = vunpack.c.h.bf16 %v7960
        %v8394 = vunpack.c.l.bf16 %v7961
        %v8395 = vunpack.c.h.bf16 %v7961
        %v8396 = vunpack.c.l.bf16 %v7962
        %v8397 = vunpack.c.h.bf16 %v7962
        %v8398 = vunpack.c.l.bf16 %v7963
        %v8399 = vunpack.c.h.bf16 %v7963
        %v8400 = vunpack.c.l.bf16 %v7964
        %v8401 = vunpack.c.h.bf16 %v7964
        %v8402 = vunpack.c.l.bf16 %v7965
        %v8403 = vunpack.c.h.bf16 %v7965
        %v8404 = vunpack.c.l.bf16 %v7966
        %v8405 = vunpack.c.h.bf16 %v7966
        %v8406 = vunpack.c.l.bf16 %v7967
        %v8407 = vunpack.c.h.bf16 %v7967
        %v8408 = vunpack.c.l.bf16 %v7968
        %v8409 = vunpack.c.h.bf16 %v7968
        %v8410 = vunpack.c.l.bf16 %v7969
        %v8411 = vunpack.c.h.bf16 %v7969
        %v8412 = vunpack.c.l.bf16 %v7970
        %v8413 = vunpack.c.h.bf16 %v7970
        %v8414 = vunpack.c.l.bf16 %v7971
        %v8415 = vunpack.c.h.bf16 %v7971
        %v8416 = vunpack.c.l.bf16 %v7972
        %v8417 = vunpack.c.h.bf16 %v7972
        %v8418 = vunpack.c.l.bf16 %v7973
        %v8419 = vunpack.c.h.bf16 %v7973
        %v8420 = vunpack.c.l.bf16 %v7974
        %v8421 = vunpack.c.h.bf16 %v7974
        %v8422 = vunpack.c.l.bf16 %v7975
        %v8423 = vunpack.c.h.bf16 %v7975
        %v8424 = vunpack.c.l.bf16 %v7976
        %v8425 = vunpack.c.h.bf16 %v7976
        %v8426 = vunpack.c.l.bf16 %v7977
        %v8427 = vunpack.c.h.bf16 %v7977
        %v8428 = vunpack.c.l.bf16 %v7978
        %v8429 = vunpack.c.h.bf16 %v7978
        %v8430 = vunpack.c.l.bf16 %v7979
        %v8431 = vunpack.c.h.bf16 %v7979
        %v8432 = vunpack.c.l.bf16 %v7980
        %v8433 = vunpack.c.h.bf16 %v7980
        %v8434 = vunpack.c.l.bf16 %v7981
        %v8435 = vunpack.c.h.bf16 %v7981
        %v8436 = vunpack.c.l.bf16 %v7982
        %v8437 = vunpack.c.h.bf16 %v7982
        %v8438 = vunpack.c.l.bf16 %v7983
        %v8439 = vunpack.c.h.bf16 %v7983
        %v8440 = vunpack.c.l.bf16 %v7984
        %v8441 = vunpack.c.h.bf16 %v7984
        %v8442 = vunpack.c.l.bf16 %v7985
        %v8443 = vunpack.c.h.bf16 %v7985
        %v8444 = vunpack.c.l.bf16 %v7986
        %v8445 = vunpack.c.h.bf16 %v7986
        %v8446 = vunpack.c.l.bf16 %v7987
        %v8447 = vunpack.c.h.bf16 %v7987
        %v8448 = vunpack.c.l.bf16 %v7988
        %v8449 = vunpack.c.h.bf16 %v7988
        %v8450 = vunpack.c.l.bf16 %v7989
        %v8451 = vunpack.c.h.bf16 %v7989
        %v8452 = vunpack.c.l.bf16 %v7990
        %v8453 = vunpack.c.h.bf16 %v7990
        %v8454 = vunpack.c.l.bf16 %v7991
        %v8455 = vunpack.c.h.bf16 %v7991
        %v8456 = vunpack.c.l.bf16 %v7992
        %v8457 = vunpack.c.h.bf16 %v7992
        %v8458 = vunpack.c.l.bf16 %v7993
        %v8459 = vunpack.c.h.bf16 %v7993
        %v8460 = vunpack.c.l.bf16 %v7994
        %v8461 = vunpack.c.h.bf16 %v7994
        %v8462 = vunpack.c.l.bf16 %v7995
        %v8463 = vunpack.c.h.bf16 %v7995
        %v8464 = vunpack.c.l.bf16 %v7996
        %v8465 = vunpack.c.h.bf16 %v7996
        %v8466 = vunpack.c.l.bf16 %v7997
        %v8467 = vunpack.c.h.bf16 %v7997
        %v8468 = vunpack.c.l.bf16 %v7998
        %v8469 = vunpack.c.h.bf16 %v7998
        %v8470 = vunpack.c.l.bf16 %v7999
        %v8471 = vunpack.c.h.bf16 %v7999
        %v8472 = vunpack.c.l.bf16 %v8000
        %v8473 = vunpack.c.h.bf16 %v8000
        %v8474 = vunpack.c.l.bf16 %v8001
        %v8475 = vunpack.c.h.bf16 %v8001
        %v8476 = vunpack.c.l.bf16 %v8002
        %v8477 = vunpack.c.h.bf16 %v8002
        %v8478 = vunpack.c.l.bf16 %v8003
        %v8479 = vunpack.c.h.bf16 %v8003
        %v8480 = vunpack.c.l.bf16 %v8004
        %v8481 = vunpack.c.h.bf16 %v8004
        %v8482 = vunpack.c.l.bf16 %v8005
        %v8483 = vunpack.c.h.bf16 %v8005
        %v8484 = vunpack.c.l.bf16 %v8006
        %v8485 = vunpack.c.h.bf16 %v8006
        %v8486 = vunpack.c.l.bf16 %v8007
        %v8487 = vunpack.c.h.bf16 %v8007
        %v8488 = vunpack.c.l.bf16 %v8008
        %v8489 = vunpack.c.h.bf16 %v8008
        %v8490 = vunpack.c.l.bf16 %v8009
        %v8491 = vunpack.c.h.bf16 %v8009
        %v8492 = vunpack.c.l.bf16 %v8010
        %v8493 = vunpack.c.h.bf16 %v8010
        %v8494 = vunpack.c.l.bf16 %v8011
        %v8495 = vunpack.c.h.bf16 %v8011
        %v8496 = vunpack.c.l.bf16 %v8012
        %v8497 = vunpack.c.h.bf16 %v8012
        %v8498 = vunpack.c.l.bf16 %v8013
        %v8499 = vunpack.c.h.bf16 %v8013
        %v8500 = vunpack.c.l.bf16 %v8014
        %v8501 = vunpack.c.h.bf16 %v8014
        %v8502 = vunpack.c.l.bf16 %v8015
        %v8503 = vunpack.c.h.bf16 %v8015
        %v8504 = vunpack.c.l.bf16 %v8016
        %v8505 = vunpack.c.h.bf16 %v8016
        %v8506 = vunpack.c.l.bf16 %v8017
        %v8507 = vunpack.c.h.bf16 %v8017
        %v8508 = vunpack.c.l.bf16 %v8018
        %v8509 = vunpack.c.h.bf16 %v8018
        %v8510 = vunpack.c.l.bf16 %v8019
        %v8511 = vunpack.c.h.bf16 %v8019
        %v8512 = vunpack.c.l.bf16 %v8020
        %v8513 = vunpack.c.h.bf16 %v8020
        %v8514 = vunpack.c.l.bf16 %v8021
        %v8515 = vunpack.c.h.bf16 %v8021
        %v8516 = vunpack.c.l.bf16 %v8022
        %v8517 = vunpack.c.h.bf16 %v8022
        %v8518 = vunpack.c.l.bf16 %v8023
        %v8519 = vunpack.c.h.bf16 %v8023
        %v8520 = vunpack.c.l.bf16 %v8024
        %v8521 = vunpack.c.h.bf16 %v8024
        %v8522 = vunpack.c.l.bf16 %v8025
        %v8523 = vunpack.c.h.bf16 %v8025
        %v8524 = vunpack.c.l.bf16 %v8026
        %v8525 = vunpack.c.h.bf16 %v8026
        %v8526 = vunpack.c.l.bf16 %v8027
        %v8527 = vunpack.c.h.bf16 %v8027
        %v8528 = vunpack.c.l.bf16 %v8028
        %v8529 = vunpack.c.h.bf16 %v8028
        %v8530 = vunpack.c.l.bf16 %v8029
        %v8531 = vunpack.c.h.bf16 %v8029
        %v8532 = vunpack.c.l.bf16 %v8030
        %v8533 = vunpack.c.h.bf16 %v8030
        %v8534 = vunpack.c.l.bf16 %v8031
        %v8535 = vunpack.c.h.bf16 %v8031
        %v8536 = vunpack.c.l.bf16 %v8032
        %v8537 = vunpack.c.h.bf16 %v8032
        %v8538 = vunpack.c.l.bf16 %v8033
        %v8539 = vunpack.c.h.bf16 %v8033
        %v8540 = vunpack.c.l.bf16 %v8034
        %v8541 = vunpack.c.h.bf16 %v8034
        %v8542 = vunpack.c.l.bf16 %v8035
        %v8543 = vunpack.c.h.bf16 %v8035
        %v8544 = vunpack.c.l.bf16 %v8036
        %v8545 = vunpack.c.h.bf16 %v8036
        %v8546 = vunpack.c.l.bf16 %v8037
        %v8547 = vunpack.c.h.bf16 %v8037
        %v8548 = vunpack.c.l.bf16 %v8038
        %v8549 = vunpack.c.h.bf16 %v8038
        %v8550 = vunpack.c.l.bf16 %v8039
        %v8551 = vunpack.c.h.bf16 %v8039
        %v8552 = vld [vmem:[%s5695 + $0x4] sm:$0x3]
        %v8553 = vld [vmem:[#allocation6] sm:$0xff]
        %v8554 = vld [vmem:[#allocation6 + $0x8] sm:$0xff]
        %v8555 = vld [vmem:[#allocation6 + $0x10] sm:$0xff]
        %v8556 = vld [vmem:[#allocation6 + $0x18] sm:$0xff]
        %v8557 = vld [vmem:[#allocation6 + $0x20] sm:$0xff]
        %v8558 = vld [vmem:[#allocation6 + $0x28] sm:$0xff]
        %v8559 = vld [vmem:[#allocation6 + $0x30] sm:$0xff]
        %v8560 = vld [vmem:[#allocation6 + $0x38] sm:$0xff]
        %v8561 = vld [vmem:[#allocation6 + $0x40] sm:$0xff]
        %v8562 = vld [vmem:[#allocation6 + $0x48] sm:$0xff]
        %v8563 = vld [vmem:[#allocation6 + $0x50] sm:$0xff]
        %v8564 = vld [vmem:[#allocation6 + $0x58] sm:$0xff]
        %v8565 = vld [vmem:[#allocation6 + $0x60] sm:$0xff]
        %v8566 = vld [vmem:[#allocation6 + $0x68] sm:$0xff]
        %v8567 = vld [vmem:[#allocation6 + $0x70] sm:$0xff]
        %v8568 = vld [vmem:[#allocation6 + $0x78] sm:$0xff]
        %v8569 = vld [vmem:[#allocation6 + $0x80] sm:$0xff]
        %v8570 = vld [vmem:[#allocation6 + $0x88] sm:$0xff]
        %v8571 = vld [vmem:[#allocation6 + $0x90] sm:$0xff]
        %v8572 = vld [vmem:[#allocation6 + $0x98] sm:$0xff]
        %v8573 = vld [vmem:[#allocation6 + $0xa0] sm:$0xff]
        %v8574 = vld [vmem:[#allocation6 + $0xa8] sm:$0xff]
        %v8575 = vld [vmem:[#allocation6 + $0xb0] sm:$0xff]
        %v8576 = vld [vmem:[#allocation6 + $0xb8] sm:$0xff]
        %v8577 = vld [vmem:[#allocation6 + $0xc0] sm:$0xff]
        %v8578 = vld [vmem:[#allocation6 + $0xc8] sm:$0xff]
        %v8579 = vld [vmem:[#allocation6 + $0xd0] sm:$0xff]
        %v8580 = vld [vmem:[#allocation6 + $0xd8] sm:$0xff]
        %v8581 = vld [vmem:[#allocation6 + $0xe0] sm:$0xff]
        %v8582 = vld [vmem:[#allocation6 + $0xe8] sm:$0xff]
        %v8583 = vld [vmem:[#allocation6 + $0xf0] sm:$0xff]
        %v8584 = vld [vmem:[#allocation6 + $0xf8] sm:$0xff]
        %v8586 = vlaneseq
        %v8587 = vshrl.u32 %v8586, 7
        %v8588 = vsub.s32 0, %v8587
        %v8589 = vrot.slane %v8552, %v8588
        %v8590 = vlaneseq
        %v8591 = vshrl.u32 %v8590, 7
        %v8592 = vsub.s32 1, %v8591
        %v8593 = vrot.slane %v8552, %v8592
        %8596 = vmatprep.subr.mxu0 %v8071
        %8597 = vmatpush1.msra.mxu0 %v8070
        %8598 = vmatprep.subr.mxu0 %v8069
        %8599 = vmatpush1.msra.mxu0 %v8068
        %8600 = vmatprep.subr.mxu0 %v8067
        %8601 = vmatpush1.msra.mxu0 %v8066
        %8602 = vmatprep.subr.mxu0 %v8065
        %8603 = vmatpush1.msra.mxu0 %v8064
        %8604 = vmatprep.subr.mxu0 %v8063
        %8605 = vmatpush1.msra.mxu0 %v8062
        %8606 = vmatprep.subr.mxu0 %v8061
        %8607 = vmatpush1.msra.mxu0 %v8060
        %8608 = vmatprep.subr.mxu0 %v8059
        %8609 = vmatpush1.msra.mxu0 %v8058
        %8610 = vmatprep.subr.mxu0 %v8057
        %8611 = vmatpush1.msra.mxu0 %v8056
        %8612 = vmatprep.subr.mxu0 %v8055
        %8613 = vmatpush1.msra.mxu0 %v8054
        %8614 = vmatprep.subr.mxu0 %v8053
        %8615 = vmatpush1.msra.mxu0 %v8052
        %8616 = vmatprep.subr.mxu0 %v8051
        %8617 = vmatpush1.msra.mxu0 %v8050
        %8618 = vmatprep.subr.mxu0 %v8049
        %8619 = vmatpush1.msra.mxu0 %v8048
        %8620 = vmatprep.subr.mxu0 %v8047
        %8621 = vmatpush1.msra.mxu0 %v8046
        %8622 = vmatprep.subr.mxu0 %v8045
        %8623 = vmatpush1.msra.mxu0 %v8044
        %8624 = vmatprep.subr.mxu0 %v8043
        %8625 = vmatpush1.msra.mxu0 %v8042
        %8626 = vmatprep.subr.mxu0 %v8041
        %8627 = vmatpush1.msra.mxu0 %v8040
        %8628 = vmatprep.subr.mxu0 %v8103
        %8629 = vmatpush2.msra.mxu0 %v8102
        %8630 = vmatprep.subr.mxu0 %v8101
        %8631 = vmatpush2.msra.mxu0 %v8100
        %8632 = vmatprep.subr.mxu0 %v8099
        %8633 = vmatpush2.msra.mxu0 %v8098
        %8634 = vmatprep.subr.mxu0 %v8097
        %8635 = vmatpush2.msra.mxu0 %v8096
        %8636 = vmatprep.subr.mxu0 %v8095
        %8637 = vmatpush2.msra.mxu0 %v8094
        %8638 = vmatprep.subr.mxu0 %v8093
        %8639 = vmatpush2.msra.mxu0 %v8092
        %8640 = vmatprep.subr.mxu0 %v8091
        %8641 = vmatpush2.msra.mxu0 %v8090
        %8642 = vmatprep.subr.mxu0 %v8089
        %8643 = vmatpush2.msra.mxu0 %v8088
        %8644 = vmatprep.subr.mxu0 %v8087
        %8645 = vmatpush2.msra.mxu0 %v8086
        %8646 = vmatprep.subr.mxu0 %v8085
        %8647 = vmatpush2.msra.mxu0 %v8084
        %8648 = vmatprep.subr.mxu0 %v8083
        %8649 = vmatpush2.msra.mxu0 %v8082
        %8650 = vmatprep.subr.mxu0 %v8081
        %8651 = vmatpush2.msra.mxu0 %v8080
        %8652 = vmatprep.subr.mxu0 %v8079
        %8653 = vmatpush2.msra.mxu0 %v8078
        %8654 = vmatprep.subr.mxu0 %v8077
        %8655 = vmatpush2.msra.mxu0 %v8076
        %8656 = vmatprep.subr.mxu0 %v8075
        %8657 = vmatpush2.msra.mxu0 %v8074
        %8658 = vmatprep.subr.mxu0 %v8073
        %8659 = vmatpush2.msra.mxu0 %v8072
        %8660 = vmatprep.mubr.f32.mxu0 %v8554
        %8661 = vmatmul.mubr.f32.gmra.mxu0 %v8553
        %v8662 = vpop.f32.mrf.mxu0
        %v8663 = vadd.f32 %v8589, %v8662
        %v8664 = vpop.f32.mrf.mxu0
        %v8665 = vadd.f32 %v8593, %v8664
        %8666 = vmatprep.mubr.f32.mxu0 %v8570
        %8667 = vmatmul.mubr.f32.gmra.mxu0 %v8569
        %v8668 = vpop.f32.mrf.mxu0
        %v8669 = vadd.f32 %v8589, %v8668
        %v8670 = vpop.f32.mrf.mxu0
        %v8671 = vadd.f32 %v8593, %v8670
        %8672 = vdwg.mxu0
        %8673 = vmatprep.subr.mxu0 %v8135
        %8674 = vmatpush1.msra.mxu0 %v8134
        %8675 = vmatprep.subr.mxu0 %v8133
        %8676 = vmatpush1.msra.mxu0 %v8132
        %8677 = vmatprep.subr.mxu0 %v8131
        %8678 = vmatpush1.msra.mxu0 %v8130
        %8679 = vmatprep.subr.mxu0 %v8129
        %8680 = vmatpush1.msra.mxu0 %v8128
        %8681 = vmatprep.subr.mxu0 %v8127
        %8682 = vmatpush1.msra.mxu0 %v8126
        %8683 = vmatprep.subr.mxu0 %v8125
        %8684 = vmatpush1.msra.mxu0 %v8124
        %8685 = vmatprep.subr.mxu0 %v8123
        %8686 = vmatpush1.msra.mxu0 %v8122
        %8687 = vmatprep.subr.mxu0 %v8121
        %8688 = vmatpush1.msra.mxu0 %v8120
        %8689 = vmatprep.subr.mxu0 %v8119
        %8690 = vmatpush1.msra.mxu0 %v8118
        %8691 = vmatprep.subr.mxu0 %v8117
        %8692 = vmatpush1.msra.mxu0 %v8116
        %8693 = vmatprep.subr.mxu0 %v8115
        %8694 = vmatpush1.msra.mxu0 %v8114
        %8695 = vmatprep.subr.mxu0 %v8113
        %8696 = vmatpush1.msra.mxu0 %v8112
        %8697 = vmatprep.subr.mxu0 %v8111
        %8698 = vmatpush1.msra.mxu0 %v8110
        %8699 = vmatprep.subr.mxu0 %v8109
        %8700 = vmatpush1.msra.mxu0 %v8108
        %8701 = vmatprep.subr.mxu0 %v8107
        %8702 = vmatpush1.msra.mxu0 %v8106
        %8703 = vmatprep.subr.mxu0 %v8105
        %8704 = vmatpush1.msra.mxu0 %v8104
        %8705 = vmatprep.subr.mxu0 %v8167
        %8706 = vmatpush2.msra.mxu0 %v8166
        %8707 = vmatprep.subr.mxu0 %v8165
        %8708 = vmatpush2.msra.mxu0 %v8164
        %8709 = vmatprep.subr.mxu0 %v8163
        %8710 = vmatpush2.msra.mxu0 %v8162
        %8711 = vmatprep.subr.mxu0 %v8161
        %8712 = vmatpush2.msra.mxu0 %v8160
        %8713 = vmatprep.subr.mxu0 %v8159
        %8714 = vmatpush2.msra.mxu0 %v8158
        %8715 = vmatprep.subr.mxu0 %v8157
        %8716 = vmatpush2.msra.mxu0 %v8156
        %8717 = vmatprep.subr.mxu0 %v8155
        %8718 = vmatpush2.msra.mxu0 %v8154
        %8719 = vmatprep.subr.mxu0 %v8153
        %8720 = vmatpush2.msra.mxu0 %v8152
        %8721 = vmatprep.subr.mxu0 %v8151
        %8722 = vmatpush2.msra.mxu0 %v8150
        %8723 = vmatprep.subr.mxu0 %v8149
        %8724 = vmatpush2.msra.mxu0 %v8148
        %8725 = vmatprep.subr.mxu0 %v8147
        %8726 = vmatpush2.msra.mxu0 %v8146
        %8727 = vmatprep.subr.mxu0 %v8145
        %8728 = vmatpush2.msra.mxu0 %v8144
        %8729 = vmatprep.subr.mxu0 %v8143
        %8730 = vmatpush2.msra.mxu0 %v8142
        %8731 = vmatprep.subr.mxu0 %v8141
        %8732 = vmatpush2.msra.mxu0 %v8140
        %8733 = vmatprep.subr.mxu0 %v8139
        %8734 = vmatpush2.msra.mxu0 %v8138
        %8735 = vmatprep.subr.mxu0 %v8137
        %8736 = vmatpush2.msra.mxu0 %v8136
        %8737 = vmatprep.mubr.f32.mxu0 %v8556
        %8738 = vmatmul.mubr.f32.gmra.mxu0 %v8555
        %v8739 = vpop.f32.mrf.mxu0
        %v8740 = vadd.f32 %v8663, %v8739
        %v8741 = vpop.f32.mrf.mxu0
        %v8742 = vadd.f32 %v8665, %v8741
        %8743 = vmatprep.mubr.f32.mxu0 %v8572
        %8744 = vmatmul.mubr.f32.gmra.mxu0 %v8571
        %v8745 = vpop.f32.mrf.mxu0
        %v8746 = vadd.f32 %v8669, %v8745
        %v8747 = vpop.f32.mrf.mxu0
        %v8748 = vadd.f32 %v8671, %v8747
        %8749 = vdwg.mxu0
        %8750 = vmatprep.subr.mxu0 %v8199
        %8751 = vmatpush1.msra.mxu0 %v8198
        %8752 = vmatprep.subr.mxu0 %v8197
        %8753 = vmatpush1.msra.mxu0 %v8196
        %8754 = vmatprep.subr.mxu0 %v8195
        %8755 = vmatpush1.msra.mxu0 %v8194
        %8756 = vmatprep.subr.mxu0 %v8193
        %8757 = vmatpush1.msra.mxu0 %v8192
        %8758 = vmatprep.subr.mxu0 %v8191
        %8759 = vmatpush1.msra.mxu0 %v8190
        %8760 = vmatprep.subr.mxu0 %v8189
        %8761 = vmatpush1.msra.mxu0 %v8188
        %8762 = vmatprep.subr.mxu0 %v8187
        %8763 = vmatpush1.msra.mxu0 %v8186
        %8764 = vmatprep.subr.mxu0 %v8185
        %8765 = vmatpush1.msra.mxu0 %v8184
        %8766 = vmatprep.subr.mxu0 %v8183
        %8767 = vmatpush1.msra.mxu0 %v8182
        %8768 = vmatprep.subr.mxu0 %v8181
        %8769 = vmatpush1.msra.mxu0 %v8180
        %8770 = vmatprep.subr.mxu0 %v8179
        %8771 = vmatpush1.msra.mxu0 %v8178
        %8772 = vmatprep.subr.mxu0 %v8177
        %8773 = vmatpush1.msra.mxu0 %v8176
        %8774 = vmatprep.subr.mxu0 %v8175
        %8775 = vmatpush1.msra.mxu0 %v8174
        %8776 = vmatprep.subr.mxu0 %v8173
        %8777 = vmatpush1.msra.mxu0 %v8172
        %8778 = vmatprep.subr.mxu0 %v8171
        %8779 = vmatpush1.msra.mxu0 %v8170
        %8780 = vmatprep.subr.mxu0 %v8169
        %8781 = vmatpush1.msra.mxu0 %v8168
        %8782 = vmatprep.subr.mxu0 %v8231
        %8783 = vmatpush2.msra.mxu0 %v8230
        %8784 = vmatprep.subr.mxu0 %v8229
        %8785 = vmatpush2.msra.mxu0 %v8228
        %8786 = vmatprep.subr.mxu0 %v8227
        %8787 = vmatpush2.msra.mxu0 %v8226
        %8788 = vmatprep.subr.mxu0 %v8225
        %8789 = vmatpush2.msra.mxu0 %v8224
        %8790 = vmatprep.subr.mxu0 %v8223
        %8791 = vmatpush2.msra.mxu0 %v8222
        %8792 = vmatprep.subr.mxu0 %v8221
        %8793 = vmatpush2.msra.mxu0 %v8220
        %8794 = vmatprep.subr.mxu0 %v8219
        %8795 = vmatpush2.msra.mxu0 %v8218
        %8796 = vmatprep.subr.mxu0 %v8217
        %8797 = vmatpush2.msra.mxu0 %v8216
        %8798 = vmatprep.subr.mxu0 %v8215
        %8799 = vmatpush2.msra.mxu0 %v8214
        %8800 = vmatprep.subr.mxu0 %v8213
        %8801 = vmatpush2.msra.mxu0 %v8212
        %8802 = vmatprep.subr.mxu0 %v8211
        %8803 = vmatpush2.msra.mxu0 %v8210
        %8804 = vmatprep.subr.mxu0 %v8209
        %8805 = vmatpush2.msra.mxu0 %v8208
        %8806 = vmatprep.subr.mxu0 %v8207
        %8807 = vmatpush2.msra.mxu0 %v8206
        %8808 = vmatprep.subr.mxu0 %v8205
        %8809 = vmatpush2.msra.mxu0 %v8204
        %8810 = vmatprep.subr.mxu0 %v8203
        %8811 = vmatpush2.msra.mxu0 %v8202
        %8812 = vmatprep.subr.mxu0 %v8201
        %8813 = vmatpush2.msra.mxu0 %v8200
        %8814 = vmatprep.mubr.f32.mxu0 %v8558
        %8815 = vmatmul.mubr.f32.gmra.mxu0 %v8557
        %v8816 = vpop.f32.mrf.mxu0
        %v8817 = vadd.f32 %v8740, %v8816
        %v8818 = vpop.f32.mrf.mxu0
        %v8819 = vadd.f32 %v8742, %v8818
        %8820 = vmatprep.mubr.f32.mxu0 %v8574
        %8821 = vmatmul.mubr.f32.gmra.mxu0 %v8573
        %v8822 = vpop.f32.mrf.mxu0
        %v8823 = vadd.f32 %v8746, %v8822
        %v8824 = vpop.f32.mrf.mxu0
        %v8825 = vadd.f32 %v8748, %v8824
        %8826 = vdwg.mxu0
        %8827 = vmatprep.subr.mxu0 %v8263
        %8828 = vmatpush1.msra.mxu0 %v8262
        %8829 = vmatprep.subr.mxu0 %v8261
        %8830 = vmatpush1.msra.mxu0 %v8260
        %8831 = vmatprep.subr.mxu0 %v8259
        %8832 = vmatpush1.msra.mxu0 %v8258
        %8833 = vmatprep.subr.mxu0 %v8257
        %8834 = vmatpush1.msra.mxu0 %v8256
        %8835 = vmatprep.subr.mxu0 %v8255
        %8836 = vmatpush1.msra.mxu0 %v8254
        %8837 = vmatprep.subr.mxu0 %v8253
        %8838 = vmatpush1.msra.mxu0 %v8252
        %8839 = vmatprep.subr.mxu0 %v8251
        %8840 = vmatpush1.msra.mxu0 %v8250
        %8841 = vmatprep.subr.mxu0 %v8249
        %8842 = vmatpush1.msra.mxu0 %v8248
        %8843 = vmatprep.subr.mxu0 %v8247
        %8844 = vmatpush1.msra.mxu0 %v8246
        %8845 = vmatprep.subr.mxu0 %v8245
        %8846 = vmatpush1.msra.mxu0 %v8244
        %8847 = vmatprep.subr.mxu0 %v8243
        %8848 = vmatpush1.msra.mxu0 %v8242
        %8849 = vmatprep.subr.mxu0 %v8241
        %8850 = vmatpush1.msra.mxu0 %v8240
        %8851 = vmatprep.subr.mxu0 %v8239
        %8852 = vmatpush1.msra.mxu0 %v8238
        %8853 = vmatprep.subr.mxu0 %v8237
        %8854 = vmatpush1.msra.mxu0 %v8236
        %8855 = vmatprep.subr.mxu0 %v8235
        %8856 = vmatpush1.msra.mxu0 %v8234
        %8857 = vmatprep.subr.mxu0 %v8233
        %8858 = vmatpush1.msra.mxu0 %v8232
        %8859 = vmatprep.subr.mxu0 %v8295
        %8860 = vmatpush2.msra.mxu0 %v8294
        %8861 = vmatprep.subr.mxu0 %v8293
        %8862 = vmatpush2.msra.mxu0 %v8292
        %8863 = vmatprep.subr.mxu0 %v8291
        %8864 = vmatpush2.msra.mxu0 %v8290
        %8865 = vmatprep.subr.mxu0 %v8289
        %8866 = vmatpush2.msra.mxu0 %v8288
        %8867 = vmatprep.subr.mxu0 %v8287
        %8868 = vmatpush2.msra.mxu0 %v8286
        %8869 = vmatprep.subr.mxu0 %v8285
        %8870 = vmatpush2.msra.mxu0 %v8284
        %8871 = vmatprep.subr.mxu0 %v8283
        %8872 = vmatpush2.msra.mxu0 %v8282
        %8873 = vmatprep.subr.mxu0 %v8281
        %8874 = vmatpush2.msra.mxu0 %v8280
        %8875 = vmatprep.subr.mxu0 %v8279
        %8876 = vmatpush2.msra.mxu0 %v8278
        %8877 = vmatprep.subr.mxu0 %v8277
        %8878 = vmatpush2.msra.mxu0 %v8276
        %8879 = vmatprep.subr.mxu0 %v8275
        %8880 = vmatpush2.msra.mxu0 %v8274
        %8881 = vmatprep.subr.mxu0 %v8273
        %8882 = vmatpush2.msra.mxu0 %v8272
        %8883 = vmatprep.subr.mxu0 %v8271
        %8884 = vmatpush2.msra.mxu0 %v8270
        %8885 = vmatprep.subr.mxu0 %v8269
        %8886 = vmatpush2.msra.mxu0 %v8268
        %8887 = vmatprep.subr.mxu0 %v8267
        %8888 = vmatpush2.msra.mxu0 %v8266
        %8889 = vmatprep.subr.mxu0 %v8265
        %8890 = vmatpush2.msra.mxu0 %v8264
        %8891 = vmatprep.mubr.f32.mxu0 %v8560
        %8892 = vmatmul.mubr.f32.gmra.mxu0 %v8559
        %v8893 = vpop.f32.mrf.mxu0
        %v8894 = vadd.f32 %v8817, %v8893
        %v8895 = vpop.f32.mrf.mxu0
        %v8896 = vadd.f32 %v8819, %v8895
        %8897 = vmatprep.mubr.f32.mxu0 %v8576
        %8898 = vmatmul.mubr.f32.gmra.mxu0 %v8575
        %v8899 = vpop.f32.mrf.mxu0
        %v8900 = vadd.f32 %v8823, %v8899
        %v8901 = vpop.f32.mrf.mxu0
        %v8902 = vadd.f32 %v8825, %v8901
        %8903 = vdwg.mxu0
        %8904 = vmatprep.subr.mxu0 %v8327
        %8905 = vmatpush1.msra.mxu0 %v8326
        %8906 = vmatprep.subr.mxu0 %v8325
        %8907 = vmatpush1.msra.mxu0 %v8324
        %8908 = vmatprep.subr.mxu0 %v8323
        %8909 = vmatpush1.msra.mxu0 %v8322
        %8910 = vmatprep.subr.mxu0 %v8321
        %8911 = vmatpush1.msra.mxu0 %v8320
        %8912 = vmatprep.subr.mxu0 %v8319
        %8913 = vmatpush1.msra.mxu0 %v8318
        %8914 = vmatprep.subr.mxu0 %v8317
        %8915 = vmatpush1.msra.mxu0 %v8316
        %8916 = vmatprep.subr.mxu0 %v8315
        %8917 = vmatpush1.msra.mxu0 %v8314
        %8918 = vmatprep.subr.mxu0 %v8313
        %8919 = vmatpush1.msra.mxu0 %v8312
        %8920 = vmatprep.subr.mxu0 %v8311
        %8921 = vmatpush1.msra.mxu0 %v8310
        %8922 = vmatprep.subr.mxu0 %v8309
        %8923 = vmatpush1.msra.mxu0 %v8308
        %8924 = vmatprep.subr.mxu0 %v8307
        %8925 = vmatpush1.msra.mxu0 %v8306
        %8926 = vmatprep.subr.mxu0 %v8305
        %8927 = vmatpush1.msra.mxu0 %v8304
        %8928 = vmatprep.subr.mxu0 %v8303
        %8929 = vmatpush1.msra.mxu0 %v8302
        %8930 = vmatprep.subr.mxu0 %v8301
        %8931 = vmatpush1.msra.mxu0 %v8300
        %8932 = vmatprep.subr.mxu0 %v8299
        %8933 = vmatpush1.msra.mxu0 %v8298
        %8934 = vmatprep.subr.mxu0 %v8297
        %8935 = vmatpush1.msra.mxu0 %v8296
        %8936 = vmatprep.subr.mxu0 %v8359
        %8937 = vmatpush2.msra.mxu0 %v8358
        %8938 = vmatprep.subr.mxu0 %v8357
        %8939 = vmatpush2.msra.mxu0 %v8356
        %8940 = vmatprep.subr.mxu0 %v8355
        %8941 = vmatpush2.msra.mxu0 %v8354
        %8942 = vmatprep.subr.mxu0 %v8353
        %8943 = vmatpush2.msra.mxu0 %v8352
        %8944 = vmatprep.subr.mxu0 %v8351
        %8945 = vmatpush2.msra.mxu0 %v8350
        %8946 = vmatprep.subr.mxu0 %v8349
        %8947 = vmatpush2.msra.mxu0 %v8348
        %8948 = vmatprep.subr.mxu0 %v8347
        %8949 = vmatpush2.msra.mxu0 %v8346
        %8950 = vmatprep.subr.mxu0 %v8345
        %8951 = vmatpush2.msra.mxu0 %v8344
        %8952 = vmatprep.subr.mxu0 %v8343
        %8953 = vmatpush2.msra.mxu0 %v8342
        %8954 = vmatprep.subr.mxu0 %v8341
        %8955 = vmatpush2.msra.mxu0 %v8340
        %8956 = vmatprep.subr.mxu0 %v8339
        %8957 = vmatpush2.msra.mxu0 %v8338
        %8958 = vmatprep.subr.mxu0 %v8337
        %8959 = vmatpush2.msra.mxu0 %v8336
        %8960 = vmatprep.subr.mxu0 %v8335
        %8961 = vmatpush2.msra.mxu0 %v8334
        %8962 = vmatprep.subr.mxu0 %v8333
        %8963 = vmatpush2.msra.mxu0 %v8332
        %8964 = vmatprep.subr.mxu0 %v8331
        %8965 = vmatpush2.msra.mxu0 %v8330
        %8966 = vmatprep.subr.mxu0 %v8329
        %8967 = vmatpush2.msra.mxu0 %v8328
        %8968 = vmatprep.mubr.f32.mxu0 %v8562
        %8969 = vmatmul.mubr.f32.gmra.mxu0 %v8561
        %v8970 = vpop.f32.mrf.mxu0
        %v8971 = vadd.f32 %v8894, %v8970
        %v8972 = vpop.f32.mrf.mxu0
        %v8973 = vadd.f32 %v8896, %v8972
        %8974 = vmatprep.mubr.f32.mxu0 %v8578
        %8975 = vmatmul.mubr.f32.gmra.mxu0 %v8577
        %v8976 = vpop.f32.mrf.mxu0
        %v8977 = vadd.f32 %v8900, %v8976
        %v8978 = vpop.f32.mrf.mxu0
        %v8979 = vadd.f32 %v8902, %v8978
        %8980 = vdwg.mxu0
        %8981 = vmatprep.subr.mxu0 %v8391
        %8982 = vmatpush1.msra.mxu0 %v8390
        %8983 = vmatprep.subr.mxu0 %v8389
        %8984 = vmatpush1.msra.mxu0 %v8388
        %8985 = vmatprep.subr.mxu0 %v8387
        %8986 = vmatpush1.msra.mxu0 %v8386
        %8987 = vmatprep.subr.mxu0 %v8385
        %8988 = vmatpush1.msra.mxu0 %v8384
        %8989 = vmatprep.subr.mxu0 %v8383
        %8990 = vmatpush1.msra.mxu0 %v8382
        %8991 = vmatprep.subr.mxu0 %v8381
        %8992 = vmatpush1.msra.mxu0 %v8380
        %8993 = vmatprep.subr.mxu0 %v8379
        %8994 = vmatpush1.msra.mxu0 %v8378
        %8995 = vmatprep.subr.mxu0 %v8377
        %8996 = vmatpush1.msra.mxu0 %v8376
        %8997 = vmatprep.subr.mxu0 %v8375
        %8998 = vmatpush1.msra.mxu0 %v8374
        %8999 = vmatprep.subr.mxu0 %v8373
        %9000 = vmatpush1.msra.mxu0 %v8372
        %9001 = vmatprep.subr.mxu0 %v8371
        %9002 = vmatpush1.msra.mxu0 %v8370
        %9003 = vmatprep.subr.mxu0 %v8369
        %9004 = vmatpush1.msra.mxu0 %v8368
        %9005 = vmatprep.subr.mxu0 %v8367
        %9006 = vmatpush1.msra.mxu0 %v8366
        %9007 = vmatprep.subr.mxu0 %v8365
        %9008 = vmatpush1.msra.mxu0 %v8364
        %9009 = vmatprep.subr.mxu0 %v8363
        %9010 = vmatpush1.msra.mxu0 %v8362
        %9011 = vmatprep.subr.mxu0 %v8361
        %9012 = vmatpush1.msra.mxu0 %v8360
        %9013 = vmatprep.subr.mxu0 %v8423
        %9014 = vmatpush2.msra.mxu0 %v8422
        %9015 = vmatprep.subr.mxu0 %v8421
        %9016 = vmatpush2.msra.mxu0 %v8420
        %9017 = vmatprep.subr.mxu0 %v8419
        %9018 = vmatpush2.msra.mxu0 %v8418
        %9019 = vmatprep.subr.mxu0 %v8417
        %9020 = vmatpush2.msra.mxu0 %v8416
        %9021 = vmatprep.subr.mxu0 %v8415
        %9022 = vmatpush2.msra.mxu0 %v8414
        %9023 = vmatprep.subr.mxu0 %v8413
        %9024 = vmatpush2.msra.mxu0 %v8412
        %9025 = vmatprep.subr.mxu0 %v8411
        %9026 = vmatpush2.msra.mxu0 %v8410
        %9027 = vmatprep.subr.mxu0 %v8409
        %9028 = vmatpush2.msra.mxu0 %v8408
        %9029 = vmatprep.subr.mxu0 %v8407
        %9030 = vmatpush2.msra.mxu0 %v8406
        %9031 = vmatprep.subr.mxu0 %v8405
        %9032 = vmatpush2.msra.mxu0 %v8404
        %9033 = vmatprep.subr.mxu0 %v8403
        %9034 = vmatpush2.msra.mxu0 %v8402
        %9035 = vmatprep.subr.mxu0 %v8401
        %9036 = vmatpush2.msra.mxu0 %v8400
        %9037 = vmatprep.subr.mxu0 %v8399
        %9038 = vmatpush2.msra.mxu0 %v8398
        %9039 = vmatprep.subr.mxu0 %v8397
        %9040 = vmatpush2.msra.mxu0 %v8396
        %9041 = vmatprep.subr.mxu0 %v8395
        %9042 = vmatpush2.msra.mxu0 %v8394
        %9043 = vmatprep.subr.mxu0 %v8393
        %9044 = vmatpush2.msra.mxu0 %v8392
        %9045 = vmatprep.mubr.f32.mxu0 %v8564
        %9046 = vmatmul.mubr.f32.gmra.mxu0 %v8563
        %v9047 = vpop.f32.mrf.mxu0
        %v9048 = vadd.f32 %v8971, %v9047
        %v9049 = vpop.f32.mrf.mxu0
        %v9050 = vadd.f32 %v8973, %v9049
        %9051 = vmatprep.mubr.f32.mxu0 %v8580
        %9052 = vmatmul.mubr.f32.gmra.mxu0 %v8579
        %v9053 = vpop.f32.mrf.mxu0
        %v9054 = vadd.f32 %v8977, %v9053
        %v9055 = vpop.f32.mrf.mxu0
        %v9056 = vadd.f32 %v8979, %v9055
        %9057 = vdwg.mxu0
        %9058 = vmatprep.subr.mxu0 %v8455
        %9059 = vmatpush1.msra.mxu0 %v8454
        %9060 = vmatprep.subr.mxu0 %v8453
        %9061 = vmatpush1.msra.mxu0 %v8452
        %9062 = vmatprep.subr.mxu0 %v8451
        %9063 = vmatpush1.msra.mxu0 %v8450
        %9064 = vmatprep.subr.mxu0 %v8449
        %9065 = vmatpush1.msra.mxu0 %v8448
        %9066 = vmatprep.subr.mxu0 %v8447
        %9067 = vmatpush1.msra.mxu0 %v8446
        %9068 = vmatprep.subr.mxu0 %v8445
        %9069 = vmatpush1.msra.mxu0 %v8444
        %9070 = vmatprep.subr.mxu0 %v8443
        %9071 = vmatpush1.msra.mxu0 %v8442
        %9072 = vmatprep.subr.mxu0 %v8441
        %9073 = vmatpush1.msra.mxu0 %v8440
        %9074 = vmatprep.subr.mxu0 %v8439
        %9075 = vmatpush1.msra.mxu0 %v8438
        %9076 = vmatprep.subr.mxu0 %v8437
        %9077 = vmatpush1.msra.mxu0 %v8436
        %9078 = vmatprep.subr.mxu0 %v8435
        %9079 = vmatpush1.msra.mxu0 %v8434
        %9080 = vmatprep.subr.mxu0 %v8433
        %9081 = vmatpush1.msra.mxu0 %v8432
        %9082 = vmatprep.subr.mxu0 %v8431
        %9083 = vmatpush1.msra.mxu0 %v8430
        %9084 = vmatprep.subr.mxu0 %v8429
        %9085 = vmatpush1.msra.mxu0 %v8428
        %9086 = vmatprep.subr.mxu0 %v8427
        %9087 = vmatpush1.msra.mxu0 %v8426
        %9088 = vmatprep.subr.mxu0 %v8425
        %9089 = vmatpush1.msra.mxu0 %v8424
        %9090 = vmatprep.subr.mxu0 %v8487
        %9091 = vmatpush2.msra.mxu0 %v8486
        %9092 = vmatprep.subr.mxu0 %v8485
        %9093 = vmatpush2.msra.mxu0 %v8484
        %9094 = vmatprep.subr.mxu0 %v8483
        %9095 = vmatpush2.msra.mxu0 %v8482
        %9096 = vmatprep.subr.mxu0 %v8481
        %9097 = vmatpush2.msra.mxu0 %v8480
        %9098 = vmatprep.subr.mxu0 %v8479
        %9099 = vmatpush2.msra.mxu0 %v8478
        %9100 = vmatprep.subr.mxu0 %v8477
        %9101 = vmatpush2.msra.mxu0 %v8476
        %9102 = vmatprep.subr.mxu0 %v8475
        %9103 = vmatpush2.msra.mxu0 %v8474
        %9104 = vmatprep.subr.mxu0 %v8473
        %9105 = vmatpush2.msra.mxu0 %v8472
        %9106 = vmatprep.subr.mxu0 %v8471
        %9107 = vmatpush2.msra.mxu0 %v8470
        %9108 = vmatprep.subr.mxu0 %v8469
        %9109 = vmatpush2.msra.mxu0 %v8468
        %9110 = vmatprep.subr.mxu0 %v8467
        %9111 = vmatpush2.msra.mxu0 %v8466
        %9112 = vmatprep.subr.mxu0 %v8465
        %9113 = vmatpush2.msra.mxu0 %v8464
        %9114 = vmatprep.subr.mxu0 %v8463
        %9115 = vmatpush2.msra.mxu0 %v8462
        %9116 = vmatprep.subr.mxu0 %v8461
        %9117 = vmatpush2.msra.mxu0 %v8460
        %9118 = vmatprep.subr.mxu0 %v8459
        %9119 = vmatpush2.msra.mxu0 %v8458
        %9120 = vmatprep.subr.mxu0 %v8457
        %9121 = vmatpush2.msra.mxu0 %v8456
        %9122 = vmatprep.mubr.f32.mxu0 %v8566
        %9123 = vmatmul.mubr.f32.gmra.mxu0 %v8565
        %v9124 = vpop.f32.mrf.mxu0
        %v9125 = vadd.f32 %v9048, %v9124
        %v9126 = vpop.f32.mrf.mxu0
        %v9127 = vadd.f32 %v9050, %v9126
        %9128 = vmatprep.mubr.f32.mxu0 %v8582
        %9129 = vmatmul.mubr.f32.gmra.mxu0 %v8581
        %v9130 = vpop.f32.mrf.mxu0
        %v9131 = vadd.f32 %v9054, %v9130
        %v9132 = vpop.f32.mrf.mxu0
        %v9133 = vadd.f32 %v9056, %v9132
        %9134 = vdwg.mxu0
        %9135 = vmatprep.subr.mxu0 %v8519
        %9136 = vmatpush1.msra.mxu0 %v8518
        %9137 = vmatprep.subr.mxu0 %v8517
        %9138 = vmatpush1.msra.mxu0 %v8516
        %9139 = vmatprep.subr.mxu0 %v8515
        %9140 = vmatpush1.msra.mxu0 %v8514
        %9141 = vmatprep.subr.mxu0 %v8513
        %9142 = vmatpush1.msra.mxu0 %v8512
        %9143 = vmatprep.subr.mxu0 %v8511
        %9144 = vmatpush1.msra.mxu0 %v8510
        %9145 = vmatprep.subr.mxu0 %v8509
        %9146 = vmatpush1.msra.mxu0 %v8508
        %9147 = vmatprep.subr.mxu0 %v8507
        %9148 = vmatpush1.msra.mxu0 %v8506
        %9149 = vmatprep.subr.mxu0 %v8505
        %9150 = vmatpush1.msra.mxu0 %v8504
        %9151 = vmatprep.subr.mxu0 %v8503
        %9152 = vmatpush1.msra.mxu0 %v8502
        %9153 = vmatprep.subr.mxu0 %v8501
        %9154 = vmatpush1.msra.mxu0 %v8500
        %9155 = vmatprep.subr.mxu0 %v8499
        %9156 = vmatpush1.msra.mxu0 %v8498
        %9157 = vmatprep.subr.mxu0 %v8497
        %9158 = vmatpush1.msra.mxu0 %v8496
        %9159 = vmatprep.subr.mxu0 %v8495
        %9160 = vmatpush1.msra.mxu0 %v8494
        %9161 = vmatprep.subr.mxu0 %v8493
        %9162 = vmatpush1.msra.mxu0 %v8492
        %9163 = vmatprep.subr.mxu0 %v8491
        %9164 = vmatpush1.msra.mxu0 %v8490
        %9165 = vmatprep.subr.mxu0 %v8489
        %9166 = vmatpush1.msra.mxu0 %v8488
        %9167 = vmatprep.subr.mxu0 %v8551
        %9168 = vmatpush2.msra.mxu0 %v8550
        %9169 = vmatprep.subr.mxu0 %v8549
        %9170 = vmatpush2.msra.mxu0 %v8548
        %9171 = vmatprep.subr.mxu0 %v8547
        %9172 = vmatpush2.msra.mxu0 %v8546
        %9173 = vmatprep.subr.mxu0 %v8545
        %9174 = vmatpush2.msra.mxu0 %v8544
        %9175 = vmatprep.subr.mxu0 %v8543
        %9176 = vmatpush2.msra.mxu0 %v8542
        %9177 = vmatprep.subr.mxu0 %v8541
        %9178 = vmatpush2.msra.mxu0 %v8540
        %9179 = vmatprep.subr.mxu0 %v8539
        %9180 = vmatpush2.msra.mxu0 %v8538
        %9181 = vmatprep.subr.mxu0 %v8537
        %9182 = vmatpush2.msra.mxu0 %v8536
        %9183 = vmatprep.subr.mxu0 %v8535
        %9184 = vmatpush2.msra.mxu0 %v8534
        %9185 = vmatprep.subr.mxu0 %v8533
        %9186 = vmatpush2.msra.mxu0 %v8532
        %9187 = vmatprep.subr.mxu0 %v8531
        %9188 = vmatpush2.msra.mxu0 %v8530
        %9189 = vmatprep.subr.mxu0 %v8529
        %9190 = vmatpush2.msra.mxu0 %v8528
        %9191 = vmatprep.subr.mxu0 %v8527
        %9192 = vmatpush2.msra.mxu0 %v8526
        %9193 = vmatprep.subr.mxu0 %v8525
        %9194 = vmatpush2.msra.mxu0 %v8524
        %9195 = vmatprep.subr.mxu0 %v8523
        %9196 = vmatpush2.msra.mxu0 %v8522
        %9197 = vmatprep.subr.mxu0 %v8521
        %9198 = vmatpush2.msra.mxu0 %v8520
        %9199 = vmatprep.mubr.f32.mxu0 %v8568
        %9200 = vmatmul.mubr.f32.gmra.mxu0 %v8567
        %v9201 = vpop.f32.mrf.mxu0
        %v9202 = vadd.f32 %v9125, %v9201
        %v9203 = vpop.f32.mrf.mxu0
        %v9204 = vadd.f32 %v9127, %v9203
        %9205 = vmatprep.mubr.f32.mxu0 %v8584
        %9206 = vmatmul.mubr.f32.gmra.mxu0 %v8583
        %v9207 = vpop.f32.mrf.mxu0
        %v9208 = vadd.f32 %v9131, %v9207
        %v9209 = vpop.f32.mrf.mxu0
        %v9210 = vadd.f32 %v9133, %v9209
        %9211 = vdwg.mxu0
        %9212 = vmatprep.subr.mxu0 0.0
        %9213 = vmatpush1.xpose.msra.mxu0 0.0
        %9214 = vmatprep.subr.mxu0 0.0
        %9215 = vmatpush1.xpose.msra.mxu0 0.0
        %9216 = vmatprep.subr.mxu0 0.0
        %9217 = vmatpush1.xpose.msra.mxu0 0.0
        %9218 = vmatprep.subr.mxu0 0.0
        %9219 = vmatpush1.xpose.msra.mxu0 0.0
        %9220 = vmatprep.subr.mxu0 0.0
        %9221 = vmatpush1.xpose.msra.mxu0 0.0
        %9222 = vmatprep.subr.mxu0 0.0
        %9223 = vmatpush1.xpose.msra.mxu0 0.0
        %9224 = vmatprep.subr.mxu0 0.0
        %9225 = vmatpush1.xpose.msra.mxu0 0.0
        %9226 = vmatprep.subr.mxu0 0.0
        %9227 = vmatpush1.xpose.msra.mxu0 0.0
        %9228 = vmatprep.subr.mxu0 0.0
        %9229 = vmatpush1.xpose.msra.mxu0 0.0
        %9230 = vmatprep.subr.mxu0 0.0
        %9231 = vmatpush1.xpose.msra.mxu0 0.0
        %9232 = vmatprep.subr.mxu0 0.0
        %9233 = vmatpush1.xpose.msra.mxu0 0.0
        %9234 = vmatprep.subr.mxu0 0.0
        %9235 = vmatpush1.xpose.msra.mxu0 0.0
        %9236 = vmatprep.subr.mxu0 0.0
        %9237 = vmatpush1.xpose.msra.mxu0 0.0
        %9238 = vmatprep.subr.mxu0 0.0
        %9239 = vmatpush1.xpose.msra.mxu0 0.0
        %9240 = vmatprep.subr.mxu0 0.0
        %9241 = vmatpush1.xpose.msra.mxu0 0.0
        %9242 = vmatprep.subr.mxu0 %v7776
        %9243 = vmatpush1.xpose.msra.mxu0 %v7774
        %9244 = vmatprep.subr.mxu0 0.0
        %9245 = vmatpush2.xpose.msra.mxu0 0.0
        %9246 = vmatprep.subr.mxu0 0.0
        %9247 = vmatpush2.xpose.msra.mxu0 0.0
        %9248 = vmatprep.subr.mxu0 0.0
        %9249 = vmatpush2.xpose.msra.mxu0 0.0
        %9250 = vmatprep.subr.mxu0 0.0
        %9251 = vmatpush2.xpose.msra.mxu0 0.0
        %9252 = vmatprep.subr.mxu0 0.0
        %9253 = vmatpush2.xpose.msra.mxu0 0.0
        %9254 = vmatprep.subr.mxu0 0.0
        %9255 = vmatpush2.xpose.msra.mxu0 0.0
        %9256 = vmatprep.subr.mxu0 0.0
        %9257 = vmatpush2.xpose.msra.mxu0 0.0
        %9258 = vmatprep.subr.mxu0 0.0
        %9259 = vmatpush2.xpose.msra.mxu0 0.0
        %9260 = vmatprep.subr.mxu0 0.0
        %9261 = vmatpush2.xpose.msra.mxu0 0.0
        %9262 = vmatprep.subr.mxu0 0.0
        %9263 = vmatpush2.xpose.msra.mxu0 0.0
        %9264 = vmatprep.subr.mxu0 0.0
        %9265 = vmatpush2.xpose.msra.mxu0 0.0
        %9266 = vmatprep.subr.mxu0 0.0
        %9267 = vmatpush2.xpose.msra.mxu0 0.0
        %9268 = vmatprep.subr.mxu0 0.0
        %9269 = vmatpush2.xpose.msra.mxu0 0.0
        %9270 = vmatprep.subr.mxu0 0.0
        %9271 = vmatpush2.xpose.msra.mxu0 0.0
        %9272 = vmatprep.subr.mxu0 0.0
        %9273 = vmatpush2.xpose.msra.mxu0 0.0
        %9274 = vmatprep.subr.mxu0 0.0
        %9275 = vmatpush2.xpose.msra.mxu0 0.0
        %9276 = vmatprep.mubr.f32.mxu0 %v6348
        %9277 = vmatmul.mubr.f32.gmra.mxu0 %v6346
        %v9278 = vpop.f32.mrf.mxu0
        %v9279 = vadd.f32 0.0, %v9278
        %v9280 = vpop.f32.mrf.mxu0
        %9281 = vdwg.mxu0
        %9282 = vmatprep.subr.mxu0 0.0
        %9283 = vmatpush1.xpose.msra.mxu0 0.0
        %9284 = vmatprep.subr.mxu0 0.0
        %9285 = vmatpush1.xpose.msra.mxu0 0.0
        %9286 = vmatprep.subr.mxu0 0.0
        %9287 = vmatpush1.xpose.msra.mxu0 0.0
        %9288 = vmatprep.subr.mxu0 0.0
        %9289 = vmatpush1.xpose.msra.mxu0 0.0
        %9290 = vmatprep.subr.mxu0 0.0
        %9291 = vmatpush1.xpose.msra.mxu0 0.0
        %9292 = vmatprep.subr.mxu0 0.0
        %9293 = vmatpush1.xpose.msra.mxu0 0.0
        %9294 = vmatprep.subr.mxu0 0.0
        %9295 = vmatpush1.xpose.msra.mxu0 0.0
        %9296 = vmatprep.subr.mxu0 0.0
        %9297 = vmatpush1.xpose.msra.mxu0 0.0
        %9298 = vmatprep.subr.mxu0 0.0
        %9299 = vmatpush1.xpose.msra.mxu0 0.0
        %9300 = vmatprep.subr.mxu0 0.0
        %9301 = vmatpush1.xpose.msra.mxu0 0.0
        %9302 = vmatprep.subr.mxu0 0.0
        %9303 = vmatpush1.xpose.msra.mxu0 0.0
        %9304 = vmatprep.subr.mxu0 0.0
        %9305 = vmatpush1.xpose.msra.mxu0 0.0
        %9306 = vmatprep.subr.mxu0 0.0
        %9307 = vmatpush1.xpose.msra.mxu0 0.0
        %9308 = vmatprep.subr.mxu0 0.0
        %9309 = vmatpush1.xpose.msra.mxu0 0.0
        %9310 = vmatprep.subr.mxu0 0.0
        %9311 = vmatpush1.xpose.msra.mxu0 0.0
        %9312 = vmatprep.subr.mxu0 %v7782
        %9313 = vmatpush1.xpose.msra.mxu0 %v7780
        %9314 = vmatprep.subr.mxu0 0.0
        %9315 = vmatpush2.xpose.msra.mxu0 0.0
        %9316 = vmatprep.subr.mxu0 0.0
        %9317 = vmatpush2.xpose.msra.mxu0 0.0
        %9318 = vmatprep.subr.mxu0 0.0
        %9319 = vmatpush2.xpose.msra.mxu0 0.0
        %9320 = vmatprep.subr.mxu0 0.0
        %9321 = vmatpush2.xpose.msra.mxu0 0.0
        %9322 = vmatprep.subr.mxu0 0.0
        %9323 = vmatpush2.xpose.msra.mxu0 0.0
        %9324 = vmatprep.subr.mxu0 0.0
        %9325 = vmatpush2.xpose.msra.mxu0 0.0
        %9326 = vmatprep.subr.mxu0 0.0
        %9327 = vmatpush2.xpose.msra.mxu0 0.0
        %9328 = vmatprep.subr.mxu0 0.0
        %9329 = vmatpush2.xpose.msra.mxu0 0.0
        %9330 = vmatprep.subr.mxu0 0.0
        %9331 = vmatpush2.xpose.msra.mxu0 0.0
        %9332 = vmatprep.subr.mxu0 0.0
        %9333 = vmatpush2.xpose.msra.mxu0 0.0
        %9334 = vmatprep.subr.mxu0 0.0
        %9335 = vmatpush2.xpose.msra.mxu0 0.0
        %9336 = vmatprep.subr.mxu0 0.0
        %9337 = vmatpush2.xpose.msra.mxu0 0.0
        %9338 = vmatprep.subr.mxu0 0.0
        %9339 = vmatpush2.xpose.msra.mxu0 0.0
        %9340 = vmatprep.subr.mxu0 0.0
        %9341 = vmatpush2.xpose.msra.mxu0 0.0
        %9342 = vmatprep.subr.mxu0 0.0
        %9343 = vmatpush2.xpose.msra.mxu0 0.0
        %9344 = vmatprep.subr.mxu0 0.0
        %9345 = vmatpush2.xpose.msra.mxu0 0.0
        %9346 = vmatprep.mubr.f32.mxu0 %v6354
        %9347 = vmatmul.mubr.f32.gmra.mxu0 %v6352
        %v9348 = vpop.f32.mrf.mxu0
        %v9349 = vadd.f32 0.0, %v9348
        %v9350 = vpop.f32.mrf.mxu0
        %9351 = vdwg.mxu0
        %v9352 = vmul.f32 %v9279, 0.0625
        %v9353 = vmul.f32 %v9349, 0.0625
        %v9354 = vsel %vm4751, %v9352, -inf
        %9355 = vmax.xlane.f32.xlu0 %v9354
        %v9356 = vpop.xlane.xlu0 %9355
        %v9357 = vsel %vm4751, %v9353, -inf
        %9358 = vmax.xlane.f32.xlu0 %v9357
        %v9359 = vpop.xlane.xlu0 %9358
        %v9360 = vsub.f32 %v9352, %v9356
        %v9361 = vsub.f32 %v9353, %v9359
        %v9362 = vmul.f32 %v9360, 1.442695
        %v9363 = vpow.pop %v9362
        %v9364 = vmul.f32 %v9361, 1.442695
        %v9365 = vpow.pop %v9364
        %v9366 = vsel %vm4751, %v9363, 0.0
        %9367 = vadd.xlane.f32.xlu0 %v9366
        %v9368 = vpop.xlane.xlu0 %9367
        %v9369 = vsel %vm4751, %v9365, 0.0
        %9370 = vadd.xlane.f32.xlu0 %v9369
        %v9371 = vpop.xlane.xlu0 %9370
        %v9372 = vrcp.pop %v9368
        %v9373 = vmul.f32 %v9363, %v9372
        %v9374 = vrcp.pop %v9371
        %v9375 = vmul.f32 %v9365, %v9374
        %v9377 = vsel %vm4751, %v9373, 0
        %9379 = vmatprep.subr.mxu0 0.0
        %9380 = vmatpush1.msra.mxu0 0.0
        %9381 = vmatprep.subr.mxu0 0.0
        %9382 = vmatpush1.msra.mxu0 0.0
        %9383 = vmatprep.subr.mxu0 0.0
        %9384 = vmatpush1.msra.mxu0 0.0
        %9385 = vmatprep.subr.mxu0 0.0
        %9386 = vmatpush1.msra.mxu0 0.0
        %9387 = vmatprep.subr.mxu0 0.0
        %9388 = vmatpush1.msra.mxu0 0.0
        %9389 = vmatprep.subr.mxu0 0.0
        %9390 = vmatpush1.msra.mxu0 0.0
        %9391 = vmatprep.subr.mxu0 0.0
        %9392 = vmatpush1.msra.mxu0 0.0
        %9393 = vmatprep.subr.mxu0 0.0
        %9394 = vmatpush1.msra.mxu0 0.0
        %9395 = vmatprep.subr.mxu0 0.0
        %9396 = vmatpush1.msra.mxu0 0.0
        %9397 = vmatprep.subr.mxu0 0.0
        %9398 = vmatpush1.msra.mxu0 0.0
        %9399 = vmatprep.subr.mxu0 0.0
        %9400 = vmatpush1.msra.mxu0 0.0
        %9401 = vmatprep.subr.mxu0 0.0
        %9402 = vmatpush1.msra.mxu0 0.0
        %9403 = vmatprep.subr.mxu0 0.0
        %9404 = vmatpush1.msra.mxu0 0.0
        %9405 = vmatprep.subr.mxu0 0.0
        %9406 = vmatpush1.msra.mxu0 0.0
        %9407 = vmatprep.subr.mxu0 0.0
        %9408 = vmatpush1.msra.mxu0 0.0
        %9409 = vmatprep.subr.mxu0 %v9204
        %9410 = vmatpush1.msra.mxu0 %v9202
        %9411 = vmatprep.subr.mxu0 0.0
        %9412 = vmatpush2.msra.mxu0 0.0
        %9413 = vmatprep.subr.mxu0 0.0
        %9414 = vmatpush2.msra.mxu0 0.0
        %9415 = vmatprep.subr.mxu0 0.0
        %9416 = vmatpush2.msra.mxu0 0.0
        %9417 = vmatprep.subr.mxu0 0.0
        %9418 = vmatpush2.msra.mxu0 0.0
        %9419 = vmatprep.subr.mxu0 0.0
        %9420 = vmatpush2.msra.mxu0 0.0
        %9421 = vmatprep.subr.mxu0 0.0
        %9422 = vmatpush2.msra.mxu0 0.0
        %9423 = vmatprep.subr.mxu0 0.0
        %9424 = vmatpush2.msra.mxu0 0.0
        %9425 = vmatprep.subr.mxu0 0.0
        %9426 = vmatpush2.msra.mxu0 0.0
        %9427 = vmatprep.subr.mxu0 0.0
        %9428 = vmatpush2.msra.mxu0 0.0
        %9429 = vmatprep.subr.mxu0 0.0
        %9430 = vmatpush2.msra.mxu0 0.0
        %9431 = vmatprep.subr.mxu0 0.0
        %9432 = vmatpush2.msra.mxu0 0.0
        %9433 = vmatprep.subr.mxu0 0.0
        %9434 = vmatpush2.msra.mxu0 0.0
        %9435 = vmatprep.subr.mxu0 0.0
        %9436 = vmatpush2.msra.mxu0 0.0
        %9437 = vmatprep.subr.mxu0 0.0
        %9438 = vmatpush2.msra.mxu0 0.0
        %9439 = vmatprep.subr.mxu0 0.0
        %9440 = vmatpush2.msra.mxu0 0.0
        %9441 = vmatprep.subr.mxu0 0.0
        %9442 = vmatpush2.msra.mxu0 0.0
        %9443 = vmatprep.mubr.f32.mxu0 0.0
        %9444 = vmatmul.mubr.f32.gmra.mxu0 %v9377
        %v9445 = vpop.f32.mrf.mxu0
        %v9446 = vadd.f32 0.0, %v9445
        %v9447 = vpop.f32.mrf.mxu0
        %v9448 = vadd.f32 0.0, %v9447
        %9449 = vdwg.mxu0
        %v9451 = vsel %vm4751, %v9375, 0
        %9453 = vmatprep.subr.mxu0 0.0
        %9454 = vmatpush1.msra.mxu0 0.0
        %9455 = vmatprep.subr.mxu0 0.0
        %9456 = vmatpush1.msra.mxu0 0.0
        %9457 = vmatprep.subr.mxu0 0.0
        %9458 = vmatpush1.msra.mxu0 0.0
        %9459 = vmatprep.subr.mxu0 0.0
        %9460 = vmatpush1.msra.mxu0 0.0
        %9461 = vmatprep.subr.mxu0 0.0
        %9462 = vmatpush1.msra.mxu0 0.0
        %9463 = vmatprep.subr.mxu0 0.0
        %9464 = vmatpush1.msra.mxu0 0.0
        %9465 = vmatprep.subr.mxu0 0.0
        %9466 = vmatpush1.msra.mxu0 0.0
        %9467 = vmatprep.subr.mxu0 0.0
        %9468 = vmatpush1.msra.mxu0 0.0
        %9469 = vmatprep.subr.mxu0 0.0
        %9470 = vmatpush1.msra.mxu0 0.0
        %9471 = vmatprep.subr.mxu0 0.0
        %9472 = vmatpush1.msra.mxu0 0.0
        %9473 = vmatprep.subr.mxu0 0.0
        %9474 = vmatpush1.msra.mxu0 0.0
        %9475 = vmatprep.subr.mxu0 0.0
        %9476 = vmatpush1.msra.mxu0 0.0
        %9477 = vmatprep.subr.mxu0 0.0
        %9478 = vmatpush1.msra.mxu0 0.0
        %9479 = vmatprep.subr.mxu0 0.0
        %9480 = vmatpush1.msra.mxu0 0.0
        %9481 = vmatprep.subr.mxu0 0.0
        %9482 = vmatpush1.msra.mxu0 0.0
        %9483 = vmatprep.subr.mxu0 %v9210
        %9484 = vmatpush1.msra.mxu0 %v9208
        %9485 = vmatprep.subr.mxu0 0.0
        %9486 = vmatpush2.msra.mxu0 0.0
        %9487 = vmatprep.subr.mxu0 0.0
        %9488 = vmatpush2.msra.mxu0 0.0
        %9489 = vmatprep.subr.mxu0 0.0
        %9490 = vmatpush2.msra.mxu0 0.0
        %9491 = vmatprep.subr.mxu0 0.0
        %9492 = vmatpush2.msra.mxu0 0.0
        %9493 = vmatprep.subr.mxu0 0.0
        %9494 = vmatpush2.msra.mxu0 0.0
        %9495 = vmatprep.subr.mxu0 0.0
        %9496 = vmatpush2.msra.mxu0 0.0
        %9497 = vmatprep.subr.mxu0 0.0
        %9498 = vmatpush2.msra.mxu0 0.0
        %9499 = vmatprep.subr.mxu0 0.0
        %9500 = vmatpush2.msra.mxu0 0.0
        %9501 = vmatprep.subr.mxu0 0.0
        %9502 = vmatpush2.msra.mxu0 0.0
        %9503 = vmatprep.subr.mxu0 0.0
        %9504 = vmatpush2.msra.mxu0 0.0
        %9505 = vmatprep.subr.mxu0 0.0
        %9506 = vmatpush2.msra.mxu0 0.0
        %9507 = vmatprep.subr.mxu0 0.0
        %9508 = vmatpush2.msra.mxu0 0.0
        %9509 = vmatprep.subr.mxu0 0.0
        %9510 = vmatpush2.msra.mxu0 0.0
        %9511 = vmatprep.subr.mxu0 0.0
        %9512 = vmatpush2.msra.mxu0 0.0
        %9513 = vmatprep.subr.mxu0 0.0
        %9514 = vmatpush2.msra.mxu0 0.0
        %9515 = vmatprep.subr.mxu0 0.0
        %9516 = vmatpush2.msra.mxu0 0.0
        %9517 = vmatprep.mubr.f32.mxu0 0.0
        %9518 = vmatmul.mubr.f32.gmra.mxu0 %v9451
        %v9519 = vpop.f32.mrf.mxu0
        %v9520 = vadd.f32 0.0, %v9519
        %v9521 = vpop.f32.mrf.mxu0
        %v9522 = vadd.f32 0.0, %v9521
        %9523 = vdwg.mxu0
        %9524 = vst [vmem:[%s321 + $0x10] sm:$0xff] %v9446
        %9525 = vst [vmem:[%s321 + $0x18] sm:$0xff] %v9448
        %9526 = vst [vmem:[%s321 + $0x30] sm:$0xff] %v9520
        %9527 = vst [vmem:[%s321 + $0x38] sm:$0xff] %v9522
        %s9528 = sand.u32 %s144, 1
        %s9529 = sand.u32 %s144, 1
        %s9530 = smul.addr %s9529, 64
        %s9531 = scalar_lea.vmem [#allocation10], %s9530
        // Predicated region
        $region61: #{mhdpa_forward.1} parent=39 // pred_check
          %p9532 = pneg %p154
        $region62: #{mhdpa_forward.1} parent=39 // pred_check_branch
          %9534 = sbr.rel (%p9532) target = $region64
        $region63: #{mhdpa_forward.1} parent=39 // pred_region
          %s9535 = smul.u32 4, %s21
          %s9536 = smul.addr %s9535, 8
          %s9537 = scalar_lea.vmem %s5, %s9536
          // Predicated region
          $region65: #{mhdpa_forward.1} parent=63 // pred_check
            _
          $region66: #{mhdpa_forward.1} parent=63 // pred_check_branch
            %9539 = sbr.rel (0) target = $region68
          $region67: #{mhdpa_forward.1} parent=63 // pred_region
            // Predicated region
            $region69: #{mhdpa_forward.1} parent=67 // pred_check
              _
            $region70: #{mhdpa_forward.1} parent=67 // pred_check_branch
              %9541 = sbr.rel (0) target = $region72
            $region71: #{mhdpa_forward.1} parent=67 // pred_region
              loop: start=0, step=1, limit=1
              $region73: #{mhdpa_forward.1} parent=71 // loop_pre_header
                _
              $region74: #{mhdpa_forward.1} parent=71 // loop_header
                %s9543 = sphi 0, %s9547
                %p9544 = scmp.ge.s32.totalorder %s9543, 1
                %s9548 = sphi %s9531, %s9531
                %s9549 = sphi %s9537, %s9537
              $region75: #{mhdpa_forward.1} parent=71 // loop_header_branch
                %9546 = sbr.rel (%p9544) target = $region79
              $region76: #{mhdpa_forward.1} parent=71 // loop_body
                %v9550 = vld [vmem:[%s9548] sm:$0xff]
                %9551 = vst [vmem:[%s9549] sm:$0xff] %v9550
                %v9552 = vld [vmem:[%s9548 + $0x8] sm:$0xff]
                %9553 = vst [vmem:[%s9549 + $0x8] sm:$0xff] %v9552
                %v9554 = vld [vmem:[%s9548 + $0x10] sm:$0xff]
                %9555 = vst [vmem:[%s9549 + $0x10] sm:$0xff] %v9554
                %v9556 = vld [vmem:[%s9548 + $0x18] sm:$0xff]
                %9557 = vst [vmem:[%s9549 + $0x18] sm:$0xff] %v9556
                %v9558 = vld [vmem:[%s9548 + $0x20] sm:$0xff]
                %9559 = vst [vmem:[%s9549 + $0x80] sm:$0xff] %v9558
                %v9560 = vld [vmem:[%s9548 + $0x28] sm:$0xff]
                %9561 = vst [vmem:[%s9549 + $0x88] sm:$0xff] %v9560
                %v9562 = vld [vmem:[%s9548 + $0x30] sm:$0xff]
                %9563 = vst [vmem:[%s9549 + $0x90] sm:$0xff] %v9562
                %v9564 = vld [vmem:[%s9548 + $0x38] sm:$0xff]
                %9565 = vst [vmem:[%s9549 + $0x98] sm:$0xff] %v9564
              $region77: #{mhdpa_forward.1} parent=71 // loop_footer
                %s9547 = sadd.s32 1, %s9543
              $region78: #{mhdpa_forward.1} parent=71 // loop_footer_branch
                %9542 = sbr.rel target = $region74
              $region79: #{mhdpa_forward.1} parent=71 // loop_exit
                _
            $region72: #{mhdpa_forward.1} parent=67 // pred_fallthru
              _
            // Predicated region
            $region80: #{mhdpa_forward.1} parent=67 // pred_check
              _
            $region81: #{mhdpa_forward.1} parent=67 // pred_check_branch
              %9567 = sbr.rel target = $region83
            $region82: #{mhdpa_forward.1} parent=67 // pred_region
              _
            $region83: #{mhdpa_forward.1} parent=67 // pred_fallthru
              _
          $region68: #{mhdpa_forward.1} parent=63 // pred_fallthru
            _
          %9568 = vnop
        $region64: #{mhdpa_forward.1} parent=39 // pred_fallthru
          _
      $region40: #{mhdpa_forward.1} parent=5 // pred_fallthru
        _
      %p9569 = scmp.le.s32.totalorder 2, %s16
      // Predicated region
      $region84: #{mhdpa_forward.1} parent=5 // pred_check
        %p9570 = pneg %p9569
      $region85: #{mhdpa_forward.1} parent=5 // pred_check_branch
        %9572 = sbr.rel (%p9570) target = $region87
      $region86: #{mhdpa_forward.1} parent=5 // pred_region
        %s9573 = ssub.s32 %s16, 2
        // Predicated region
        $region88: #{mhdpa_forward.1} parent=86 // pred_check
          %p9574 = pneg %p160
        $region89: #{mhdpa_forward.1} parent=86 // pred_check_branch
          %9576 = sbr.rel (%p9574) target = $region91
        $region90: #{mhdpa_forward.1} parent=86 // pred_region
          %s9577 = sand.u32 %s145, 1
          %s9578 = sand.u32 %s145, 1
          %s9579 = smul.addr %s9578, 64
          %s9580 = scalar_lea.vmem [#allocation10], %s9579
        $region91: #{mhdpa_forward.1} parent=86 // pred_fallthru
          _
      $region87: #{mhdpa_forward.1} parent=5 // pred_fallthru
        _
    $region6: #{mhdpa_forward.1} parent=1 // loop_footer
      %s20 = sadd.s32 1, %s16
    $region7: #{mhdpa_forward.1} parent=1 // loop_footer_branch
      %15 = sbr.rel target = $region3
    $region8: #{mhdpa_forward.1} parent=1 // loop_exit
      _
    %9581 = vsyncpa [#allocation3], 1
    %s9582 = scalar_lea.sflag [#allocation3], 1
    %9583 = vsyncpa %s9582, 1
    %9584 = vsyncpa [#allocation5], 1
    %9585 = vsyncpa [#allocation8], 1
    %s9586 = scalar_lea.sflag [#allocation8], 1
    %9587 = vsyncpa %s9586, 1

</llo_original>
